<compile_context>
chip_gen: v7x
topology: tpu7x:2x2x1
jax: 0.10.0
libtpu: 0.0.40
codegen_flags: <defaults>
</compile_context>

<pallas_src>
import numpy as np
import jax
import jax.numpy as jnp
from jax.experimental import pallas as pl
from jax.experimental.pallas import tpu as pltpu

VMEM_SPEC = pl.BlockSpec(memory_space=pltpu.MemorySpace.VMEM)
ANY_SPEC = pl.BlockSpec(memory_space=pl.ANY)


# ------------------------------ fused kernel ------------------------------- #

def _fused_net_kernel(p1_ref, w1_ref, b1_ref, s_hbm, w2_ref, b2_ref,
                      wf1_hbm, bf1_ref, wf2_ref, bf2_ref, out_ref,
                      pstk_ref, s_vmem, wf1_vmem, dma_sems):
    f32 = jnp.float32

    # Kick off the two large parameter DMAs so they overlap with the conv1 /
    # conv2-stage-1 compute below instead of serializing before the body.
    s_copy = pltpu.make_async_copy(s_hbm, s_vmem, dma_sems.at[0])
    wf1_copy = pltpu.make_async_copy(wf1_hbm, wf1_vmem, dma_sems.at[1])
    s_copy.start()
    wf1_copy.start()

    p1 = p1_ref[...]                                    # (B*64, 36), lanes = (q, tap)

    # conv1 fused with maxpool #1: one dot per pool offset q against a zero-padded
    # 36-row weight block; fold the 4-way max incrementally (live value stays small).
    y = jnp.dot(p1, w1_ref[0], preferred_element_type=f32)
    for q in range(1, 4):
        y = jnp.maximum(y, jnp.dot(p1, w1_ref[q], preferred_element_type=f32))
    x1 = jnp.maximum(y + b1_ref[...], 0.0)              # (B*64, 32), rows (b, h, w)

    # conv2 stage 1: per-tap channel transforms P_t = x1 @ w2[t], stacked along the
    # rows of a VMEM scratch so stage 2 is a single big-K matmul.
    n_in = x1.shape[0]
    for t in range(9):
        pstk_ref[t * n_in:(t + 1) * n_in, :] = jnp.dot(
            x1, w2_ref[t], preferred_element_type=f32)

    # conv2 stage 2: one gather matmul (row selection with pool-2-friendly output
    # ordering, all tap accumulation inside the MXU), then pool #2 + bias + ReLU.
    s_copy.wait()
    acc = jnp.dot(s_vmem[...], pstk_ref[...], preferred_element_type=f32)  # (512, 64)
    m = acc.shape[0] // 4
    x2 = jnp.maximum(jnp.maximum(acc[0 * m:1 * m], acc[1 * m:2 * m]),
                     jnp.maximum(acc[2 * m:3 * m], acc[3 * m:4 * m]))
    x2 = jnp.maximum(x2 + b2_ref[...], 0.0)             # (npos*blk, 64), rows (p, b)

    # fc1: rows(position) -> lanes relayout so the 16 per-position dots collapse into
    # a single K=1024 MXU matmul (accumulation stays inside the MXU).
    co2 = x2.shape[1]
    npos = wf1_vmem.shape[0] // co2                     # 16
    blk = x2.shape[0] // npos                           # 8 (sublane-aligned batch pad)
    halves = []
    for j in range(npos // 2):
        lo = x2[(2 * j) * blk:(2 * j + 1) * blk, :]
        hi = x2[(2 * j + 1) * blk:(2 * j + 2) * blk, :]
        halves.append(jnp.concatenate([lo, hi], axis=1))        # (blk, 128)
    x2f = jnp.concatenate(halves, axis=1)               # (blk, npos*co2) = (8, 1024)

    wf1_copy.wait()
    h1 = jnp.dot(x2f, wf1_vmem[...], preferred_element_type=f32)
    h1 = jnp.maximum(h1 + bf1_ref[...], 0.0)            # (8, 512)

    # fc2 + numerically stable log_softmax; keep the first `batch` rows.
    z = jnp.dot(h1, wf2_ref[...], preferred_element_type=f32) + bf2_ref[...]
    zmax = jnp.max(z, axis=-1, keepdims=True)
    lse = zmax + jnp.log(jnp.sum(jnp.exp(z - zmax), axis=-1, keepdims=True))
    out_ref[...] = (z - lse)[0:out_ref.shape[0], :].astype(out_ref.dtype)


# --------------------------- forward-pass wrapper --------------------------- #

def net_forward(x_nchw, kp):
    """Full forward pass; everything except a tiny one-shot patch prep of the raw
    input runs inside a single fused Pallas kernel."""
    B, _, H, W = x_nchw.shape
    hh, wh = H // 2, W // 2
    # 3x3/pad=1 patches of the raw input with the 4 pool offsets packed into LANES:
    # rows = (b, h, w) over the pooled grid, lane = (dh*2+dw)*9 + tap  -> dense DMA.
    x = x_nchw[:, 0, :, :]
    xp = jnp.pad(x, ((0, 0), (1, 1), (1, 1)))
    taps = [xp[:, kh:kh + H, kw:kw + W] for kh in range(3) for kw in range(3)]
    pat = jnp.stack(taps, axis=-1)                       # (B, H, W, 9)
    pat = pat.reshape(B, hh, 2, wh, 2, 9)
    pat = jnp.transpose(pat, (0, 1, 3, 2, 4, 5))         # (b, h, w, dh, dw, tap)
    p1 = pat.reshape(B * hh * wh, 36)

    n_out, kg = kp["s"].shape                            # (512, 9*B*64)
    co2 = kp["w2"].shape[2]
    ncls = kp["wf2"].shape[1]

    return pl.pallas_call(
        _fused_net_kernel,
        out_shape=jax.ShapeDtypeStruct((B, ncls), jnp.float32),
        in_specs=[VMEM_SPEC, VMEM_SPEC, VMEM_SPEC,
                  ANY_SPEC,                               # s: stays in HBM, manual DMA
                  VMEM_SPEC, VMEM_SPEC,
                  ANY_SPEC,                               # wf1: stays in HBM, manual DMA
                  VMEM_SPEC, VMEM_SPEC, VMEM_SPEC],
        out_specs=VMEM_SPEC,
        scratch_shapes=[
            pltpu.VMEM((kg, co2), jnp.float32),           # stacked per-tap transforms
            pltpu.VMEM((n_out, kg), jnp.float32),         # VMEM landing buf for s
            pltpu.VMEM(tuple(kp["wf1"].shape), jnp.float32),  # landing buf for wf1
            pltpu.SemaphoreType.DMA((2,)),
        ],
    )(p1, kp["w1"], kp["b1"], kp["s"], kp["w2"], kp["b2"],
      kp["wf1"], kp["bf1"], kp["wf2"], kp["bf2"])


# ----------------------- parameter construction / prep ---------------------- #

def init_torch_params(key, h, w):
    """PyTorch-layout parameters (OIHW conv weights, (out,in) fc weights)."""
    flat = 64 * (h // 4) * (w // 4)
    ks = jax.random.split(key, 8)
    return {
        "w1": 0.1 * jax.random.normal(ks[0], (32, 1, 3, 3), jnp.float32),
        "b1": 0.01 * jax.random.normal(ks[1], (32,), jnp.float32),
        "w2": 0.05 * jax.random.normal(ks[2], (64, 32, 3, 3), jnp.float32),
        "b2": 0.01 * jax.random.normal(ks[3], (64,), jnp.float32),
        "wf1": 0.02 * jax.random.normal(ks[4], (500, flat), jnp.float32),
        "bf1": 0.01 * jax.random.normal(ks[5], (500,), jnp.float32),
        "wf2": 0.05 * jax.random.normal(ks[6], (19, 500), jnp.float32),
        "bf2": 0.01 * jax.random.normal(ks[7], (19,), jnp.float32),
    }


def _build_conv2_gather(batch, hg, wg, blk):
    """Column-concatenated 0/1 selection matrix: im2col row-gather for conv2 with a
    pool-2-friendly, 8-row-aligned output ordering ((dh,dw), position, batch).
    Shape (4*npos*blk, 9*batch*hg*wg); consumed as ONE matmul in the kernel."""
    hp, wp = hg // 2, wg // 2
    npos = hp * wp
    n_in = batch * hg * wg
    n_out = 4 * npos * blk
    s = np.zeros((n_out, 9 * n_in), np.float32)
    for kh in range(3):
        for kw in range(3):
            t = kh * 3 + kw
            for b in range(batch):
                for oh in range(hg):
                    for ow in range(wg):
                        ih, iw = oh + kh - 1, ow + kw - 1
                        if 0 <= ih < hg and 0 <= iw < wg:
                            q = (oh % 2) * 2 + (ow % 2)
                            p = (oh // 2) * wp + (ow // 2)
                            out_row = (q * npos + p) * blk + b
                            in_col = t * n_in + (b * hg + ih) * wg + iw
                            s[out_row, in_col] = 1.0
    return jnp.asarray(s)


def prepare_kernel_params(tp, batch, h, w):
    """Map torch-layout params to the fused kernel's matmul-friendly layouts."""
    hg, wg = h // 2, w // 2                   # conv2 spatial grid (after pool1)
    hp, wp = hg // 2, wg // 2
    npos = hp * wp                            # final pooled positions (16)
    blk = ((batch + 7) // 8) * 8              # batch rows padded to a sublane tile
    co1 = tp["w1"].shape[0]
    co2, ci2 = tp["w2"].shape[0], tp["w2"].shape[1]
    nf1 = tp["wf1"].shape[0]                  # 500
    nf1p = ((nf1 + 127) // 128) * 128         # 512 (lane-dense fc1)
    ncls = tp["wf2"].shape[0]                 # 19

    # conv1: zero-padded per-pool-offset weight blocks (4, 36, 32); p1 lane = q*9 + tap.
    w1mat = np.asarray(jnp.transpose(tp["w1"], (2, 3, 1, 0)).reshape(9, co1))
    w1q = np.zeros((4, 36, co1), np.float32)
    for q in range(4):
        w1q[q, q * 9:(q + 1) * 9, :] = w1mat

    w2c = jnp.transpose(tp["w2"], (2, 3, 1, 0)).reshape(9, ci2, co2)     # (9,32,64)

    # Fold the torch NCHW .view() flatten (index = c*npos + p) into fc1 rows ordered
    # (p, c) to match the kernel's rows->lanes relayout; pad N 500 -> 512.
    wf1b = jnp.transpose(tp["wf1"].reshape(nf1, co2, npos), (2, 1, 0))   # (16,64,500)
    wf1b = wf1b.reshape(npos * co2, nf1)
    wf1b = jnp.pad(wf1b, ((0, 0), (0, nf1p - nf1)))                      # (1024,512)
    bf1p = jnp.pad(tp["bf1"], (0, nf1p - nf1)).reshape(1, nf1p)
    wf2p = jnp.pad(tp["wf2"].T, ((0, nf1p - nf1), (0, 0)))               # (512,19)

    return {
        "w1": jnp.asarray(w1q), "b1": tp["b1"].reshape(1, co1),
        "s": _build_conv2_gather(batch, hg, wg, blk),
        "w2": w2c, "b2": tp["b2"].reshape(1, co2),
        "wf1": wf1b, "bf1": bf1p,
        "wf2": wf2p, "bf2": tp["bf2"].reshape(1, ncls),
    }


# ------------------------- plain-JAX reference check ------------------------ #

def reference_forward(x_nchw, tp):
    """Straightforward mirror of the PyTorch module (torch-layout params)."""
    B = x_nchw.shape[0]
    x = jnp.transpose(x_nchw, (0, 2, 3, 1))              # NHWC

    def conv3x3(inp, w_oihw, b):
        Bq, Hq, Wq, Ci = inp.shape
        Co = w_oihw.shape[0]
        xp = jnp.pad(inp, ((0, 0), (1, 1), (1, 1), (0, 0)))
        cols = [xp[:, kh:kh + Hq, kw:kw + Wq, :]
                for kh in range(3) for kw in range(3)]
        pat = jnp.concatenate(cols, axis=-1).reshape(Bq * Hq * Wq, 9 * Ci)
        wmat = jnp.transpose(w_oihw, (2, 3, 1, 0)).reshape(9 * Ci, Co)
        return (pat @ wmat + b).reshape(Bq, Hq, Wq, Co)

    def pool2x2(inp):
        Bq, Hq, Wq, C = inp.shape
        return inp.reshape(Bq, Hq // 2, 2, Wq // 2, 2, C).max(axis=(2, 4))

    y = pool2x2(jnp.maximum(conv3x3(x, tp["w1"], tp["b1"]), 0.0))
    y = pool2x2(jnp.maximum(conv3x3(y, tp["w2"], tp["b2"]), 0.0))
    y = jnp.transpose(y, (0, 3, 1, 2)).reshape(B, -1)     # NCHW flatten (.view)
    y = jnp.maximum(y @ tp["wf1"].T + tp["bf1"], 0.0)
    y = y @ tp["wf2"].T + tp["bf2"]
    m = jnp.max(y, axis=1, keepdims=True)
    return y - (m + jnp.log(jnp.sum(jnp.exp(y - m), axis=1, keepdims=True)))


# ----------------------------------- main ----------------------------------- #

if __name__ == "__main__":
    key = jax.random.PRNGKey(0)
    k_in, k_par = jax.random.split(key)

    B, H, W = 2, 16, 16                       # small MNIST-like input, Cin = 1
    x = jax.random.normal(k_in, (B, 1, H, W), jnp.float32)

    tparams = init_torch_params(k_par, H, W)
    kparams = prepare_kernel_params(tparams, B, H, W)

    fwd = jax.jit(net_forward)
    out = jax.block_until_ready(fwd(x, kparams))

    ref = reference_forward(x, tparams)
    assert out.shape == (B, 19), out.shape
    assert bool(jnp.all(jnp.isfinite(out))), "non-finite output"
    assert jnp.allclose(out, ref, atol=5e-4, rtol=5e-4), "mismatch vs reference"

    print("KERNEL_OK")
</pallas_src>

<mosaic_0001>
module attributes {stable_mosaic.version = 11 : i64} {
  func.func @_fused_net_kernel(%arg0: memref<128x36xf32, #tpu.memory_space<vmem>>, %arg1: memref<4x36x32xf32, #tpu.memory_space<vmem>>, %arg2: memref<1x32xf32, #tpu.memory_space<vmem>>, %arg3: memref<512x1152xf32, #tpu.memory_space<any>>, %arg4: memref<9x32x64xf32, #tpu.memory_space<vmem>>, %arg5: memref<1x64xf32, #tpu.memory_space<vmem>>, %arg6: memref<1024x512xf32, #tpu.memory_space<any>>, %arg7: memref<1x512xf32, #tpu.memory_space<vmem>>, %arg8: memref<512x19xf32, #tpu.memory_space<vmem>>, %arg9: memref<1x19xf32, #tpu.memory_space<vmem>>, %arg10: memref<2x19xf32, #tpu.memory_space<vmem>>, %arg11: memref<1152x64xf32, #tpu.memory_space<vmem>>, %arg12: memref<512x1152xf32, #tpu.memory_space<vmem>>, %arg13: memref<1024x512xf32, #tpu.memory_space<vmem>>, %arg14: memref<2x!tpu.dma_semaphore, #tpu.memory_space<semaphore_mem>>) attributes {dimension_semantics = [], scalar_prefetch = 0 : i64, scratch_operands = 4 : i64, tpu.core_type = #tpu.core_type<tc>} {
    %c0_i32 = arith.constant 0 : i32
    %0 = tpu.memref_slice %arg14[%c0_i32] : memref<2x!tpu.dma_semaphore, #tpu.memory_space<semaphore_mem>> -> memref<1x!tpu.dma_semaphore, #tpu.memory_space<semaphore_mem>>
    %1 = tpu.memref_squeeze %0 : memref<1x!tpu.dma_semaphore, #tpu.memory_space<semaphore_mem>> -> memref<!tpu.dma_semaphore, #tpu.memory_space<semaphore_mem>>
    tpu.enqueue_dma source(%arg3 : memref<512x1152xf32, #tpu.memory_space<any>>) target(%arg12 : memref<512x1152xf32, #tpu.memory_space<vmem>>) target_semaphore(%1 : memref<!tpu.dma_semaphore, #tpu.memory_space<semaphore_mem>>)
    %c1_i32 = arith.constant 1 : i32
    %2 = tpu.memref_slice %arg14[%c1_i32] : memref<2x!tpu.dma_semaphore, #tpu.memory_space<semaphore_mem>> -> memref<1x!tpu.dma_semaphore, #tpu.memory_space<semaphore_mem>>
    %3 = tpu.memref_squeeze %2 : memref<1x!tpu.dma_semaphore, #tpu.memory_space<semaphore_mem>> -> memref<!tpu.dma_semaphore, #tpu.memory_space<semaphore_mem>>
    tpu.enqueue_dma source(%arg6 : memref<1024x512xf32, #tpu.memory_space<any>>) target(%arg13 : memref<1024x512xf32, #tpu.memory_space<vmem>>) target_semaphore(%3 : memref<!tpu.dma_semaphore, #tpu.memory_space<semaphore_mem>>)
    %c0 = arith.constant 0 : index
    %c0_0 = arith.constant 0 : index
    %4 = vector.load %arg0[%c0, %c0_0] : memref<128x36xf32, #tpu.memory_space<vmem>>, vector<128x36xf32>
    %c0_1 = arith.constant 0 : index
    %c0_2 = arith.constant 0 : index
    %c0_3 = arith.constant 0 : index
    %5 = vector.load %arg1[%c0_1, %c0_2, %c0_3] : memref<4x36x32xf32, #tpu.memory_space<vmem>>, vector<1x36x32xf32>
    %6 = vector.shape_cast %5 : vector<1x36x32xf32> to vector<36x32xf32>
    %cst = arith.constant dense<0.000000e+00> : vector<128x32xf32>
    %7 = tpu.matmul %4, %6, %cst {dimension_numbers = #tpu.dot_dimension_numbers<[1], [0], [0], [1], [0, 0, 1, 1], [], []>} : vector<128x36xf32>, vector<36x32xf32>, vector<128x32xf32> -> vector<128x32xf32>
    %c1 = arith.constant 1 : index
    %c0_4 = arith.constant 0 : index
    %c0_5 = arith.constant 0 : index
    %8 = vector.load %arg1[%c1, %c0_4, %c0_5] : memref<4x36x32xf32, #tpu.memory_space<vmem>>, vector<1x36x32xf32>
    %9 = vector.shape_cast %8 : vector<1x36x32xf32> to vector<36x32xf32>
    %cst_6 = arith.constant dense<0.000000e+00> : vector<128x32xf32>
    %10 = tpu.matmul %4, %9, %cst_6 {dimension_numbers = #tpu.dot_dimension_numbers<[1], [0], [0], [1], [0, 0, 1, 1], [], []>} : vector<128x36xf32>, vector<36x32xf32>, vector<128x32xf32> -> vector<128x32xf32>
    %11 = arith.maximumf %7, %10 : vector<128x32xf32>
    %c2 = arith.constant 2 : index
    %c0_7 = arith.constant 0 : index
    %c0_8 = arith.constant 0 : index
    %12 = vector.load %arg1[%c2, %c0_7, %c0_8] : memref<4x36x32xf32, #tpu.memory_space<vmem>>, vector<1x36x32xf32>
    %13 = vector.shape_cast %12 : vector<1x36x32xf32> to vector<36x32xf32>
    %cst_9 = arith.constant dense<0.000000e+00> : vector<128x32xf32>
    %14 = tpu.matmul %4, %13, %cst_9 {dimension_numbers = #tpu.dot_dimension_numbers<[1], [0], [0], [1], [0, 0, 1, 1], [], []>} : vector<128x36xf32>, vector<36x32xf32>, vector<128x32xf32> -> vector<128x32xf32>
    %15 = arith.maximumf %11, %14 : vector<128x32xf32>
    %c3 = arith.constant 3 : index
    %c0_10 = arith.constant 0 : index
    %c0_11 = arith.constant 0 : index
    %16 = vector.load %arg1[%c3, %c0_10, %c0_11] : memref<4x36x32xf32, #tpu.memory_space<vmem>>, vector<1x36x32xf32>
    %17 = vector.shape_cast %16 : vector<1x36x32xf32> to vector<36x32xf32>
    %cst_12 = arith.constant dense<0.000000e+00> : vector<128x32xf32>
    %18 = tpu.matmul %4, %17, %cst_12 {dimension_numbers = #tpu.dot_dimension_numbers<[1], [0], [0], [1], [0, 0, 1, 1], [], []>} : vector<128x36xf32>, vector<36x32xf32>, vector<128x32xf32> -> vector<128x32xf32>
    %19 = arith.maximumf %15, %18 : vector<128x32xf32>
    %c0_13 = arith.constant 0 : index
    %c0_14 = arith.constant 0 : index
    %20 = vector.load %arg2[%c0_13, %c0_14] : memref<1x32xf32, #tpu.memory_space<vmem>>, vector<1x32xf32>
    %21 = vector.broadcast %20 : vector<1x32xf32> to vector<128x32xf32>
    %22 = arith.addf %19, %21 : vector<128x32xf32>
    %cst_15 = arith.constant 0.000000e+00 : f32
    %23 = vector.broadcast %cst_15 : f32 to vector<128x32xf32>
    %24 = arith.maximumf %22, %23 : vector<128x32xf32>
    %c0_16 = arith.constant 0 : index
    %c0_17 = arith.constant 0 : index
    %c0_18 = arith.constant 0 : index
    %25 = vector.load %arg4[%c0_16, %c0_17, %c0_18] : memref<9x32x64xf32, #tpu.memory_space<vmem>>, vector<1x32x64xf32>
    %26 = vector.shape_cast %25 : vector<1x32x64xf32> to vector<32x64xf32>
    %cst_19 = arith.constant dense<0.000000e+00> : vector<128x64xf32>
    %27 = tpu.matmul %24, %26, %cst_19 {dimension_numbers = #tpu.dot_dimension_numbers<[1], [0], [0], [1], [0, 0, 1, 1], [], []>} : vector<128x32xf32>, vector<32x64xf32>, vector<128x64xf32> -> vector<128x64xf32>
    %c0_20 = arith.constant 0 : index
    %c0_21 = arith.constant 0 : index
    %28 = vector.load %arg11[%c0_20, %c0_21] : memref<1152x64xf32, #tpu.memory_space<vmem>>, vector<128x64xf32>
    tpu.vector_store %arg11[%c0_20, %c0_21], %27 {strides = array<i32>} : memref<1152x64xf32, #tpu.memory_space<vmem>>, vector<128x64xf32>,
    %c1_22 = arith.constant 1 : index
    %c0_23 = arith.constant 0 : index
    %c0_24 = arith.constant 0 : index
    %29 = vector.load %arg4[%c1_22, %c0_23, %c0_24] : memref<9x32x64xf32, #tpu.memory_space<vmem>>, vector<1x32x64xf32>
    %30 = vector.shape_cast %29 : vector<1x32x64xf32> to vector<32x64xf32>
    %cst_25 = arith.constant dense<0.000000e+00> : vector<128x64xf32>
    %31 = tpu.matmul %24, %30, %cst_25 {dimension_numbers = #tpu.dot_dimension_numbers<[1], [0], [0], [1], [0, 0, 1, 1], [], []>} : vector<128x32xf32>, vector<32x64xf32>, vector<128x64xf32> -> vector<128x64xf32>
    %c128 = arith.constant 128 : index
    %c0_26 = arith.constant 0 : index
    %32 = vector.load %arg11[%c128, %c0_26] : memref<1152x64xf32, #tpu.memory_space<vmem>>, vector<128x64xf32>
    tpu.vector_store %arg11[%c128, %c0_26], %31 {strides = array<i32>} : memref<1152x64xf32, #tpu.memory_space<vmem>>, vector<128x64xf32>,
    %c2_27 = arith.constant 2 : index
    %c0_28 = arith.constant 0 : index
    %c0_29 = arith.constant 0 : index
    %33 = vector.load %arg4[%c2_27, %c0_28, %c0_29] : memref<9x32x64xf32, #tpu.memory_space<vmem>>, vector<1x32x64xf32>
    %34 = vector.shape_cast %33 : vector<1x32x64xf32> to vector<32x64xf32>
    %cst_30 = arith.constant dense<0.000000e+00> : vector<128x64xf32>
    %35 = tpu.matmul %24, %34, %cst_30 {dimension_numbers = #tpu.dot_dimension_numbers<[1], [0], [0], [1], [0, 0, 1, 1], [], []>} : vector<128x32xf32>, vector<32x64xf32>, vector<128x64xf32> -> vector<128x64xf32>
    %c256 = arith.constant 256 : index
    %c0_31 = arith.constant 0 : index
    %36 = vector.load %arg11[%c256, %c0_31] : memref<1152x64xf32, #tpu.memory_space<vmem>>, vector<128x64xf32>
    tpu.vector_store %arg11[%c256, %c0_31], %35 {strides = array<i32>} : memref<1152x64xf32, #tpu.memory_space<vmem>>, vector<128x64xf32>,
    %c3_32 = arith.constant 3 : index
    %c0_33 = arith.constant 0 : index
    %c0_34 = arith.constant 0 : index
    %37 = vector.load %arg4[%c3_32, %c0_33, %c0_34] : memref<9x32x64xf32, #tpu.memory_space<vmem>>, vector<1x32x64xf32>
    %38 = vector.shape_cast %37 : vector<1x32x64xf32> to vector<32x64xf32>
    %cst_35 = arith.constant dense<0.000000e+00> : vector<128x64xf32>
    %39 = tpu.matmul %24, %38, %cst_35 {dimension_numbers = #tpu.dot_dimension_numbers<[1], [0], [0], [1], [0, 0, 1, 1], [], []>} : vector<128x32xf32>, vector<32x64xf32>, vector<128x64xf32> -> vector<128x64xf32>
    %c384 = arith.constant 384 : index
    %c0_36 = arith.constant 0 : index
    %40 = vector.load %arg11[%c384, %c0_36] : memref<1152x64xf32, #tpu.memory_space<vmem>>, vector<128x64xf32>
    tpu.vector_store %arg11[%c384, %c0_36], %39 {strides = array<i32>} : memref<1152x64xf32, #tpu.memory_space<vmem>>, vector<128x64xf32>,
    %c4 = arith.constant 4 : index
    %c0_37 = arith.constant 0 : index
    %c0_38 = arith.constant 0 : index
    %41 = vector.load %arg4[%c4, %c0_37, %c0_38] : memref<9x32x64xf32, #tpu.memory_space<vmem>>, vector<1x32x64xf32>
    %42 = vector.shape_cast %41 : vector<1x32x64xf32> to vector<32x64xf32>
    %cst_39 = arith.constant dense<0.000000e+00> : vector<128x64xf32>
    %43 = tpu.matmul %24, %42, %cst_39 {dimension_numbers = #tpu.dot_dimension_numbers<[1], [0], [0], [1], [0, 0, 1, 1], [], []>} : vector<128x32xf32>, vector<32x64xf32>, vector<128x64xf32> -> vector<128x64xf32>
    %c512 = arith.constant 512 : index
    %c0_40 = arith.constant 0 : index
    %44 = vector.load %arg11[%c512, %c0_40] : memref<1152x64xf32, #tpu.memory_space<vmem>>, vector<128x64xf32>
    tpu.vector_store %arg11[%c512, %c0_40], %43 {strides = array<i32>} : memref<1152x64xf32, #tpu.memory_space<vmem>>, vector<128x64xf32>,
    %c5 = arith.constant 5 : index
    %c0_41 = arith.constant 0 : index
    %c0_42 = arith.constant 0 : index
    %45 = vector.load %arg4[%c5, %c0_41, %c0_42] : memref<9x32x64xf32, #tpu.memory_space<vmem>>, vector<1x32x64xf32>
    %46 = vector.shape_cast %45 : vector<1x32x64xf32> to vector<32x64xf32>
    %cst_43 = arith.constant dense<0.000000e+00> : vector<128x64xf32>
    %47 = tpu.matmul %24, %46, %cst_43 {dimension_numbers = #tpu.dot_dimension_numbers<[1], [0], [0], [1], [0, 0, 1, 1], [], []>} : vector<128x32xf32>, vector<32x64xf32>, vector<128x64xf32> -> vector<128x64xf32>
    %c640 = arith.constant 640 : index
    %c0_44 = arith.constant 0 : index
    %48 = vector.load %arg11[%c640, %c0_44] : memref<1152x64xf32, #tpu.memory_space<vmem>>, vector<128x64xf32>
    tpu.vector_store %arg11[%c640, %c0_44], %47 {strides = array<i32>} : memref<1152x64xf32, #tpu.memory_space<vmem>>, vector<128x64xf32>,
    %c6 = arith.constant 6 : index
    %c0_45 = arith.constant 0 : index
    %c0_46 = arith.constant 0 : index
    %49 = vector.load %arg4[%c6, %c0_45, %c0_46] : memref<9x32x64xf32, #tpu.memory_space<vmem>>, vector<1x32x64xf32>
    %50 = vector.shape_cast %49 : vector<1x32x64xf32> to vector<32x64xf32>
    %cst_47 = arith.constant dense<0.000000e+00> : vector<128x64xf32>
    %51 = tpu.matmul %24, %50, %cst_47 {dimension_numbers = #tpu.dot_dimension_numbers<[1], [0], [0], [1], [0, 0, 1, 1], [], []>} : vector<128x32xf32>, vector<32x64xf32>, vector<128x64xf32> -> vector<128x64xf32>
    %c768 = arith.constant 768 : index
    %c0_48 = arith.constant 0 : index
    %52 = vector.load %arg11[%c768, %c0_48] : memref<1152x64xf32, #tpu.memory_space<vmem>>, vector<128x64xf32>
    tpu.vector_store %arg11[%c768, %c0_48], %51 {strides = array<i32>} : memref<1152x64xf32, #tpu.memory_space<vmem>>, vector<128x64xf32>,
    %c7 = arith.constant 7 : index
    %c0_49 = arith.constant 0 : index
    %c0_50 = arith.constant 0 : index
    %53 = vector.load %arg4[%c7, %c0_49, %c0_50] : memref<9x32x64xf32, #tpu.memory_space<vmem>>, vector<1x32x64xf32>
    %54 = vector.shape_cast %53 : vector<1x32x64xf32> to vector<32x64xf32>
    %cst_51 = arith.constant dense<0.000000e+00> : vector<128x64xf32>
    %55 = tpu.matmul %24, %54, %cst_51 {dimension_numbers = #tpu.dot_dimension_numbers<[1], [0], [0], [1], [0, 0, 1, 1], [], []>} : vector<128x32xf32>, vector<32x64xf32>, vector<128x64xf32> -> vector<128x64xf32>
    %c896 = arith.constant 896 : index
    %c0_52 = arith.constant 0 : index
    %56 = vector.load %arg11[%c896, %c0_52] : memref<1152x64xf32, #tpu.memory_space<vmem>>, vector<128x64xf32>
    tpu.vector_store %arg11[%c896, %c0_52], %55 {strides = array<i32>} : memref<1152x64xf32, #tpu.memory_space<vmem>>, vector<128x64xf32>,
    %c8 = arith.constant 8 : index
    %c0_53 = arith.constant 0 : index
    %c0_54 = arith.constant 0 : index
    %57 = vector.load %arg4[%c8, %c0_53, %c0_54] : memref<9x32x64xf32, #tpu.memory_space<vmem>>, vector<1x32x64xf32>
    %58 = vector.shape_cast %57 : vector<1x32x64xf32> to vector<32x64xf32>
    %cst_55 = arith.constant dense<0.000000e+00> : vector<128x64xf32>
    %59 = tpu.matmul %24, %58, %cst_55 {dimension_numbers = #tpu.dot_dimension_numbers<[1], [0], [0], [1], [0, 0, 1, 1], [], []>} : vector<128x32xf32>, vector<32x64xf32>, vector<128x64xf32> -> vector<128x64xf32>
    %c1024 = arith.constant 1024 : index
    %c0_56 = arith.constant 0 : index
    %60 = vector.load %arg11[%c1024, %c0_56] : memref<1152x64xf32, #tpu.memory_space<vmem>>, vector<128x64xf32>
    tpu.vector_store %arg11[%c1024, %c0_56], %59 {strides = array<i32>} : memref<1152x64xf32, #tpu.memory_space<vmem>>, vector<128x64xf32>,
    %c0_i32_57 = arith.constant 0 : i32
    %61 = tpu.memref_slice %arg14[%c0_i32_57] : memref<2x!tpu.dma_semaphore, #tpu.memory_space<semaphore_mem>> -> memref<1x!tpu.dma_semaphore, #tpu.memory_space<semaphore_mem>>
    %62 = tpu.memref_squeeze %61 : memref<1x!tpu.dma_semaphore, #tpu.memory_space<semaphore_mem>> -> memref<!tpu.dma_semaphore, #tpu.memory_space<semaphore_mem>>
    tpu.wait_dma2 semaphore(%62 : memref<!tpu.dma_semaphore, #tpu.memory_space<semaphore_mem>>) src(%arg3 : memref<512x1152xf32, #tpu.memory_space<any>>) dst(%arg12 : memref<512x1152xf32, #tpu.memory_space<vmem>>)
    %c0_58 = arith.constant 0 : index
    %c0_59 = arith.constant 0 : index
    %63 = vector.load %arg12[%c0_58, %c0_59] : memref<512x1152xf32, #tpu.memory_space<vmem>>, vector<512x1152xf32>
    %c0_60 = arith.constant 0 : index
    %c0_61 = arith.constant 0 : index
    %64 = vector.load %arg11[%c0_60, %c0_61] : memref<1152x64xf32, #tpu.memory_space<vmem>>, vector<1152x64xf32>
    %cst_62 = arith.constant dense<0.000000e+00> : vector<512x64xf32>
    %65 = tpu.matmul %63, %64, %cst_62 {dimension_numbers = #tpu.dot_dimension_numbers<[1], [0], [0], [1], [0, 0, 1, 1], [], []>} : vector<512x1152xf32>, vector<1152x64xf32>, vector<512x64xf32> -> vector<512x64xf32>
    %66 = vector.extract_strided_slice %65 {offsets = [0, 0], sizes = [128, 64], strides = [1, 1]} : vector<512x64xf32> to vector<128x64xf32>
    %67 = vector.extract_strided_slice %65 {offsets = [128, 0], sizes = [128, 64], strides = [1, 1]} : vector<512x64xf32> to vector<128x64xf32>
    %68 = arith.maximumf %66, %67 : vector<128x64xf32>
    %69 = vector.extract_strided_slice %65 {offsets = [256, 0], sizes = [128, 64], strides = [1, 1]} : vector<512x64xf32> to vector<128x64xf32>
    %70 = vector.extract_strided_slice %65 {offsets = [384, 0], sizes = [128, 64], strides = [1, 1]} : vector<512x64xf32> to vector<128x64xf32>
    %71 = arith.maximumf %69, %70 : vector<128x64xf32>
    %72 = arith.maximumf %68, %71 : vector<128x64xf32>
    %c0_63 = arith.constant 0 : index
    %c0_64 = arith.constant 0 : index
    %73 = vector.load %arg5[%c0_63, %c0_64] : memref<1x64xf32, #tpu.memory_space<vmem>>, vector<1x64xf32>
    %74 = vector.broadcast %73 : vector<1x64xf32> to vector<128x64xf32>
    %75 = arith.addf %72, %74 : vector<128x64xf32>
    %cst_65 = arith.constant 0.000000e+00 : f32
    %76 = vector.broadcast %cst_65 : f32 to vector<128x64xf32>
    %77 = arith.maximumf %75, %76 : vector<128x64xf32>
    %78 = vector.extract_strided_slice %77 {offsets = [0, 0], sizes = [8, 64], strides = [1, 1]} : vector<128x64xf32> to vector<8x64xf32>
    %79 = vector.extract_strided_slice %77 {offsets = [8, 0], sizes = [8, 64], strides = [1, 1]} : vector<128x64xf32> to vector<8x64xf32>
    %80 = tpu.concatenate %78, %79 in 1 : vector<8x64xf32>, vector<8x64xf32> -> vector<8x128xf32>
    %81 = vector.extract_strided_slice %77 {offsets = [16, 0], sizes = [8, 64], strides = [1, 1]} : vector<128x64xf32> to vector<8x64xf32>
    %82 = vector.extract_strided_slice %77 {offsets = [24, 0], sizes = [8, 64], strides = [1, 1]} : vector<128x64xf32> to vector<8x64xf32>
    %83 = tpu.concatenate %81, %82 in 1 : vector<8x64xf32>, vector<8x64xf32> -> vector<8x128xf32>
    %84 = vector.extract_strided_slice %77 {offsets = [32, 0], sizes = [8, 64], strides = [1, 1]} : vector<128x64xf32> to vector<8x64xf32>
    %85 = vector.extract_strided_slice %77 {offsets = [40, 0], sizes = [8, 64], strides = [1, 1]} : vector<128x64xf32> to vector<8x64xf32>
    %86 = tpu.concatenate %84, %85 in 1 : vector<8x64xf32>, vector<8x64xf32> -> vector<8x128xf32>
    %87 = vector.extract_strided_slice %77 {offsets = [48, 0], sizes = [8, 64], strides = [1, 1]} : vector<128x64xf32> to vector<8x64xf32>
    %88 = vector.extract_strided_slice %77 {offsets = [56, 0], sizes = [8, 64], strides = [1, 1]} : vector<128x64xf32> to vector<8x64xf32>
    %89 = tpu.concatenate %87, %88 in 1 : vector<8x64xf32>, vector<8x64xf32> -> vector<8x128xf32>
    %90 = vector.extract_strided_slice %77 {offsets = [64, 0], sizes = [8, 64], strides = [1, 1]} : vector<128x64xf32> to vector<8x64xf32>
    %91 = vector.extract_strided_slice %77 {offsets = [72, 0], sizes = [8, 64], strides = [1, 1]} : vector<128x64xf32> to vector<8x64xf32>
    %92 = tpu.concatenate %90, %91 in 1 : vector<8x64xf32>, vector<8x64xf32> -> vector<8x128xf32>
    %93 = vector.extract_strided_slice %77 {offsets = [80, 0], sizes = [8, 64], strides = [1, 1]} : vector<128x64xf32> to vector<8x64xf32>
    %94 = vector.extract_strided_slice %77 {offsets = [88, 0], sizes = [8, 64], strides = [1, 1]} : vector<128x64xf32> to vector<8x64xf32>
    %95 = tpu.concatenate %93, %94 in 1 : vector<8x64xf32>, vector<8x64xf32> -> vector<8x128xf32>
    %96 = vector.extract_strided_slice %77 {offsets = [96, 0], sizes = [8, 64], strides = [1, 1]} : vector<128x64xf32> to vector<8x64xf32>
    %97 = vector.extract_strided_slice %77 {offsets = [104, 0], sizes = [8, 64], strides = [1, 1]} : vector<128x64xf32> to vector<8x64xf32>
    %98 = tpu.concatenate %96, %97 in 1 : vector<8x64xf32>, vector<8x64xf32> -> vector<8x128xf32>
    %99 = vector.extract_strided_slice %77 {offsets = [112, 0], sizes = [8, 64], strides = [1, 1]} : vector<128x64xf32> to vector<8x64xf32>
    %100 = vector.extract_strided_slice %77 {offsets = [120, 0], sizes = [8, 64], strides = [1, 1]} : vector<128x64xf32> to vector<8x64xf32>
    %101 = tpu.concatenate %99, %100 in 1 : vector<8x64xf32>, vector<8x64xf32> -> vector<8x128xf32>
    %102 = tpu.concatenate %80, %83, %86, %89, %92, %95, %98, %101 in 1 : vector<8x128xf32>, vector<8x128xf32>, vector<8x128xf32>, vector<8x128xf32>, vector<8x128xf32>, vector<8x128xf32>, vector<8x128xf32>, vector<8x128xf32> -> vector<8x1024xf32>
    %c1_i32_66 = arith.constant 1 : i32
    %103 = tpu.memref_slice %arg14[%c1_i32_66] : memref<2x!tpu.dma_semaphore, #tpu.memory_space<semaphore_mem>> -> memref<1x!tpu.dma_semaphore, #tpu.memory_space<semaphore_mem>>
    %104 = tpu.memref_squeeze %103 : memref<1x!tpu.dma_semaphore, #tpu.memory_space<semaphore_mem>> -> memref<!tpu.dma_semaphore, #tpu.memory_space<semaphore_mem>>
    tpu.wait_dma2 semaphore(%104 : memref<!tpu.dma_semaphore, #tpu.memory_space<semaphore_mem>>) src(%arg6 : memref<1024x512xf32, #tpu.memory_space<any>>) dst(%arg13 : memref<1024x512xf32, #tpu.memory_space<vmem>>)
    %c0_67 = arith.constant 0 : index
    %c0_68 = arith.constant 0 : index
    %105 = vector.load %arg13[%c0_67, %c0_68] : memref<1024x512xf32, #tpu.memory_space<vmem>>, vector<1024x512xf32>
    %cst_69 = arith.constant dense<0.000000e+00> : vector<8x512xf32>
    %106 = tpu.matmul %102, %105, %cst_69 {dimension_numbers = #tpu.dot_dimension_numbers<[1], [0], [0], [1], [0, 0, 1, 1], [], []>} : vector<8x1024xf32>, vector<1024x512xf32>, vector<8x512xf32> -> vector<8x512xf32>
    %c0_70 = arith.constant 0 : index
    %c0_71 = arith.constant 0 : index
    %107 = vector.load %arg7[%c0_70, %c0_71] : memref<1x512xf32, #tpu.memory_space<vmem>>, vector<1x512xf32>
    %108 = vector.broadcast %107 : vector<1x512xf32> to vector<8x512xf32>
    %109 = arith.addf %106, %108 : vector<8x512xf32>
    %cst_72 = arith.constant 0.000000e+00 : f32
    %110 = vector.broadcast %cst_72 : f32 to vector<8x512xf32>
    %111 = arith.maximumf %109, %110 : vector<8x512xf32>
    %c0_73 = arith.constant 0 : index
    %c0_74 = arith.constant 0 : index
    %112 = vector.load %arg8[%c0_73, %c0_74] : memref<512x19xf32, #tpu.memory_space<vmem>>, vector<512x19xf32>
    %cst_75 = arith.constant dense<0.000000e+00> : vector<8x19xf32>
    %113 = tpu.matmul %111, %112, %cst_75 {dimension_numbers = #tpu.dot_dimension_numbers<[1], [0], [0], [1], [0, 0, 1, 1], [], []>} : vector<8x512xf32>, vector<512x19xf32>, vector<8x19xf32> -> vector<8x19xf32>
    %c0_76 = arith.constant 0 : index
    %c0_77 = arith.constant 0 : index
    %114 = vector.load %arg9[%c0_76, %c0_77] : memref<1x19xf32, #tpu.memory_space<vmem>>, vector<1x19xf32>
    %115 = vector.broadcast %114 : vector<1x19xf32> to vector<8x19xf32>
    %116 = arith.addf %113, %115 : vector<8x19xf32>
    %cst_78 = arith.constant dense<0xFF800000> : vector<8xf32>
    %117 = vector.multi_reduction <maximumf>, %116, %cst_78 [1] : vector<8x19xf32> to vector<8xf32>
    %118 = vector.shape_cast %117 : vector<8xf32> to vector<8x1xf32>
    %119 = vector.broadcast %118 : vector<8x1xf32> to vector<8x19xf32>
    %120 = arith.subf %116, %119 : vector<8x19xf32>
    %121 = math.exp %120 : vector<8x19xf32>
    %cst_79 = arith.constant dense<0.000000e+00> : vector<8xf32>
    %122 = vector.multi_reduction <add>, %121, %cst_79 [1] : vector<8x19xf32> to vector<8xf32>
    %123 = vector.shape_cast %122 : vector<8xf32> to vector<8x1xf32>
    %124 = math.log %123 : vector<8x1xf32>
    %125 = arith.addf %118, %124 : vector<8x1xf32>
    %126 = vector.broadcast %125 : vector<8x1xf32> to vector<8x19xf32>
    %127 = arith.subf %116, %126 : vector<8x19xf32>
    %128 = vector.extract_strided_slice %127 {offsets = [0, 0], sizes = [2, 19], strides = [1, 1]} : vector<8x19xf32> to vector<2x19xf32>
    %c0_80 = arith.constant 0 : index
    %c0_81 = arith.constant 0 : index
    %129 = vector.load %arg10[%c0_80, %c0_81] : memref<2x19xf32, #tpu.memory_space<vmem>>, vector<2x19xf32>
    tpu.vector_store %arg10[%c0_80, %c0_81], %128 {strides = array<i32>} : memref<2x19xf32, #tpu.memory_space<vmem>>, vector<2x19xf32>,
    return
  }
}

</mosaic_0001>

<llo_original>
// kernel: net_forward.1
$region0: #{net_forward.1}
  #allocation0 [shape = 'u32[]', space=smem, size = 0x4, offset = 0x4, fixed_abs, tag = 'smem constant byte address 0x4 - core index']
  #allocation1 [shape = 'u32[144,128]{1,0:T(1,128)}', space=vmem, size = 0x12000, scoped, tag = 'internal scratch']
  #allocation2 [shape = 'f32[1152,64]{1,0:T(8,128)}', space=vmem, size = 0x90000, scoped, tag = 'scratch operand']
  #allocation3 [shape = 'f32[512,1152]{1,0:T(8,128)}', space=vmem, size = 0x240000, scoped, tag = 'scratch operand']
  #allocation4 [shape = 'f32[1024,512]{1,0:T(8,128)}', space=vmem, size = 0x200000, scoped, tag = 'scratch operand']
  #allocation5 [shape = 's32[2]{0}', space=sflag, size = 0x8, scoped, tag = 'scratch operand']
  #allocation8 [shape = 's32[]', space=sflag, size = 0x4, offset = 0, fixed_abs, tag = 'sflag constant byte address 0x0 - dummy sync flag']
  #allocation9 [shape = 's32[]', space=sflag, size = 0x4, offset = 0, fixed_abs, tag = 'sflag constant byte address 0x0 - dummy sync flag']
  %s0 = inlined_call_operand.vmem [shape: f32[128,36], index: 0, kind: input, shape index: {}]
  %s1 = inlined_call_operand.vmem [shape: f32[4,36,32], index: 1, kind: input, shape index: {}]
  %s2 = inlined_call_operand.vmem [shape: f32[1,32], index: 2, kind: input, shape index: {}]
  %s3 = inlined_call_operand.vmem [shape: f32[512,1152], index: 3, kind: input, shape index: {}]
  %s4 = inlined_call_operand.vmem [shape: f32[9,32,64], index: 4, kind: input, shape index: {}]
  %s5 = inlined_call_operand.vmem [shape: f32[1,64], index: 5, kind: input, shape index: {}]
  %s6 = inlined_call_operand.vmem [shape: f32[1024,512], index: 6, kind: input, shape index: {}]
  %s7 = inlined_call_operand.vmem [shape: f32[1,512], index: 7, kind: input, shape index: {}]
  %s8 = inlined_call_operand.vmem [shape: f32[512,19], index: 8, kind: input, shape index: {}]
  %s9 = inlined_call_operand.vmem [shape: f32[1,19], index: 9, kind: input, shape index: {}]
  %s10 = inlined_call_operand.hbm [shape: f32[2,19], index: 10, kind: output, shape index: {}]
  %s11 = sld [smem:[#allocation0]]
  $region110: #{net_forward.1} parent=0
    _
  %s13 = ssub.s32 1, %s11
  %s14 = scalar_select 0, %s13, %s11
  $region1: #{net_forward.1} parent=0
    #allocation6 [shape = 'u8[1024]{0}', space=vmem, size = 0x400, scoped, tag = 'output window, operand 0, single buffered']
    #allocation7 [shape = 's32[1]{0}', space=sflag, size = 0x4, scoped, tag = 'scoped memory for net_forward.1']
    %15 = vsyncpa [#allocation7], 0
    // Predicated region
    $region2: #{net_forward.1} parent=1 // pred_check
      _
    $region3: #{net_forward.1} parent=1 // pred_check_branch
      %17 = sbr.rel (0) target = $region5
    $region4: #{net_forward.1} parent=1 // pred_region
      _
    $region5: #{net_forward.1} parent=1 // pred_fallthru
      _
    // Predicated region
    $region6: #{net_forward.1} parent=1 // pred_check
      _
    $region7: #{net_forward.1} parent=1 // pred_check_branch
      %19 = sbr.rel (0) target = $region9
    $region8: #{net_forward.1} parent=1 // pred_region
      _
    $region9: #{net_forward.1} parent=1 // pred_fallthru
      _
    // Predicated region
    $region10: #{net_forward.1} parent=1 // pred_check
      _
    $region11: #{net_forward.1} parent=1 // pred_check_branch
      %21 = sbr.rel (0) target = $region13
    $region12: #{net_forward.1} parent=1 // pred_region
      _
    $region13: #{net_forward.1} parent=1 // pred_fallthru
      _
    // Predicated region
    $region14: #{net_forward.1} parent=1 // pred_check
      _
    $region15: #{net_forward.1} parent=1 // pred_check_branch
      %23 = sbr.rel (0) target = $region17
    $region16: #{net_forward.1} parent=1 // pred_region
      _
    $region17: #{net_forward.1} parent=1 // pred_fallthru
      _
    // Predicated region
    $region18: #{net_forward.1} parent=1 // pred_check
      _
    $region19: #{net_forward.1} parent=1 // pred_check_branch
      %25 = sbr.rel (0) target = $region21
    $region20: #{net_forward.1} parent=1 // pred_region
      _
    $region21: #{net_forward.1} parent=1 // pred_fallthru
      _
    // Predicated region
    $region22: #{net_forward.1} parent=1 // pred_check
      _
    $region23: #{net_forward.1} parent=1 // pred_check_branch
      %27 = sbr.rel (0) target = $region25
    $region24: #{net_forward.1} parent=1 // pred_region
      _
    $region25: #{net_forward.1} parent=1 // pred_fallthru
      _
    // Predicated region
    $region26: #{net_forward.1} parent=1 // pred_check
      _
    $region27: #{net_forward.1} parent=1 // pred_check_branch
      %29 = sbr.rel (0) target = $region29
    $region28: #{net_forward.1} parent=1 // pred_region
      _
    $region29: #{net_forward.1} parent=1 // pred_fallthru
      _
    // Predicated region
    $region30: #{net_forward.1} parent=1 // pred_check
      _
    $region31: #{net_forward.1} parent=1 // pred_check_branch
      %31 = sbr.rel (0) target = $region33
    $region32: #{net_forward.1} parent=1 // pred_region
      _
    $region33: #{net_forward.1} parent=1 // pred_fallthru
      _
    %p33 = scmp.lt.u32.totalorder 4608, 8
    %p34 = pneg %p33
    // Predicated region
    $region34: #{net_forward.1} parent=1 // pred_check
      _
    $region35: #{net_forward.1} parent=1 // pred_check_branch
      %36 = sbr.rel (%p33) target = $region37
    $region36: #{net_forward.1} parent=1 // pred_region
      %s51 = sand.u32 4608, 7
      %p52 = scmp.eq.s32.totalorder %s51, 0
      // Predicated region
      $region49: #{net_forward.1} parent=36 // pred_check
        %p53 = pneg %p52
      $region50: #{net_forward.1} parent=36 // pred_check_branch
        %55 = sbr.rel (%p53) target = $region52
      $region51: #{net_forward.1} parent=36 // pred_region
        loop: start=0, step=1, limit=1
        $region53: #{net_forward.1} parent=51 // loop_pre_header
          _
        $region54: #{net_forward.1} parent=51 // loop_header
          %s57 = sphi 0, %s61
          %p58 = scmp.ge.s32.totalorder %s57, 1
          %s62 = sphi %s3, %s3
          %s63 = sphi [#allocation3], [#allocation3]
        $region55: #{net_forward.1} parent=51 // loop_header_branch
          %60 = sbr.rel (%p58) target = $region59
        $region56: #{net_forward.1} parent=51 // loop_body
          %v64 = vld [vmem:[%s62] sm:$0xff]
          %65 = vst [vmem:[%s63] sm:$0xff] %v64
          %v66 = vld [vmem:[%s62 + $0x8] sm:$0xff]
          %67 = vst [vmem:[%s63 + $0x8] sm:$0xff] %v66
          %v68 = vld [vmem:[%s62 + $0x10] sm:$0xff]
          %69 = vst [vmem:[%s63 + $0x10] sm:$0xff] %v68
          %v70 = vld [vmem:[%s62 + $0x18] sm:$0xff]
          %71 = vst [vmem:[%s63 + $0x18] sm:$0xff] %v70
          %v72 = vld [vmem:[%s62 + $0x20] sm:$0xff]
          %73 = vst [vmem:[%s63 + $0x20] sm:$0xff] %v72
          %v74 = vld [vmem:[%s62 + $0x28] sm:$0xff]
          %75 = vst [vmem:[%s63 + $0x28] sm:$0xff] %v74
          %v76 = vld [vmem:[%s62 + $0x30] sm:$0xff]
          %77 = vst [vmem:[%s63 + $0x30] sm:$0xff] %v76
          %v78 = vld [vmem:[%s62 + $0x38] sm:$0xff]
          %79 = vst [vmem:[%s63 + $0x38] sm:$0xff] %v78
          %v80 = vld [vmem:[%s62 + $0x40] sm:$0xff]
          %81 = vst [vmem:[%s63 + $0x40] sm:$0xff] %v80
          %v82 = vld [vmem:[%s62 + $0x48] sm:$0xff]
          %83 = vst [vmem:[%s63 + $0x48] sm:$0xff] %v82
          %v84 = vld [vmem:[%s62 + $0x50] sm:$0xff]
          %85 = vst [vmem:[%s63 + $0x50] sm:$0xff] %v84
          %v86 = vld [vmem:[%s62 + $0x58] sm:$0xff]
          %87 = vst [vmem:[%s63 + $0x58] sm:$0xff] %v86
          %v88 = vld [vmem:[%s62 + $0x60] sm:$0xff]
          %89 = vst [vmem:[%s63 + $0x60] sm:$0xff] %v88
          %v90 = vld [vmem:[%s62 + $0x68] sm:$0xff]
          %91 = vst [vmem:[%s63 + $0x68] sm:$0xff] %v90
          %v92 = vld [vmem:[%s62 + $0x70] sm:$0xff]
          %93 = vst [vmem:[%s63 + $0x70] sm:$0xff] %v92
          %v94 = vld [vmem:[%s62 + $0x78] sm:$0xff]
          %95 = vst [vmem:[%s63 + $0x78] sm:$0xff] %v94
          %v96 = vld [vmem:[%s62 + $0x80] sm:$0xff]
          %97 = vst [vmem:[%s63 + $0x80] sm:$0xff] %v96
          %v98 = vld [vmem:[%s62 + $0x88] sm:$0xff]
          %99 = vst [vmem:[%s63 + $0x88] sm:$0xff] %v98
          %v100 = vld [vmem:[%s62 + $0x90] sm:$0xff]
          %101 = vst [vmem:[%s63 + $0x90] sm:$0xff] %v100
          %v102 = vld [vmem:[%s62 + $0x98] sm:$0xff]
          %103 = vst [vmem:[%s63 + $0x98] sm:$0xff] %v102
          %v104 = vld [vmem:[%s62 + $0xa0] sm:$0xff]
          %105 = vst [vmem:[%s63 + $0xa0] sm:$0xff] %v104
          %v106 = vld [vmem:[%s62 + $0xa8] sm:$0xff]
          %107 = vst [vmem:[%s63 + $0xa8] sm:$0xff] %v106
          %v108 = vld [vmem:[%s62 + $0xb0] sm:$0xff]
          %109 = vst [vmem:[%s63 + $0xb0] sm:$0xff] %v108
          %v110 = vld [vmem:[%s62 + $0xb8] sm:$0xff]
          %111 = vst [vmem:[%s63 + $0xb8] sm:$0xff] %v110
          %v112 = vld [vmem:[%s62 + $0xc0] sm:$0xff]
          %113 = vst [vmem:[%s63 + $0xc0] sm:$0xff] %v112
          %v114 = vld [vmem:[%s62 + $0xc8] sm:$0xff]
          %115 = vst [vmem:[%s63 + $0xc8] sm:$0xff] %v114
          %v116 = vld [vmem:[%s62 + $0xd0] sm:$0xff]
          %117 = vst [vmem:[%s63 + $0xd0] sm:$0xff] %v116
          %v118 = vld [vmem:[%s62 + $0xd8] sm:$0xff]
          %119 = vst [vmem:[%s63 + $0xd8] sm:$0xff] %v118
          %v120 = vld [vmem:[%s62 + $0xe0] sm:$0xff]
          %121 = vst [vmem:[%s63 + $0xe0] sm:$0xff] %v120
          %v122 = vld [vmem:[%s62 + $0xe8] sm:$0xff]
          %123 = vst [vmem:[%s63 + $0xe8] sm:$0xff] %v122
          %v124 = vld [vmem:[%s62 + $0xf0] sm:$0xff]
          %125 = vst [vmem:[%s63 + $0xf0] sm:$0xff] %v124
          %v126 = vld [vmem:[%s62 + $0xf8] sm:$0xff]
          %127 = vst [vmem:[%s63 + $0xf8] sm:$0xff] %v126
          %v128 = vld [vmem:[%s62 + $0x100] sm:$0xff]
          %129 = vst [vmem:[%s63 + $0x100] sm:$0xff] %v128
          %v130 = vld [vmem:[%s62 + $0x108] sm:$0xff]
          %131 = vst [vmem:[%s63 + $0x108] sm:$0xff] %v130
          %v132 = vld [vmem:[%s62 + $0x110] sm:$0xff]
          %133 = vst [vmem:[%s63 + $0x110] sm:$0xff] %v132
          %v134 = vld [vmem:[%s62 + $0x118] sm:$0xff]
          %135 = vst [vmem:[%s63 + $0x118] sm:$0xff] %v134
          %v136 = vld [vmem:[%s62 + $0x120] sm:$0xff]
          %137 = vst [vmem:[%s63 + $0x120] sm:$0xff] %v136
          %v138 = vld [vmem:[%s62 + $0x128] sm:$0xff]
          %139 = vst [vmem:[%s63 + $0x128] sm:$0xff] %v138
          %v140 = vld [vmem:[%s62 + $0x130] sm:$0xff]
          %141 = vst [vmem:[%s63 + $0x130] sm:$0xff] %v140
          %v142 = vld [vmem:[%s62 + $0x138] sm:$0xff]
          %143 = vst [vmem:[%s63 + $0x138] sm:$0xff] %v142
          %v144 = vld [vmem:[%s62 + $0x140] sm:$0xff]
          %145 = vst [vmem:[%s63 + $0x140] sm:$0xff] %v144
          %v146 = vld [vmem:[%s62 + $0x148] sm:$0xff]
          %147 = vst [vmem:[%s63 + $0x148] sm:$0xff] %v146
          %v148 = vld [vmem:[%s62 + $0x150] sm:$0xff]
          %149 = vst [vmem:[%s63 + $0x150] sm:$0xff] %v148
          %v150 = vld [vmem:[%s62 + $0x158] sm:$0xff]
          %151 = vst [vmem:[%s63 + $0x158] sm:$0xff] %v150
          %v152 = vld [vmem:[%s62 + $0x160] sm:$0xff]
          %153 = vst [vmem:[%s63 + $0x160] sm:$0xff] %v152
          %v154 = vld [vmem:[%s62 + $0x168] sm:$0xff]
          %155 = vst [vmem:[%s63 + $0x168] sm:$0xff] %v154
          %v156 = vld [vmem:[%s62 + $0x170] sm:$0xff]
          %157 = vst [vmem:[%s63 + $0x170] sm:$0xff] %v156
          %v158 = vld [vmem:[%s62 + $0x178] sm:$0xff]
          %159 = vst [vmem:[%s63 + $0x178] sm:$0xff] %v158
          %v160 = vld [vmem:[%s62 + $0x180] sm:$0xff]
          %161 = vst [vmem:[%s63 + $0x180] sm:$0xff] %v160
          %v162 = vld [vmem:[%s62 + $0x188] sm:$0xff]
          %163 = vst [vmem:[%s63 + $0x188] sm:$0xff] %v162
          %v164 = vld [vmem:[%s62 + $0x190] sm:$0xff]
          %165 = vst [vmem:[%s63 + $0x190] sm:$0xff] %v164
          %v166 = vld [vmem:[%s62 + $0x198] sm:$0xff]
          %167 = vst [vmem:[%s63 + $0x198] sm:$0xff] %v166
          %v168 = vld [vmem:[%s62 + $0x1a0] sm:$0xff]
          %169 = vst [vmem:[%s63 + $0x1a0] sm:$0xff] %v168
          %v170 = vld [vmem:[%s62 + $0x1a8] sm:$0xff]
          %171 = vst [vmem:[%s63 + $0x1a8] sm:$0xff] %v170
          %v172 = vld [vmem:[%s62 + $0x1b0] sm:$0xff]
          %173 = vst [vmem:[%s63 + $0x1b0] sm:$0xff] %v172
          %v174 = vld [vmem:[%s62 + $0x1b8] sm:$0xff]
          %175 = vst [vmem:[%s63 + $0x1b8] sm:$0xff] %v174
          %v176 = vld [vmem:[%s62 + $0x1c0] sm:$0xff]
          %177 = vst [vmem:[%s63 + $0x1c0] sm:$0xff] %v176
          %v178 = vld [vmem:[%s62 + $0x1c8] sm:$0xff]
          %179 = vst [vmem:[%s63 + $0x1c8] sm:$0xff] %v178
          %v180 = vld [vmem:[%s62 + $0x1d0] sm:$0xff]
          %181 = vst [vmem:[%s63 + $0x1d0] sm:$0xff] %v180
          %v182 = vld [vmem:[%s62 + $0x1d8] sm:$0xff]
          %183 = vst [vmem:[%s63 + $0x1d8] sm:$0xff] %v182
          %v184 = vld [vmem:[%s62 + $0x1e0] sm:$0xff]
          %185 = vst [vmem:[%s63 + $0x1e0] sm:$0xff] %v184
          %v186 = vld [vmem:[%s62 + $0x1e8] sm:$0xff]
          %187 = vst [vmem:[%s63 + $0x1e8] sm:$0xff] %v186
          %v188 = vld [vmem:[%s62 + $0x1f0] sm:$0xff]
          %189 = vst [vmem:[%s63 + $0x1f0] sm:$0xff] %v188
          %v190 = vld [vmem:[%s62 + $0x1f8] sm:$0xff]
          %191 = vst [vmem:[%s63 + $0x1f8] sm:$0xff] %v190
          %v192 = vld [vmem:[%s62 + $0x200] sm:$0xff]
          %193 = vst [vmem:[%s63 + $0x200] sm:$0xff] %v192
          %v194 = vld [vmem:[%s62 + $0x208] sm:$0xff]
          %195 = vst [vmem:[%s63 + $0x208] sm:$0xff] %v194
          %v196 = vld [vmem:[%s62 + $0x210] sm:$0xff]
          %197 = vst [vmem:[%s63 + $0x210] sm:$0xff] %v196
          %v198 = vld [vmem:[%s62 + $0x218] sm:$0xff]
          %199 = vst [vmem:[%s63 + $0x218] sm:$0xff] %v198
          %v200 = vld [vmem:[%s62 + $0x220] sm:$0xff]
          %201 = vst [vmem:[%s63 + $0x220] sm:$0xff] %v200
          %v202 = vld [vmem:[%s62 + $0x228] sm:$0xff]
          %203 = vst [vmem:[%s63 + $0x228] sm:$0xff] %v202
          %v204 = vld [vmem:[%s62 + $0x230] sm:$0xff]
          %205 = vst [vmem:[%s63 + $0x230] sm:$0xff] %v204
          %v206 = vld [vmem:[%s62 + $0x238] sm:$0xff]
          %207 = vst [vmem:[%s63 + $0x238] sm:$0xff] %v206
          %v208 = vld [vmem:[%s62 + $0x240] sm:$0xff]
          %209 = vst [vmem:[%s63 + $0x240] sm:$0xff] %v208
          %v210 = vld [vmem:[%s62 + $0x248] sm:$0xff]
          %211 = vst [vmem:[%s63 + $0x248] sm:$0xff] %v210
          %v212 = vld [vmem:[%s62 + $0x250] sm:$0xff]
          %213 = vst [vmem:[%s63 + $0x250] sm:$0xff] %v212
          %v214 = vld [vmem:[%s62 + $0x258] sm:$0xff]
          %215 = vst [vmem:[%s63 + $0x258] sm:$0xff] %v214
          %v216 = vld [vmem:[%s62 + $0x260] sm:$0xff]
          %217 = vst [vmem:[%s63 + $0x260] sm:$0xff] %v216
          %v218 = vld [vmem:[%s62 + $0x268] sm:$0xff]
          %219 = vst [vmem:[%s63 + $0x268] sm:$0xff] %v218
          %v220 = vld [vmem:[%s62 + $0x270] sm:$0xff]
          %221 = vst [vmem:[%s63 + $0x270] sm:$0xff] %v220
          %v222 = vld [vmem:[%s62 + $0x278] sm:$0xff]
          %223 = vst [vmem:[%s63 + $0x278] sm:$0xff] %v222
          %v224 = vld [vmem:[%s62 + $0x280] sm:$0xff]
          %225 = vst [vmem:[%s63 + $0x280] sm:$0xff] %v224
          %v226 = vld [vmem:[%s62 + $0x288] sm:$0xff]
          %227 = vst [vmem:[%s63 + $0x288] sm:$0xff] %v226
          %v228 = vld [vmem:[%s62 + $0x290] sm:$0xff]
          %229 = vst [vmem:[%s63 + $0x290] sm:$0xff] %v228
          %v230 = vld [vmem:[%s62 + $0x298] sm:$0xff]
          %231 = vst [vmem:[%s63 + $0x298] sm:$0xff] %v230
          %v232 = vld [vmem:[%s62 + $0x2a0] sm:$0xff]
          %233 = vst [vmem:[%s63 + $0x2a0] sm:$0xff] %v232
          %v234 = vld [vmem:[%s62 + $0x2a8] sm:$0xff]
          %235 = vst [vmem:[%s63 + $0x2a8] sm:$0xff] %v234
          %v236 = vld [vmem:[%s62 + $0x2b0] sm:$0xff]
          %237 = vst [vmem:[%s63 + $0x2b0] sm:$0xff] %v236
          %v238 = vld [vmem:[%s62 + $0x2b8] sm:$0xff]
          %239 = vst [vmem:[%s63 + $0x2b8] sm:$0xff] %v238
          %v240 = vld [vmem:[%s62 + $0x2c0] sm:$0xff]
          %241 = vst [vmem:[%s63 + $0x2c0] sm:$0xff] %v240
          %v242 = vld [vmem:[%s62 + $0x2c8] sm:$0xff]
          %243 = vst [vmem:[%s63 + $0x2c8] sm:$0xff] %v242
          %v244 = vld [vmem:[%s62 + $0x2d0] sm:$0xff]
          %245 = vst [vmem:[%s63 + $0x2d0] sm:$0xff] %v244
          %v246 = vld [vmem:[%s62 + $0x2d8] sm:$0xff]
          %247 = vst [vmem:[%s63 + $0x2d8] sm:$0xff] %v246
          %v248 = vld [vmem:[%s62 + $0x2e0] sm:$0xff]
          %249 = vst [vmem:[%s63 + $0x2e0] sm:$0xff] %v248
          %v250 = vld [vmem:[%s62 + $0x2e8] sm:$0xff]
          %251 = vst [vmem:[%s63 + $0x2e8] sm:$0xff] %v250
          %v252 = vld [vmem:[%s62 + $0x2f0] sm:$0xff]
          %253 = vst [vmem:[%s63 + $0x2f0] sm:$0xff] %v252
          %v254 = vld [vmem:[%s62 + $0x2f8] sm:$0xff]
          %255 = vst [vmem:[%s63 + $0x2f8] sm:$0xff] %v254
          %v256 = vld [vmem:[%s62 + $0x300] sm:$0xff]
          %257 = vst [vmem:[%s63 + $0x300] sm:$0xff] %v256
          %v258 = vld [vmem:[%s62 + $0x308] sm:$0xff]
          %259 = vst [vmem:[%s63 + $0x308] sm:$0xff] %v258
          %v260 = vld [vmem:[%s62 + $0x310] sm:$0xff]
          %261 = vst [vmem:[%s63 + $0x310] sm:$0xff] %v260
          %v262 = vld [vmem:[%s62 + $0x318] sm:$0xff]
          %263 = vst [vmem:[%s63 + $0x318] sm:$0xff] %v262
          %v264 = vld [vmem:[%s62 + $0x320] sm:$0xff]
          %265 = vst [vmem:[%s63 + $0x320] sm:$0xff] %v264
          %v266 = vld [vmem:[%s62 + $0x328] sm:$0xff]
          %267 = vst [vmem:[%s63 + $0x328] sm:$0xff] %v266
          %v268 = vld [vmem:[%s62 + $0x330] sm:$0xff]
          %269 = vst [vmem:[%s63 + $0x330] sm:$0xff] %v268
          %v270 = vld [vmem:[%s62 + $0x338] sm:$0xff]
          %271 = vst [vmem:[%s63 + $0x338] sm:$0xff] %v270
          %v272 = vld [vmem:[%s62 + $0x340] sm:$0xff]
          %273 = vst [vmem:[%s63 + $0x340] sm:$0xff] %v272
          %v274 = vld [vmem:[%s62 + $0x348] sm:$0xff]
          %275 = vst [vmem:[%s63 + $0x348] sm:$0xff] %v274
          %v276 = vld [vmem:[%s62 + $0x350] sm:$0xff]
          %277 = vst [vmem:[%s63 + $0x350] sm:$0xff] %v276
          %v278 = vld [vmem:[%s62 + $0x358] sm:$0xff]
          %279 = vst [vmem:[%s63 + $0x358] sm:$0xff] %v278
          %v280 = vld [vmem:[%s62 + $0x360] sm:$0xff]
          %281 = vst [vmem:[%s63 + $0x360] sm:$0xff] %v280
          %v282 = vld [vmem:[%s62 + $0x368] sm:$0xff]
          %283 = vst [vmem:[%s63 + $0x368] sm:$0xff] %v282
          %v284 = vld [vmem:[%s62 + $0x370] sm:$0xff]
          %285 = vst [vmem:[%s63 + $0x370] sm:$0xff] %v284
          %v286 = vld [vmem:[%s62 + $0x378] sm:$0xff]
          %287 = vst [vmem:[%s63 + $0x378] sm:$0xff] %v286
          %v288 = vld [vmem:[%s62 + $0x380] sm:$0xff]
          %289 = vst [vmem:[%s63 + $0x380] sm:$0xff] %v288
          %v290 = vld [vmem:[%s62 + $0x388] sm:$0xff]
          %291 = vst [vmem:[%s63 + $0x388] sm:$0xff] %v290
          %v292 = vld [vmem:[%s62 + $0x390] sm:$0xff]
          %293 = vst [vmem:[%s63 + $0x390] sm:$0xff] %v292
          %v294 = vld [vmem:[%s62 + $0x398] sm:$0xff]
          %295 = vst [vmem:[%s63 + $0x398] sm:$0xff] %v294
          %v296 = vld [vmem:[%s62 + $0x3a0] sm:$0xff]
          %297 = vst [vmem:[%s63 + $0x3a0] sm:$0xff] %v296
          %v298 = vld [vmem:[%s62 + $0x3a8] sm:$0xff]
          %299 = vst [vmem:[%s63 + $0x3a8] sm:$0xff] %v298
          %v300 = vld [vmem:[%s62 + $0x3b0] sm:$0xff]
          %301 = vst [vmem:[%s63 + $0x3b0] sm:$0xff] %v300
          %v302 = vld [vmem:[%s62 + $0x3b8] sm:$0xff]
          %303 = vst [vmem:[%s63 + $0x3b8] sm:$0xff] %v302
          %v304 = vld [vmem:[%s62 + $0x3c0] sm:$0xff]
          %305 = vst [vmem:[%s63 + $0x3c0] sm:$0xff] %v304
          %v306 = vld [vmem:[%s62 + $0x3c8] sm:$0xff]
          %307 = vst [vmem:[%s63 + $0x3c8] sm:$0xff] %v306
          %v308 = vld [vmem:[%s62 + $0x3d0] sm:$0xff]
          %309 = vst [vmem:[%s63 + $0x3d0] sm:$0xff] %v308
          %v310 = vld [vmem:[%s62 + $0x3d8] sm:$0xff]
          %311 = vst [vmem:[%s63 + $0x3d8] sm:$0xff] %v310
          %v312 = vld [vmem:[%s62 + $0x3e0] sm:$0xff]
          %313 = vst [vmem:[%s63 + $0x3e0] sm:$0xff] %v312
          %v314 = vld [vmem:[%s62 + $0x3e8] sm:$0xff]
          %315 = vst [vmem:[%s63 + $0x3e8] sm:$0xff] %v314
          %v316 = vld [vmem:[%s62 + $0x3f0] sm:$0xff]
          %317 = vst [vmem:[%s63 + $0x3f0] sm:$0xff] %v316
          %v318 = vld [vmem:[%s62 + $0x3f8] sm:$0xff]
          %319 = vst [vmem:[%s63 + $0x3f8] sm:$0xff] %v318
          %v320 = vld [vmem:[%s62 + $0x400] sm:$0xff]
          %321 = vst [vmem:[%s63 + $0x400] sm:$0xff] %v320
          %v322 = vld [vmem:[%s62 + $0x408] sm:$0xff]
          %323 = vst [vmem:[%s63 + $0x408] sm:$0xff] %v322
          %v324 = vld [vmem:[%s62 + $0x410] sm:$0xff]
          %325 = vst [vmem:[%s63 + $0x410] sm:$0xff] %v324
          %v326 = vld [vmem:[%s62 + $0x418] sm:$0xff]
          %327 = vst [vmem:[%s63 + $0x418] sm:$0xff] %v326
          %v328 = vld [vmem:[%s62 + $0x420] sm:$0xff]
          %329 = vst [vmem:[%s63 + $0x420] sm:$0xff] %v328
          %v330 = vld [vmem:[%s62 + $0x428] sm:$0xff]
          %331 = vst [vmem:[%s63 + $0x428] sm:$0xff] %v330
          %v332 = vld [vmem:[%s62 + $0x430] sm:$0xff]
          %333 = vst [vmem:[%s63 + $0x430] sm:$0xff] %v332
          %v334 = vld [vmem:[%s62 + $0x438] sm:$0xff]
          %335 = vst [vmem:[%s63 + $0x438] sm:$0xff] %v334
          %v336 = vld [vmem:[%s62 + $0x440] sm:$0xff]
          %337 = vst [vmem:[%s63 + $0x440] sm:$0xff] %v336
          %v338 = vld [vmem:[%s62 + $0x448] sm:$0xff]
          %339 = vst [vmem:[%s63 + $0x448] sm:$0xff] %v338
          %v340 = vld [vmem:[%s62 + $0x450] sm:$0xff]
          %341 = vst [vmem:[%s63 + $0x450] sm:$0xff] %v340
          %v342 = vld [vmem:[%s62 + $0x458] sm:$0xff]
          %343 = vst [vmem:[%s63 + $0x458] sm:$0xff] %v342
          %v344 = vld [vmem:[%s62 + $0x460] sm:$0xff]
          %345 = vst [vmem:[%s63 + $0x460] sm:$0xff] %v344
          %v346 = vld [vmem:[%s62 + $0x468] sm:$0xff]
          %347 = vst [vmem:[%s63 + $0x468] sm:$0xff] %v346
          %v348 = vld [vmem:[%s62 + $0x470] sm:$0xff]
          %349 = vst [vmem:[%s63 + $0x470] sm:$0xff] %v348
          %v350 = vld [vmem:[%s62 + $0x478] sm:$0xff]
          %351 = vst [vmem:[%s63 + $0x478] sm:$0xff] %v350
          %v352 = vld [vmem:[%s62 + $0x480] sm:$0xff]
          %353 = vst [vmem:[%s63 + $0x480] sm:$0xff] %v352
          %v354 = vld [vmem:[%s62 + $0x488] sm:$0xff]
          %355 = vst [vmem:[%s63 + $0x488] sm:$0xff] %v354
          %v356 = vld [vmem:[%s62 + $0x490] sm:$0xff]
          %357 = vst [vmem:[%s63 + $0x490] sm:$0xff] %v356
          %v358 = vld [vmem:[%s62 + $0x498] sm:$0xff]
          %359 = vst [vmem:[%s63 + $0x498] sm:$0xff] %v358
          %v360 = vld [vmem:[%s62 + $0x4a0] sm:$0xff]
          %361 = vst [vmem:[%s63 + $0x4a0] sm:$0xff] %v360
          %v362 = vld [vmem:[%s62 + $0x4a8] sm:$0xff]
          %363 = vst [vmem:[%s63 + $0x4a8] sm:$0xff] %v362
          %v364 = vld [vmem:[%s62 + $0x4b0] sm:$0xff]
          %365 = vst [vmem:[%s63 + $0x4b0] sm:$0xff] %v364
          %v366 = vld [vmem:[%s62 + $0x4b8] sm:$0xff]
          %367 = vst [vmem:[%s63 + $0x4b8] sm:$0xff] %v366
          %v368 = vld [vmem:[%s62 + $0x4c0] sm:$0xff]
          %369 = vst [vmem:[%s63 + $0x4c0] sm:$0xff] %v368
          %v370 = vld [vmem:[%s62 + $0x4c8] sm:$0xff]
          %371 = vst [vmem:[%s63 + $0x4c8] sm:$0xff] %v370
          %v372 = vld [vmem:[%s62 + $0x4d0] sm:$0xff]
          %373 = vst [vmem:[%s63 + $0x4d0] sm:$0xff] %v372
          %v374 = vld [vmem:[%s62 + $0x4d8] sm:$0xff]
          %375 = vst [vmem:[%s63 + $0x4d8] sm:$0xff] %v374
          %v376 = vld [vmem:[%s62 + $0x4e0] sm:$0xff]
          %377 = vst [vmem:[%s63 + $0x4e0] sm:$0xff] %v376
          %v378 = vld [vmem:[%s62 + $0x4e8] sm:$0xff]
          %379 = vst [vmem:[%s63 + $0x4e8] sm:$0xff] %v378
          %v380 = vld [vmem:[%s62 + $0x4f0] sm:$0xff]
          %381 = vst [vmem:[%s63 + $0x4f0] sm:$0xff] %v380
          %v382 = vld [vmem:[%s62 + $0x4f8] sm:$0xff]
          %383 = vst [vmem:[%s63 + $0x4f8] sm:$0xff] %v382
          %v384 = vld [vmem:[%s62 + $0x500] sm:$0xff]
          %385 = vst [vmem:[%s63 + $0x500] sm:$0xff] %v384
          %v386 = vld [vmem:[%s62 + $0x508] sm:$0xff]
          %387 = vst [vmem:[%s63 + $0x508] sm:$0xff] %v386
          %v388 = vld [vmem:[%s62 + $0x510] sm:$0xff]
          %389 = vst [vmem:[%s63 + $0x510] sm:$0xff] %v388
          %v390 = vld [vmem:[%s62 + $0x518] sm:$0xff]
          %391 = vst [vmem:[%s63 + $0x518] sm:$0xff] %v390
          %v392 = vld [vmem:[%s62 + $0x520] sm:$0xff]
          %393 = vst [vmem:[%s63 + $0x520] sm:$0xff] %v392
          %v394 = vld [vmem:[%s62 + $0x528] sm:$0xff]
          %395 = vst [vmem:[%s63 + $0x528] sm:$0xff] %v394
          %v396 = vld [vmem:[%s62 + $0x530] sm:$0xff]
          %397 = vst [vmem:[%s63 + $0x530] sm:$0xff] %v396
          %v398 = vld [vmem:[%s62 + $0x538] sm:$0xff]
          %399 = vst [vmem:[%s63 + $0x538] sm:$0xff] %v398
          %v400 = vld [vmem:[%s62 + $0x540] sm:$0xff]
          %401 = vst [vmem:[%s63 + $0x540] sm:$0xff] %v400
          %v402 = vld [vmem:[%s62 + $0x548] sm:$0xff]
          %403 = vst [vmem:[%s63 + $0x548] sm:$0xff] %v402
          %v404 = vld [vmem:[%s62 + $0x550] sm:$0xff]
          %405 = vst [vmem:[%s63 + $0x550] sm:$0xff] %v404
          %v406 = vld [vmem:[%s62 + $0x558] sm:$0xff]
          %407 = vst [vmem:[%s63 + $0x558] sm:$0xff] %v406
          %v408 = vld [vmem:[%s62 + $0x560] sm:$0xff]
          %409 = vst [vmem:[%s63 + $0x560] sm:$0xff] %v408
          %v410 = vld [vmem:[%s62 + $0x568] sm:$0xff]
          %411 = vst [vmem:[%s63 + $0x568] sm:$0xff] %v410
          %v412 = vld [vmem:[%s62 + $0x570] sm:$0xff]
          %413 = vst [vmem:[%s63 + $0x570] sm:$0xff] %v412
          %v414 = vld [vmem:[%s62 + $0x578] sm:$0xff]
          %415 = vst [vmem:[%s63 + $0x578] sm:$0xff] %v414
          %v416 = vld [vmem:[%s62 + $0x580] sm:$0xff]
          %417 = vst [vmem:[%s63 + $0x580] sm:$0xff] %v416
          %v418 = vld [vmem:[%s62 + $0x588] sm:$0xff]
          %419 = vst [vmem:[%s63 + $0x588] sm:$0xff] %v418
          %v420 = vld [vmem:[%s62 + $0x590] sm:$0xff]
          %421 = vst [vmem:[%s63 + $0x590] sm:$0xff] %v420
          %v422 = vld [vmem:[%s62 + $0x598] sm:$0xff]
          %423 = vst [vmem:[%s63 + $0x598] sm:$0xff] %v422
          %v424 = vld [vmem:[%s62 + $0x5a0] sm:$0xff]
          %425 = vst [vmem:[%s63 + $0x5a0] sm:$0xff] %v424
          %v426 = vld [vmem:[%s62 + $0x5a8] sm:$0xff]
          %427 = vst [vmem:[%s63 + $0x5a8] sm:$0xff] %v426
          %v428 = vld [vmem:[%s62 + $0x5b0] sm:$0xff]
          %429 = vst [vmem:[%s63 + $0x5b0] sm:$0xff] %v428
          %v430 = vld [vmem:[%s62 + $0x5b8] sm:$0xff]
          %431 = vst [vmem:[%s63 + $0x5b8] sm:$0xff] %v430
          %v432 = vld [vmem:[%s62 + $0x5c0] sm:$0xff]
          %433 = vst [vmem:[%s63 + $0x5c0] sm:$0xff] %v432
          %v434 = vld [vmem:[%s62 + $0x5c8] sm:$0xff]
          %435 = vst [vmem:[%s63 + $0x5c8] sm:$0xff] %v434
          %v436 = vld [vmem:[%s62 + $0x5d0] sm:$0xff]
          %437 = vst [vmem:[%s63 + $0x5d0] sm:$0xff] %v436
          %v438 = vld [vmem:[%s62 + $0x5d8] sm:$0xff]
          %439 = vst [vmem:[%s63 + $0x5d8] sm:$0xff] %v438
          %v440 = vld [vmem:[%s62 + $0x5e0] sm:$0xff]
          %441 = vst [vmem:[%s63 + $0x5e0] sm:$0xff] %v440
          %v442 = vld [vmem:[%s62 + $0x5e8] sm:$0xff]
          %443 = vst [vmem:[%s63 + $0x5e8] sm:$0xff] %v442
          %v444 = vld [vmem:[%s62 + $0x5f0] sm:$0xff]
          %445 = vst [vmem:[%s63 + $0x5f0] sm:$0xff] %v444
          %v446 = vld [vmem:[%s62 + $0x5f8] sm:$0xff]
          %447 = vst [vmem:[%s63 + $0x5f8] sm:$0xff] %v446
          %v448 = vld [vmem:[%s62 + $0x600] sm:$0xff]
          %449 = vst [vmem:[%s63 + $0x600] sm:$0xff] %v448
          %v450 = vld [vmem:[%s62 + $0x608] sm:$0xff]
          %451 = vst [vmem:[%s63 + $0x608] sm:$0xff] %v450
          %v452 = vld [vmem:[%s62 + $0x610] sm:$0xff]
          %453 = vst [vmem:[%s63 + $0x610] sm:$0xff] %v452
          %v454 = vld [vmem:[%s62 + $0x618] sm:$0xff]
          %455 = vst [vmem:[%s63 + $0x618] sm:$0xff] %v454
          %v456 = vld [vmem:[%s62 + $0x620] sm:$0xff]
          %457 = vst [vmem:[%s63 + $0x620] sm:$0xff] %v456
          %v458 = vld [vmem:[%s62 + $0x628] sm:$0xff]
          %459 = vst [vmem:[%s63 + $0x628] sm:$0xff] %v458
          %v460 = vld [vmem:[%s62 + $0x630] sm:$0xff]
          %461 = vst [vmem:[%s63 + $0x630] sm:$0xff] %v460
          %v462 = vld [vmem:[%s62 + $0x638] sm:$0xff]
          %463 = vst [vmem:[%s63 + $0x638] sm:$0xff] %v462
          %v464 = vld [vmem:[%s62 + $0x640] sm:$0xff]
          %465 = vst [vmem:[%s63 + $0x640] sm:$0xff] %v464
          %v466 = vld [vmem:[%s62 + $0x648] sm:$0xff]
          %467 = vst [vmem:[%s63 + $0x648] sm:$0xff] %v466
          %v468 = vld [vmem:[%s62 + $0x650] sm:$0xff]
          %469 = vst [vmem:[%s63 + $0x650] sm:$0xff] %v468
          %v470 = vld [vmem:[%s62 + $0x658] sm:$0xff]
          %471 = vst [vmem:[%s63 + $0x658] sm:$0xff] %v470
          %v472 = vld [vmem:[%s62 + $0x660] sm:$0xff]
          %473 = vst [vmem:[%s63 + $0x660] sm:$0xff] %v472
          %v474 = vld [vmem:[%s62 + $0x668] sm:$0xff]
          %475 = vst [vmem:[%s63 + $0x668] sm:$0xff] %v474
          %v476 = vld [vmem:[%s62 + $0x670] sm:$0xff]
          %477 = vst [vmem:[%s63 + $0x670] sm:$0xff] %v476
          %v478 = vld [vmem:[%s62 + $0x678] sm:$0xff]
          %479 = vst [vmem:[%s63 + $0x678] sm:$0xff] %v478
          %v480 = vld [vmem:[%s62 + $0x680] sm:$0xff]
          %481 = vst [vmem:[%s63 + $0x680] sm:$0xff] %v480
          %v482 = vld [vmem:[%s62 + $0x688] sm:$0xff]
          %483 = vst [vmem:[%s63 + $0x688] sm:$0xff] %v482
          %v484 = vld [vmem:[%s62 + $0x690] sm:$0xff]
          %485 = vst [vmem:[%s63 + $0x690] sm:$0xff] %v484
          %v486 = vld [vmem:[%s62 + $0x698] sm:$0xff]
          %487 = vst [vmem:[%s63 + $0x698] sm:$0xff] %v486
          %v488 = vld [vmem:[%s62 + $0x6a0] sm:$0xff]
          %489 = vst [vmem:[%s63 + $0x6a0] sm:$0xff] %v488
          %v490 = vld [vmem:[%s62 + $0x6a8] sm:$0xff]
          %491 = vst [vmem:[%s63 + $0x6a8] sm:$0xff] %v490
          %v492 = vld [vmem:[%s62 + $0x6b0] sm:$0xff]
          %493 = vst [vmem:[%s63 + $0x6b0] sm:$0xff] %v492
          %v494 = vld [vmem:[%s62 + $0x6b8] sm:$0xff]
          %495 = vst [vmem:[%s63 + $0x6b8] sm:$0xff] %v494
          %v496 = vld [vmem:[%s62 + $0x6c0] sm:$0xff]
          %497 = vst [vmem:[%s63 + $0x6c0] sm:$0xff] %v496
          %v498 = vld [vmem:[%s62 + $0x6c8] sm:$0xff]
          %499 = vst [vmem:[%s63 + $0x6c8] sm:$0xff] %v498
          %v500 = vld [vmem:[%s62 + $0x6d0] sm:$0xff]
          %501 = vst [vmem:[%s63 + $0x6d0] sm:$0xff] %v500
          %v502 = vld [vmem:[%s62 + $0x6d8] sm:$0xff]
          %503 = vst [vmem:[%s63 + $0x6d8] sm:$0xff] %v502
          %v504 = vld [vmem:[%s62 + $0x6e0] sm:$0xff]
          %505 = vst [vmem:[%s63 + $0x6e0] sm:$0xff] %v504
          %v506 = vld [vmem:[%s62 + $0x6e8] sm:$0xff]
          %507 = vst [vmem:[%s63 + $0x6e8] sm:$0xff] %v506
          %v508 = vld [vmem:[%s62 + $0x6f0] sm:$0xff]
          %509 = vst [vmem:[%s63 + $0x6f0] sm:$0xff] %v508
          %v510 = vld [vmem:[%s62 + $0x6f8] sm:$0xff]
          %511 = vst [vmem:[%s63 + $0x6f8] sm:$0xff] %v510
          %v512 = vld [vmem:[%s62 + $0x700] sm:$0xff]
          %513 = vst [vmem:[%s63 + $0x700] sm:$0xff] %v512
          %v514 = vld [vmem:[%s62 + $0x708] sm:$0xff]
          %515 = vst [vmem:[%s63 + $0x708] sm:$0xff] %v514
          %v516 = vld [vmem:[%s62 + $0x710] sm:$0xff]
          %517 = vst [vmem:[%s63 + $0x710] sm:$0xff] %v516
          %v518 = vld [vmem:[%s62 + $0x718] sm:$0xff]
          %519 = vst [vmem:[%s63 + $0x718] sm:$0xff] %v518
          %v520 = vld [vmem:[%s62 + $0x720] sm:$0xff]
          %521 = vst [vmem:[%s63 + $0x720] sm:$0xff] %v520
          %v522 = vld [vmem:[%s62 + $0x728] sm:$0xff]
          %523 = vst [vmem:[%s63 + $0x728] sm:$0xff] %v522
          %v524 = vld [vmem:[%s62 + $0x730] sm:$0xff]
          %525 = vst [vmem:[%s63 + $0x730] sm:$0xff] %v524
          %v526 = vld [vmem:[%s62 + $0x738] sm:$0xff]
          %527 = vst [vmem:[%s63 + $0x738] sm:$0xff] %v526
          %v528 = vld [vmem:[%s62 + $0x740] sm:$0xff]
          %529 = vst [vmem:[%s63 + $0x740] sm:$0xff] %v528
          %v530 = vld [vmem:[%s62 + $0x748] sm:$0xff]
          %531 = vst [vmem:[%s63 + $0x748] sm:$0xff] %v530
          %v532 = vld [vmem:[%s62 + $0x750] sm:$0xff]
          %533 = vst [vmem:[%s63 + $0x750] sm:$0xff] %v532
          %v534 = vld [vmem:[%s62 + $0x758] sm:$0xff]
          %535 = vst [vmem:[%s63 + $0x758] sm:$0xff] %v534
          %v536 = vld [vmem:[%s62 + $0x760] sm:$0xff]
          %537 = vst [vmem:[%s63 + $0x760] sm:$0xff] %v536
          %v538 = vld [vmem:[%s62 + $0x768] sm:$0xff]
          %539 = vst [vmem:[%s63 + $0x768] sm:$0xff] %v538
          %v540 = vld [vmem:[%s62 + $0x770] sm:$0xff]
          %541 = vst [vmem:[%s63 + $0x770] sm:$0xff] %v540
          %v542 = vld [vmem:[%s62 + $0x778] sm:$0xff]
          %543 = vst [vmem:[%s63 + $0x778] sm:$0xff] %v542
          %v544 = vld [vmem:[%s62 + $0x780] sm:$0xff]
          %545 = vst [vmem:[%s63 + $0x780] sm:$0xff] %v544
          %v546 = vld [vmem:[%s62 + $0x788] sm:$0xff]
          %547 = vst [vmem:[%s63 + $0x788] sm:$0xff] %v546
          %v548 = vld [vmem:[%s62 + $0x790] sm:$0xff]
          %549 = vst [vmem:[%s63 + $0x790] sm:$0xff] %v548
          %v550 = vld [vmem:[%s62 + $0x798] sm:$0xff]
          %551 = vst [vmem:[%s63 + $0x798] sm:$0xff] %v550
          %v552 = vld [vmem:[%s62 + $0x7a0] sm:$0xff]
          %553 = vst [vmem:[%s63 + $0x7a0] sm:$0xff] %v552
          %v554 = vld [vmem:[%s62 + $0x7a8] sm:$0xff]
          %555 = vst [vmem:[%s63 + $0x7a8] sm:$0xff] %v554
          %v556 = vld [vmem:[%s62 + $0x7b0] sm:$0xff]
          %557 = vst [vmem:[%s63 + $0x7b0] sm:$0xff] %v556
          %v558 = vld [vmem:[%s62 + $0x7b8] sm:$0xff]
          %559 = vst [vmem:[%s63 + $0x7b8] sm:$0xff] %v558
          %v560 = vld [vmem:[%s62 + $0x7c0] sm:$0xff]
          %561 = vst [vmem:[%s63 + $0x7c0] sm:$0xff] %v560
          %v562 = vld [vmem:[%s62 + $0x7c8] sm:$0xff]
          %563 = vst [vmem:[%s63 + $0x7c8] sm:$0xff] %v562
          %v564 = vld [vmem:[%s62 + $0x7d0] sm:$0xff]
          %565 = vst [vmem:[%s63 + $0x7d0] sm:$0xff] %v564
          %v566 = vld [vmem:[%s62 + $0x7d8] sm:$0xff]
          %567 = vst [vmem:[%s63 + $0x7d8] sm:$0xff] %v566
          %v568 = vld [vmem:[%s62 + $0x7e0] sm:$0xff]
          %569 = vst [vmem:[%s63 + $0x7e0] sm:$0xff] %v568
          %v570 = vld [vmem:[%s62 + $0x7e8] sm:$0xff]
          %571 = vst [vmem:[%s63 + $0x7e8] sm:$0xff] %v570
          %v572 = vld [vmem:[%s62 + $0x7f0] sm:$0xff]
          %573 = vst [vmem:[%s63 + $0x7f0] sm:$0xff] %v572
          %v574 = vld [vmem:[%s62 + $0x7f8] sm:$0xff]
          %575 = vst [vmem:[%s63 + $0x7f8] sm:$0xff] %v574
          %v576 = vld [vmem:[%s62 + $0x800] sm:$0xff]
          %577 = vst [vmem:[%s63 + $0x800] sm:$0xff] %v576
          %v578 = vld [vmem:[%s62 + $0x808] sm:$0xff]
          %579 = vst [vmem:[%s63 + $0x808] sm:$0xff] %v578
          %v580 = vld [vmem:[%s62 + $0x810] sm:$0xff]
          %581 = vst [vmem:[%s63 + $0x810] sm:$0xff] %v580
          %v582 = vld [vmem:[%s62 + $0x818] sm:$0xff]
          %583 = vst [vmem:[%s63 + $0x818] sm:$0xff] %v582
          %v584 = vld [vmem:[%s62 + $0x820] sm:$0xff]
          %585 = vst [vmem:[%s63 + $0x820] sm:$0xff] %v584
          %v586 = vld [vmem:[%s62 + $0x828] sm:$0xff]
          %587 = vst [vmem:[%s63 + $0x828] sm:$0xff] %v586
          %v588 = vld [vmem:[%s62 + $0x830] sm:$0xff]
          %589 = vst [vmem:[%s63 + $0x830] sm:$0xff] %v588
          %v590 = vld [vmem:[%s62 + $0x838] sm:$0xff]
          %591 = vst [vmem:[%s63 + $0x838] sm:$0xff] %v590
          %v592 = vld [vmem:[%s62 + $0x840] sm:$0xff]
          %593 = vst [vmem:[%s63 + $0x840] sm:$0xff] %v592
          %v594 = vld [vmem:[%s62 + $0x848] sm:$0xff]
          %595 = vst [vmem:[%s63 + $0x848] sm:$0xff] %v594
          %v596 = vld [vmem:[%s62 + $0x850] sm:$0xff]
          %597 = vst [vmem:[%s63 + $0x850] sm:$0xff] %v596
          %v598 = vld [vmem:[%s62 + $0x858] sm:$0xff]
          %599 = vst [vmem:[%s63 + $0x858] sm:$0xff] %v598
          %v600 = vld [vmem:[%s62 + $0x860] sm:$0xff]
          %601 = vst [vmem:[%s63 + $0x860] sm:$0xff] %v600
          %v602 = vld [vmem:[%s62 + $0x868] sm:$0xff]
          %603 = vst [vmem:[%s63 + $0x868] sm:$0xff] %v602
          %v604 = vld [vmem:[%s62 + $0x870] sm:$0xff]
          %605 = vst [vmem:[%s63 + $0x870] sm:$0xff] %v604
          %v606 = vld [vmem:[%s62 + $0x878] sm:$0xff]
          %607 = vst [vmem:[%s63 + $0x878] sm:$0xff] %v606
          %v608 = vld [vmem:[%s62 + $0x880] sm:$0xff]
          %609 = vst [vmem:[%s63 + $0x880] sm:$0xff] %v608
          %v610 = vld [vmem:[%s62 + $0x888] sm:$0xff]
          %611 = vst [vmem:[%s63 + $0x888] sm:$0xff] %v610
          %v612 = vld [vmem:[%s62 + $0x890] sm:$0xff]
          %613 = vst [vmem:[%s63 + $0x890] sm:$0xff] %v612
          %v614 = vld [vmem:[%s62 + $0x898] sm:$0xff]
          %615 = vst [vmem:[%s63 + $0x898] sm:$0xff] %v614
          %v616 = vld [vmem:[%s62 + $0x8a0] sm:$0xff]
          %617 = vst [vmem:[%s63 + $0x8a0] sm:$0xff] %v616
          %v618 = vld [vmem:[%s62 + $0x8a8] sm:$0xff]
          %619 = vst [vmem:[%s63 + $0x8a8] sm:$0xff] %v618
          %v620 = vld [vmem:[%s62 + $0x8b0] sm:$0xff]
          %621 = vst [vmem:[%s63 + $0x8b0] sm:$0xff] %v620
          %v622 = vld [vmem:[%s62 + $0x8b8] sm:$0xff]
          %623 = vst [vmem:[%s63 + $0x8b8] sm:$0xff] %v622
          %v624 = vld [vmem:[%s62 + $0x8c0] sm:$0xff]
          %625 = vst [vmem:[%s63 + $0x8c0] sm:$0xff] %v624
          %v626 = vld [vmem:[%s62 + $0x8c8] sm:$0xff]
          %627 = vst [vmem:[%s63 + $0x8c8] sm:$0xff] %v626
          %v628 = vld [vmem:[%s62 + $0x8d0] sm:$0xff]
          %629 = vst [vmem:[%s63 + $0x8d0] sm:$0xff] %v628
          %v630 = vld [vmem:[%s62 + $0x8d8] sm:$0xff]
          %631 = vst [vmem:[%s63 + $0x8d8] sm:$0xff] %v630
          %v632 = vld [vmem:[%s62 + $0x8e0] sm:$0xff]
          %633 = vst [vmem:[%s63 + $0x8e0] sm:$0xff] %v632
          %v634 = vld [vmem:[%s62 + $0x8e8] sm:$0xff]
          %635 = vst [vmem:[%s63 + $0x8e8] sm:$0xff] %v634
          %v636 = vld [vmem:[%s62 + $0x8f0] sm:$0xff]
          %637 = vst [vmem:[%s63 + $0x8f0] sm:$0xff] %v636
          %v638 = vld [vmem:[%s62 + $0x8f8] sm:$0xff]
          %639 = vst [vmem:[%s63 + $0x8f8] sm:$0xff] %v638
          %v640 = vld [vmem:[%s62 + $0x900] sm:$0xff]
          %641 = vst [vmem:[%s63 + $0x900] sm:$0xff] %v640
          %v642 = vld [vmem:[%s62 + $0x908] sm:$0xff]
          %643 = vst [vmem:[%s63 + $0x908] sm:$0xff] %v642
          %v644 = vld [vmem:[%s62 + $0x910] sm:$0xff]
          %645 = vst [vmem:[%s63 + $0x910] sm:$0xff] %v644
          %v646 = vld [vmem:[%s62 + $0x918] sm:$0xff]
          %647 = vst [vmem:[%s63 + $0x918] sm:$0xff] %v646
          %v648 = vld [vmem:[%s62 + $0x920] sm:$0xff]
          %649 = vst [vmem:[%s63 + $0x920] sm:$0xff] %v648
          %v650 = vld [vmem:[%s62 + $0x928] sm:$0xff]
          %651 = vst [vmem:[%s63 + $0x928] sm:$0xff] %v650
          %v652 = vld [vmem:[%s62 + $0x930] sm:$0xff]
          %653 = vst [vmem:[%s63 + $0x930] sm:$0xff] %v652
          %v654 = vld [vmem:[%s62 + $0x938] sm:$0xff]
          %655 = vst [vmem:[%s63 + $0x938] sm:$0xff] %v654
          %v656 = vld [vmem:[%s62 + $0x940] sm:$0xff]
          %657 = vst [vmem:[%s63 + $0x940] sm:$0xff] %v656
          %v658 = vld [vmem:[%s62 + $0x948] sm:$0xff]
          %659 = vst [vmem:[%s63 + $0x948] sm:$0xff] %v658
          %v660 = vld [vmem:[%s62 + $0x950] sm:$0xff]
          %661 = vst [vmem:[%s63 + $0x950] sm:$0xff] %v660
          %v662 = vld [vmem:[%s62 + $0x958] sm:$0xff]
          %663 = vst [vmem:[%s63 + $0x958] sm:$0xff] %v662
          %v664 = vld [vmem:[%s62 + $0x960] sm:$0xff]
          %665 = vst [vmem:[%s63 + $0x960] sm:$0xff] %v664
          %v666 = vld [vmem:[%s62 + $0x968] sm:$0xff]
          %667 = vst [vmem:[%s63 + $0x968] sm:$0xff] %v666
          %v668 = vld [vmem:[%s62 + $0x970] sm:$0xff]
          %669 = vst [vmem:[%s63 + $0x970] sm:$0xff] %v668
          %v670 = vld [vmem:[%s62 + $0x978] sm:$0xff]
          %671 = vst [vmem:[%s63 + $0x978] sm:$0xff] %v670
          %v672 = vld [vmem:[%s62 + $0x980] sm:$0xff]
          %673 = vst [vmem:[%s63 + $0x980] sm:$0xff] %v672
          %v674 = vld [vmem:[%s62 + $0x988] sm:$0xff]
          %675 = vst [vmem:[%s63 + $0x988] sm:$0xff] %v674
          %v676 = vld [vmem:[%s62 + $0x990] sm:$0xff]
          %677 = vst [vmem:[%s63 + $0x990] sm:$0xff] %v676
          %v678 = vld [vmem:[%s62 + $0x998] sm:$0xff]
          %679 = vst [vmem:[%s63 + $0x998] sm:$0xff] %v678
          %v680 = vld [vmem:[%s62 + $0x9a0] sm:$0xff]
          %681 = vst [vmem:[%s63 + $0x9a0] sm:$0xff] %v680
          %v682 = vld [vmem:[%s62 + $0x9a8] sm:$0xff]
          %683 = vst [vmem:[%s63 + $0x9a8] sm:$0xff] %v682
          %v684 = vld [vmem:[%s62 + $0x9b0] sm:$0xff]
          %685 = vst [vmem:[%s63 + $0x9b0] sm:$0xff] %v684
          %v686 = vld [vmem:[%s62 + $0x9b8] sm:$0xff]
          %687 = vst [vmem:[%s63 + $0x9b8] sm:$0xff] %v686
          %v688 = vld [vmem:[%s62 + $0x9c0] sm:$0xff]
          %689 = vst [vmem:[%s63 + $0x9c0] sm:$0xff] %v688
          %v690 = vld [vmem:[%s62 + $0x9c8] sm:$0xff]
          %691 = vst [vmem:[%s63 + $0x9c8] sm:$0xff] %v690
          %v692 = vld [vmem:[%s62 + $0x9d0] sm:$0xff]
          %693 = vst [vmem:[%s63 + $0x9d0] sm:$0xff] %v692
          %v694 = vld [vmem:[%s62 + $0x9d8] sm:$0xff]
          %695 = vst [vmem:[%s63 + $0x9d8] sm:$0xff] %v694
          %v696 = vld [vmem:[%s62 + $0x9e0] sm:$0xff]
          %697 = vst [vmem:[%s63 + $0x9e0] sm:$0xff] %v696
          %v698 = vld [vmem:[%s62 + $0x9e8] sm:$0xff]
          %699 = vst [vmem:[%s63 + $0x9e8] sm:$0xff] %v698
          %v700 = vld [vmem:[%s62 + $0x9f0] sm:$0xff]
          %701 = vst [vmem:[%s63 + $0x9f0] sm:$0xff] %v700
          %v702 = vld [vmem:[%s62 + $0x9f8] sm:$0xff]
          %703 = vst [vmem:[%s63 + $0x9f8] sm:$0xff] %v702
          %v704 = vld [vmem:[%s62 + $0xa00] sm:$0xff]
          %705 = vst [vmem:[%s63 + $0xa00] sm:$0xff] %v704
          %v706 = vld [vmem:[%s62 + $0xa08] sm:$0xff]
          %707 = vst [vmem:[%s63 + $0xa08] sm:$0xff] %v706
          %v708 = vld [vmem:[%s62 + $0xa10] sm:$0xff]
          %709 = vst [vmem:[%s63 + $0xa10] sm:$0xff] %v708
          %v710 = vld [vmem:[%s62 + $0xa18] sm:$0xff]
          %711 = vst [vmem:[%s63 + $0xa18] sm:$0xff] %v710
          %v712 = vld [vmem:[%s62 + $0xa20] sm:$0xff]
          %713 = vst [vmem:[%s63 + $0xa20] sm:$0xff] %v712
          %v714 = vld [vmem:[%s62 + $0xa28] sm:$0xff]
          %715 = vst [vmem:[%s63 + $0xa28] sm:$0xff] %v714
          %v716 = vld [vmem:[%s62 + $0xa30] sm:$0xff]
          %717 = vst [vmem:[%s63 + $0xa30] sm:$0xff] %v716
          %v718 = vld [vmem:[%s62 + $0xa38] sm:$0xff]
          %719 = vst [vmem:[%s63 + $0xa38] sm:$0xff] %v718
          %v720 = vld [vmem:[%s62 + $0xa40] sm:$0xff]
          %721 = vst [vmem:[%s63 + $0xa40] sm:$0xff] %v720
          %v722 = vld [vmem:[%s62 + $0xa48] sm:$0xff]
          %723 = vst [vmem:[%s63 + $0xa48] sm:$0xff] %v722
          %v724 = vld [vmem:[%s62 + $0xa50] sm:$0xff]
          %725 = vst [vmem:[%s63 + $0xa50] sm:$0xff] %v724
          %v726 = vld [vmem:[%s62 + $0xa58] sm:$0xff]
          %727 = vst [vmem:[%s63 + $0xa58] sm:$0xff] %v726
          %v728 = vld [vmem:[%s62 + $0xa60] sm:$0xff]
          %729 = vst [vmem:[%s63 + $0xa60] sm:$0xff] %v728
          %v730 = vld [vmem:[%s62 + $0xa68] sm:$0xff]
          %731 = vst [vmem:[%s63 + $0xa68] sm:$0xff] %v730
          %v732 = vld [vmem:[%s62 + $0xa70] sm:$0xff]
          %733 = vst [vmem:[%s63 + $0xa70] sm:$0xff] %v732
          %v734 = vld [vmem:[%s62 + $0xa78] sm:$0xff]
          %735 = vst [vmem:[%s63 + $0xa78] sm:$0xff] %v734
          %v736 = vld [vmem:[%s62 + $0xa80] sm:$0xff]
          %737 = vst [vmem:[%s63 + $0xa80] sm:$0xff] %v736
          %v738 = vld [vmem:[%s62 + $0xa88] sm:$0xff]
          %739 = vst [vmem:[%s63 + $0xa88] sm:$0xff] %v738
          %v740 = vld [vmem:[%s62 + $0xa90] sm:$0xff]
          %741 = vst [vmem:[%s63 + $0xa90] sm:$0xff] %v740
          %v742 = vld [vmem:[%s62 + $0xa98] sm:$0xff]
          %743 = vst [vmem:[%s63 + $0xa98] sm:$0xff] %v742
          %v744 = vld [vmem:[%s62 + $0xaa0] sm:$0xff]
          %745 = vst [vmem:[%s63 + $0xaa0] sm:$0xff] %v744
          %v746 = vld [vmem:[%s62 + $0xaa8] sm:$0xff]
          %747 = vst [vmem:[%s63 + $0xaa8] sm:$0xff] %v746
          %v748 = vld [vmem:[%s62 + $0xab0] sm:$0xff]
          %749 = vst [vmem:[%s63 + $0xab0] sm:$0xff] %v748
          %v750 = vld [vmem:[%s62 + $0xab8] sm:$0xff]
          %751 = vst [vmem:[%s63 + $0xab8] sm:$0xff] %v750
          %v752 = vld [vmem:[%s62 + $0xac0] sm:$0xff]
          %753 = vst [vmem:[%s63 + $0xac0] sm:$0xff] %v752
          %v754 = vld [vmem:[%s62 + $0xac8] sm:$0xff]
          %755 = vst [vmem:[%s63 + $0xac8] sm:$0xff] %v754
          %v756 = vld [vmem:[%s62 + $0xad0] sm:$0xff]
          %757 = vst [vmem:[%s63 + $0xad0] sm:$0xff] %v756
          %v758 = vld [vmem:[%s62 + $0xad8] sm:$0xff]
          %759 = vst [vmem:[%s63 + $0xad8] sm:$0xff] %v758
          %v760 = vld [vmem:[%s62 + $0xae0] sm:$0xff]
          %761 = vst [vmem:[%s63 + $0xae0] sm:$0xff] %v760
          %v762 = vld [vmem:[%s62 + $0xae8] sm:$0xff]
          %763 = vst [vmem:[%s63 + $0xae8] sm:$0xff] %v762
          %v764 = vld [vmem:[%s62 + $0xaf0] sm:$0xff]
          %765 = vst [vmem:[%s63 + $0xaf0] sm:$0xff] %v764
          %v766 = vld [vmem:[%s62 + $0xaf8] sm:$0xff]
          %767 = vst [vmem:[%s63 + $0xaf8] sm:$0xff] %v766
          %v768 = vld [vmem:[%s62 + $0xb00] sm:$0xff]
          %769 = vst [vmem:[%s63 + $0xb00] sm:$0xff] %v768
          %v770 = vld [vmem:[%s62 + $0xb08] sm:$0xff]
          %771 = vst [vmem:[%s63 + $0xb08] sm:$0xff] %v770
          %v772 = vld [vmem:[%s62 + $0xb10] sm:$0xff]
          %773 = vst [vmem:[%s63 + $0xb10] sm:$0xff] %v772
          %v774 = vld [vmem:[%s62 + $0xb18] sm:$0xff]
          %775 = vst [vmem:[%s63 + $0xb18] sm:$0xff] %v774
          %v776 = vld [vmem:[%s62 + $0xb20] sm:$0xff]
          %777 = vst [vmem:[%s63 + $0xb20] sm:$0xff] %v776
          %v778 = vld [vmem:[%s62 + $0xb28] sm:$0xff]
          %779 = vst [vmem:[%s63 + $0xb28] sm:$0xff] %v778
          %v780 = vld [vmem:[%s62 + $0xb30] sm:$0xff]
          %781 = vst [vmem:[%s63 + $0xb30] sm:$0xff] %v780
          %v782 = vld [vmem:[%s62 + $0xb38] sm:$0xff]
          %783 = vst [vmem:[%s63 + $0xb38] sm:$0xff] %v782
          %v784 = vld [vmem:[%s62 + $0xb40] sm:$0xff]
          %785 = vst [vmem:[%s63 + $0xb40] sm:$0xff] %v784
          %v786 = vld [vmem:[%s62 + $0xb48] sm:$0xff]
          %787 = vst [vmem:[%s63 + $0xb48] sm:$0xff] %v786
          %v788 = vld [vmem:[%s62 + $0xb50] sm:$0xff]
          %789 = vst [vmem:[%s63 + $0xb50] sm:$0xff] %v788
          %v790 = vld [vmem:[%s62 + $0xb58] sm:$0xff]
          %791 = vst [vmem:[%s63 + $0xb58] sm:$0xff] %v790
          %v792 = vld [vmem:[%s62 + $0xb60] sm:$0xff]
          %793 = vst [vmem:[%s63 + $0xb60] sm:$0xff] %v792
          %v794 = vld [vmem:[%s62 + $0xb68] sm:$0xff]
          %795 = vst [vmem:[%s63 + $0xb68] sm:$0xff] %v794
          %v796 = vld [vmem:[%s62 + $0xb70] sm:$0xff]
          %797 = vst [vmem:[%s63 + $0xb70] sm:$0xff] %v796
          %v798 = vld [vmem:[%s62 + $0xb78] sm:$0xff]
          %799 = vst [vmem:[%s63 + $0xb78] sm:$0xff] %v798
          %v800 = vld [vmem:[%s62 + $0xb80] sm:$0xff]
          %801 = vst [vmem:[%s63 + $0xb80] sm:$0xff] %v800
          %v802 = vld [vmem:[%s62 + $0xb88] sm:$0xff]
          %803 = vst [vmem:[%s63 + $0xb88] sm:$0xff] %v802
          %v804 = vld [vmem:[%s62 + $0xb90] sm:$0xff]
          %805 = vst [vmem:[%s63 + $0xb90] sm:$0xff] %v804
          %v806 = vld [vmem:[%s62 + $0xb98] sm:$0xff]
          %807 = vst [vmem:[%s63 + $0xb98] sm:$0xff] %v806
          %v808 = vld [vmem:[%s62 + $0xba0] sm:$0xff]
          %809 = vst [vmem:[%s63 + $0xba0] sm:$0xff] %v808
          %v810 = vld [vmem:[%s62 + $0xba8] sm:$0xff]
          %811 = vst [vmem:[%s63 + $0xba8] sm:$0xff] %v810
          %v812 = vld [vmem:[%s62 + $0xbb0] sm:$0xff]
          %813 = vst [vmem:[%s63 + $0xbb0] sm:$0xff] %v812
          %v814 = vld [vmem:[%s62 + $0xbb8] sm:$0xff]
          %815 = vst [vmem:[%s63 + $0xbb8] sm:$0xff] %v814
          %v816 = vld [vmem:[%s62 + $0xbc0] sm:$0xff]
          %817 = vst [vmem:[%s63 + $0xbc0] sm:$0xff] %v816
          %v818 = vld [vmem:[%s62 + $0xbc8] sm:$0xff]
          %819 = vst [vmem:[%s63 + $0xbc8] sm:$0xff] %v818
          %v820 = vld [vmem:[%s62 + $0xbd0] sm:$0xff]
          %821 = vst [vmem:[%s63 + $0xbd0] sm:$0xff] %v820
          %v822 = vld [vmem:[%s62 + $0xbd8] sm:$0xff]
          %823 = vst [vmem:[%s63 + $0xbd8] sm:$0xff] %v822
          %v824 = vld [vmem:[%s62 + $0xbe0] sm:$0xff]
          %825 = vst [vmem:[%s63 + $0xbe0] sm:$0xff] %v824
          %v826 = vld [vmem:[%s62 + $0xbe8] sm:$0xff]
          %827 = vst [vmem:[%s63 + $0xbe8] sm:$0xff] %v826
          %v828 = vld [vmem:[%s62 + $0xbf0] sm:$0xff]
          %829 = vst [vmem:[%s63 + $0xbf0] sm:$0xff] %v828
          %v830 = vld [vmem:[%s62 + $0xbf8] sm:$0xff]
          %831 = vst [vmem:[%s63 + $0xbf8] sm:$0xff] %v830
          %v832 = vld [vmem:[%s62 + $0xc00] sm:$0xff]
          %833 = vst [vmem:[%s63 + $0xc00] sm:$0xff] %v832
          %v834 = vld [vmem:[%s62 + $0xc08] sm:$0xff]
          %835 = vst [vmem:[%s63 + $0xc08] sm:$0xff] %v834
          %v836 = vld [vmem:[%s62 + $0xc10] sm:$0xff]
          %837 = vst [vmem:[%s63 + $0xc10] sm:$0xff] %v836
          %v838 = vld [vmem:[%s62 + $0xc18] sm:$0xff]
          %839 = vst [vmem:[%s63 + $0xc18] sm:$0xff] %v838
          %v840 = vld [vmem:[%s62 + $0xc20] sm:$0xff]
          %841 = vst [vmem:[%s63 + $0xc20] sm:$0xff] %v840
          %v842 = vld [vmem:[%s62 + $0xc28] sm:$0xff]
          %843 = vst [vmem:[%s63 + $0xc28] sm:$0xff] %v842
          %v844 = vld [vmem:[%s62 + $0xc30] sm:$0xff]
          %845 = vst [vmem:[%s63 + $0xc30] sm:$0xff] %v844
          %v846 = vld [vmem:[%s62 + $0xc38] sm:$0xff]
          %847 = vst [vmem:[%s63 + $0xc38] sm:$0xff] %v846
          %v848 = vld [vmem:[%s62 + $0xc40] sm:$0xff]
          %849 = vst [vmem:[%s63 + $0xc40] sm:$0xff] %v848
          %v850 = vld [vmem:[%s62 + $0xc48] sm:$0xff]
          %851 = vst [vmem:[%s63 + $0xc48] sm:$0xff] %v850
          %v852 = vld [vmem:[%s62 + $0xc50] sm:$0xff]
          %853 = vst [vmem:[%s63 + $0xc50] sm:$0xff] %v852
          %v854 = vld [vmem:[%s62 + $0xc58] sm:$0xff]
          %855 = vst [vmem:[%s63 + $0xc58] sm:$0xff] %v854
          %v856 = vld [vmem:[%s62 + $0xc60] sm:$0xff]
          %857 = vst [vmem:[%s63 + $0xc60] sm:$0xff] %v856
          %v858 = vld [vmem:[%s62 + $0xc68] sm:$0xff]
          %859 = vst [vmem:[%s63 + $0xc68] sm:$0xff] %v858
          %v860 = vld [vmem:[%s62 + $0xc70] sm:$0xff]
          %861 = vst [vmem:[%s63 + $0xc70] sm:$0xff] %v860
          %v862 = vld [vmem:[%s62 + $0xc78] sm:$0xff]
          %863 = vst [vmem:[%s63 + $0xc78] sm:$0xff] %v862
          %v864 = vld [vmem:[%s62 + $0xc80] sm:$0xff]
          %865 = vst [vmem:[%s63 + $0xc80] sm:$0xff] %v864
          %v866 = vld [vmem:[%s62 + $0xc88] sm:$0xff]
          %867 = vst [vmem:[%s63 + $0xc88] sm:$0xff] %v866
          %v868 = vld [vmem:[%s62 + $0xc90] sm:$0xff]
          %869 = vst [vmem:[%s63 + $0xc90] sm:$0xff] %v868
          %v870 = vld [vmem:[%s62 + $0xc98] sm:$0xff]
          %871 = vst [vmem:[%s63 + $0xc98] sm:$0xff] %v870
          %v872 = vld [vmem:[%s62 + $0xca0] sm:$0xff]
          %873 = vst [vmem:[%s63 + $0xca0] sm:$0xff] %v872
          %v874 = vld [vmem:[%s62 + $0xca8] sm:$0xff]
          %875 = vst [vmem:[%s63 + $0xca8] sm:$0xff] %v874
          %v876 = vld [vmem:[%s62 + $0xcb0] sm:$0xff]
          %877 = vst [vmem:[%s63 + $0xcb0] sm:$0xff] %v876
          %v878 = vld [vmem:[%s62 + $0xcb8] sm:$0xff]
          %879 = vst [vmem:[%s63 + $0xcb8] sm:$0xff] %v878
          %v880 = vld [vmem:[%s62 + $0xcc0] sm:$0xff]
          %881 = vst [vmem:[%s63 + $0xcc0] sm:$0xff] %v880
          %v882 = vld [vmem:[%s62 + $0xcc8] sm:$0xff]
          %883 = vst [vmem:[%s63 + $0xcc8] sm:$0xff] %v882
          %v884 = vld [vmem:[%s62 + $0xcd0] sm:$0xff]
          %885 = vst [vmem:[%s63 + $0xcd0] sm:$0xff] %v884
          %v886 = vld [vmem:[%s62 + $0xcd8] sm:$0xff]
          %887 = vst [vmem:[%s63 + $0xcd8] sm:$0xff] %v886
          %v888 = vld [vmem:[%s62 + $0xce0] sm:$0xff]
          %889 = vst [vmem:[%s63 + $0xce0] sm:$0xff] %v888
          %v890 = vld [vmem:[%s62 + $0xce8] sm:$0xff]
          %891 = vst [vmem:[%s63 + $0xce8] sm:$0xff] %v890
          %v892 = vld [vmem:[%s62 + $0xcf0] sm:$0xff]
          %893 = vst [vmem:[%s63 + $0xcf0] sm:$0xff] %v892
          %v894 = vld [vmem:[%s62 + $0xcf8] sm:$0xff]
          %895 = vst [vmem:[%s63 + $0xcf8] sm:$0xff] %v894
          %v896 = vld [vmem:[%s62 + $0xd00] sm:$0xff]
          %897 = vst [vmem:[%s63 + $0xd00] sm:$0xff] %v896
          %v898 = vld [vmem:[%s62 + $0xd08] sm:$0xff]
          %899 = vst [vmem:[%s63 + $0xd08] sm:$0xff] %v898
          %v900 = vld [vmem:[%s62 + $0xd10] sm:$0xff]
          %901 = vst [vmem:[%s63 + $0xd10] sm:$0xff] %v900
          %v902 = vld [vmem:[%s62 + $0xd18] sm:$0xff]
          %903 = vst [vmem:[%s63 + $0xd18] sm:$0xff] %v902
          %v904 = vld [vmem:[%s62 + $0xd20] sm:$0xff]
          %905 = vst [vmem:[%s63 + $0xd20] sm:$0xff] %v904
          %v906 = vld [vmem:[%s62 + $0xd28] sm:$0xff]
          %907 = vst [vmem:[%s63 + $0xd28] sm:$0xff] %v906
          %v908 = vld [vmem:[%s62 + $0xd30] sm:$0xff]
          %909 = vst [vmem:[%s63 + $0xd30] sm:$0xff] %v908
          %v910 = vld [vmem:[%s62 + $0xd38] sm:$0xff]
          %911 = vst [vmem:[%s63 + $0xd38] sm:$0xff] %v910
          %v912 = vld [vmem:[%s62 + $0xd40] sm:$0xff]
          %913 = vst [vmem:[%s63 + $0xd40] sm:$0xff] %v912
          %v914 = vld [vmem:[%s62 + $0xd48] sm:$0xff]
          %915 = vst [vmem:[%s63 + $0xd48] sm:$0xff] %v914
          %v916 = vld [vmem:[%s62 + $0xd50] sm:$0xff]
          %917 = vst [vmem:[%s63 + $0xd50] sm:$0xff] %v916
          %v918 = vld [vmem:[%s62 + $0xd58] sm:$0xff]
          %919 = vst [vmem:[%s63 + $0xd58] sm:$0xff] %v918
          %v920 = vld [vmem:[%s62 + $0xd60] sm:$0xff]
          %921 = vst [vmem:[%s63 + $0xd60] sm:$0xff] %v920
          %v922 = vld [vmem:[%s62 + $0xd68] sm:$0xff]
          %923 = vst [vmem:[%s63 + $0xd68] sm:$0xff] %v922
          %v924 = vld [vmem:[%s62 + $0xd70] sm:$0xff]
          %925 = vst [vmem:[%s63 + $0xd70] sm:$0xff] %v924
          %v926 = vld [vmem:[%s62 + $0xd78] sm:$0xff]
          %927 = vst [vmem:[%s63 + $0xd78] sm:$0xff] %v926
          %v928 = vld [vmem:[%s62 + $0xd80] sm:$0xff]
          %929 = vst [vmem:[%s63 + $0xd80] sm:$0xff] %v928
          %v930 = vld [vmem:[%s62 + $0xd88] sm:$0xff]
          %931 = vst [vmem:[%s63 + $0xd88] sm:$0xff] %v930
          %v932 = vld [vmem:[%s62 + $0xd90] sm:$0xff]
          %933 = vst [vmem:[%s63 + $0xd90] sm:$0xff] %v932
          %v934 = vld [vmem:[%s62 + $0xd98] sm:$0xff]
          %935 = vst [vmem:[%s63 + $0xd98] sm:$0xff] %v934
          %v936 = vld [vmem:[%s62 + $0xda0] sm:$0xff]
          %937 = vst [vmem:[%s63 + $0xda0] sm:$0xff] %v936
          %v938 = vld [vmem:[%s62 + $0xda8] sm:$0xff]
          %939 = vst [vmem:[%s63 + $0xda8] sm:$0xff] %v938
          %v940 = vld [vmem:[%s62 + $0xdb0] sm:$0xff]
          %941 = vst [vmem:[%s63 + $0xdb0] sm:$0xff] %v940
          %v942 = vld [vmem:[%s62 + $0xdb8] sm:$0xff]
          %943 = vst [vmem:[%s63 + $0xdb8] sm:$0xff] %v942
          %v944 = vld [vmem:[%s62 + $0xdc0] sm:$0xff]
          %945 = vst [vmem:[%s63 + $0xdc0] sm:$0xff] %v944
          %v946 = vld [vmem:[%s62 + $0xdc8] sm:$0xff]
          %947 = vst [vmem:[%s63 + $0xdc8] sm:$0xff] %v946
          %v948 = vld [vmem:[%s62 + $0xdd0] sm:$0xff]
          %949 = vst [vmem:[%s63 + $0xdd0] sm:$0xff] %v948
          %v950 = vld [vmem:[%s62 + $0xdd8] sm:$0xff]
          %951 = vst [vmem:[%s63 + $0xdd8] sm:$0xff] %v950
          %v952 = vld [vmem:[%s62 + $0xde0] sm:$0xff]
          %953 = vst [vmem:[%s63 + $0xde0] sm:$0xff] %v952
          %v954 = vld [vmem:[%s62 + $0xde8] sm:$0xff]
          %955 = vst [vmem:[%s63 + $0xde8] sm:$0xff] %v954
          %v956 = vld [vmem:[%s62 + $0xdf0] sm:$0xff]
          %957 = vst [vmem:[%s63 + $0xdf0] sm:$0xff] %v956
          %v958 = vld [vmem:[%s62 + $0xdf8] sm:$0xff]
          %959 = vst [vmem:[%s63 + $0xdf8] sm:$0xff] %v958
          %v960 = vld [vmem:[%s62 + $0xe00] sm:$0xff]
          %961 = vst [vmem:[%s63 + $0xe00] sm:$0xff] %v960
          %v962 = vld [vmem:[%s62 + $0xe08] sm:$0xff]
          %963 = vst [vmem:[%s63 + $0xe08] sm:$0xff] %v962
          %v964 = vld [vmem:[%s62 + $0xe10] sm:$0xff]
          %965 = vst [vmem:[%s63 + $0xe10] sm:$0xff] %v964
          %v966 = vld [vmem:[%s62 + $0xe18] sm:$0xff]
          %967 = vst [vmem:[%s63 + $0xe18] sm:$0xff] %v966
          %v968 = vld [vmem:[%s62 + $0xe20] sm:$0xff]
          %969 = vst [vmem:[%s63 + $0xe20] sm:$0xff] %v968
          %v970 = vld [vmem:[%s62 + $0xe28] sm:$0xff]
          %971 = vst [vmem:[%s63 + $0xe28] sm:$0xff] %v970
          %v972 = vld [vmem:[%s62 + $0xe30] sm:$0xff]
          %973 = vst [vmem:[%s63 + $0xe30] sm:$0xff] %v972
          %v974 = vld [vmem:[%s62 + $0xe38] sm:$0xff]
          %975 = vst [vmem:[%s63 + $0xe38] sm:$0xff] %v974
          %v976 = vld [vmem:[%s62 + $0xe40] sm:$0xff]
          %977 = vst [vmem:[%s63 + $0xe40] sm:$0xff] %v976
          %v978 = vld [vmem:[%s62 + $0xe48] sm:$0xff]
          %979 = vst [vmem:[%s63 + $0xe48] sm:$0xff] %v978
          %v980 = vld [vmem:[%s62 + $0xe50] sm:$0xff]
          %981 = vst [vmem:[%s63 + $0xe50] sm:$0xff] %v980
          %v982 = vld [vmem:[%s62 + $0xe58] sm:$0xff]
          %983 = vst [vmem:[%s63 + $0xe58] sm:$0xff] %v982
          %v984 = vld [vmem:[%s62 + $0xe60] sm:$0xff]
          %985 = vst [vmem:[%s63 + $0xe60] sm:$0xff] %v984
          %v986 = vld [vmem:[%s62 + $0xe68] sm:$0xff]
          %987 = vst [vmem:[%s63 + $0xe68] sm:$0xff] %v986
          %v988 = vld [vmem:[%s62 + $0xe70] sm:$0xff]
          %989 = vst [vmem:[%s63 + $0xe70] sm:$0xff] %v988
          %v990 = vld [vmem:[%s62 + $0xe78] sm:$0xff]
          %991 = vst [vmem:[%s63 + $0xe78] sm:$0xff] %v990
          %v992 = vld [vmem:[%s62 + $0xe80] sm:$0xff]
          %993 = vst [vmem:[%s63 + $0xe80] sm:$0xff] %v992
          %v994 = vld [vmem:[%s62 + $0xe88] sm:$0xff]
          %995 = vst [vmem:[%s63 + $0xe88] sm:$0xff] %v994
          %v996 = vld [vmem:[%s62 + $0xe90] sm:$0xff]
          %997 = vst [vmem:[%s63 + $0xe90] sm:$0xff] %v996
          %v998 = vld [vmem:[%s62 + $0xe98] sm:$0xff]
          %999 = vst [vmem:[%s63 + $0xe98] sm:$0xff] %v998
          %v1000 = vld [vmem:[%s62 + $0xea0] sm:$0xff]
          %1001 = vst [vmem:[%s63 + $0xea0] sm:$0xff] %v1000
          %v1002 = vld [vmem:[%s62 + $0xea8] sm:$0xff]
          %1003 = vst [vmem:[%s63 + $0xea8] sm:$0xff] %v1002
          %v1004 = vld [vmem:[%s62 + $0xeb0] sm:$0xff]
          %1005 = vst [vmem:[%s63 + $0xeb0] sm:$0xff] %v1004
          %v1006 = vld [vmem:[%s62 + $0xeb8] sm:$0xff]
          %1007 = vst [vmem:[%s63 + $0xeb8] sm:$0xff] %v1006
          %v1008 = vld [vmem:[%s62 + $0xec0] sm:$0xff]
          %1009 = vst [vmem:[%s63 + $0xec0] sm:$0xff] %v1008
          %v1010 = vld [vmem:[%s62 + $0xec8] sm:$0xff]
          %1011 = vst [vmem:[%s63 + $0xec8] sm:$0xff] %v1010
          %v1012 = vld [vmem:[%s62 + $0xed0] sm:$0xff]
          %1013 = vst [vmem:[%s63 + $0xed0] sm:$0xff] %v1012
          %v1014 = vld [vmem:[%s62 + $0xed8] sm:$0xff]
          %1015 = vst [vmem:[%s63 + $0xed8] sm:$0xff] %v1014
          %v1016 = vld [vmem:[%s62 + $0xee0] sm:$0xff]
          %1017 = vst [vmem:[%s63 + $0xee0] sm:$0xff] %v1016
          %v1018 = vld [vmem:[%s62 + $0xee8] sm:$0xff]
          %1019 = vst [vmem:[%s63 + $0xee8] sm:$0xff] %v1018
          %v1020 = vld [vmem:[%s62 + $0xef0] sm:$0xff]
          %1021 = vst [vmem:[%s63 + $0xef0] sm:$0xff] %v1020
          %v1022 = vld [vmem:[%s62 + $0xef8] sm:$0xff]
          %1023 = vst [vmem:[%s63 + $0xef8] sm:$0xff] %v1022
          %v1024 = vld [vmem:[%s62 + $0xf00] sm:$0xff]
          %1025 = vst [vmem:[%s63 + $0xf00] sm:$0xff] %v1024
          %v1026 = vld [vmem:[%s62 + $0xf08] sm:$0xff]
          %1027 = vst [vmem:[%s63 + $0xf08] sm:$0xff] %v1026
          %v1028 = vld [vmem:[%s62 + $0xf10] sm:$0xff]
          %1029 = vst [vmem:[%s63 + $0xf10] sm:$0xff] %v1028
          %v1030 = vld [vmem:[%s62 + $0xf18] sm:$0xff]
          %1031 = vst [vmem:[%s63 + $0xf18] sm:$0xff] %v1030
          %v1032 = vld [vmem:[%s62 + $0xf20] sm:$0xff]
          %1033 = vst [vmem:[%s63 + $0xf20] sm:$0xff] %v1032
          %v1034 = vld [vmem:[%s62 + $0xf28] sm:$0xff]
          %1035 = vst [vmem:[%s63 + $0xf28] sm:$0xff] %v1034
          %v1036 = vld [vmem:[%s62 + $0xf30] sm:$0xff]
          %1037 = vst [vmem:[%s63 + $0xf30] sm:$0xff] %v1036
          %v1038 = vld [vmem:[%s62 + $0xf38] sm:$0xff]
          %1039 = vst [vmem:[%s63 + $0xf38] sm:$0xff] %v1038
          %v1040 = vld [vmem:[%s62 + $0xf40] sm:$0xff]
          %1041 = vst [vmem:[%s63 + $0xf40] sm:$0xff] %v1040
          %v1042 = vld [vmem:[%s62 + $0xf48] sm:$0xff]
          %1043 = vst [vmem:[%s63 + $0xf48] sm:$0xff] %v1042
          %v1044 = vld [vmem:[%s62 + $0xf50] sm:$0xff]
          %1045 = vst [vmem:[%s63 + $0xf50] sm:$0xff] %v1044
          %v1046 = vld [vmem:[%s62 + $0xf58] sm:$0xff]
          %1047 = vst [vmem:[%s63 + $0xf58] sm:$0xff] %v1046
          %v1048 = vld [vmem:[%s62 + $0xf60] sm:$0xff]
          %1049 = vst [vmem:[%s63 + $0xf60] sm:$0xff] %v1048
          %v1050 = vld [vmem:[%s62 + $0xf68] sm:$0xff]
          %1051 = vst [vmem:[%s63 + $0xf68] sm:$0xff] %v1050
          %v1052 = vld [vmem:[%s62 + $0xf70] sm:$0xff]
          %1053 = vst [vmem:[%s63 + $0xf70] sm:$0xff] %v1052
          %v1054 = vld [vmem:[%s62 + $0xf78] sm:$0xff]
          %1055 = vst [vmem:[%s63 + $0xf78] sm:$0xff] %v1054
          %v1056 = vld [vmem:[%s62 + $0xf80] sm:$0xff]
          %1057 = vst [vmem:[%s63 + $0xf80] sm:$0xff] %v1056
          %v1058 = vld [vmem:[%s62 + $0xf88] sm:$0xff]
          %1059 = vst [vmem:[%s63 + $0xf88] sm:$0xff] %v1058
          %v1060 = vld [vmem:[%s62 + $0xf90] sm:$0xff]
          %1061 = vst [vmem:[%s63 + $0xf90] sm:$0xff] %v1060
          %v1062 = vld [vmem:[%s62 + $0xf98] sm:$0xff]
          %1063 = vst [vmem:[%s63 + $0xf98] sm:$0xff] %v1062
          %v1064 = vld [vmem:[%s62 + $0xfa0] sm:$0xff]
          %1065 = vst [vmem:[%s63 + $0xfa0] sm:$0xff] %v1064
          %v1066 = vld [vmem:[%s62 + $0xfa8] sm:$0xff]
          %1067 = vst [vmem:[%s63 + $0xfa8] sm:$0xff] %v1066
          %v1068 = vld [vmem:[%s62 + $0xfb0] sm:$0xff]
          %1069 = vst [vmem:[%s63 + $0xfb0] sm:$0xff] %v1068
          %v1070 = vld [vmem:[%s62 + $0xfb8] sm:$0xff]
          %1071 = vst [vmem:[%s63 + $0xfb8] sm:$0xff] %v1070
          %v1072 = vld [vmem:[%s62 + $0xfc0] sm:$0xff]
          %1073 = vst [vmem:[%s63 + $0xfc0] sm:$0xff] %v1072
          %v1074 = vld [vmem:[%s62 + $0xfc8] sm:$0xff]
          %1075 = vst [vmem:[%s63 + $0xfc8] sm:$0xff] %v1074
          %v1076 = vld [vmem:[%s62 + $0xfd0] sm:$0xff]
          %1077 = vst [vmem:[%s63 + $0xfd0] sm:$0xff] %v1076
          %v1078 = vld [vmem:[%s62 + $0xfd8] sm:$0xff]
          %1079 = vst [vmem:[%s63 + $0xfd8] sm:$0xff] %v1078
          %v1080 = vld [vmem:[%s62 + $0xfe0] sm:$0xff]
          %1081 = vst [vmem:[%s63 + $0xfe0] sm:$0xff] %v1080
          %v1082 = vld [vmem:[%s62 + $0xfe8] sm:$0xff]
          %1083 = vst [vmem:[%s63 + $0xfe8] sm:$0xff] %v1082
          %v1084 = vld [vmem:[%s62 + $0xff0] sm:$0xff]
          %1085 = vst [vmem:[%s63 + $0xff0] sm:$0xff] %v1084
          %v1086 = vld [vmem:[%s62 + $0xff8] sm:$0xff]
          %1087 = vst [vmem:[%s63 + $0xff8] sm:$0xff] %v1086
          %v1088 = vld [vmem:[%s62 + $0x1000] sm:$0xff]
          %1089 = vst [vmem:[%s63 + $0x1000] sm:$0xff] %v1088
          %v1090 = vld [vmem:[%s62 + $0x1008] sm:$0xff]
          %1091 = vst [vmem:[%s63 + $0x1008] sm:$0xff] %v1090
          %v1092 = vld [vmem:[%s62 + $0x1010] sm:$0xff]
          %1093 = vst [vmem:[%s63 + $0x1010] sm:$0xff] %v1092
          %v1094 = vld [vmem:[%s62 + $0x1018] sm:$0xff]
          %1095 = vst [vmem:[%s63 + $0x1018] sm:$0xff] %v1094
          %v1096 = vld [vmem:[%s62 + $0x1020] sm:$0xff]
          %1097 = vst [vmem:[%s63 + $0x1020] sm:$0xff] %v1096
          %v1098 = vld [vmem:[%s62 + $0x1028] sm:$0xff]
          %1099 = vst [vmem:[%s63 + $0x1028] sm:$0xff] %v1098
          %v1100 = vld [vmem:[%s62 + $0x1030] sm:$0xff]
          %1101 = vst [vmem:[%s63 + $0x1030] sm:$0xff] %v1100
          %v1102 = vld [vmem:[%s62 + $0x1038] sm:$0xff]
          %1103 = vst [vmem:[%s63 + $0x1038] sm:$0xff] %v1102
          %v1104 = vld [vmem:[%s62 + $0x1040] sm:$0xff]
          %1105 = vst [vmem:[%s63 + $0x1040] sm:$0xff] %v1104
          %v1106 = vld [vmem:[%s62 + $0x1048] sm:$0xff]
          %1107 = vst [vmem:[%s63 + $0x1048] sm:$0xff] %v1106
          %v1108 = vld [vmem:[%s62 + $0x1050] sm:$0xff]
          %1109 = vst [vmem:[%s63 + $0x1050] sm:$0xff] %v1108
          %v1110 = vld [vmem:[%s62 + $0x1058] sm:$0xff]
          %1111 = vst [vmem:[%s63 + $0x1058] sm:$0xff] %v1110
          %v1112 = vld [vmem:[%s62 + $0x1060] sm:$0xff]
          %1113 = vst [vmem:[%s63 + $0x1060] sm:$0xff] %v1112
          %v1114 = vld [vmem:[%s62 + $0x1068] sm:$0xff]
          %1115 = vst [vmem:[%s63 + $0x1068] sm:$0xff] %v1114
          %v1116 = vld [vmem:[%s62 + $0x1070] sm:$0xff]
          %1117 = vst [vmem:[%s63 + $0x1070] sm:$0xff] %v1116
          %v1118 = vld [vmem:[%s62 + $0x1078] sm:$0xff]
          %1119 = vst [vmem:[%s63 + $0x1078] sm:$0xff] %v1118
          %v1120 = vld [vmem:[%s62 + $0x1080] sm:$0xff]
          %1121 = vst [vmem:[%s63 + $0x1080] sm:$0xff] %v1120
          %v1122 = vld [vmem:[%s62 + $0x1088] sm:$0xff]
          %1123 = vst [vmem:[%s63 + $0x1088] sm:$0xff] %v1122
          %v1124 = vld [vmem:[%s62 + $0x1090] sm:$0xff]
          %1125 = vst [vmem:[%s63 + $0x1090] sm:$0xff] %v1124
          %v1126 = vld [vmem:[%s62 + $0x1098] sm:$0xff]
          %1127 = vst [vmem:[%s63 + $0x1098] sm:$0xff] %v1126
          %v1128 = vld [vmem:[%s62 + $0x10a0] sm:$0xff]
          %1129 = vst [vmem:[%s63 + $0x10a0] sm:$0xff] %v1128
          %v1130 = vld [vmem:[%s62 + $0x10a8] sm:$0xff]
          %1131 = vst [vmem:[%s63 + $0x10a8] sm:$0xff] %v1130
          %v1132 = vld [vmem:[%s62 + $0x10b0] sm:$0xff]
          %1133 = vst [vmem:[%s63 + $0x10b0] sm:$0xff] %v1132
          %v1134 = vld [vmem:[%s62 + $0x10b8] sm:$0xff]
          %1135 = vst [vmem:[%s63 + $0x10b8] sm:$0xff] %v1134
          %v1136 = vld [vmem:[%s62 + $0x10c0] sm:$0xff]
          %1137 = vst [vmem:[%s63 + $0x10c0] sm:$0xff] %v1136
          %v1138 = vld [vmem:[%s62 + $0x10c8] sm:$0xff]
          %1139 = vst [vmem:[%s63 + $0x10c8] sm:$0xff] %v1138
          %v1140 = vld [vmem:[%s62 + $0x10d0] sm:$0xff]
          %1141 = vst [vmem:[%s63 + $0x10d0] sm:$0xff] %v1140
          %v1142 = vld [vmem:[%s62 + $0x10d8] sm:$0xff]
          %1143 = vst [vmem:[%s63 + $0x10d8] sm:$0xff] %v1142
          %v1144 = vld [vmem:[%s62 + $0x10e0] sm:$0xff]
          %1145 = vst [vmem:[%s63 + $0x10e0] sm:$0xff] %v1144
          %v1146 = vld [vmem:[%s62 + $0x10e8] sm:$0xff]
          %1147 = vst [vmem:[%s63 + $0x10e8] sm:$0xff] %v1146
          %v1148 = vld [vmem:[%s62 + $0x10f0] sm:$0xff]
          %1149 = vst [vmem:[%s63 + $0x10f0] sm:$0xff] %v1148
          %v1150 = vld [vmem:[%s62 + $0x10f8] sm:$0xff]
          %1151 = vst [vmem:[%s63 + $0x10f8] sm:$0xff] %v1150
          %v1152 = vld [vmem:[%s62 + $0x1100] sm:$0xff]
          %1153 = vst [vmem:[%s63 + $0x1100] sm:$0xff] %v1152
          %v1154 = vld [vmem:[%s62 + $0x1108] sm:$0xff]
          %1155 = vst [vmem:[%s63 + $0x1108] sm:$0xff] %v1154
          %v1156 = vld [vmem:[%s62 + $0x1110] sm:$0xff]
          %1157 = vst [vmem:[%s63 + $0x1110] sm:$0xff] %v1156
          %v1158 = vld [vmem:[%s62 + $0x1118] sm:$0xff]
          %1159 = vst [vmem:[%s63 + $0x1118] sm:$0xff] %v1158
          %v1160 = vld [vmem:[%s62 + $0x1120] sm:$0xff]
          %1161 = vst [vmem:[%s63 + $0x1120] sm:$0xff] %v1160
          %v1162 = vld [vmem:[%s62 + $0x1128] sm:$0xff]
          %1163 = vst [vmem:[%s63 + $0x1128] sm:$0xff] %v1162
          %v1164 = vld [vmem:[%s62 + $0x1130] sm:$0xff]
          %1165 = vst [vmem:[%s63 + $0x1130] sm:$0xff] %v1164
          %v1166 = vld [vmem:[%s62 + $0x1138] sm:$0xff]
          %1167 = vst [vmem:[%s63 + $0x1138] sm:$0xff] %v1166
          %v1168 = vld [vmem:[%s62 + $0x1140] sm:$0xff]
          %1169 = vst [vmem:[%s63 + $0x1140] sm:$0xff] %v1168
          %v1170 = vld [vmem:[%s62 + $0x1148] sm:$0xff]
          %1171 = vst [vmem:[%s63 + $0x1148] sm:$0xff] %v1170
          %v1172 = vld [vmem:[%s62 + $0x1150] sm:$0xff]
          %1173 = vst [vmem:[%s63 + $0x1150] sm:$0xff] %v1172
          %v1174 = vld [vmem:[%s62 + $0x1158] sm:$0xff]
          %1175 = vst [vmem:[%s63 + $0x1158] sm:$0xff] %v1174
          %v1176 = vld [vmem:[%s62 + $0x1160] sm:$0xff]
          %1177 = vst [vmem:[%s63 + $0x1160] sm:$0xff] %v1176
          %v1178 = vld [vmem:[%s62 + $0x1168] sm:$0xff]
          %1179 = vst [vmem:[%s63 + $0x1168] sm:$0xff] %v1178
          %v1180 = vld [vmem:[%s62 + $0x1170] sm:$0xff]
          %1181 = vst [vmem:[%s63 + $0x1170] sm:$0xff] %v1180
          %v1182 = vld [vmem:[%s62 + $0x1178] sm:$0xff]
          %1183 = vst [vmem:[%s63 + $0x1178] sm:$0xff] %v1182
          %v1184 = vld [vmem:[%s62 + $0x1180] sm:$0xff]
          %1185 = vst [vmem:[%s63 + $0x1180] sm:$0xff] %v1184
          %v1186 = vld [vmem:[%s62 + $0x1188] sm:$0xff]
          %1187 = vst [vmem:[%s63 + $0x1188] sm:$0xff] %v1186
          %v1188 = vld [vmem:[%s62 + $0x1190] sm:$0xff]
          %1189 = vst [vmem:[%s63 + $0x1190] sm:$0xff] %v1188
          %v1190 = vld [vmem:[%s62 + $0x1198] sm:$0xff]
          %1191 = vst [vmem:[%s63 + $0x1198] sm:$0xff] %v1190
          %v1192 = vld [vmem:[%s62 + $0x11a0] sm:$0xff]
          %1193 = vst [vmem:[%s63 + $0x11a0] sm:$0xff] %v1192
          %v1194 = vld [vmem:[%s62 + $0x11a8] sm:$0xff]
          %1195 = vst [vmem:[%s63 + $0x11a8] sm:$0xff] %v1194
          %v1196 = vld [vmem:[%s62 + $0x11b0] sm:$0xff]
          %1197 = vst [vmem:[%s63 + $0x11b0] sm:$0xff] %v1196
          %v1198 = vld [vmem:[%s62 + $0x11b8] sm:$0xff]
          %1199 = vst [vmem:[%s63 + $0x11b8] sm:$0xff] %v1198
          %v1200 = vld [vmem:[%s62 + $0x11c0] sm:$0xff]
          %1201 = vst [vmem:[%s63 + $0x11c0] sm:$0xff] %v1200
          %v1202 = vld [vmem:[%s62 + $0x11c8] sm:$0xff]
          %1203 = vst [vmem:[%s63 + $0x11c8] sm:$0xff] %v1202
          %v1204 = vld [vmem:[%s62 + $0x11d0] sm:$0xff]
          %1205 = vst [vmem:[%s63 + $0x11d0] sm:$0xff] %v1204
          %v1206 = vld [vmem:[%s62 + $0x11d8] sm:$0xff]
          %1207 = vst [vmem:[%s63 + $0x11d8] sm:$0xff] %v1206
          %v1208 = vld [vmem:[%s62 + $0x11e0] sm:$0xff]
          %1209 = vst [vmem:[%s63 + $0x11e0] sm:$0xff] %v1208
          %v1210 = vld [vmem:[%s62 + $0x11e8] sm:$0xff]
          %1211 = vst [vmem:[%s63 + $0x11e8] sm:$0xff] %v1210
          %v1212 = vld [vmem:[%s62 + $0x11f0] sm:$0xff]
          %1213 = vst [vmem:[%s63 + $0x11f0] sm:$0xff] %v1212
          %v1214 = vld [vmem:[%s62 + $0x11f8] sm:$0xff]
          %1215 = vst [vmem:[%s63 + $0x11f8] sm:$0xff] %v1214
        $region57: #{net_forward.1} parent=51 // loop_footer
          %s61 = sadd.s32 1, %s57
        $region58: #{net_forward.1} parent=51 // loop_footer_branch
          %56 = sbr.rel target = $region54
        $region59: #{net_forward.1} parent=51 // loop_exit
          _
      $region52: #{net_forward.1} parent=36 // pred_fallthru
        _
      %p1216 = pneg %p52
      // Predicated region
      $region60: #{net_forward.1} parent=36 // pred_check
        _
      $region61: #{net_forward.1} parent=36 // pred_check_branch
        %1218 = sbr.rel (%p52) target = $region63
      $region62: #{net_forward.1} parent=36 // pred_region
        %s1219 = sand.u32 4608, 7
      $region63: #{net_forward.1} parent=36 // pred_fallthru
        _
    $region37: #{net_forward.1} parent=1 // pred_fallthru
      _
    // Predicated region
    $region38: #{net_forward.1} parent=1 // pred_check
      %p37 = pneg %p33
    $region39: #{net_forward.1} parent=1 // pred_check_branch
      %39 = sbr.rel (%p37) target = $region41
    $region40: #{net_forward.1} parent=1 // pred_region
      %s40 = sshllo.u32 0, 4608
      loop: start=0, step=1, limit=1
      $region42: #{net_forward.1} parent=40 // loop_pre_header
        _
      $region43: #{net_forward.1} parent=40 // loop_header
        %s42 = sphi 0, %s46
        %p43 = scmp.ge.s32.totalorder %s42, 1
        %s47 = sphi %s3, %s3
        %s48 = sphi [#allocation3], [#allocation3]
      $region44: #{net_forward.1} parent=40 // loop_header_branch
        %45 = sbr.rel (%p43) target = $region48
      $region45: #{net_forward.1} parent=40 // loop_body
        %v49 = vld [vmem:[%s47] sm:%s40]
        %50 = vst [vmem:[%s48] sm:%s40] %v49
      $region46: #{net_forward.1} parent=40 // loop_footer
        %s46 = sadd.s32 1, %s42
      $region47: #{net_forward.1} parent=40 // loop_footer_branch
        %41 = sbr.rel target = $region43
      $region48: #{net_forward.1} parent=40 // loop_exit
        _
    $region41: #{net_forward.1} parent=1 // pred_fallthru
      _
    // Predicated region
    $region64: #{net_forward.1} parent=1 // pred_check
      _
    $region65: #{net_forward.1} parent=1 // pred_check_branch
      %1222 = sbr.rel (0) target = $region67
    $region66: #{net_forward.1} parent=1 // pred_region
      %1223 = vsyncadd [#allocation5], 73728
    $region67: #{net_forward.1} parent=1 // pred_fallthru
      _
    %s1224 = scalar_lea.sflag [#allocation5], 1
    %p1226 = scmp.lt.u32.totalorder 4096, 8
    %p1227 = pneg %p1226
    // Predicated region
    $region68: #{net_forward.1} parent=1 // pred_check
      _
    $region69: #{net_forward.1} parent=1 // pred_check_branch
      %1229 = sbr.rel (%p1226) target = $region71
    $region70: #{net_forward.1} parent=1 // pred_region
      %s1244 = sand.u32 4096, 7
      %p1245 = scmp.eq.s32.totalorder %s1244, 0
      // Predicated region
      $region83: #{net_forward.1} parent=70 // pred_check
        %p1246 = pneg %p1245
      $region84: #{net_forward.1} parent=70 // pred_check_branch
        %1248 = sbr.rel (%p1246) target = $region86
      $region85: #{net_forward.1} parent=70 // pred_region
        loop: start=0, step=1, limit=1
        $region87: #{net_forward.1} parent=85 // loop_pre_header
          _
        $region88: #{net_forward.1} parent=85 // loop_header
          %s1250 = sphi 0, %s1254
          %p1251 = scmp.ge.s32.totalorder %s1250, 1
          %s1255 = sphi %s6, %s6
          %s1256 = sphi [#allocation4], [#allocation4]
        $region89: #{net_forward.1} parent=85 // loop_header_branch
          %1253 = sbr.rel (%p1251) target = $region93
        $region90: #{net_forward.1} parent=85 // loop_body
          %v1257 = vld [vmem:[%s1255] sm:$0xff]
          %1258 = vst [vmem:[%s1256] sm:$0xff] %v1257
          %v1259 = vld [vmem:[%s1255 + $0x8] sm:$0xff]
          %1260 = vst [vmem:[%s1256 + $0x8] sm:$0xff] %v1259
          %v1261 = vld [vmem:[%s1255 + $0x10] sm:$0xff]
          %1262 = vst [vmem:[%s1256 + $0x10] sm:$0xff] %v1261
          %v1263 = vld [vmem:[%s1255 + $0x18] sm:$0xff]
          %1264 = vst [vmem:[%s1256 + $0x18] sm:$0xff] %v1263
          %v1265 = vld [vmem:[%s1255 + $0x20] sm:$0xff]
          %1266 = vst [vmem:[%s1256 + $0x20] sm:$0xff] %v1265
          %v1267 = vld [vmem:[%s1255 + $0x28] sm:$0xff]
          %1268 = vst [vmem:[%s1256 + $0x28] sm:$0xff] %v1267
          %v1269 = vld [vmem:[%s1255 + $0x30] sm:$0xff]
          %1270 = vst [vmem:[%s1256 + $0x30] sm:$0xff] %v1269
          %v1271 = vld [vmem:[%s1255 + $0x38] sm:$0xff]
          %1272 = vst [vmem:[%s1256 + $0x38] sm:$0xff] %v1271
          %v1273 = vld [vmem:[%s1255 + $0x40] sm:$0xff]
          %1274 = vst [vmem:[%s1256 + $0x40] sm:$0xff] %v1273
          %v1275 = vld [vmem:[%s1255 + $0x48] sm:$0xff]
          %1276 = vst [vmem:[%s1256 + $0x48] sm:$0xff] %v1275
          %v1277 = vld [vmem:[%s1255 + $0x50] sm:$0xff]
          %1278 = vst [vmem:[%s1256 + $0x50] sm:$0xff] %v1277
          %v1279 = vld [vmem:[%s1255 + $0x58] sm:$0xff]
          %1280 = vst [vmem:[%s1256 + $0x58] sm:$0xff] %v1279
          %v1281 = vld [vmem:[%s1255 + $0x60] sm:$0xff]
          %1282 = vst [vmem:[%s1256 + $0x60] sm:$0xff] %v1281
          %v1283 = vld [vmem:[%s1255 + $0x68] sm:$0xff]
          %1284 = vst [vmem:[%s1256 + $0x68] sm:$0xff] %v1283
          %v1285 = vld [vmem:[%s1255 + $0x70] sm:$0xff]
          %1286 = vst [vmem:[%s1256 + $0x70] sm:$0xff] %v1285
          %v1287 = vld [vmem:[%s1255 + $0x78] sm:$0xff]
          %1288 = vst [vmem:[%s1256 + $0x78] sm:$0xff] %v1287
          %v1289 = vld [vmem:[%s1255 + $0x80] sm:$0xff]
          %1290 = vst [vmem:[%s1256 + $0x80] sm:$0xff] %v1289
          %v1291 = vld [vmem:[%s1255 + $0x88] sm:$0xff]
          %1292 = vst [vmem:[%s1256 + $0x88] sm:$0xff] %v1291
          %v1293 = vld [vmem:[%s1255 + $0x90] sm:$0xff]
          %1294 = vst [vmem:[%s1256 + $0x90] sm:$0xff] %v1293
          %v1295 = vld [vmem:[%s1255 + $0x98] sm:$0xff]
          %1296 = vst [vmem:[%s1256 + $0x98] sm:$0xff] %v1295
          %v1297 = vld [vmem:[%s1255 + $0xa0] sm:$0xff]
          %1298 = vst [vmem:[%s1256 + $0xa0] sm:$0xff] %v1297
          %v1299 = vld [vmem:[%s1255 + $0xa8] sm:$0xff]
          %1300 = vst [vmem:[%s1256 + $0xa8] sm:$0xff] %v1299
          %v1301 = vld [vmem:[%s1255 + $0xb0] sm:$0xff]
          %1302 = vst [vmem:[%s1256 + $0xb0] sm:$0xff] %v1301
          %v1303 = vld [vmem:[%s1255 + $0xb8] sm:$0xff]
          %1304 = vst [vmem:[%s1256 + $0xb8] sm:$0xff] %v1303
          %v1305 = vld [vmem:[%s1255 + $0xc0] sm:$0xff]
          %1306 = vst [vmem:[%s1256 + $0xc0] sm:$0xff] %v1305
          %v1307 = vld [vmem:[%s1255 + $0xc8] sm:$0xff]
          %1308 = vst [vmem:[%s1256 + $0xc8] sm:$0xff] %v1307
          %v1309 = vld [vmem:[%s1255 + $0xd0] sm:$0xff]
          %1310 = vst [vmem:[%s1256 + $0xd0] sm:$0xff] %v1309
          %v1311 = vld [vmem:[%s1255 + $0xd8] sm:$0xff]
          %1312 = vst [vmem:[%s1256 + $0xd8] sm:$0xff] %v1311
          %v1313 = vld [vmem:[%s1255 + $0xe0] sm:$0xff]
          %1314 = vst [vmem:[%s1256 + $0xe0] sm:$0xff] %v1313
          %v1315 = vld [vmem:[%s1255 + $0xe8] sm:$0xff]
          %1316 = vst [vmem:[%s1256 + $0xe8] sm:$0xff] %v1315
          %v1317 = vld [vmem:[%s1255 + $0xf0] sm:$0xff]
          %1318 = vst [vmem:[%s1256 + $0xf0] sm:$0xff] %v1317
          %v1319 = vld [vmem:[%s1255 + $0xf8] sm:$0xff]
          %1320 = vst [vmem:[%s1256 + $0xf8] sm:$0xff] %v1319
          %v1321 = vld [vmem:[%s1255 + $0x100] sm:$0xff]
          %1322 = vst [vmem:[%s1256 + $0x100] sm:$0xff] %v1321
          %v1323 = vld [vmem:[%s1255 + $0x108] sm:$0xff]
          %1324 = vst [vmem:[%s1256 + $0x108] sm:$0xff] %v1323
          %v1325 = vld [vmem:[%s1255 + $0x110] sm:$0xff]
          %1326 = vst [vmem:[%s1256 + $0x110] sm:$0xff] %v1325
          %v1327 = vld [vmem:[%s1255 + $0x118] sm:$0xff]
          %1328 = vst [vmem:[%s1256 + $0x118] sm:$0xff] %v1327
          %v1329 = vld [vmem:[%s1255 + $0x120] sm:$0xff]
          %1330 = vst [vmem:[%s1256 + $0x120] sm:$0xff] %v1329
          %v1331 = vld [vmem:[%s1255 + $0x128] sm:$0xff]
          %1332 = vst [vmem:[%s1256 + $0x128] sm:$0xff] %v1331
          %v1333 = vld [vmem:[%s1255 + $0x130] sm:$0xff]
          %1334 = vst [vmem:[%s1256 + $0x130] sm:$0xff] %v1333
          %v1335 = vld [vmem:[%s1255 + $0x138] sm:$0xff]
          %1336 = vst [vmem:[%s1256 + $0x138] sm:$0xff] %v1335
          %v1337 = vld [vmem:[%s1255 + $0x140] sm:$0xff]
          %1338 = vst [vmem:[%s1256 + $0x140] sm:$0xff] %v1337
          %v1339 = vld [vmem:[%s1255 + $0x148] sm:$0xff]
          %1340 = vst [vmem:[%s1256 + $0x148] sm:$0xff] %v1339
          %v1341 = vld [vmem:[%s1255 + $0x150] sm:$0xff]
          %1342 = vst [vmem:[%s1256 + $0x150] sm:$0xff] %v1341
          %v1343 = vld [vmem:[%s1255 + $0x158] sm:$0xff]
          %1344 = vst [vmem:[%s1256 + $0x158] sm:$0xff] %v1343
          %v1345 = vld [vmem:[%s1255 + $0x160] sm:$0xff]
          %1346 = vst [vmem:[%s1256 + $0x160] sm:$0xff] %v1345
          %v1347 = vld [vmem:[%s1255 + $0x168] sm:$0xff]
          %1348 = vst [vmem:[%s1256 + $0x168] sm:$0xff] %v1347
          %v1349 = vld [vmem:[%s1255 + $0x170] sm:$0xff]
          %1350 = vst [vmem:[%s1256 + $0x170] sm:$0xff] %v1349
          %v1351 = vld [vmem:[%s1255 + $0x178] sm:$0xff]
          %1352 = vst [vmem:[%s1256 + $0x178] sm:$0xff] %v1351
          %v1353 = vld [vmem:[%s1255 + $0x180] sm:$0xff]
          %1354 = vst [vmem:[%s1256 + $0x180] sm:$0xff] %v1353
          %v1355 = vld [vmem:[%s1255 + $0x188] sm:$0xff]
          %1356 = vst [vmem:[%s1256 + $0x188] sm:$0xff] %v1355
          %v1357 = vld [vmem:[%s1255 + $0x190] sm:$0xff]
          %1358 = vst [vmem:[%s1256 + $0x190] sm:$0xff] %v1357
          %v1359 = vld [vmem:[%s1255 + $0x198] sm:$0xff]
          %1360 = vst [vmem:[%s1256 + $0x198] sm:$0xff] %v1359
          %v1361 = vld [vmem:[%s1255 + $0x1a0] sm:$0xff]
          %1362 = vst [vmem:[%s1256 + $0x1a0] sm:$0xff] %v1361
          %v1363 = vld [vmem:[%s1255 + $0x1a8] sm:$0xff]
          %1364 = vst [vmem:[%s1256 + $0x1a8] sm:$0xff] %v1363
          %v1365 = vld [vmem:[%s1255 + $0x1b0] sm:$0xff]
          %1366 = vst [vmem:[%s1256 + $0x1b0] sm:$0xff] %v1365
          %v1367 = vld [vmem:[%s1255 + $0x1b8] sm:$0xff]
          %1368 = vst [vmem:[%s1256 + $0x1b8] sm:$0xff] %v1367
          %v1369 = vld [vmem:[%s1255 + $0x1c0] sm:$0xff]
          %1370 = vst [vmem:[%s1256 + $0x1c0] sm:$0xff] %v1369
          %v1371 = vld [vmem:[%s1255 + $0x1c8] sm:$0xff]
          %1372 = vst [vmem:[%s1256 + $0x1c8] sm:$0xff] %v1371
          %v1373 = vld [vmem:[%s1255 + $0x1d0] sm:$0xff]
          %1374 = vst [vmem:[%s1256 + $0x1d0] sm:$0xff] %v1373
          %v1375 = vld [vmem:[%s1255 + $0x1d8] sm:$0xff]
          %1376 = vst [vmem:[%s1256 + $0x1d8] sm:$0xff] %v1375
          %v1377 = vld [vmem:[%s1255 + $0x1e0] sm:$0xff]
          %1378 = vst [vmem:[%s1256 + $0x1e0] sm:$0xff] %v1377
          %v1379 = vld [vmem:[%s1255 + $0x1e8] sm:$0xff]
          %1380 = vst [vmem:[%s1256 + $0x1e8] sm:$0xff] %v1379
          %v1381 = vld [vmem:[%s1255 + $0x1f0] sm:$0xff]
          %1382 = vst [vmem:[%s1256 + $0x1f0] sm:$0xff] %v1381
          %v1383 = vld [vmem:[%s1255 + $0x1f8] sm:$0xff]
          %1384 = vst [vmem:[%s1256 + $0x1f8] sm:$0xff] %v1383
          %v1385 = vld [vmem:[%s1255 + $0x200] sm:$0xff]
          %1386 = vst [vmem:[%s1256 + $0x200] sm:$0xff] %v1385
          %v1387 = vld [vmem:[%s1255 + $0x208] sm:$0xff]
          %1388 = vst [vmem:[%s1256 + $0x208] sm:$0xff] %v1387
          %v1389 = vld [vmem:[%s1255 + $0x210] sm:$0xff]
          %1390 = vst [vmem:[%s1256 + $0x210] sm:$0xff] %v1389
          %v1391 = vld [vmem:[%s1255 + $0x218] sm:$0xff]
          %1392 = vst [vmem:[%s1256 + $0x218] sm:$0xff] %v1391
          %v1393 = vld [vmem:[%s1255 + $0x220] sm:$0xff]
          %1394 = vst [vmem:[%s1256 + $0x220] sm:$0xff] %v1393
          %v1395 = vld [vmem:[%s1255 + $0x228] sm:$0xff]
          %1396 = vst [vmem:[%s1256 + $0x228] sm:$0xff] %v1395
          %v1397 = vld [vmem:[%s1255 + $0x230] sm:$0xff]
          %1398 = vst [vmem:[%s1256 + $0x230] sm:$0xff] %v1397
          %v1399 = vld [vmem:[%s1255 + $0x238] sm:$0xff]
          %1400 = vst [vmem:[%s1256 + $0x238] sm:$0xff] %v1399
          %v1401 = vld [vmem:[%s1255 + $0x240] sm:$0xff]
          %1402 = vst [vmem:[%s1256 + $0x240] sm:$0xff] %v1401
          %v1403 = vld [vmem:[%s1255 + $0x248] sm:$0xff]
          %1404 = vst [vmem:[%s1256 + $0x248] sm:$0xff] %v1403
          %v1405 = vld [vmem:[%s1255 + $0x250] sm:$0xff]
          %1406 = vst [vmem:[%s1256 + $0x250] sm:$0xff] %v1405
          %v1407 = vld [vmem:[%s1255 + $0x258] sm:$0xff]
          %1408 = vst [vmem:[%s1256 + $0x258] sm:$0xff] %v1407
          %v1409 = vld [vmem:[%s1255 + $0x260] sm:$0xff]
          %1410 = vst [vmem:[%s1256 + $0x260] sm:$0xff] %v1409
          %v1411 = vld [vmem:[%s1255 + $0x268] sm:$0xff]
          %1412 = vst [vmem:[%s1256 + $0x268] sm:$0xff] %v1411
          %v1413 = vld [vmem:[%s1255 + $0x270] sm:$0xff]
          %1414 = vst [vmem:[%s1256 + $0x270] sm:$0xff] %v1413
          %v1415 = vld [vmem:[%s1255 + $0x278] sm:$0xff]
          %1416 = vst [vmem:[%s1256 + $0x278] sm:$0xff] %v1415
          %v1417 = vld [vmem:[%s1255 + $0x280] sm:$0xff]
          %1418 = vst [vmem:[%s1256 + $0x280] sm:$0xff] %v1417
          %v1419 = vld [vmem:[%s1255 + $0x288] sm:$0xff]
          %1420 = vst [vmem:[%s1256 + $0x288] sm:$0xff] %v1419
          %v1421 = vld [vmem:[%s1255 + $0x290] sm:$0xff]
          %1422 = vst [vmem:[%s1256 + $0x290] sm:$0xff] %v1421
          %v1423 = vld [vmem:[%s1255 + $0x298] sm:$0xff]
          %1424 = vst [vmem:[%s1256 + $0x298] sm:$0xff] %v1423
          %v1425 = vld [vmem:[%s1255 + $0x2a0] sm:$0xff]
          %1426 = vst [vmem:[%s1256 + $0x2a0] sm:$0xff] %v1425
          %v1427 = vld [vmem:[%s1255 + $0x2a8] sm:$0xff]
          %1428 = vst [vmem:[%s1256 + $0x2a8] sm:$0xff] %v1427
          %v1429 = vld [vmem:[%s1255 + $0x2b0] sm:$0xff]
          %1430 = vst [vmem:[%s1256 + $0x2b0] sm:$0xff] %v1429
          %v1431 = vld [vmem:[%s1255 + $0x2b8] sm:$0xff]
          %1432 = vst [vmem:[%s1256 + $0x2b8] sm:$0xff] %v1431
          %v1433 = vld [vmem:[%s1255 + $0x2c0] sm:$0xff]
          %1434 = vst [vmem:[%s1256 + $0x2c0] sm:$0xff] %v1433
          %v1435 = vld [vmem:[%s1255 + $0x2c8] sm:$0xff]
          %1436 = vst [vmem:[%s1256 + $0x2c8] sm:$0xff] %v1435
          %v1437 = vld [vmem:[%s1255 + $0x2d0] sm:$0xff]
          %1438 = vst [vmem:[%s1256 + $0x2d0] sm:$0xff] %v1437
          %v1439 = vld [vmem:[%s1255 + $0x2d8] sm:$0xff]
          %1440 = vst [vmem:[%s1256 + $0x2d8] sm:$0xff] %v1439
          %v1441 = vld [vmem:[%s1255 + $0x2e0] sm:$0xff]
          %1442 = vst [vmem:[%s1256 + $0x2e0] sm:$0xff] %v1441
          %v1443 = vld [vmem:[%s1255 + $0x2e8] sm:$0xff]
          %1444 = vst [vmem:[%s1256 + $0x2e8] sm:$0xff] %v1443
          %v1445 = vld [vmem:[%s1255 + $0x2f0] sm:$0xff]
          %1446 = vst [vmem:[%s1256 + $0x2f0] sm:$0xff] %v1445
          %v1447 = vld [vmem:[%s1255 + $0x2f8] sm:$0xff]
          %1448 = vst [vmem:[%s1256 + $0x2f8] sm:$0xff] %v1447
          %v1449 = vld [vmem:[%s1255 + $0x300] sm:$0xff]
          %1450 = vst [vmem:[%s1256 + $0x300] sm:$0xff] %v1449
          %v1451 = vld [vmem:[%s1255 + $0x308] sm:$0xff]
          %1452 = vst [vmem:[%s1256 + $0x308] sm:$0xff] %v1451
          %v1453 = vld [vmem:[%s1255 + $0x310] sm:$0xff]
          %1454 = vst [vmem:[%s1256 + $0x310] sm:$0xff] %v1453
          %v1455 = vld [vmem:[%s1255 + $0x318] sm:$0xff]
          %1456 = vst [vmem:[%s1256 + $0x318] sm:$0xff] %v1455
          %v1457 = vld [vmem:[%s1255 + $0x320] sm:$0xff]
          %1458 = vst [vmem:[%s1256 + $0x320] sm:$0xff] %v1457
          %v1459 = vld [vmem:[%s1255 + $0x328] sm:$0xff]
          %1460 = vst [vmem:[%s1256 + $0x328] sm:$0xff] %v1459
          %v1461 = vld [vmem:[%s1255 + $0x330] sm:$0xff]
          %1462 = vst [vmem:[%s1256 + $0x330] sm:$0xff] %v1461
          %v1463 = vld [vmem:[%s1255 + $0x338] sm:$0xff]
          %1464 = vst [vmem:[%s1256 + $0x338] sm:$0xff] %v1463
          %v1465 = vld [vmem:[%s1255 + $0x340] sm:$0xff]
          %1466 = vst [vmem:[%s1256 + $0x340] sm:$0xff] %v1465
          %v1467 = vld [vmem:[%s1255 + $0x348] sm:$0xff]
          %1468 = vst [vmem:[%s1256 + $0x348] sm:$0xff] %v1467
          %v1469 = vld [vmem:[%s1255 + $0x350] sm:$0xff]
          %1470 = vst [vmem:[%s1256 + $0x350] sm:$0xff] %v1469
          %v1471 = vld [vmem:[%s1255 + $0x358] sm:$0xff]
          %1472 = vst [vmem:[%s1256 + $0x358] sm:$0xff] %v1471
          %v1473 = vld [vmem:[%s1255 + $0x360] sm:$0xff]
          %1474 = vst [vmem:[%s1256 + $0x360] sm:$0xff] %v1473
          %v1475 = vld [vmem:[%s1255 + $0x368] sm:$0xff]
          %1476 = vst [vmem:[%s1256 + $0x368] sm:$0xff] %v1475
          %v1477 = vld [vmem:[%s1255 + $0x370] sm:$0xff]
          %1478 = vst [vmem:[%s1256 + $0x370] sm:$0xff] %v1477
          %v1479 = vld [vmem:[%s1255 + $0x378] sm:$0xff]
          %1480 = vst [vmem:[%s1256 + $0x378] sm:$0xff] %v1479
          %v1481 = vld [vmem:[%s1255 + $0x380] sm:$0xff]
          %1482 = vst [vmem:[%s1256 + $0x380] sm:$0xff] %v1481
          %v1483 = vld [vmem:[%s1255 + $0x388] sm:$0xff]
          %1484 = vst [vmem:[%s1256 + $0x388] sm:$0xff] %v1483
          %v1485 = vld [vmem:[%s1255 + $0x390] sm:$0xff]
          %1486 = vst [vmem:[%s1256 + $0x390] sm:$0xff] %v1485
          %v1487 = vld [vmem:[%s1255 + $0x398] sm:$0xff]
          %1488 = vst [vmem:[%s1256 + $0x398] sm:$0xff] %v1487
          %v1489 = vld [vmem:[%s1255 + $0x3a0] sm:$0xff]
          %1490 = vst [vmem:[%s1256 + $0x3a0] sm:$0xff] %v1489
          %v1491 = vld [vmem:[%s1255 + $0x3a8] sm:$0xff]
          %1492 = vst [vmem:[%s1256 + $0x3a8] sm:$0xff] %v1491
          %v1493 = vld [vmem:[%s1255 + $0x3b0] sm:$0xff]
          %1494 = vst [vmem:[%s1256 + $0x3b0] sm:$0xff] %v1493
          %v1495 = vld [vmem:[%s1255 + $0x3b8] sm:$0xff]
          %1496 = vst [vmem:[%s1256 + $0x3b8] sm:$0xff] %v1495
          %v1497 = vld [vmem:[%s1255 + $0x3c0] sm:$0xff]
          %1498 = vst [vmem:[%s1256 + $0x3c0] sm:$0xff] %v1497
          %v1499 = vld [vmem:[%s1255 + $0x3c8] sm:$0xff]
          %1500 = vst [vmem:[%s1256 + $0x3c8] sm:$0xff] %v1499
          %v1501 = vld [vmem:[%s1255 + $0x3d0] sm:$0xff]
          %1502 = vst [vmem:[%s1256 + $0x3d0] sm:$0xff] %v1501
          %v1503 = vld [vmem:[%s1255 + $0x3d8] sm:$0xff]
          %1504 = vst [vmem:[%s1256 + $0x3d8] sm:$0xff] %v1503
          %v1505 = vld [vmem:[%s1255 + $0x3e0] sm:$0xff]
          %1506 = vst [vmem:[%s1256 + $0x3e0] sm:$0xff] %v1505
          %v1507 = vld [vmem:[%s1255 + $0x3e8] sm:$0xff]
          %1508 = vst [vmem:[%s1256 + $0x3e8] sm:$0xff] %v1507
          %v1509 = vld [vmem:[%s1255 + $0x3f0] sm:$0xff]
          %1510 = vst [vmem:[%s1256 + $0x3f0] sm:$0xff] %v1509
          %v1511 = vld [vmem:[%s1255 + $0x3f8] sm:$0xff]
          %1512 = vst [vmem:[%s1256 + $0x3f8] sm:$0xff] %v1511
          %v1513 = vld [vmem:[%s1255 + $0x400] sm:$0xff]
          %1514 = vst [vmem:[%s1256 + $0x400] sm:$0xff] %v1513
          %v1515 = vld [vmem:[%s1255 + $0x408] sm:$0xff]
          %1516 = vst [vmem:[%s1256 + $0x408] sm:$0xff] %v1515
          %v1517 = vld [vmem:[%s1255 + $0x410] sm:$0xff]
          %1518 = vst [vmem:[%s1256 + $0x410] sm:$0xff] %v1517
          %v1519 = vld [vmem:[%s1255 + $0x418] sm:$0xff]
          %1520 = vst [vmem:[%s1256 + $0x418] sm:$0xff] %v1519
          %v1521 = vld [vmem:[%s1255 + $0x420] sm:$0xff]
          %1522 = vst [vmem:[%s1256 + $0x420] sm:$0xff] %v1521
          %v1523 = vld [vmem:[%s1255 + $0x428] sm:$0xff]
          %1524 = vst [vmem:[%s1256 + $0x428] sm:$0xff] %v1523
          %v1525 = vld [vmem:[%s1255 + $0x430] sm:$0xff]
          %1526 = vst [vmem:[%s1256 + $0x430] sm:$0xff] %v1525
          %v1527 = vld [vmem:[%s1255 + $0x438] sm:$0xff]
          %1528 = vst [vmem:[%s1256 + $0x438] sm:$0xff] %v1527
          %v1529 = vld [vmem:[%s1255 + $0x440] sm:$0xff]
          %1530 = vst [vmem:[%s1256 + $0x440] sm:$0xff] %v1529
          %v1531 = vld [vmem:[%s1255 + $0x448] sm:$0xff]
          %1532 = vst [vmem:[%s1256 + $0x448] sm:$0xff] %v1531
          %v1533 = vld [vmem:[%s1255 + $0x450] sm:$0xff]
          %1534 = vst [vmem:[%s1256 + $0x450] sm:$0xff] %v1533
          %v1535 = vld [vmem:[%s1255 + $0x458] sm:$0xff]
          %1536 = vst [vmem:[%s1256 + $0x458] sm:$0xff] %v1535
          %v1537 = vld [vmem:[%s1255 + $0x460] sm:$0xff]
          %1538 = vst [vmem:[%s1256 + $0x460] sm:$0xff] %v1537
          %v1539 = vld [vmem:[%s1255 + $0x468] sm:$0xff]
          %1540 = vst [vmem:[%s1256 + $0x468] sm:$0xff] %v1539
          %v1541 = vld [vmem:[%s1255 + $0x470] sm:$0xff]
          %1542 = vst [vmem:[%s1256 + $0x470] sm:$0xff] %v1541
          %v1543 = vld [vmem:[%s1255 + $0x478] sm:$0xff]
          %1544 = vst [vmem:[%s1256 + $0x478] sm:$0xff] %v1543
          %v1545 = vld [vmem:[%s1255 + $0x480] sm:$0xff]
          %1546 = vst [vmem:[%s1256 + $0x480] sm:$0xff] %v1545
          %v1547 = vld [vmem:[%s1255 + $0x488] sm:$0xff]
          %1548 = vst [vmem:[%s1256 + $0x488] sm:$0xff] %v1547
          %v1549 = vld [vmem:[%s1255 + $0x490] sm:$0xff]
          %1550 = vst [vmem:[%s1256 + $0x490] sm:$0xff] %v1549
          %v1551 = vld [vmem:[%s1255 + $0x498] sm:$0xff]
          %1552 = vst [vmem:[%s1256 + $0x498] sm:$0xff] %v1551
          %v1553 = vld [vmem:[%s1255 + $0x4a0] sm:$0xff]
          %1554 = vst [vmem:[%s1256 + $0x4a0] sm:$0xff] %v1553
          %v1555 = vld [vmem:[%s1255 + $0x4a8] sm:$0xff]
          %1556 = vst [vmem:[%s1256 + $0x4a8] sm:$0xff] %v1555
          %v1557 = vld [vmem:[%s1255 + $0x4b0] sm:$0xff]
          %1558 = vst [vmem:[%s1256 + $0x4b0] sm:$0xff] %v1557
          %v1559 = vld [vmem:[%s1255 + $0x4b8] sm:$0xff]
          %1560 = vst [vmem:[%s1256 + $0x4b8] sm:$0xff] %v1559
          %v1561 = vld [vmem:[%s1255 + $0x4c0] sm:$0xff]
          %1562 = vst [vmem:[%s1256 + $0x4c0] sm:$0xff] %v1561
          %v1563 = vld [vmem:[%s1255 + $0x4c8] sm:$0xff]
          %1564 = vst [vmem:[%s1256 + $0x4c8] sm:$0xff] %v1563
          %v1565 = vld [vmem:[%s1255 + $0x4d0] sm:$0xff]
          %1566 = vst [vmem:[%s1256 + $0x4d0] sm:$0xff] %v1565
          %v1567 = vld [vmem:[%s1255 + $0x4d8] sm:$0xff]
          %1568 = vst [vmem:[%s1256 + $0x4d8] sm:$0xff] %v1567
          %v1569 = vld [vmem:[%s1255 + $0x4e0] sm:$0xff]
          %1570 = vst [vmem:[%s1256 + $0x4e0] sm:$0xff] %v1569
          %v1571 = vld [vmem:[%s1255 + $0x4e8] sm:$0xff]
          %1572 = vst [vmem:[%s1256 + $0x4e8] sm:$0xff] %v1571
          %v1573 = vld [vmem:[%s1255 + $0x4f0] sm:$0xff]
          %1574 = vst [vmem:[%s1256 + $0x4f0] sm:$0xff] %v1573
          %v1575 = vld [vmem:[%s1255 + $0x4f8] sm:$0xff]
          %1576 = vst [vmem:[%s1256 + $0x4f8] sm:$0xff] %v1575
          %v1577 = vld [vmem:[%s1255 + $0x500] sm:$0xff]
          %1578 = vst [vmem:[%s1256 + $0x500] sm:$0xff] %v1577
          %v1579 = vld [vmem:[%s1255 + $0x508] sm:$0xff]
          %1580 = vst [vmem:[%s1256 + $0x508] sm:$0xff] %v1579
          %v1581 = vld [vmem:[%s1255 + $0x510] sm:$0xff]
          %1582 = vst [vmem:[%s1256 + $0x510] sm:$0xff] %v1581
          %v1583 = vld [vmem:[%s1255 + $0x518] sm:$0xff]
          %1584 = vst [vmem:[%s1256 + $0x518] sm:$0xff] %v1583
          %v1585 = vld [vmem:[%s1255 + $0x520] sm:$0xff]
          %1586 = vst [vmem:[%s1256 + $0x520] sm:$0xff] %v1585
          %v1587 = vld [vmem:[%s1255 + $0x528] sm:$0xff]
          %1588 = vst [vmem:[%s1256 + $0x528] sm:$0xff] %v1587
          %v1589 = vld [vmem:[%s1255 + $0x530] sm:$0xff]
          %1590 = vst [vmem:[%s1256 + $0x530] sm:$0xff] %v1589
          %v1591 = vld [vmem:[%s1255 + $0x538] sm:$0xff]
          %1592 = vst [vmem:[%s1256 + $0x538] sm:$0xff] %v1591
          %v1593 = vld [vmem:[%s1255 + $0x540] sm:$0xff]
          %1594 = vst [vmem:[%s1256 + $0x540] sm:$0xff] %v1593
          %v1595 = vld [vmem:[%s1255 + $0x548] sm:$0xff]
          %1596 = vst [vmem:[%s1256 + $0x548] sm:$0xff] %v1595
          %v1597 = vld [vmem:[%s1255 + $0x550] sm:$0xff]
          %1598 = vst [vmem:[%s1256 + $0x550] sm:$0xff] %v1597
          %v1599 = vld [vmem:[%s1255 + $0x558] sm:$0xff]
          %1600 = vst [vmem:[%s1256 + $0x558] sm:$0xff] %v1599
          %v1601 = vld [vmem:[%s1255 + $0x560] sm:$0xff]
          %1602 = vst [vmem:[%s1256 + $0x560] sm:$0xff] %v1601
          %v1603 = vld [vmem:[%s1255 + $0x568] sm:$0xff]
          %1604 = vst [vmem:[%s1256 + $0x568] sm:$0xff] %v1603
          %v1605 = vld [vmem:[%s1255 + $0x570] sm:$0xff]
          %1606 = vst [vmem:[%s1256 + $0x570] sm:$0xff] %v1605
          %v1607 = vld [vmem:[%s1255 + $0x578] sm:$0xff]
          %1608 = vst [vmem:[%s1256 + $0x578] sm:$0xff] %v1607
          %v1609 = vld [vmem:[%s1255 + $0x580] sm:$0xff]
          %1610 = vst [vmem:[%s1256 + $0x580] sm:$0xff] %v1609
          %v1611 = vld [vmem:[%s1255 + $0x588] sm:$0xff]
          %1612 = vst [vmem:[%s1256 + $0x588] sm:$0xff] %v1611
          %v1613 = vld [vmem:[%s1255 + $0x590] sm:$0xff]
          %1614 = vst [vmem:[%s1256 + $0x590] sm:$0xff] %v1613
          %v1615 = vld [vmem:[%s1255 + $0x598] sm:$0xff]
          %1616 = vst [vmem:[%s1256 + $0x598] sm:$0xff] %v1615
          %v1617 = vld [vmem:[%s1255 + $0x5a0] sm:$0xff]
          %1618 = vst [vmem:[%s1256 + $0x5a0] sm:$0xff] %v1617
          %v1619 = vld [vmem:[%s1255 + $0x5a8] sm:$0xff]
          %1620 = vst [vmem:[%s1256 + $0x5a8] sm:$0xff] %v1619
          %v1621 = vld [vmem:[%s1255 + $0x5b0] sm:$0xff]
          %1622 = vst [vmem:[%s1256 + $0x5b0] sm:$0xff] %v1621
          %v1623 = vld [vmem:[%s1255 + $0x5b8] sm:$0xff]
          %1624 = vst [vmem:[%s1256 + $0x5b8] sm:$0xff] %v1623
          %v1625 = vld [vmem:[%s1255 + $0x5c0] sm:$0xff]
          %1626 = vst [vmem:[%s1256 + $0x5c0] sm:$0xff] %v1625
          %v1627 = vld [vmem:[%s1255 + $0x5c8] sm:$0xff]
          %1628 = vst [vmem:[%s1256 + $0x5c8] sm:$0xff] %v1627
          %v1629 = vld [vmem:[%s1255 + $0x5d0] sm:$0xff]
          %1630 = vst [vmem:[%s1256 + $0x5d0] sm:$0xff] %v1629
          %v1631 = vld [vmem:[%s1255 + $0x5d8] sm:$0xff]
          %1632 = vst [vmem:[%s1256 + $0x5d8] sm:$0xff] %v1631
          %v1633 = vld [vmem:[%s1255 + $0x5e0] sm:$0xff]
          %1634 = vst [vmem:[%s1256 + $0x5e0] sm:$0xff] %v1633
          %v1635 = vld [vmem:[%s1255 + $0x5e8] sm:$0xff]
          %1636 = vst [vmem:[%s1256 + $0x5e8] sm:$0xff] %v1635
          %v1637 = vld [vmem:[%s1255 + $0x5f0] sm:$0xff]
          %1638 = vst [vmem:[%s1256 + $0x5f0] sm:$0xff] %v1637
          %v1639 = vld [vmem:[%s1255 + $0x5f8] sm:$0xff]
          %1640 = vst [vmem:[%s1256 + $0x5f8] sm:$0xff] %v1639
          %v1641 = vld [vmem:[%s1255 + $0x600] sm:$0xff]
          %1642 = vst [vmem:[%s1256 + $0x600] sm:$0xff] %v1641
          %v1643 = vld [vmem:[%s1255 + $0x608] sm:$0xff]
          %1644 = vst [vmem:[%s1256 + $0x608] sm:$0xff] %v1643
          %v1645 = vld [vmem:[%s1255 + $0x610] sm:$0xff]
          %1646 = vst [vmem:[%s1256 + $0x610] sm:$0xff] %v1645
          %v1647 = vld [vmem:[%s1255 + $0x618] sm:$0xff]
          %1648 = vst [vmem:[%s1256 + $0x618] sm:$0xff] %v1647
          %v1649 = vld [vmem:[%s1255 + $0x620] sm:$0xff]
          %1650 = vst [vmem:[%s1256 + $0x620] sm:$0xff] %v1649
          %v1651 = vld [vmem:[%s1255 + $0x628] sm:$0xff]
          %1652 = vst [vmem:[%s1256 + $0x628] sm:$0xff] %v1651
          %v1653 = vld [vmem:[%s1255 + $0x630] sm:$0xff]
          %1654 = vst [vmem:[%s1256 + $0x630] sm:$0xff] %v1653
          %v1655 = vld [vmem:[%s1255 + $0x638] sm:$0xff]
          %1656 = vst [vmem:[%s1256 + $0x638] sm:$0xff] %v1655
          %v1657 = vld [vmem:[%s1255 + $0x640] sm:$0xff]
          %1658 = vst [vmem:[%s1256 + $0x640] sm:$0xff] %v1657
          %v1659 = vld [vmem:[%s1255 + $0x648] sm:$0xff]
          %1660 = vst [vmem:[%s1256 + $0x648] sm:$0xff] %v1659
          %v1661 = vld [vmem:[%s1255 + $0x650] sm:$0xff]
          %1662 = vst [vmem:[%s1256 + $0x650] sm:$0xff] %v1661
          %v1663 = vld [vmem:[%s1255 + $0x658] sm:$0xff]
          %1664 = vst [vmem:[%s1256 + $0x658] sm:$0xff] %v1663
          %v1665 = vld [vmem:[%s1255 + $0x660] sm:$0xff]
          %1666 = vst [vmem:[%s1256 + $0x660] sm:$0xff] %v1665
          %v1667 = vld [vmem:[%s1255 + $0x668] sm:$0xff]
          %1668 = vst [vmem:[%s1256 + $0x668] sm:$0xff] %v1667
          %v1669 = vld [vmem:[%s1255 + $0x670] sm:$0xff]
          %1670 = vst [vmem:[%s1256 + $0x670] sm:$0xff] %v1669
          %v1671 = vld [vmem:[%s1255 + $0x678] sm:$0xff]
          %1672 = vst [vmem:[%s1256 + $0x678] sm:$0xff] %v1671
          %v1673 = vld [vmem:[%s1255 + $0x680] sm:$0xff]
          %1674 = vst [vmem:[%s1256 + $0x680] sm:$0xff] %v1673
          %v1675 = vld [vmem:[%s1255 + $0x688] sm:$0xff]
          %1676 = vst [vmem:[%s1256 + $0x688] sm:$0xff] %v1675
          %v1677 = vld [vmem:[%s1255 + $0x690] sm:$0xff]
          %1678 = vst [vmem:[%s1256 + $0x690] sm:$0xff] %v1677
          %v1679 = vld [vmem:[%s1255 + $0x698] sm:$0xff]
          %1680 = vst [vmem:[%s1256 + $0x698] sm:$0xff] %v1679
          %v1681 = vld [vmem:[%s1255 + $0x6a0] sm:$0xff]
          %1682 = vst [vmem:[%s1256 + $0x6a0] sm:$0xff] %v1681
          %v1683 = vld [vmem:[%s1255 + $0x6a8] sm:$0xff]
          %1684 = vst [vmem:[%s1256 + $0x6a8] sm:$0xff] %v1683
          %v1685 = vld [vmem:[%s1255 + $0x6b0] sm:$0xff]
          %1686 = vst [vmem:[%s1256 + $0x6b0] sm:$0xff] %v1685
          %v1687 = vld [vmem:[%s1255 + $0x6b8] sm:$0xff]
          %1688 = vst [vmem:[%s1256 + $0x6b8] sm:$0xff] %v1687
          %v1689 = vld [vmem:[%s1255 + $0x6c0] sm:$0xff]
          %1690 = vst [vmem:[%s1256 + $0x6c0] sm:$0xff] %v1689
          %v1691 = vld [vmem:[%s1255 + $0x6c8] sm:$0xff]
          %1692 = vst [vmem:[%s1256 + $0x6c8] sm:$0xff] %v1691
          %v1693 = vld [vmem:[%s1255 + $0x6d0] sm:$0xff]
          %1694 = vst [vmem:[%s1256 + $0x6d0] sm:$0xff] %v1693
          %v1695 = vld [vmem:[%s1255 + $0x6d8] sm:$0xff]
          %1696 = vst [vmem:[%s1256 + $0x6d8] sm:$0xff] %v1695
          %v1697 = vld [vmem:[%s1255 + $0x6e0] sm:$0xff]
          %1698 = vst [vmem:[%s1256 + $0x6e0] sm:$0xff] %v1697
          %v1699 = vld [vmem:[%s1255 + $0x6e8] sm:$0xff]
          %1700 = vst [vmem:[%s1256 + $0x6e8] sm:$0xff] %v1699
          %v1701 = vld [vmem:[%s1255 + $0x6f0] sm:$0xff]
          %1702 = vst [vmem:[%s1256 + $0x6f0] sm:$0xff] %v1701
          %v1703 = vld [vmem:[%s1255 + $0x6f8] sm:$0xff]
          %1704 = vst [vmem:[%s1256 + $0x6f8] sm:$0xff] %v1703
          %v1705 = vld [vmem:[%s1255 + $0x700] sm:$0xff]
          %1706 = vst [vmem:[%s1256 + $0x700] sm:$0xff] %v1705
          %v1707 = vld [vmem:[%s1255 + $0x708] sm:$0xff]
          %1708 = vst [vmem:[%s1256 + $0x708] sm:$0xff] %v1707
          %v1709 = vld [vmem:[%s1255 + $0x710] sm:$0xff]
          %1710 = vst [vmem:[%s1256 + $0x710] sm:$0xff] %v1709
          %v1711 = vld [vmem:[%s1255 + $0x718] sm:$0xff]
          %1712 = vst [vmem:[%s1256 + $0x718] sm:$0xff] %v1711
          %v1713 = vld [vmem:[%s1255 + $0x720] sm:$0xff]
          %1714 = vst [vmem:[%s1256 + $0x720] sm:$0xff] %v1713
          %v1715 = vld [vmem:[%s1255 + $0x728] sm:$0xff]
          %1716 = vst [vmem:[%s1256 + $0x728] sm:$0xff] %v1715
          %v1717 = vld [vmem:[%s1255 + $0x730] sm:$0xff]
          %1718 = vst [vmem:[%s1256 + $0x730] sm:$0xff] %v1717
          %v1719 = vld [vmem:[%s1255 + $0x738] sm:$0xff]
          %1720 = vst [vmem:[%s1256 + $0x738] sm:$0xff] %v1719
          %v1721 = vld [vmem:[%s1255 + $0x740] sm:$0xff]
          %1722 = vst [vmem:[%s1256 + $0x740] sm:$0xff] %v1721
          %v1723 = vld [vmem:[%s1255 + $0x748] sm:$0xff]
          %1724 = vst [vmem:[%s1256 + $0x748] sm:$0xff] %v1723
          %v1725 = vld [vmem:[%s1255 + $0x750] sm:$0xff]
          %1726 = vst [vmem:[%s1256 + $0x750] sm:$0xff] %v1725
          %v1727 = vld [vmem:[%s1255 + $0x758] sm:$0xff]
          %1728 = vst [vmem:[%s1256 + $0x758] sm:$0xff] %v1727
          %v1729 = vld [vmem:[%s1255 + $0x760] sm:$0xff]
          %1730 = vst [vmem:[%s1256 + $0x760] sm:$0xff] %v1729
          %v1731 = vld [vmem:[%s1255 + $0x768] sm:$0xff]
          %1732 = vst [vmem:[%s1256 + $0x768] sm:$0xff] %v1731
          %v1733 = vld [vmem:[%s1255 + $0x770] sm:$0xff]
          %1734 = vst [vmem:[%s1256 + $0x770] sm:$0xff] %v1733
          %v1735 = vld [vmem:[%s1255 + $0x778] sm:$0xff]
          %1736 = vst [vmem:[%s1256 + $0x778] sm:$0xff] %v1735
          %v1737 = vld [vmem:[%s1255 + $0x780] sm:$0xff]
          %1738 = vst [vmem:[%s1256 + $0x780] sm:$0xff] %v1737
          %v1739 = vld [vmem:[%s1255 + $0x788] sm:$0xff]
          %1740 = vst [vmem:[%s1256 + $0x788] sm:$0xff] %v1739
          %v1741 = vld [vmem:[%s1255 + $0x790] sm:$0xff]
          %1742 = vst [vmem:[%s1256 + $0x790] sm:$0xff] %v1741
          %v1743 = vld [vmem:[%s1255 + $0x798] sm:$0xff]
          %1744 = vst [vmem:[%s1256 + $0x798] sm:$0xff] %v1743
          %v1745 = vld [vmem:[%s1255 + $0x7a0] sm:$0xff]
          %1746 = vst [vmem:[%s1256 + $0x7a0] sm:$0xff] %v1745
          %v1747 = vld [vmem:[%s1255 + $0x7a8] sm:$0xff]
          %1748 = vst [vmem:[%s1256 + $0x7a8] sm:$0xff] %v1747
          %v1749 = vld [vmem:[%s1255 + $0x7b0] sm:$0xff]
          %1750 = vst [vmem:[%s1256 + $0x7b0] sm:$0xff] %v1749
          %v1751 = vld [vmem:[%s1255 + $0x7b8] sm:$0xff]
          %1752 = vst [vmem:[%s1256 + $0x7b8] sm:$0xff] %v1751
          %v1753 = vld [vmem:[%s1255 + $0x7c0] sm:$0xff]
          %1754 = vst [vmem:[%s1256 + $0x7c0] sm:$0xff] %v1753
          %v1755 = vld [vmem:[%s1255 + $0x7c8] sm:$0xff]
          %1756 = vst [vmem:[%s1256 + $0x7c8] sm:$0xff] %v1755
          %v1757 = vld [vmem:[%s1255 + $0x7d0] sm:$0xff]
          %1758 = vst [vmem:[%s1256 + $0x7d0] sm:$0xff] %v1757
          %v1759 = vld [vmem:[%s1255 + $0x7d8] sm:$0xff]
          %1760 = vst [vmem:[%s1256 + $0x7d8] sm:$0xff] %v1759
          %v1761 = vld [vmem:[%s1255 + $0x7e0] sm:$0xff]
          %1762 = vst [vmem:[%s1256 + $0x7e0] sm:$0xff] %v1761
          %v1763 = vld [vmem:[%s1255 + $0x7e8] sm:$0xff]
          %1764 = vst [vmem:[%s1256 + $0x7e8] sm:$0xff] %v1763
          %v1765 = vld [vmem:[%s1255 + $0x7f0] sm:$0xff]
          %1766 = vst [vmem:[%s1256 + $0x7f0] sm:$0xff] %v1765
          %v1767 = vld [vmem:[%s1255 + $0x7f8] sm:$0xff]
          %1768 = vst [vmem:[%s1256 + $0x7f8] sm:$0xff] %v1767
          %v1769 = vld [vmem:[%s1255 + $0x800] sm:$0xff]
          %1770 = vst [vmem:[%s1256 + $0x800] sm:$0xff] %v1769
          %v1771 = vld [vmem:[%s1255 + $0x808] sm:$0xff]
          %1772 = vst [vmem:[%s1256 + $0x808] sm:$0xff] %v1771
          %v1773 = vld [vmem:[%s1255 + $0x810] sm:$0xff]
          %1774 = vst [vmem:[%s1256 + $0x810] sm:$0xff] %v1773
          %v1775 = vld [vmem:[%s1255 + $0x818] sm:$0xff]
          %1776 = vst [vmem:[%s1256 + $0x818] sm:$0xff] %v1775
          %v1777 = vld [vmem:[%s1255 + $0x820] sm:$0xff]
          %1778 = vst [vmem:[%s1256 + $0x820] sm:$0xff] %v1777
          %v1779 = vld [vmem:[%s1255 + $0x828] sm:$0xff]
          %1780 = vst [vmem:[%s1256 + $0x828] sm:$0xff] %v1779
          %v1781 = vld [vmem:[%s1255 + $0x830] sm:$0xff]
          %1782 = vst [vmem:[%s1256 + $0x830] sm:$0xff] %v1781
          %v1783 = vld [vmem:[%s1255 + $0x838] sm:$0xff]
          %1784 = vst [vmem:[%s1256 + $0x838] sm:$0xff] %v1783
          %v1785 = vld [vmem:[%s1255 + $0x840] sm:$0xff]
          %1786 = vst [vmem:[%s1256 + $0x840] sm:$0xff] %v1785
          %v1787 = vld [vmem:[%s1255 + $0x848] sm:$0xff]
          %1788 = vst [vmem:[%s1256 + $0x848] sm:$0xff] %v1787
          %v1789 = vld [vmem:[%s1255 + $0x850] sm:$0xff]
          %1790 = vst [vmem:[%s1256 + $0x850] sm:$0xff] %v1789
          %v1791 = vld [vmem:[%s1255 + $0x858] sm:$0xff]
          %1792 = vst [vmem:[%s1256 + $0x858] sm:$0xff] %v1791
          %v1793 = vld [vmem:[%s1255 + $0x860] sm:$0xff]
          %1794 = vst [vmem:[%s1256 + $0x860] sm:$0xff] %v1793
          %v1795 = vld [vmem:[%s1255 + $0x868] sm:$0xff]
          %1796 = vst [vmem:[%s1256 + $0x868] sm:$0xff] %v1795
          %v1797 = vld [vmem:[%s1255 + $0x870] sm:$0xff]
          %1798 = vst [vmem:[%s1256 + $0x870] sm:$0xff] %v1797
          %v1799 = vld [vmem:[%s1255 + $0x878] sm:$0xff]
          %1800 = vst [vmem:[%s1256 + $0x878] sm:$0xff] %v1799
          %v1801 = vld [vmem:[%s1255 + $0x880] sm:$0xff]
          %1802 = vst [vmem:[%s1256 + $0x880] sm:$0xff] %v1801
          %v1803 = vld [vmem:[%s1255 + $0x888] sm:$0xff]
          %1804 = vst [vmem:[%s1256 + $0x888] sm:$0xff] %v1803
          %v1805 = vld [vmem:[%s1255 + $0x890] sm:$0xff]
          %1806 = vst [vmem:[%s1256 + $0x890] sm:$0xff] %v1805
          %v1807 = vld [vmem:[%s1255 + $0x898] sm:$0xff]
          %1808 = vst [vmem:[%s1256 + $0x898] sm:$0xff] %v1807
          %v1809 = vld [vmem:[%s1255 + $0x8a0] sm:$0xff]
          %1810 = vst [vmem:[%s1256 + $0x8a0] sm:$0xff] %v1809
          %v1811 = vld [vmem:[%s1255 + $0x8a8] sm:$0xff]
          %1812 = vst [vmem:[%s1256 + $0x8a8] sm:$0xff] %v1811
          %v1813 = vld [vmem:[%s1255 + $0x8b0] sm:$0xff]
          %1814 = vst [vmem:[%s1256 + $0x8b0] sm:$0xff] %v1813
          %v1815 = vld [vmem:[%s1255 + $0x8b8] sm:$0xff]
          %1816 = vst [vmem:[%s1256 + $0x8b8] sm:$0xff] %v1815
          %v1817 = vld [vmem:[%s1255 + $0x8c0] sm:$0xff]
          %1818 = vst [vmem:[%s1256 + $0x8c0] sm:$0xff] %v1817
          %v1819 = vld [vmem:[%s1255 + $0x8c8] sm:$0xff]
          %1820 = vst [vmem:[%s1256 + $0x8c8] sm:$0xff] %v1819
          %v1821 = vld [vmem:[%s1255 + $0x8d0] sm:$0xff]
          %1822 = vst [vmem:[%s1256 + $0x8d0] sm:$0xff] %v1821
          %v1823 = vld [vmem:[%s1255 + $0x8d8] sm:$0xff]
          %1824 = vst [vmem:[%s1256 + $0x8d8] sm:$0xff] %v1823
          %v1825 = vld [vmem:[%s1255 + $0x8e0] sm:$0xff]
          %1826 = vst [vmem:[%s1256 + $0x8e0] sm:$0xff] %v1825
          %v1827 = vld [vmem:[%s1255 + $0x8e8] sm:$0xff]
          %1828 = vst [vmem:[%s1256 + $0x8e8] sm:$0xff] %v1827
          %v1829 = vld [vmem:[%s1255 + $0x8f0] sm:$0xff]
          %1830 = vst [vmem:[%s1256 + $0x8f0] sm:$0xff] %v1829
          %v1831 = vld [vmem:[%s1255 + $0x8f8] sm:$0xff]
          %1832 = vst [vmem:[%s1256 + $0x8f8] sm:$0xff] %v1831
          %v1833 = vld [vmem:[%s1255 + $0x900] sm:$0xff]
          %1834 = vst [vmem:[%s1256 + $0x900] sm:$0xff] %v1833
          %v1835 = vld [vmem:[%s1255 + $0x908] sm:$0xff]
          %1836 = vst [vmem:[%s1256 + $0x908] sm:$0xff] %v1835
          %v1837 = vld [vmem:[%s1255 + $0x910] sm:$0xff]
          %1838 = vst [vmem:[%s1256 + $0x910] sm:$0xff] %v1837
          %v1839 = vld [vmem:[%s1255 + $0x918] sm:$0xff]
          %1840 = vst [vmem:[%s1256 + $0x918] sm:$0xff] %v1839
          %v1841 = vld [vmem:[%s1255 + $0x920] sm:$0xff]
          %1842 = vst [vmem:[%s1256 + $0x920] sm:$0xff] %v1841
          %v1843 = vld [vmem:[%s1255 + $0x928] sm:$0xff]
          %1844 = vst [vmem:[%s1256 + $0x928] sm:$0xff] %v1843
          %v1845 = vld [vmem:[%s1255 + $0x930] sm:$0xff]
          %1846 = vst [vmem:[%s1256 + $0x930] sm:$0xff] %v1845
          %v1847 = vld [vmem:[%s1255 + $0x938] sm:$0xff]
          %1848 = vst [vmem:[%s1256 + $0x938] sm:$0xff] %v1847
          %v1849 = vld [vmem:[%s1255 + $0x940] sm:$0xff]
          %1850 = vst [vmem:[%s1256 + $0x940] sm:$0xff] %v1849
          %v1851 = vld [vmem:[%s1255 + $0x948] sm:$0xff]
          %1852 = vst [vmem:[%s1256 + $0x948] sm:$0xff] %v1851
          %v1853 = vld [vmem:[%s1255 + $0x950] sm:$0xff]
          %1854 = vst [vmem:[%s1256 + $0x950] sm:$0xff] %v1853
          %v1855 = vld [vmem:[%s1255 + $0x958] sm:$0xff]
          %1856 = vst [vmem:[%s1256 + $0x958] sm:$0xff] %v1855
          %v1857 = vld [vmem:[%s1255 + $0x960] sm:$0xff]
          %1858 = vst [vmem:[%s1256 + $0x960] sm:$0xff] %v1857
          %v1859 = vld [vmem:[%s1255 + $0x968] sm:$0xff]
          %1860 = vst [vmem:[%s1256 + $0x968] sm:$0xff] %v1859
          %v1861 = vld [vmem:[%s1255 + $0x970] sm:$0xff]
          %1862 = vst [vmem:[%s1256 + $0x970] sm:$0xff] %v1861
          %v1863 = vld [vmem:[%s1255 + $0x978] sm:$0xff]
          %1864 = vst [vmem:[%s1256 + $0x978] sm:$0xff] %v1863
          %v1865 = vld [vmem:[%s1255 + $0x980] sm:$0xff]
          %1866 = vst [vmem:[%s1256 + $0x980] sm:$0xff] %v1865
          %v1867 = vld [vmem:[%s1255 + $0x988] sm:$0xff]
          %1868 = vst [vmem:[%s1256 + $0x988] sm:$0xff] %v1867
          %v1869 = vld [vmem:[%s1255 + $0x990] sm:$0xff]
          %1870 = vst [vmem:[%s1256 + $0x990] sm:$0xff] %v1869
          %v1871 = vld [vmem:[%s1255 + $0x998] sm:$0xff]
          %1872 = vst [vmem:[%s1256 + $0x998] sm:$0xff] %v1871
          %v1873 = vld [vmem:[%s1255 + $0x9a0] sm:$0xff]
          %1874 = vst [vmem:[%s1256 + $0x9a0] sm:$0xff] %v1873
          %v1875 = vld [vmem:[%s1255 + $0x9a8] sm:$0xff]
          %1876 = vst [vmem:[%s1256 + $0x9a8] sm:$0xff] %v1875
          %v1877 = vld [vmem:[%s1255 + $0x9b0] sm:$0xff]
          %1878 = vst [vmem:[%s1256 + $0x9b0] sm:$0xff] %v1877
          %v1879 = vld [vmem:[%s1255 + $0x9b8] sm:$0xff]
          %1880 = vst [vmem:[%s1256 + $0x9b8] sm:$0xff] %v1879
          %v1881 = vld [vmem:[%s1255 + $0x9c0] sm:$0xff]
          %1882 = vst [vmem:[%s1256 + $0x9c0] sm:$0xff] %v1881
          %v1883 = vld [vmem:[%s1255 + $0x9c8] sm:$0xff]
          %1884 = vst [vmem:[%s1256 + $0x9c8] sm:$0xff] %v1883
          %v1885 = vld [vmem:[%s1255 + $0x9d0] sm:$0xff]
          %1886 = vst [vmem:[%s1256 + $0x9d0] sm:$0xff] %v1885
          %v1887 = vld [vmem:[%s1255 + $0x9d8] sm:$0xff]
          %1888 = vst [vmem:[%s1256 + $0x9d8] sm:$0xff] %v1887
          %v1889 = vld [vmem:[%s1255 + $0x9e0] sm:$0xff]
          %1890 = vst [vmem:[%s1256 + $0x9e0] sm:$0xff] %v1889
          %v1891 = vld [vmem:[%s1255 + $0x9e8] sm:$0xff]
          %1892 = vst [vmem:[%s1256 + $0x9e8] sm:$0xff] %v1891
          %v1893 = vld [vmem:[%s1255 + $0x9f0] sm:$0xff]
          %1894 = vst [vmem:[%s1256 + $0x9f0] sm:$0xff] %v1893
          %v1895 = vld [vmem:[%s1255 + $0x9f8] sm:$0xff]
          %1896 = vst [vmem:[%s1256 + $0x9f8] sm:$0xff] %v1895
          %v1897 = vld [vmem:[%s1255 + $0xa00] sm:$0xff]
          %1898 = vst [vmem:[%s1256 + $0xa00] sm:$0xff] %v1897
          %v1899 = vld [vmem:[%s1255 + $0xa08] sm:$0xff]
          %1900 = vst [vmem:[%s1256 + $0xa08] sm:$0xff] %v1899
          %v1901 = vld [vmem:[%s1255 + $0xa10] sm:$0xff]
          %1902 = vst [vmem:[%s1256 + $0xa10] sm:$0xff] %v1901
          %v1903 = vld [vmem:[%s1255 + $0xa18] sm:$0xff]
          %1904 = vst [vmem:[%s1256 + $0xa18] sm:$0xff] %v1903
          %v1905 = vld [vmem:[%s1255 + $0xa20] sm:$0xff]
          %1906 = vst [vmem:[%s1256 + $0xa20] sm:$0xff] %v1905
          %v1907 = vld [vmem:[%s1255 + $0xa28] sm:$0xff]
          %1908 = vst [vmem:[%s1256 + $0xa28] sm:$0xff] %v1907
          %v1909 = vld [vmem:[%s1255 + $0xa30] sm:$0xff]
          %1910 = vst [vmem:[%s1256 + $0xa30] sm:$0xff] %v1909
          %v1911 = vld [vmem:[%s1255 + $0xa38] sm:$0xff]
          %1912 = vst [vmem:[%s1256 + $0xa38] sm:$0xff] %v1911
          %v1913 = vld [vmem:[%s1255 + $0xa40] sm:$0xff]
          %1914 = vst [vmem:[%s1256 + $0xa40] sm:$0xff] %v1913
          %v1915 = vld [vmem:[%s1255 + $0xa48] sm:$0xff]
          %1916 = vst [vmem:[%s1256 + $0xa48] sm:$0xff] %v1915
          %v1917 = vld [vmem:[%s1255 + $0xa50] sm:$0xff]
          %1918 = vst [vmem:[%s1256 + $0xa50] sm:$0xff] %v1917
          %v1919 = vld [vmem:[%s1255 + $0xa58] sm:$0xff]
          %1920 = vst [vmem:[%s1256 + $0xa58] sm:$0xff] %v1919
          %v1921 = vld [vmem:[%s1255 + $0xa60] sm:$0xff]
          %1922 = vst [vmem:[%s1256 + $0xa60] sm:$0xff] %v1921
          %v1923 = vld [vmem:[%s1255 + $0xa68] sm:$0xff]
          %1924 = vst [vmem:[%s1256 + $0xa68] sm:$0xff] %v1923
          %v1925 = vld [vmem:[%s1255 + $0xa70] sm:$0xff]
          %1926 = vst [vmem:[%s1256 + $0xa70] sm:$0xff] %v1925
          %v1927 = vld [vmem:[%s1255 + $0xa78] sm:$0xff]
          %1928 = vst [vmem:[%s1256 + $0xa78] sm:$0xff] %v1927
          %v1929 = vld [vmem:[%s1255 + $0xa80] sm:$0xff]
          %1930 = vst [vmem:[%s1256 + $0xa80] sm:$0xff] %v1929
          %v1931 = vld [vmem:[%s1255 + $0xa88] sm:$0xff]
          %1932 = vst [vmem:[%s1256 + $0xa88] sm:$0xff] %v1931
          %v1933 = vld [vmem:[%s1255 + $0xa90] sm:$0xff]
          %1934 = vst [vmem:[%s1256 + $0xa90] sm:$0xff] %v1933
          %v1935 = vld [vmem:[%s1255 + $0xa98] sm:$0xff]
          %1936 = vst [vmem:[%s1256 + $0xa98] sm:$0xff] %v1935
          %v1937 = vld [vmem:[%s1255 + $0xaa0] sm:$0xff]
          %1938 = vst [vmem:[%s1256 + $0xaa0] sm:$0xff] %v1937
          %v1939 = vld [vmem:[%s1255 + $0xaa8] sm:$0xff]
          %1940 = vst [vmem:[%s1256 + $0xaa8] sm:$0xff] %v1939
          %v1941 = vld [vmem:[%s1255 + $0xab0] sm:$0xff]
          %1942 = vst [vmem:[%s1256 + $0xab0] sm:$0xff] %v1941
          %v1943 = vld [vmem:[%s1255 + $0xab8] sm:$0xff]
          %1944 = vst [vmem:[%s1256 + $0xab8] sm:$0xff] %v1943
          %v1945 = vld [vmem:[%s1255 + $0xac0] sm:$0xff]
          %1946 = vst [vmem:[%s1256 + $0xac0] sm:$0xff] %v1945
          %v1947 = vld [vmem:[%s1255 + $0xac8] sm:$0xff]
          %1948 = vst [vmem:[%s1256 + $0xac8] sm:$0xff] %v1947
          %v1949 = vld [vmem:[%s1255 + $0xad0] sm:$0xff]
          %1950 = vst [vmem:[%s1256 + $0xad0] sm:$0xff] %v1949
          %v1951 = vld [vmem:[%s1255 + $0xad8] sm:$0xff]
          %1952 = vst [vmem:[%s1256 + $0xad8] sm:$0xff] %v1951
          %v1953 = vld [vmem:[%s1255 + $0xae0] sm:$0xff]
          %1954 = vst [vmem:[%s1256 + $0xae0] sm:$0xff] %v1953
          %v1955 = vld [vmem:[%s1255 + $0xae8] sm:$0xff]
          %1956 = vst [vmem:[%s1256 + $0xae8] sm:$0xff] %v1955
          %v1957 = vld [vmem:[%s1255 + $0xaf0] sm:$0xff]
          %1958 = vst [vmem:[%s1256 + $0xaf0] sm:$0xff] %v1957
          %v1959 = vld [vmem:[%s1255 + $0xaf8] sm:$0xff]
          %1960 = vst [vmem:[%s1256 + $0xaf8] sm:$0xff] %v1959
          %v1961 = vld [vmem:[%s1255 + $0xb00] sm:$0xff]
          %1962 = vst [vmem:[%s1256 + $0xb00] sm:$0xff] %v1961
          %v1963 = vld [vmem:[%s1255 + $0xb08] sm:$0xff]
          %1964 = vst [vmem:[%s1256 + $0xb08] sm:$0xff] %v1963
          %v1965 = vld [vmem:[%s1255 + $0xb10] sm:$0xff]
          %1966 = vst [vmem:[%s1256 + $0xb10] sm:$0xff] %v1965
          %v1967 = vld [vmem:[%s1255 + $0xb18] sm:$0xff]
          %1968 = vst [vmem:[%s1256 + $0xb18] sm:$0xff] %v1967
          %v1969 = vld [vmem:[%s1255 + $0xb20] sm:$0xff]
          %1970 = vst [vmem:[%s1256 + $0xb20] sm:$0xff] %v1969
          %v1971 = vld [vmem:[%s1255 + $0xb28] sm:$0xff]
          %1972 = vst [vmem:[%s1256 + $0xb28] sm:$0xff] %v1971
          %v1973 = vld [vmem:[%s1255 + $0xb30] sm:$0xff]
          %1974 = vst [vmem:[%s1256 + $0xb30] sm:$0xff] %v1973
          %v1975 = vld [vmem:[%s1255 + $0xb38] sm:$0xff]
          %1976 = vst [vmem:[%s1256 + $0xb38] sm:$0xff] %v1975
          %v1977 = vld [vmem:[%s1255 + $0xb40] sm:$0xff]
          %1978 = vst [vmem:[%s1256 + $0xb40] sm:$0xff] %v1977
          %v1979 = vld [vmem:[%s1255 + $0xb48] sm:$0xff]
          %1980 = vst [vmem:[%s1256 + $0xb48] sm:$0xff] %v1979
          %v1981 = vld [vmem:[%s1255 + $0xb50] sm:$0xff]
          %1982 = vst [vmem:[%s1256 + $0xb50] sm:$0xff] %v1981
          %v1983 = vld [vmem:[%s1255 + $0xb58] sm:$0xff]
          %1984 = vst [vmem:[%s1256 + $0xb58] sm:$0xff] %v1983
          %v1985 = vld [vmem:[%s1255 + $0xb60] sm:$0xff]
          %1986 = vst [vmem:[%s1256 + $0xb60] sm:$0xff] %v1985
          %v1987 = vld [vmem:[%s1255 + $0xb68] sm:$0xff]
          %1988 = vst [vmem:[%s1256 + $0xb68] sm:$0xff] %v1987
          %v1989 = vld [vmem:[%s1255 + $0xb70] sm:$0xff]
          %1990 = vst [vmem:[%s1256 + $0xb70] sm:$0xff] %v1989
          %v1991 = vld [vmem:[%s1255 + $0xb78] sm:$0xff]
          %1992 = vst [vmem:[%s1256 + $0xb78] sm:$0xff] %v1991
          %v1993 = vld [vmem:[%s1255 + $0xb80] sm:$0xff]
          %1994 = vst [vmem:[%s1256 + $0xb80] sm:$0xff] %v1993
          %v1995 = vld [vmem:[%s1255 + $0xb88] sm:$0xff]
          %1996 = vst [vmem:[%s1256 + $0xb88] sm:$0xff] %v1995
          %v1997 = vld [vmem:[%s1255 + $0xb90] sm:$0xff]
          %1998 = vst [vmem:[%s1256 + $0xb90] sm:$0xff] %v1997
          %v1999 = vld [vmem:[%s1255 + $0xb98] sm:$0xff]
          %2000 = vst [vmem:[%s1256 + $0xb98] sm:$0xff] %v1999
          %v2001 = vld [vmem:[%s1255 + $0xba0] sm:$0xff]
          %2002 = vst [vmem:[%s1256 + $0xba0] sm:$0xff] %v2001
          %v2003 = vld [vmem:[%s1255 + $0xba8] sm:$0xff]
          %2004 = vst [vmem:[%s1256 + $0xba8] sm:$0xff] %v2003
          %v2005 = vld [vmem:[%s1255 + $0xbb0] sm:$0xff]
          %2006 = vst [vmem:[%s1256 + $0xbb0] sm:$0xff] %v2005
          %v2007 = vld [vmem:[%s1255 + $0xbb8] sm:$0xff]
          %2008 = vst [vmem:[%s1256 + $0xbb8] sm:$0xff] %v2007
          %v2009 = vld [vmem:[%s1255 + $0xbc0] sm:$0xff]
          %2010 = vst [vmem:[%s1256 + $0xbc0] sm:$0xff] %v2009
          %v2011 = vld [vmem:[%s1255 + $0xbc8] sm:$0xff]
          %2012 = vst [vmem:[%s1256 + $0xbc8] sm:$0xff] %v2011
          %v2013 = vld [vmem:[%s1255 + $0xbd0] sm:$0xff]
          %2014 = vst [vmem:[%s1256 + $0xbd0] sm:$0xff] %v2013
          %v2015 = vld [vmem:[%s1255 + $0xbd8] sm:$0xff]
          %2016 = vst [vmem:[%s1256 + $0xbd8] sm:$0xff] %v2015
          %v2017 = vld [vmem:[%s1255 + $0xbe0] sm:$0xff]
          %2018 = vst [vmem:[%s1256 + $0xbe0] sm:$0xff] %v2017
          %v2019 = vld [vmem:[%s1255 + $0xbe8] sm:$0xff]
          %2020 = vst [vmem:[%s1256 + $0xbe8] sm:$0xff] %v2019
          %v2021 = vld [vmem:[%s1255 + $0xbf0] sm:$0xff]
          %2022 = vst [vmem:[%s1256 + $0xbf0] sm:$0xff] %v2021
          %v2023 = vld [vmem:[%s1255 + $0xbf8] sm:$0xff]
          %2024 = vst [vmem:[%s1256 + $0xbf8] sm:$0xff] %v2023
          %v2025 = vld [vmem:[%s1255 + $0xc00] sm:$0xff]
          %2026 = vst [vmem:[%s1256 + $0xc00] sm:$0xff] %v2025
          %v2027 = vld [vmem:[%s1255 + $0xc08] sm:$0xff]
          %2028 = vst [vmem:[%s1256 + $0xc08] sm:$0xff] %v2027
          %v2029 = vld [vmem:[%s1255 + $0xc10] sm:$0xff]
          %2030 = vst [vmem:[%s1256 + $0xc10] sm:$0xff] %v2029
          %v2031 = vld [vmem:[%s1255 + $0xc18] sm:$0xff]
          %2032 = vst [vmem:[%s1256 + $0xc18] sm:$0xff] %v2031
          %v2033 = vld [vmem:[%s1255 + $0xc20] sm:$0xff]
          %2034 = vst [vmem:[%s1256 + $0xc20] sm:$0xff] %v2033
          %v2035 = vld [vmem:[%s1255 + $0xc28] sm:$0xff]
          %2036 = vst [vmem:[%s1256 + $0xc28] sm:$0xff] %v2035
          %v2037 = vld [vmem:[%s1255 + $0xc30] sm:$0xff]
          %2038 = vst [vmem:[%s1256 + $0xc30] sm:$0xff] %v2037
          %v2039 = vld [vmem:[%s1255 + $0xc38] sm:$0xff]
          %2040 = vst [vmem:[%s1256 + $0xc38] sm:$0xff] %v2039
          %v2041 = vld [vmem:[%s1255 + $0xc40] sm:$0xff]
          %2042 = vst [vmem:[%s1256 + $0xc40] sm:$0xff] %v2041
          %v2043 = vld [vmem:[%s1255 + $0xc48] sm:$0xff]
          %2044 = vst [vmem:[%s1256 + $0xc48] sm:$0xff] %v2043
          %v2045 = vld [vmem:[%s1255 + $0xc50] sm:$0xff]
          %2046 = vst [vmem:[%s1256 + $0xc50] sm:$0xff] %v2045
          %v2047 = vld [vmem:[%s1255 + $0xc58] sm:$0xff]
          %2048 = vst [vmem:[%s1256 + $0xc58] sm:$0xff] %v2047
          %v2049 = vld [vmem:[%s1255 + $0xc60] sm:$0xff]
          %2050 = vst [vmem:[%s1256 + $0xc60] sm:$0xff] %v2049
          %v2051 = vld [vmem:[%s1255 + $0xc68] sm:$0xff]
          %2052 = vst [vmem:[%s1256 + $0xc68] sm:$0xff] %v2051
          %v2053 = vld [vmem:[%s1255 + $0xc70] sm:$0xff]
          %2054 = vst [vmem:[%s1256 + $0xc70] sm:$0xff] %v2053
          %v2055 = vld [vmem:[%s1255 + $0xc78] sm:$0xff]
          %2056 = vst [vmem:[%s1256 + $0xc78] sm:$0xff] %v2055
          %v2057 = vld [vmem:[%s1255 + $0xc80] sm:$0xff]
          %2058 = vst [vmem:[%s1256 + $0xc80] sm:$0xff] %v2057
          %v2059 = vld [vmem:[%s1255 + $0xc88] sm:$0xff]
          %2060 = vst [vmem:[%s1256 + $0xc88] sm:$0xff] %v2059
          %v2061 = vld [vmem:[%s1255 + $0xc90] sm:$0xff]
          %2062 = vst [vmem:[%s1256 + $0xc90] sm:$0xff] %v2061
          %v2063 = vld [vmem:[%s1255 + $0xc98] sm:$0xff]
          %2064 = vst [vmem:[%s1256 + $0xc98] sm:$0xff] %v2063
          %v2065 = vld [vmem:[%s1255 + $0xca0] sm:$0xff]
          %2066 = vst [vmem:[%s1256 + $0xca0] sm:$0xff] %v2065
          %v2067 = vld [vmem:[%s1255 + $0xca8] sm:$0xff]
          %2068 = vst [vmem:[%s1256 + $0xca8] sm:$0xff] %v2067
          %v2069 = vld [vmem:[%s1255 + $0xcb0] sm:$0xff]
          %2070 = vst [vmem:[%s1256 + $0xcb0] sm:$0xff] %v2069
          %v2071 = vld [vmem:[%s1255 + $0xcb8] sm:$0xff]
          %2072 = vst [vmem:[%s1256 + $0xcb8] sm:$0xff] %v2071
          %v2073 = vld [vmem:[%s1255 + $0xcc0] sm:$0xff]
          %2074 = vst [vmem:[%s1256 + $0xcc0] sm:$0xff] %v2073
          %v2075 = vld [vmem:[%s1255 + $0xcc8] sm:$0xff]
          %2076 = vst [vmem:[%s1256 + $0xcc8] sm:$0xff] %v2075
          %v2077 = vld [vmem:[%s1255 + $0xcd0] sm:$0xff]
          %2078 = vst [vmem:[%s1256 + $0xcd0] sm:$0xff] %v2077
          %v2079 = vld [vmem:[%s1255 + $0xcd8] sm:$0xff]
          %2080 = vst [vmem:[%s1256 + $0xcd8] sm:$0xff] %v2079
          %v2081 = vld [vmem:[%s1255 + $0xce0] sm:$0xff]
          %2082 = vst [vmem:[%s1256 + $0xce0] sm:$0xff] %v2081
          %v2083 = vld [vmem:[%s1255 + $0xce8] sm:$0xff]
          %2084 = vst [vmem:[%s1256 + $0xce8] sm:$0xff] %v2083
          %v2085 = vld [vmem:[%s1255 + $0xcf0] sm:$0xff]
          %2086 = vst [vmem:[%s1256 + $0xcf0] sm:$0xff] %v2085
          %v2087 = vld [vmem:[%s1255 + $0xcf8] sm:$0xff]
          %2088 = vst [vmem:[%s1256 + $0xcf8] sm:$0xff] %v2087
          %v2089 = vld [vmem:[%s1255 + $0xd00] sm:$0xff]
          %2090 = vst [vmem:[%s1256 + $0xd00] sm:$0xff] %v2089
          %v2091 = vld [vmem:[%s1255 + $0xd08] sm:$0xff]
          %2092 = vst [vmem:[%s1256 + $0xd08] sm:$0xff] %v2091
          %v2093 = vld [vmem:[%s1255 + $0xd10] sm:$0xff]
          %2094 = vst [vmem:[%s1256 + $0xd10] sm:$0xff] %v2093
          %v2095 = vld [vmem:[%s1255 + $0xd18] sm:$0xff]
          %2096 = vst [vmem:[%s1256 + $0xd18] sm:$0xff] %v2095
          %v2097 = vld [vmem:[%s1255 + $0xd20] sm:$0xff]
          %2098 = vst [vmem:[%s1256 + $0xd20] sm:$0xff] %v2097
          %v2099 = vld [vmem:[%s1255 + $0xd28] sm:$0xff]
          %2100 = vst [vmem:[%s1256 + $0xd28] sm:$0xff] %v2099
          %v2101 = vld [vmem:[%s1255 + $0xd30] sm:$0xff]
          %2102 = vst [vmem:[%s1256 + $0xd30] sm:$0xff] %v2101
          %v2103 = vld [vmem:[%s1255 + $0xd38] sm:$0xff]
          %2104 = vst [vmem:[%s1256 + $0xd38] sm:$0xff] %v2103
          %v2105 = vld [vmem:[%s1255 + $0xd40] sm:$0xff]
          %2106 = vst [vmem:[%s1256 + $0xd40] sm:$0xff] %v2105
          %v2107 = vld [vmem:[%s1255 + $0xd48] sm:$0xff]
          %2108 = vst [vmem:[%s1256 + $0xd48] sm:$0xff] %v2107
          %v2109 = vld [vmem:[%s1255 + $0xd50] sm:$0xff]
          %2110 = vst [vmem:[%s1256 + $0xd50] sm:$0xff] %v2109
          %v2111 = vld [vmem:[%s1255 + $0xd58] sm:$0xff]
          %2112 = vst [vmem:[%s1256 + $0xd58] sm:$0xff] %v2111
          %v2113 = vld [vmem:[%s1255 + $0xd60] sm:$0xff]
          %2114 = vst [vmem:[%s1256 + $0xd60] sm:$0xff] %v2113
          %v2115 = vld [vmem:[%s1255 + $0xd68] sm:$0xff]
          %2116 = vst [vmem:[%s1256 + $0xd68] sm:$0xff] %v2115
          %v2117 = vld [vmem:[%s1255 + $0xd70] sm:$0xff]
          %2118 = vst [vmem:[%s1256 + $0xd70] sm:$0xff] %v2117
          %v2119 = vld [vmem:[%s1255 + $0xd78] sm:$0xff]
          %2120 = vst [vmem:[%s1256 + $0xd78] sm:$0xff] %v2119
          %v2121 = vld [vmem:[%s1255 + $0xd80] sm:$0xff]
          %2122 = vst [vmem:[%s1256 + $0xd80] sm:$0xff] %v2121
          %v2123 = vld [vmem:[%s1255 + $0xd88] sm:$0xff]
          %2124 = vst [vmem:[%s1256 + $0xd88] sm:$0xff] %v2123
          %v2125 = vld [vmem:[%s1255 + $0xd90] sm:$0xff]
          %2126 = vst [vmem:[%s1256 + $0xd90] sm:$0xff] %v2125
          %v2127 = vld [vmem:[%s1255 + $0xd98] sm:$0xff]
          %2128 = vst [vmem:[%s1256 + $0xd98] sm:$0xff] %v2127
          %v2129 = vld [vmem:[%s1255 + $0xda0] sm:$0xff]
          %2130 = vst [vmem:[%s1256 + $0xda0] sm:$0xff] %v2129
          %v2131 = vld [vmem:[%s1255 + $0xda8] sm:$0xff]
          %2132 = vst [vmem:[%s1256 + $0xda8] sm:$0xff] %v2131
          %v2133 = vld [vmem:[%s1255 + $0xdb0] sm:$0xff]
          %2134 = vst [vmem:[%s1256 + $0xdb0] sm:$0xff] %v2133
          %v2135 = vld [vmem:[%s1255 + $0xdb8] sm:$0xff]
          %2136 = vst [vmem:[%s1256 + $0xdb8] sm:$0xff] %v2135
          %v2137 = vld [vmem:[%s1255 + $0xdc0] sm:$0xff]
          %2138 = vst [vmem:[%s1256 + $0xdc0] sm:$0xff] %v2137
          %v2139 = vld [vmem:[%s1255 + $0xdc8] sm:$0xff]
          %2140 = vst [vmem:[%s1256 + $0xdc8] sm:$0xff] %v2139
          %v2141 = vld [vmem:[%s1255 + $0xdd0] sm:$0xff]
          %2142 = vst [vmem:[%s1256 + $0xdd0] sm:$0xff] %v2141
          %v2143 = vld [vmem:[%s1255 + $0xdd8] sm:$0xff]
          %2144 = vst [vmem:[%s1256 + $0xdd8] sm:$0xff] %v2143
          %v2145 = vld [vmem:[%s1255 + $0xde0] sm:$0xff]
          %2146 = vst [vmem:[%s1256 + $0xde0] sm:$0xff] %v2145
          %v2147 = vld [vmem:[%s1255 + $0xde8] sm:$0xff]
          %2148 = vst [vmem:[%s1256 + $0xde8] sm:$0xff] %v2147
          %v2149 = vld [vmem:[%s1255 + $0xdf0] sm:$0xff]
          %2150 = vst [vmem:[%s1256 + $0xdf0] sm:$0xff] %v2149
          %v2151 = vld [vmem:[%s1255 + $0xdf8] sm:$0xff]
          %2152 = vst [vmem:[%s1256 + $0xdf8] sm:$0xff] %v2151
          %v2153 = vld [vmem:[%s1255 + $0xe00] sm:$0xff]
          %2154 = vst [vmem:[%s1256 + $0xe00] sm:$0xff] %v2153
          %v2155 = vld [vmem:[%s1255 + $0xe08] sm:$0xff]
          %2156 = vst [vmem:[%s1256 + $0xe08] sm:$0xff] %v2155
          %v2157 = vld [vmem:[%s1255 + $0xe10] sm:$0xff]
          %2158 = vst [vmem:[%s1256 + $0xe10] sm:$0xff] %v2157
          %v2159 = vld [vmem:[%s1255 + $0xe18] sm:$0xff]
          %2160 = vst [vmem:[%s1256 + $0xe18] sm:$0xff] %v2159
          %v2161 = vld [vmem:[%s1255 + $0xe20] sm:$0xff]
          %2162 = vst [vmem:[%s1256 + $0xe20] sm:$0xff] %v2161
          %v2163 = vld [vmem:[%s1255 + $0xe28] sm:$0xff]
          %2164 = vst [vmem:[%s1256 + $0xe28] sm:$0xff] %v2163
          %v2165 = vld [vmem:[%s1255 + $0xe30] sm:$0xff]
          %2166 = vst [vmem:[%s1256 + $0xe30] sm:$0xff] %v2165
          %v2167 = vld [vmem:[%s1255 + $0xe38] sm:$0xff]
          %2168 = vst [vmem:[%s1256 + $0xe38] sm:$0xff] %v2167
          %v2169 = vld [vmem:[%s1255 + $0xe40] sm:$0xff]
          %2170 = vst [vmem:[%s1256 + $0xe40] sm:$0xff] %v2169
          %v2171 = vld [vmem:[%s1255 + $0xe48] sm:$0xff]
          %2172 = vst [vmem:[%s1256 + $0xe48] sm:$0xff] %v2171
          %v2173 = vld [vmem:[%s1255 + $0xe50] sm:$0xff]
          %2174 = vst [vmem:[%s1256 + $0xe50] sm:$0xff] %v2173
          %v2175 = vld [vmem:[%s1255 + $0xe58] sm:$0xff]
          %2176 = vst [vmem:[%s1256 + $0xe58] sm:$0xff] %v2175
          %v2177 = vld [vmem:[%s1255 + $0xe60] sm:$0xff]
          %2178 = vst [vmem:[%s1256 + $0xe60] sm:$0xff] %v2177
          %v2179 = vld [vmem:[%s1255 + $0xe68] sm:$0xff]
          %2180 = vst [vmem:[%s1256 + $0xe68] sm:$0xff] %v2179
          %v2181 = vld [vmem:[%s1255 + $0xe70] sm:$0xff]
          %2182 = vst [vmem:[%s1256 + $0xe70] sm:$0xff] %v2181
          %v2183 = vld [vmem:[%s1255 + $0xe78] sm:$0xff]
          %2184 = vst [vmem:[%s1256 + $0xe78] sm:$0xff] %v2183
          %v2185 = vld [vmem:[%s1255 + $0xe80] sm:$0xff]
          %2186 = vst [vmem:[%s1256 + $0xe80] sm:$0xff] %v2185
          %v2187 = vld [vmem:[%s1255 + $0xe88] sm:$0xff]
          %2188 = vst [vmem:[%s1256 + $0xe88] sm:$0xff] %v2187
          %v2189 = vld [vmem:[%s1255 + $0xe90] sm:$0xff]
          %2190 = vst [vmem:[%s1256 + $0xe90] sm:$0xff] %v2189
          %v2191 = vld [vmem:[%s1255 + $0xe98] sm:$0xff]
          %2192 = vst [vmem:[%s1256 + $0xe98] sm:$0xff] %v2191
          %v2193 = vld [vmem:[%s1255 + $0xea0] sm:$0xff]
          %2194 = vst [vmem:[%s1256 + $0xea0] sm:$0xff] %v2193
          %v2195 = vld [vmem:[%s1255 + $0xea8] sm:$0xff]
          %2196 = vst [vmem:[%s1256 + $0xea8] sm:$0xff] %v2195
          %v2197 = vld [vmem:[%s1255 + $0xeb0] sm:$0xff]
          %2198 = vst [vmem:[%s1256 + $0xeb0] sm:$0xff] %v2197
          %v2199 = vld [vmem:[%s1255 + $0xeb8] sm:$0xff]
          %2200 = vst [vmem:[%s1256 + $0xeb8] sm:$0xff] %v2199
          %v2201 = vld [vmem:[%s1255 + $0xec0] sm:$0xff]
          %2202 = vst [vmem:[%s1256 + $0xec0] sm:$0xff] %v2201
          %v2203 = vld [vmem:[%s1255 + $0xec8] sm:$0xff]
          %2204 = vst [vmem:[%s1256 + $0xec8] sm:$0xff] %v2203
          %v2205 = vld [vmem:[%s1255 + $0xed0] sm:$0xff]
          %2206 = vst [vmem:[%s1256 + $0xed0] sm:$0xff] %v2205
          %v2207 = vld [vmem:[%s1255 + $0xed8] sm:$0xff]
          %2208 = vst [vmem:[%s1256 + $0xed8] sm:$0xff] %v2207
          %v2209 = vld [vmem:[%s1255 + $0xee0] sm:$0xff]
          %2210 = vst [vmem:[%s1256 + $0xee0] sm:$0xff] %v2209
          %v2211 = vld [vmem:[%s1255 + $0xee8] sm:$0xff]
          %2212 = vst [vmem:[%s1256 + $0xee8] sm:$0xff] %v2211
          %v2213 = vld [vmem:[%s1255 + $0xef0] sm:$0xff]
          %2214 = vst [vmem:[%s1256 + $0xef0] sm:$0xff] %v2213
          %v2215 = vld [vmem:[%s1255 + $0xef8] sm:$0xff]
          %2216 = vst [vmem:[%s1256 + $0xef8] sm:$0xff] %v2215
          %v2217 = vld [vmem:[%s1255 + $0xf00] sm:$0xff]
          %2218 = vst [vmem:[%s1256 + $0xf00] sm:$0xff] %v2217
          %v2219 = vld [vmem:[%s1255 + $0xf08] sm:$0xff]
          %2220 = vst [vmem:[%s1256 + $0xf08] sm:$0xff] %v2219
          %v2221 = vld [vmem:[%s1255 + $0xf10] sm:$0xff]
          %2222 = vst [vmem:[%s1256 + $0xf10] sm:$0xff] %v2221
          %v2223 = vld [vmem:[%s1255 + $0xf18] sm:$0xff]
          %2224 = vst [vmem:[%s1256 + $0xf18] sm:$0xff] %v2223
          %v2225 = vld [vmem:[%s1255 + $0xf20] sm:$0xff]
          %2226 = vst [vmem:[%s1256 + $0xf20] sm:$0xff] %v2225
          %v2227 = vld [vmem:[%s1255 + $0xf28] sm:$0xff]
          %2228 = vst [vmem:[%s1256 + $0xf28] sm:$0xff] %v2227
          %v2229 = vld [vmem:[%s1255 + $0xf30] sm:$0xff]
          %2230 = vst [vmem:[%s1256 + $0xf30] sm:$0xff] %v2229
          %v2231 = vld [vmem:[%s1255 + $0xf38] sm:$0xff]
          %2232 = vst [vmem:[%s1256 + $0xf38] sm:$0xff] %v2231
          %v2233 = vld [vmem:[%s1255 + $0xf40] sm:$0xff]
          %2234 = vst [vmem:[%s1256 + $0xf40] sm:$0xff] %v2233
          %v2235 = vld [vmem:[%s1255 + $0xf48] sm:$0xff]
          %2236 = vst [vmem:[%s1256 + $0xf48] sm:$0xff] %v2235
          %v2237 = vld [vmem:[%s1255 + $0xf50] sm:$0xff]
          %2238 = vst [vmem:[%s1256 + $0xf50] sm:$0xff] %v2237
          %v2239 = vld [vmem:[%s1255 + $0xf58] sm:$0xff]
          %2240 = vst [vmem:[%s1256 + $0xf58] sm:$0xff] %v2239
          %v2241 = vld [vmem:[%s1255 + $0xf60] sm:$0xff]
          %2242 = vst [vmem:[%s1256 + $0xf60] sm:$0xff] %v2241
          %v2243 = vld [vmem:[%s1255 + $0xf68] sm:$0xff]
          %2244 = vst [vmem:[%s1256 + $0xf68] sm:$0xff] %v2243
          %v2245 = vld [vmem:[%s1255 + $0xf70] sm:$0xff]
          %2246 = vst [vmem:[%s1256 + $0xf70] sm:$0xff] %v2245
          %v2247 = vld [vmem:[%s1255 + $0xf78] sm:$0xff]
          %2248 = vst [vmem:[%s1256 + $0xf78] sm:$0xff] %v2247
          %v2249 = vld [vmem:[%s1255 + $0xf80] sm:$0xff]
          %2250 = vst [vmem:[%s1256 + $0xf80] sm:$0xff] %v2249
          %v2251 = vld [vmem:[%s1255 + $0xf88] sm:$0xff]
          %2252 = vst [vmem:[%s1256 + $0xf88] sm:$0xff] %v2251
          %v2253 = vld [vmem:[%s1255 + $0xf90] sm:$0xff]
          %2254 = vst [vmem:[%s1256 + $0xf90] sm:$0xff] %v2253
          %v2255 = vld [vmem:[%s1255 + $0xf98] sm:$0xff]
          %2256 = vst [vmem:[%s1256 + $0xf98] sm:$0xff] %v2255
          %v2257 = vld [vmem:[%s1255 + $0xfa0] sm:$0xff]
          %2258 = vst [vmem:[%s1256 + $0xfa0] sm:$0xff] %v2257
          %v2259 = vld [vmem:[%s1255 + $0xfa8] sm:$0xff]
          %2260 = vst [vmem:[%s1256 + $0xfa8] sm:$0xff] %v2259
          %v2261 = vld [vmem:[%s1255 + $0xfb0] sm:$0xff]
          %2262 = vst [vmem:[%s1256 + $0xfb0] sm:$0xff] %v2261
          %v2263 = vld [vmem:[%s1255 + $0xfb8] sm:$0xff]
          %2264 = vst [vmem:[%s1256 + $0xfb8] sm:$0xff] %v2263
          %v2265 = vld [vmem:[%s1255 + $0xfc0] sm:$0xff]
          %2266 = vst [vmem:[%s1256 + $0xfc0] sm:$0xff] %v2265
          %v2267 = vld [vmem:[%s1255 + $0xfc8] sm:$0xff]
          %2268 = vst [vmem:[%s1256 + $0xfc8] sm:$0xff] %v2267
          %v2269 = vld [vmem:[%s1255 + $0xfd0] sm:$0xff]
          %2270 = vst [vmem:[%s1256 + $0xfd0] sm:$0xff] %v2269
          %v2271 = vld [vmem:[%s1255 + $0xfd8] sm:$0xff]
          %2272 = vst [vmem:[%s1256 + $0xfd8] sm:$0xff] %v2271
          %v2273 = vld [vmem:[%s1255 + $0xfe0] sm:$0xff]
          %2274 = vst [vmem:[%s1256 + $0xfe0] sm:$0xff] %v2273
          %v2275 = vld [vmem:[%s1255 + $0xfe8] sm:$0xff]
          %2276 = vst [vmem:[%s1256 + $0xfe8] sm:$0xff] %v2275
          %v2277 = vld [vmem:[%s1255 + $0xff0] sm:$0xff]
          %2278 = vst [vmem:[%s1256 + $0xff0] sm:$0xff] %v2277
          %v2279 = vld [vmem:[%s1255 + $0xff8] sm:$0xff]
          %2280 = vst [vmem:[%s1256 + $0xff8] sm:$0xff] %v2279
        $region91: #{net_forward.1} parent=85 // loop_footer
          %s1254 = sadd.s32 1, %s1250
        $region92: #{net_forward.1} parent=85 // loop_footer_branch
          %1249 = sbr.rel target = $region88
        $region93: #{net_forward.1} parent=85 // loop_exit
          _
      $region86: #{net_forward.1} parent=70 // pred_fallthru
        _
      %p2281 = pneg %p1245
      // Predicated region
      $region94: #{net_forward.1} parent=70 // pred_check
        _
      $region95: #{net_forward.1} parent=70 // pred_check_branch
        %2283 = sbr.rel (%p1245) target = $region97
      $region96: #{net_forward.1} parent=70 // pred_region
        %s2284 = sand.u32 4096, 7
      $region97: #{net_forward.1} parent=70 // pred_fallthru
        _
    $region71: #{net_forward.1} parent=1 // pred_fallthru
      _
    // Predicated region
    $region72: #{net_forward.1} parent=1 // pred_check
      %p1230 = pneg %p1226
    $region73: #{net_forward.1} parent=1 // pred_check_branch
      %1232 = sbr.rel (%p1230) target = $region75
    $region74: #{net_forward.1} parent=1 // pred_region
      %s1233 = sshllo.u32 0, 4096
      loop: start=0, step=1, limit=1
      $region76: #{net_forward.1} parent=74 // loop_pre_header
        _
      $region77: #{net_forward.1} parent=74 // loop_header
        %s1235 = sphi 0, %s1239
        %p1236 = scmp.ge.s32.totalorder %s1235, 1
        %s1240 = sphi %s6, %s6
        %s1241 = sphi [#allocation4], [#allocation4]
      $region78: #{net_forward.1} parent=74 // loop_header_branch
        %1238 = sbr.rel (%p1236) target = $region82
      $region79: #{net_forward.1} parent=74 // loop_body
        %v1242 = vld [vmem:[%s1240] sm:%s1233]
        %1243 = vst [vmem:[%s1241] sm:%s1233] %v1242
      $region80: #{net_forward.1} parent=74 // loop_footer
        %s1239 = sadd.s32 1, %s1235
      $region81: #{net_forward.1} parent=74 // loop_footer_branch
        %1234 = sbr.rel target = $region77
      $region82: #{net_forward.1} parent=74 // loop_exit
        _
    $region75: #{net_forward.1} parent=1 // pred_fallthru
      _
    // Predicated region
    $region98: #{net_forward.1} parent=1 // pred_check
      _
    $region99: #{net_forward.1} parent=1 // pred_check_branch
      %2287 = sbr.rel (0) target = $region101
    $region100: #{net_forward.1} parent=1 // pred_region
      %2288 = vsyncadd %s1224, 65536
    $region101: #{net_forward.1} parent=1 // pred_fallthru
      _
    %v2289 = vld [vmem:[%s0] sm:$0xff]
    %v2290 = vld [vmem:[%s0 + $0x8] sm:$0xff]
    %v2291 = vld [vmem:[%s0 + $0x10] sm:$0xff]
    %v2292 = vld [vmem:[%s0 + $0x18] sm:$0xff]
    %v2293 = vld [vmem:[%s0 + $0x20] sm:$0xff]
    %v2294 = vld [vmem:[%s0 + $0x28] sm:$0xff]
    %v2295 = vld [vmem:[%s0 + $0x30] sm:$0xff]
    %v2296 = vld [vmem:[%s0 + $0x38] sm:$0xff]
    %v2297 = vld [vmem:[%s0 + $0x40] sm:$0xff]
    %v2298 = vld [vmem:[%s0 + $0x48] sm:$0xff]
    %v2299 = vld [vmem:[%s0 + $0x50] sm:$0xff]
    %v2300 = vld [vmem:[%s0 + $0x58] sm:$0xff]
    %v2301 = vld [vmem:[%s0 + $0x60] sm:$0xff]
    %v2302 = vld [vmem:[%s0 + $0x68] sm:$0xff]
    %v2303 = vld [vmem:[%s0 + $0x70] sm:$0xff]
    %v2304 = vld [vmem:[%s0 + $0x78] sm:$0xff]
    %v2305 = vld [vmem:[%s1] sm:$0xff]
    %v2306 = vld [vmem:[%s1 + $0x8] sm:$0xff]
    %v2307 = vld [vmem:[%s1 + $0x10] sm:$0xff]
    %v2308 = vld [vmem:[%s1 + $0x18] sm:$0xff]
    %v2309 = vld [vmem:[%s1 + $0x20] sm:$0xf]
    %vm2310 = vcmask 293888
    %v2312 = vsel %vm2310, %v2289, 0
    %v2315 = vsel %vm2310, %v2290, 0
    %v2318 = vsel %vm2310, %v2291, 0
    %v2321 = vsel %vm2310, %v2292, 0
    %v2324 = vsel %vm2310, %v2293, 0
    %v2327 = vsel %vm2310, %v2294, 0
    %v2330 = vsel %vm2310, %v2295, 0
    %v2333 = vsel %vm2310, %v2296, 0
    %v2336 = vsel %vm2310, %v2297, 0
    %v2339 = vsel %vm2310, %v2298, 0
    %v2342 = vsel %vm2310, %v2299, 0
    %v2345 = vsel %vm2310, %v2300, 0
    %v2348 = vsel %vm2310, %v2301, 0
    %v2351 = vsel %vm2310, %v2302, 0
    %v2354 = vsel %vm2310, %v2303, 0
    %v2357 = vsel %vm2310, %v2304, 0
    %vm2359 = vcmask 1043456
    %v2361 = vsel %vm2359, %v2309, 0
    %2363 = vmatprep.subr.mxu0 0.0
    %2364 = vmatpush1.msra.mxu0 %v2305
    %2365 = vmatprep.subr.mxu0 0.0
    %2366 = vmatpush1.msra.mxu0 %v2306
    %2367 = vmatprep.subr.mxu0 0.0
    %2368 = vmatpush1.msra.mxu0 %v2307
    %2369 = vmatprep.subr.mxu0 0.0
    %2370 = vmatpush1.msra.mxu0 %v2308
    %2371 = vmatprep.subr.mxu0 0.0
    %2372 = vmatpush1.msra.mxu0 %v2361
    %2373 = vmatprep.subr.mxu0 0.0
    %2374 = vmatpush1.msra.mxu0 0.0
    %2375 = vmatprep.subr.mxu0 0.0
    %2376 = vmatpush1.msra.mxu0 0.0
    %2377 = vmatprep.subr.mxu0 0.0
    %2378 = vmatpush1.msra.mxu0 0.0
    %2379 = vmatprep.subr.mxu0 0.0
    %2380 = vmatpush1.msra.mxu0 0.0
    %2381 = vmatprep.subr.mxu0 0.0
    %2382 = vmatpush1.msra.mxu0 0.0
    %2383 = vmatprep.subr.mxu0 0.0
    %2384 = vmatpush1.msra.mxu0 0.0
    %2385 = vmatprep.subr.mxu0 0.0
    %2386 = vmatpush1.msra.mxu0 0.0
    %2387 = vmatprep.subr.mxu0 0.0
    %2388 = vmatpush1.msra.mxu0 0.0
    %2389 = vmatprep.subr.mxu0 0.0
    %2390 = vmatpush1.msra.mxu0 0.0
    %2391 = vmatprep.subr.mxu0 0.0
    %2392 = vmatpush1.msra.mxu0 0.0
    %2393 = vmatprep.subr.mxu0 0.0
    %2394 = vmatpush1.msra.mxu0 0.0
    %2395 = vmatprep.subr.mxu0 0.0
    %2396 = vmatpush1.msra.mxu0 0.0
    %2397 = vmatprep.subr.mxu0 0.0
    %2398 = vmatpush1.msra.mxu0 0.0
    %2399 = vmatprep.subr.mxu0 0.0
    %2400 = vmatpush1.msra.mxu0 0.0
    %2401 = vmatprep.subr.mxu0 0.0
    %2402 = vmatpush1.msra.mxu0 0.0
    %2403 = vmatprep.subr.mxu0 0.0
    %2404 = vmatpush1.msra.mxu0 0.0
    %2405 = vmatprep.subr.mxu0 0.0
    %2406 = vmatpush1.msra.mxu0 0.0
    %2407 = vmatprep.subr.mxu0 0.0
    %2408 = vmatpush1.msra.mxu0 0.0
    %2409 = vmatprep.subr.mxu0 0.0
    %2410 = vmatpush1.msra.mxu0 0.0
    %2411 = vmatprep.subr.mxu0 0.0
    %2412 = vmatpush1.msra.mxu0 0.0
    %2413 = vmatprep.subr.mxu0 0.0
    %2414 = vmatpush1.msra.mxu0 0.0
    %2415 = vmatprep.subr.mxu0 0.0
    %2416 = vmatpush1.msra.mxu0 0.0
    %2417 = vmatprep.subr.mxu0 0.0
    %2418 = vmatpush1.msra.mxu0 0.0
    %2419 = vmatprep.subr.mxu0 0.0
    %2420 = vmatpush1.msra.mxu0 0.0
    %2421 = vmatprep.subr.mxu0 0.0
    %2422 = vmatpush1.msra.mxu0 0.0
    %2423 = vmatprep.subr.mxu0 0.0
    %2424 = vmatpush1.msra.mxu0 0.0
    %2425 = vmatprep.subr.mxu0 0.0
    %2426 = vmatpush1.msra.mxu0 0.0
    %2427 = vmatprep.mubr.f32.mxu0 0.0
    %2428 = vmatmul.mubr.f32.gmra.mrb[0].mxu0 %v2312
    %v2429 = vpop.f32.mrb[0].mxu0
    %v2430 = vadd.f32 0.0, %v2429
    %v2431 = vpop.f32.mrb[0].mxu0
    %2432 = vmatprep.mubr.f32.mxu0 0.0
    %2433 = vmatmul.mubr.f32.gmra.mrb[0].mxu0 %v2315
    %v2434 = vpop.f32.mrb[0].mxu0
    %v2435 = vadd.f32 0.0, %v2434
    %v2436 = vpop.f32.mrb[0].mxu0
    %2437 = vmatprep.mubr.f32.mxu0 0.0
    %2438 = vmatmul.mubr.f32.gmra.mrb[0].mxu0 %v2318
    %v2439 = vpop.f32.mrb[0].mxu0
    %v2440 = vadd.f32 0.0, %v2439
    %v2441 = vpop.f32.mrb[0].mxu0
    %2442 = vmatprep.mubr.f32.mxu0 0.0
    %2443 = vmatmul.mubr.f32.gmra.mrb[0].mxu0 %v2321
    %v2444 = vpop.f32.mrb[0].mxu0
    %v2445 = vadd.f32 0.0, %v2444
    %v2446 = vpop.f32.mrb[0].mxu0
    %2447 = vmatprep.mubr.f32.mxu0 0.0
    %2448 = vmatmul.mubr.f32.gmra.mrb[0].mxu0 %v2324
    %v2449 = vpop.f32.mrb[0].mxu0
    %v2450 = vadd.f32 0.0, %v2449
    %v2451 = vpop.f32.mrb[0].mxu0
    %2452 = vmatprep.mubr.f32.mxu0 0.0
    %2453 = vmatmul.mubr.f32.gmra.mrb[0].mxu0 %v2327
    %v2454 = vpop.f32.mrb[0].mxu0
    %v2455 = vadd.f32 0.0, %v2454
    %v2456 = vpop.f32.mrb[0].mxu0
    %2457 = vmatprep.mubr.f32.mxu0 0.0
    %2458 = vmatmul.mubr.f32.gmra.mrb[0].mxu0 %v2330
    %v2459 = vpop.f32.mrb[0].mxu0
    %v2460 = vadd.f32 0.0, %v2459
    %v2461 = vpop.f32.mrb[0].mxu0
    %2462 = vmatprep.mubr.f32.mxu0 0.0
    %2463 = vmatmul.mubr.f32.gmra.mrb[0].mxu0 %v2333
    %v2464 = vpop.f32.mrb[0].mxu0
    %v2465 = vadd.f32 0.0, %v2464
    %v2466 = vpop.f32.mrb[0].mxu0
    %2467 = vmatprep.mubr.f32.mxu0 0.0
    %2468 = vmatmul.mubr.f32.gmra.mrb[0].mxu0 %v2336
    %v2469 = vpop.f32.mrb[0].mxu0
    %v2470 = vadd.f32 0.0, %v2469
    %v2471 = vpop.f32.mrb[0].mxu0
    %2472 = vmatprep.mubr.f32.mxu0 0.0
    %2473 = vmatmul.mubr.f32.gmra.mrb[0].mxu0 %v2339
    %v2474 = vpop.f32.mrb[0].mxu0
    %v2475 = vadd.f32 0.0, %v2474
    %v2476 = vpop.f32.mrb[0].mxu0
    %2477 = vmatprep.mubr.f32.mxu0 0.0
    %2478 = vmatmul.mubr.f32.gmra.mrb[0].mxu0 %v2342
    %v2479 = vpop.f32.mrb[0].mxu0
    %v2480 = vadd.f32 0.0, %v2479
    %v2481 = vpop.f32.mrb[0].mxu0
    %2482 = vmatprep.mubr.f32.mxu0 0.0
    %2483 = vmatmul.mubr.f32.gmra.mrb[0].mxu0 %v2345
    %v2484 = vpop.f32.mrb[0].mxu0
    %v2485 = vadd.f32 0.0, %v2484
    %v2486 = vpop.f32.mrb[0].mxu0
    %2487 = vmatprep.mubr.f32.mxu0 0.0
    %2488 = vmatmul.mubr.f32.gmra.mrb[0].mxu0 %v2348
    %v2489 = vpop.f32.mrb[0].mxu0
    %v2490 = vadd.f32 0.0, %v2489
    %v2491 = vpop.f32.mrb[0].mxu0
    %2492 = vmatprep.mubr.f32.mxu0 0.0
    %2493 = vmatmul.mubr.f32.gmra.mrb[0].mxu0 %v2351
    %v2494 = vpop.f32.mrb[0].mxu0
    %v2495 = vadd.f32 0.0, %v2494
    %v2496 = vpop.f32.mrb[0].mxu0
    %2497 = vmatprep.mubr.f32.mxu0 0.0
    %2498 = vmatmul.mubr.f32.gmra.mrb[0].mxu0 %v2354
    %v2499 = vpop.f32.mrb[0].mxu0
    %v2500 = vadd.f32 0.0, %v2499
    %v2501 = vpop.f32.mrb[0].mxu0
    %2502 = vmatprep.mubr.f32.mxu0 0.0
    %2503 = vmatmul.mubr.f32.gmra.mrb[0].mxu0 %v2357
    %v2504 = vpop.f32.mrb[0].mxu0
    %v2505 = vadd.f32 0.0, %v2504
    %v2506 = vpop.f32.mrb[0].mxu0
    %2507 = vdwg.mxu0
    %s2508 = scalar_lea.vmem %s1, 40
    %v2509 = vld [vmem:[%s2508] sm:$0xff]
    %v2510 = vld [vmem:[%s2508 + $0x8] sm:$0xff]
    %v2511 = vld [vmem:[%s2508 + $0x10] sm:$0xff]
    %v2512 = vld [vmem:[%s2508 + $0x18] sm:$0xff]
    %v2513 = vld [vmem:[%s2508 + $0x20] sm:$0xf]
    %v2515 = vsel %vm2359, %v2513, 0
    %2517 = vmatprep.subr.mxu0 0.0
    %2518 = vmatpush1.msra.mxu0 %v2509
    %2519 = vmatprep.subr.mxu0 0.0
    %2520 = vmatpush1.msra.mxu0 %v2510
    %2521 = vmatprep.subr.mxu0 0.0
    %2522 = vmatpush1.msra.mxu0 %v2511
    %2523 = vmatprep.subr.mxu0 0.0
    %2524 = vmatpush1.msra.mxu0 %v2512
    %2525 = vmatprep.subr.mxu0 0.0
    %2526 = vmatpush1.msra.mxu0 %v2515
    %2527 = vmatprep.subr.mxu0 0.0
    %2528 = vmatpush1.msra.mxu0 0.0
    %2529 = vmatprep.subr.mxu0 0.0
    %2530 = vmatpush1.msra.mxu0 0.0
    %2531 = vmatprep.subr.mxu0 0.0
    %2532 = vmatpush1.msra.mxu0 0.0
    %2533 = vmatprep.subr.mxu0 0.0
    %2534 = vmatpush1.msra.mxu0 0.0
    %2535 = vmatprep.subr.mxu0 0.0
    %2536 = vmatpush1.msra.mxu0 0.0
    %2537 = vmatprep.subr.mxu0 0.0
    %2538 = vmatpush1.msra.mxu0 0.0
    %2539 = vmatprep.subr.mxu0 0.0
    %2540 = vmatpush1.msra.mxu0 0.0
    %2541 = vmatprep.subr.mxu0 0.0
    %2542 = vmatpush1.msra.mxu0 0.0
    %2543 = vmatprep.subr.mxu0 0.0
    %2544 = vmatpush1.msra.mxu0 0.0
    %2545 = vmatprep.subr.mxu0 0.0
    %2546 = vmatpush1.msra.mxu0 0.0
    %2547 = vmatprep.subr.mxu0 0.0
    %2548 = vmatpush1.msra.mxu0 0.0
    %2549 = vmatprep.subr.mxu0 0.0
    %2550 = vmatpush1.msra.mxu0 0.0
    %2551 = vmatprep.subr.mxu0 0.0
    %2552 = vmatpush1.msra.mxu0 0.0
    %2553 = vmatprep.subr.mxu0 0.0
    %2554 = vmatpush1.msra.mxu0 0.0
    %2555 = vmatprep.subr.mxu0 0.0
    %2556 = vmatpush1.msra.mxu0 0.0
    %2557 = vmatprep.subr.mxu0 0.0
    %2558 = vmatpush1.msra.mxu0 0.0
    %2559 = vmatprep.subr.mxu0 0.0
    %2560 = vmatpush1.msra.mxu0 0.0
    %2561 = vmatprep.subr.mxu0 0.0
    %2562 = vmatpush1.msra.mxu0 0.0
    %2563 = vmatprep.subr.mxu0 0.0
    %2564 = vmatpush1.msra.mxu0 0.0
    %2565 = vmatprep.subr.mxu0 0.0
    %2566 = vmatpush1.msra.mxu0 0.0
    %2567 = vmatprep.subr.mxu0 0.0
    %2568 = vmatpush1.msra.mxu0 0.0
    %2569 = vmatprep.subr.mxu0 0.0
    %2570 = vmatpush1.msra.mxu0 0.0
    %2571 = vmatprep.subr.mxu0 0.0
    %2572 = vmatpush1.msra.mxu0 0.0
    %2573 = vmatprep.subr.mxu0 0.0
    %2574 = vmatpush1.msra.mxu0 0.0
    %2575 = vmatprep.subr.mxu0 0.0
    %2576 = vmatpush1.msra.mxu0 0.0
    %2577 = vmatprep.subr.mxu0 0.0
    %2578 = vmatpush1.msra.mxu0 0.0
    %2579 = vmatprep.subr.mxu0 0.0
    %2580 = vmatpush1.msra.mxu0 0.0
    %2581 = vmatprep.mubr.f32.mxu0 0.0
    %2582 = vmatmul.mubr.f32.gmra.mrb[0].mxu0 %v2312
    %v2583 = vpop.f32.mrb[0].mxu0
    %v2584 = vadd.f32 0.0, %v2583
    %v2585 = vpop.f32.mrb[0].mxu0
    %2586 = vmatprep.mubr.f32.mxu0 0.0
    %2587 = vmatmul.mubr.f32.gmra.mrb[0].mxu0 %v2315
    %v2588 = vpop.f32.mrb[0].mxu0
    %v2589 = vadd.f32 0.0, %v2588
    %v2590 = vpop.f32.mrb[0].mxu0
    %2591 = vmatprep.mubr.f32.mxu0 0.0
    %2592 = vmatmul.mubr.f32.gmra.mrb[0].mxu0 %v2318
    %v2593 = vpop.f32.mrb[0].mxu0
    %v2594 = vadd.f32 0.0, %v2593
    %v2595 = vpop.f32.mrb[0].mxu0
    %2596 = vmatprep.mubr.f32.mxu0 0.0
    %2597 = vmatmul.mubr.f32.gmra.mrb[0].mxu0 %v2321
    %v2598 = vpop.f32.mrb[0].mxu0
    %v2599 = vadd.f32 0.0, %v2598
    %v2600 = vpop.f32.mrb[0].mxu0
    %2601 = vmatprep.mubr.f32.mxu0 0.0
    %2602 = vmatmul.mubr.f32.gmra.mrb[0].mxu0 %v2324
    %v2603 = vpop.f32.mrb[0].mxu0
    %v2604 = vadd.f32 0.0, %v2603
    %v2605 = vpop.f32.mrb[0].mxu0
    %2606 = vmatprep.mubr.f32.mxu0 0.0
    %2607 = vmatmul.mubr.f32.gmra.mrb[0].mxu0 %v2327
    %v2608 = vpop.f32.mrb[0].mxu0
    %v2609 = vadd.f32 0.0, %v2608
    %v2610 = vpop.f32.mrb[0].mxu0
    %2611 = vmatprep.mubr.f32.mxu0 0.0
    %2612 = vmatmul.mubr.f32.gmra.mrb[0].mxu0 %v2330
    %v2613 = vpop.f32.mrb[0].mxu0
    %v2614 = vadd.f32 0.0, %v2613
    %v2615 = vpop.f32.mrb[0].mxu0
    %2616 = vmatprep.mubr.f32.mxu0 0.0
    %2617 = vmatmul.mubr.f32.gmra.mrb[0].mxu0 %v2333
    %v2618 = vpop.f32.mrb[0].mxu0
    %v2619 = vadd.f32 0.0, %v2618
    %v2620 = vpop.f32.mrb[0].mxu0
    %2621 = vmatprep.mubr.f32.mxu0 0.0
    %2622 = vmatmul.mubr.f32.gmra.mrb[0].mxu0 %v2336
    %v2623 = vpop.f32.mrb[0].mxu0
    %v2624 = vadd.f32 0.0, %v2623
    %v2625 = vpop.f32.mrb[0].mxu0
    %2626 = vmatprep.mubr.f32.mxu0 0.0
    %2627 = vmatmul.mubr.f32.gmra.mrb[0].mxu0 %v2339
    %v2628 = vpop.f32.mrb[0].mxu0
    %v2629 = vadd.f32 0.0, %v2628
    %v2630 = vpop.f32.mrb[0].mxu0
    %2631 = vmatprep.mubr.f32.mxu0 0.0
    %2632 = vmatmul.mubr.f32.gmra.mrb[0].mxu0 %v2342
    %v2633 = vpop.f32.mrb[0].mxu0
    %v2634 = vadd.f32 0.0, %v2633
    %v2635 = vpop.f32.mrb[0].mxu0
    %2636 = vmatprep.mubr.f32.mxu0 0.0
    %2637 = vmatmul.mubr.f32.gmra.mrb[0].mxu0 %v2345
    %v2638 = vpop.f32.mrb[0].mxu0
    %v2639 = vadd.f32 0.0, %v2638
    %v2640 = vpop.f32.mrb[0].mxu0
    %2641 = vmatprep.mubr.f32.mxu0 0.0
    %2642 = vmatmul.mubr.f32.gmra.mrb[0].mxu0 %v2348
    %v2643 = vpop.f32.mrb[0].mxu0
    %v2644 = vadd.f32 0.0, %v2643
    %v2645 = vpop.f32.mrb[0].mxu0
    %2646 = vmatprep.mubr.f32.mxu0 0.0
    %2647 = vmatmul.mubr.f32.gmra.mrb[0].mxu0 %v2351
    %v2648 = vpop.f32.mrb[0].mxu0
    %v2649 = vadd.f32 0.0, %v2648
    %v2650 = vpop.f32.mrb[0].mxu0
    %2651 = vmatprep.mubr.f32.mxu0 0.0
    %2652 = vmatmul.mubr.f32.gmra.mrb[0].mxu0 %v2354
    %v2653 = vpop.f32.mrb[0].mxu0
    %v2654 = vadd.f32 0.0, %v2653
    %v2655 = vpop.f32.mrb[0].mxu0
    %2656 = vmatprep.mubr.f32.mxu0 0.0
    %2657 = vmatmul.mubr.f32.gmra.mrb[0].mxu0 %v2357
    %v2658 = vpop.f32.mrb[0].mxu0
    %v2659 = vadd.f32 0.0, %v2658
    %v2660 = vpop.f32.mrb[0].mxu0
    %2661 = vdwg.mxu0
    %v2662 = vmax.f32 %v2430, %v2584
    %v2663 = vmax.f32 %v2435, %v2589
    %v2664 = vmax.f32 %v2440, %v2594
    %v2665 = vmax.f32 %v2445, %v2599
    %v2666 = vmax.f32 %v2450, %v2604
    %v2667 = vmax.f32 %v2455, %v2609
    %v2668 = vmax.f32 %v2460, %v2614
    %v2669 = vmax.f32 %v2465, %v2619
    %v2670 = vmax.f32 %v2470, %v2624
    %v2671 = vmax.f32 %v2475, %v2629
    %v2672 = vmax.f32 %v2480, %v2634
    %v2673 = vmax.f32 %v2485, %v2639
    %v2674 = vmax.f32 %v2490, %v2644
    %v2675 = vmax.f32 %v2495, %v2649
    %v2676 = vmax.f32 %v2500, %v2654
    %v2677 = vmax.f32 %v2505, %v2659
    %s2678 = scalar_lea.vmem %s1, 80
    %v2679 = vld [vmem:[%s2678] sm:$0xff]
    %v2680 = vld [vmem:[%s2678 + $0x8] sm:$0xff]
    %v2681 = vld [vmem:[%s2678 + $0x10] sm:$0xff]
    %v2682 = vld [vmem:[%s2678 + $0x18] sm:$0xff]
    %v2683 = vld [vmem:[%s2678 + $0x20] sm:$0xf]
    %v2685 = vsel %vm2359, %v2683, 0
    %2687 = vmatprep.subr.mxu0 0.0
    %2688 = vmatpush1.msra.mxu0 %v2679
    %2689 = vmatprep.subr.mxu0 0.0
    %2690 = vmatpush1.msra.mxu0 %v2680
    %2691 = vmatprep.subr.mxu0 0.0
    %2692 = vmatpush1.msra.mxu0 %v2681
    %2693 = vmatprep.subr.mxu0 0.0
    %2694 = vmatpush1.msra.mxu0 %v2682
    %2695 = vmatprep.subr.mxu0 0.0
    %2696 = vmatpush1.msra.mxu0 %v2685
    %2697 = vmatprep.subr.mxu0 0.0
    %2698 = vmatpush1.msra.mxu0 0.0
    %2699 = vmatprep.subr.mxu0 0.0
    %2700 = vmatpush1.msra.mxu0 0.0
    %2701 = vmatprep.subr.mxu0 0.0
    %2702 = vmatpush1.msra.mxu0 0.0
    %2703 = vmatprep.subr.mxu0 0.0
    %2704 = vmatpush1.msra.mxu0 0.0
    %2705 = vmatprep.subr.mxu0 0.0
    %2706 = vmatpush1.msra.mxu0 0.0
    %2707 = vmatprep.subr.mxu0 0.0
    %2708 = vmatpush1.msra.mxu0 0.0
    %2709 = vmatprep.subr.mxu0 0.0
    %2710 = vmatpush1.msra.mxu0 0.0
    %2711 = vmatprep.subr.mxu0 0.0
    %2712 = vmatpush1.msra.mxu0 0.0
    %2713 = vmatprep.subr.mxu0 0.0
    %2714 = vmatpush1.msra.mxu0 0.0
    %2715 = vmatprep.subr.mxu0 0.0
    %2716 = vmatpush1.msra.mxu0 0.0
    %2717 = vmatprep.subr.mxu0 0.0
    %2718 = vmatpush1.msra.mxu0 0.0
    %2719 = vmatprep.subr.mxu0 0.0
    %2720 = vmatpush1.msra.mxu0 0.0
    %2721 = vmatprep.subr.mxu0 0.0
    %2722 = vmatpush1.msra.mxu0 0.0
    %2723 = vmatprep.subr.mxu0 0.0
    %2724 = vmatpush1.msra.mxu0 0.0
    %2725 = vmatprep.subr.mxu0 0.0
    %2726 = vmatpush1.msra.mxu0 0.0
    %2727 = vmatprep.subr.mxu0 0.0
    %2728 = vmatpush1.msra.mxu0 0.0
    %2729 = vmatprep.subr.mxu0 0.0
    %2730 = vmatpush1.msra.mxu0 0.0
    %2731 = vmatprep.subr.mxu0 0.0
    %2732 = vmatpush1.msra.mxu0 0.0
    %2733 = vmatprep.subr.mxu0 0.0
    %2734 = vmatpush1.msra.mxu0 0.0
    %2735 = vmatprep.subr.mxu0 0.0
    %2736 = vmatpush1.msra.mxu0 0.0
    %2737 = vmatprep.subr.mxu0 0.0
    %2738 = vmatpush1.msra.mxu0 0.0
    %2739 = vmatprep.subr.mxu0 0.0
    %2740 = vmatpush1.msra.mxu0 0.0
    %2741 = vmatprep.subr.mxu0 0.0
    %2742 = vmatpush1.msra.mxu0 0.0
    %2743 = vmatprep.subr.mxu0 0.0
    %2744 = vmatpush1.msra.mxu0 0.0
    %2745 = vmatprep.subr.mxu0 0.0
    %2746 = vmatpush1.msra.mxu0 0.0
    %2747 = vmatprep.subr.mxu0 0.0
    %2748 = vmatpush1.msra.mxu0 0.0
    %2749 = vmatprep.subr.mxu0 0.0
    %2750 = vmatpush1.msra.mxu0 0.0
    %2751 = vmatprep.mubr.f32.mxu0 0.0
    %2752 = vmatmul.mubr.f32.gmra.mrb[0].mxu0 %v2312
    %v2753 = vpop.f32.mrb[0].mxu0
    %v2754 = vadd.f32 0.0, %v2753
    %v2755 = vpop.f32.mrb[0].mxu0
    %2756 = vmatprep.mubr.f32.mxu0 0.0
    %2757 = vmatmul.mubr.f32.gmra.mrb[0].mxu0 %v2315
    %v2758 = vpop.f32.mrb[0].mxu0
    %v2759 = vadd.f32 0.0, %v2758
    %v2760 = vpop.f32.mrb[0].mxu0
    %2761 = vmatprep.mubr.f32.mxu0 0.0
    %2762 = vmatmul.mubr.f32.gmra.mrb[0].mxu0 %v2318
    %v2763 = vpop.f32.mrb[0].mxu0
    %v2764 = vadd.f32 0.0, %v2763
    %v2765 = vpop.f32.mrb[0].mxu0
    %2766 = vmatprep.mubr.f32.mxu0 0.0
    %2767 = vmatmul.mubr.f32.gmra.mrb[0].mxu0 %v2321
    %v2768 = vpop.f32.mrb[0].mxu0
    %v2769 = vadd.f32 0.0, %v2768
    %v2770 = vpop.f32.mrb[0].mxu0
    %2771 = vmatprep.mubr.f32.mxu0 0.0
    %2772 = vmatmul.mubr.f32.gmra.mrb[0].mxu0 %v2324
    %v2773 = vpop.f32.mrb[0].mxu0
    %v2774 = vadd.f32 0.0, %v2773
    %v2775 = vpop.f32.mrb[0].mxu0
    %2776 = vmatprep.mubr.f32.mxu0 0.0
    %2777 = vmatmul.mubr.f32.gmra.mrb[0].mxu0 %v2327
    %v2778 = vpop.f32.mrb[0].mxu0
    %v2779 = vadd.f32 0.0, %v2778
    %v2780 = vpop.f32.mrb[0].mxu0
    %2781 = vmatprep.mubr.f32.mxu0 0.0
    %2782 = vmatmul.mubr.f32.gmra.mrb[0].mxu0 %v2330
    %v2783 = vpop.f32.mrb[0].mxu0
    %v2784 = vadd.f32 0.0, %v2783
    %v2785 = vpop.f32.mrb[0].mxu0
    %2786 = vmatprep.mubr.f32.mxu0 0.0
    %2787 = vmatmul.mubr.f32.gmra.mrb[0].mxu0 %v2333
    %v2788 = vpop.f32.mrb[0].mxu0
    %v2789 = vadd.f32 0.0, %v2788
    %v2790 = vpop.f32.mrb[0].mxu0
    %2791 = vmatprep.mubr.f32.mxu0 0.0
    %2792 = vmatmul.mubr.f32.gmra.mrb[0].mxu0 %v2336
    %v2793 = vpop.f32.mrb[0].mxu0
    %v2794 = vadd.f32 0.0, %v2793
    %v2795 = vpop.f32.mrb[0].mxu0
    %2796 = vmatprep.mubr.f32.mxu0 0.0
    %2797 = vmatmul.mubr.f32.gmra.mrb[0].mxu0 %v2339
    %v2798 = vpop.f32.mrb[0].mxu0
    %v2799 = vadd.f32 0.0, %v2798
    %v2800 = vpop.f32.mrb[0].mxu0
    %2801 = vmatprep.mubr.f32.mxu0 0.0
    %2802 = vmatmul.mubr.f32.gmra.mrb[0].mxu0 %v2342
    %v2803 = vpop.f32.mrb[0].mxu0
    %v2804 = vadd.f32 0.0, %v2803
    %v2805 = vpop.f32.mrb[0].mxu0
    %2806 = vmatprep.mubr.f32.mxu0 0.0
    %2807 = vmatmul.mubr.f32.gmra.mrb[0].mxu0 %v2345
    %v2808 = vpop.f32.mrb[0].mxu0
    %v2809 = vadd.f32 0.0, %v2808
    %v2810 = vpop.f32.mrb[0].mxu0
    %2811 = vmatprep.mubr.f32.mxu0 0.0
    %2812 = vmatmul.mubr.f32.gmra.mrb[0].mxu0 %v2348
    %v2813 = vpop.f32.mrb[0].mxu0
    %v2814 = vadd.f32 0.0, %v2813
    %v2815 = vpop.f32.mrb[0].mxu0
    %2816 = vmatprep.mubr.f32.mxu0 0.0
    %2817 = vmatmul.mubr.f32.gmra.mrb[0].mxu0 %v2351
    %v2818 = vpop.f32.mrb[0].mxu0
    %v2819 = vadd.f32 0.0, %v2818
    %v2820 = vpop.f32.mrb[0].mxu0
    %2821 = vmatprep.mubr.f32.mxu0 0.0
    %2822 = vmatmul.mubr.f32.gmra.mrb[0].mxu0 %v2354
    %v2823 = vpop.f32.mrb[0].mxu0
    %v2824 = vadd.f32 0.0, %v2823
    %v2825 = vpop.f32.mrb[0].mxu0
    %2826 = vmatprep.mubr.f32.mxu0 0.0
    %2827 = vmatmul.mubr.f32.gmra.mrb[0].mxu0 %v2357
    %v2828 = vpop.f32.mrb[0].mxu0
    %v2829 = vadd.f32 0.0, %v2828
    %v2830 = vpop.f32.mrb[0].mxu0
    %2831 = vdwg.mxu0
    %v2832 = vmax.f32 %v2662, %v2754
    %v2833 = vmax.f32 %v2663, %v2759
    %v2834 = vmax.f32 %v2664, %v2764
    %v2835 = vmax.f32 %v2665, %v2769
    %v2836 = vmax.f32 %v2666, %v2774
    %v2837 = vmax.f32 %v2667, %v2779
    %v2838 = vmax.f32 %v2668, %v2784
    %v2839 = vmax.f32 %v2669, %v2789
    %v2840 = vmax.f32 %v2670, %v2794
    %v2841 = vmax.f32 %v2671, %v2799
    %v2842 = vmax.f32 %v2672, %v2804
    %v2843 = vmax.f32 %v2673, %v2809
    %v2844 = vmax.f32 %v2674, %v2814
    %v2845 = vmax.f32 %v2675, %v2819
    %v2846 = vmax.f32 %v2676, %v2824
    %v2847 = vmax.f32 %v2677, %v2829
    %s2848 = scalar_lea.vmem %s1, 120
    %v2849 = vld [vmem:[%s2848] sm:$0xff]
    %v2850 = vld [vmem:[%s2848 + $0x8] sm:$0xff]
    %v2851 = vld [vmem:[%s2848 + $0x10] sm:$0xff]
    %v2852 = vld [vmem:[%s2848 + $0x18] sm:$0xff]
    %v2853 = vld [vmem:[%s2848 + $0x20] sm:$0xf]
    %v2855 = vsel %vm2359, %v2853, 0
    %2857 = vmatprep.subr.mxu0 0.0
    %2858 = vmatpush1.msra.mxu0 %v2849
    %2859 = vmatprep.subr.mxu0 0.0
    %2860 = vmatpush1.msra.mxu0 %v2850
    %2861 = vmatprep.subr.mxu0 0.0
    %2862 = vmatpush1.msra.mxu0 %v2851
    %2863 = vmatprep.subr.mxu0 0.0
    %2864 = vmatpush1.msra.mxu0 %v2852
    %2865 = vmatprep.subr.mxu0 0.0
    %2866 = vmatpush1.msra.mxu0 %v2855
    %2867 = vmatprep.subr.mxu0 0.0
    %2868 = vmatpush1.msra.mxu0 0.0
    %2869 = vmatprep.subr.mxu0 0.0
    %2870 = vmatpush1.msra.mxu0 0.0
    %2871 = vmatprep.subr.mxu0 0.0
    %2872 = vmatpush1.msra.mxu0 0.0
    %2873 = vmatprep.subr.mxu0 0.0
    %2874 = vmatpush1.msra.mxu0 0.0
    %2875 = vmatprep.subr.mxu0 0.0
    %2876 = vmatpush1.msra.mxu0 0.0
    %2877 = vmatprep.subr.mxu0 0.0
    %2878 = vmatpush1.msra.mxu0 0.0
    %2879 = vmatprep.subr.mxu0 0.0
    %2880 = vmatpush1.msra.mxu0 0.0
    %2881 = vmatprep.subr.mxu0 0.0
    %2882 = vmatpush1.msra.mxu0 0.0
    %2883 = vmatprep.subr.mxu0 0.0
    %2884 = vmatpush1.msra.mxu0 0.0
    %2885 = vmatprep.subr.mxu0 0.0
    %2886 = vmatpush1.msra.mxu0 0.0
    %2887 = vmatprep.subr.mxu0 0.0
    %2888 = vmatpush1.msra.mxu0 0.0
    %2889 = vmatprep.subr.mxu0 0.0
    %2890 = vmatpush1.msra.mxu0 0.0
    %2891 = vmatprep.subr.mxu0 0.0
    %2892 = vmatpush1.msra.mxu0 0.0
    %2893 = vmatprep.subr.mxu0 0.0
    %2894 = vmatpush1.msra.mxu0 0.0
    %2895 = vmatprep.subr.mxu0 0.0
    %2896 = vmatpush1.msra.mxu0 0.0
    %2897 = vmatprep.subr.mxu0 0.0
    %2898 = vmatpush1.msra.mxu0 0.0
    %2899 = vmatprep.subr.mxu0 0.0
    %2900 = vmatpush1.msra.mxu0 0.0
    %2901 = vmatprep.subr.mxu0 0.0
    %2902 = vmatpush1.msra.mxu0 0.0
    %2903 = vmatprep.subr.mxu0 0.0
    %2904 = vmatpush1.msra.mxu0 0.0
    %2905 = vmatprep.subr.mxu0 0.0
    %2906 = vmatpush1.msra.mxu0 0.0
    %2907 = vmatprep.subr.mxu0 0.0
    %2908 = vmatpush1.msra.mxu0 0.0
    %2909 = vmatprep.subr.mxu0 0.0
    %2910 = vmatpush1.msra.mxu0 0.0
    %2911 = vmatprep.subr.mxu0 0.0
    %2912 = vmatpush1.msra.mxu0 0.0
    %2913 = vmatprep.subr.mxu0 0.0
    %2914 = vmatpush1.msra.mxu0 0.0
    %2915 = vmatprep.subr.mxu0 0.0
    %2916 = vmatpush1.msra.mxu0 0.0
    %2917 = vmatprep.subr.mxu0 0.0
    %2918 = vmatpush1.msra.mxu0 0.0
    %2919 = vmatprep.subr.mxu0 0.0
    %2920 = vmatpush1.msra.mxu0 0.0
    %2921 = vmatprep.mubr.f32.mxu0 0.0
    %2922 = vmatmul.mubr.f32.gmra.mrb[0].mxu0 %v2312
    %v2923 = vpop.f32.mrb[0].mxu0
    %v2924 = vadd.f32 0.0, %v2923
    %v2925 = vpop.f32.mrb[0].mxu0
    %2926 = vmatprep.mubr.f32.mxu0 0.0
    %2927 = vmatmul.mubr.f32.gmra.mrb[0].mxu0 %v2315
    %v2928 = vpop.f32.mrb[0].mxu0
    %v2929 = vadd.f32 0.0, %v2928
    %v2930 = vpop.f32.mrb[0].mxu0
    %2931 = vmatprep.mubr.f32.mxu0 0.0
    %2932 = vmatmul.mubr.f32.gmra.mrb[0].mxu0 %v2318
    %v2933 = vpop.f32.mrb[0].mxu0
    %v2934 = vadd.f32 0.0, %v2933
    %v2935 = vpop.f32.mrb[0].mxu0
    %2936 = vmatprep.mubr.f32.mxu0 0.0
    %2937 = vmatmul.mubr.f32.gmra.mrb[0].mxu0 %v2321
    %v2938 = vpop.f32.mrb[0].mxu0
    %v2939 = vadd.f32 0.0, %v2938
    %v2940 = vpop.f32.mrb[0].mxu0
    %2941 = vmatprep.mubr.f32.mxu0 0.0
    %2942 = vmatmul.mubr.f32.gmra.mrb[0].mxu0 %v2324
    %v2943 = vpop.f32.mrb[0].mxu0
    %v2944 = vadd.f32 0.0, %v2943
    %v2945 = vpop.f32.mrb[0].mxu0
    %2946 = vmatprep.mubr.f32.mxu0 0.0
    %2947 = vmatmul.mubr.f32.gmra.mrb[0].mxu0 %v2327
    %v2948 = vpop.f32.mrb[0].mxu0
    %v2949 = vadd.f32 0.0, %v2948
    %v2950 = vpop.f32.mrb[0].mxu0
    %2951 = vmatprep.mubr.f32.mxu0 0.0
    %2952 = vmatmul.mubr.f32.gmra.mrb[0].mxu0 %v2330
    %v2953 = vpop.f32.mrb[0].mxu0
    %v2954 = vadd.f32 0.0, %v2953
    %v2955 = vpop.f32.mrb[0].mxu0
    %2956 = vmatprep.mubr.f32.mxu0 0.0
    %2957 = vmatmul.mubr.f32.gmra.mrb[0].mxu0 %v2333
    %v2958 = vpop.f32.mrb[0].mxu0
    %v2959 = vadd.f32 0.0, %v2958
    %v2960 = vpop.f32.mrb[0].mxu0
    %2961 = vmatprep.mubr.f32.mxu0 0.0
    %2962 = vmatmul.mubr.f32.gmra.mrb[0].mxu0 %v2336
    %v2963 = vpop.f32.mrb[0].mxu0
    %v2964 = vadd.f32 0.0, %v2963
    %v2965 = vpop.f32.mrb[0].mxu0
    %2966 = vmatprep.mubr.f32.mxu0 0.0
    %2967 = vmatmul.mubr.f32.gmra.mrb[0].mxu0 %v2339
    %v2968 = vpop.f32.mrb[0].mxu0
    %v2969 = vadd.f32 0.0, %v2968
    %v2970 = vpop.f32.mrb[0].mxu0
    %2971 = vmatprep.mubr.f32.mxu0 0.0
    %2972 = vmatmul.mubr.f32.gmra.mrb[0].mxu0 %v2342
    %v2973 = vpop.f32.mrb[0].mxu0
    %v2974 = vadd.f32 0.0, %v2973
    %v2975 = vpop.f32.mrb[0].mxu0
    %2976 = vmatprep.mubr.f32.mxu0 0.0
    %2977 = vmatmul.mubr.f32.gmra.mrb[0].mxu0 %v2345
    %v2978 = vpop.f32.mrb[0].mxu0
    %v2979 = vadd.f32 0.0, %v2978
    %v2980 = vpop.f32.mrb[0].mxu0
    %2981 = vmatprep.mubr.f32.mxu0 0.0
    %2982 = vmatmul.mubr.f32.gmra.mrb[0].mxu0 %v2348
    %v2983 = vpop.f32.mrb[0].mxu0
    %v2984 = vadd.f32 0.0, %v2983
    %v2985 = vpop.f32.mrb[0].mxu0
    %2986 = vmatprep.mubr.f32.mxu0 0.0
    %2987 = vmatmul.mubr.f32.gmra.mrb[0].mxu0 %v2351
    %v2988 = vpop.f32.mrb[0].mxu0
    %v2989 = vadd.f32 0.0, %v2988
    %v2990 = vpop.f32.mrb[0].mxu0
    %2991 = vmatprep.mubr.f32.mxu0 0.0
    %2992 = vmatmul.mubr.f32.gmra.mrb[0].mxu0 %v2354
    %v2993 = vpop.f32.mrb[0].mxu0
    %v2994 = vadd.f32 0.0, %v2993
    %v2995 = vpop.f32.mrb[0].mxu0
    %2996 = vmatprep.mubr.f32.mxu0 0.0
    %2997 = vmatmul.mubr.f32.gmra.mrb[0].mxu0 %v2357
    %v2998 = vpop.f32.mrb[0].mxu0
    %v2999 = vadd.f32 0.0, %v2998
    %v3000 = vpop.f32.mrb[0].mxu0
    %3001 = vdwg.mxu0
    %v3002 = vmax.f32 %v2832, %v2924
    %v3003 = vmax.f32 %v2833, %v2929
    %v3004 = vmax.f32 %v2834, %v2934
    %v3005 = vmax.f32 %v2835, %v2939
    %v3006 = vmax.f32 %v2836, %v2944
    %v3007 = vmax.f32 %v2837, %v2949
    %v3008 = vmax.f32 %v2838, %v2954
    %v3009 = vmax.f32 %v2839, %v2959
    %v3010 = vmax.f32 %v2840, %v2964
    %v3011 = vmax.f32 %v2841, %v2969
    %v3012 = vmax.f32 %v2842, %v2974
    %v3013 = vmax.f32 %v2843, %v2979
    %v3014 = vmax.f32 %v2844, %v2984
    %v3015 = vmax.f32 %v2845, %v2989
    %v3016 = vmax.f32 %v2846, %v2994
    %v3017 = vmax.f32 %v2847, %v2999
    %v3018 = vld [vmem:[%s2] sm:$0x1]
    %v3020 = vlaneseq
    %v3021 = vshrl.u32 %v3020, 7
    %v3022 = vsub.s32 0, %v3021
    %v3023 = vrot.slane %v3018, %v3022
    %v3025 = vadd.f32 %v3002, %v3023
    %v3026 = vadd.f32 %v3003, %v3023
    %v3027 = vadd.f32 %v3004, %v3023
    %v3028 = vadd.f32 %v3005, %v3023
    %v3029 = vadd.f32 %v3006, %v3023
    %v3030 = vadd.f32 %v3007, %v3023
    %v3031 = vadd.f32 %v3008, %v3023
    %v3032 = vadd.f32 %v3009, %v3023
    %v3033 = vadd.f32 %v3010, %v3023
    %v3034 = vadd.f32 %v3011, %v3023
    %v3035 = vadd.f32 %v3012, %v3023
    %v3036 = vadd.f32 %v3013, %v3023
    %v3037 = vadd.f32 %v3014, %v3023
    %v3038 = vadd.f32 %v3015, %v3023
    %v3039 = vadd.f32 %v3016, %v3023
    %v3040 = vadd.f32 %v3017, %v3023
    %v3041 = vmax.f32 %v3025, 0.0
    %v3042 = vmax.f32 %v3026, 0.0
    %v3043 = vmax.f32 %v3027, 0.0
    %v3044 = vmax.f32 %v3028, 0.0
    %v3045 = vmax.f32 %v3029, 0.0
    %v3046 = vmax.f32 %v3030, 0.0
    %v3047 = vmax.f32 %v3031, 0.0
    %v3048 = vmax.f32 %v3032, 0.0
    %v3049 = vmax.f32 %v3033, 0.0
    %v3050 = vmax.f32 %v3034, 0.0
    %v3051 = vmax.f32 %v3035, 0.0
    %v3052 = vmax.f32 %v3036, 0.0
    %v3053 = vmax.f32 %v3037, 0.0
    %v3054 = vmax.f32 %v3038, 0.0
    %v3055 = vmax.f32 %v3039, 0.0
    %v3056 = vmax.f32 %v3040, 0.0
    %v3057 = vld [vmem:[%s4] sm:$0xff]
    %v3058 = vld [vmem:[%s4 + $0x8] sm:$0xff]
    %v3059 = vld [vmem:[%s4 + $0x10] sm:$0xff]
    %v3060 = vld [vmem:[%s4 + $0x18] sm:$0xff]
    %vm3061 = vcmask 261120
    %v3063 = vsel %vm3061, %v3041, 0
    %v3066 = vsel %vm3061, %v3042, 0
    %v3069 = vsel %vm3061, %v3043, 0
    %v3072 = vsel %vm3061, %v3044, 0
    %v3075 = vsel %vm3061, %v3045, 0
    %v3078 = vsel %vm3061, %v3046, 0
    %v3081 = vsel %vm3061, %v3047, 0
    %v3084 = vsel %vm3061, %v3048, 0
    %v3087 = vsel %vm3061, %v3049, 0
    %v3090 = vsel %vm3061, %v3050, 0
    %v3093 = vsel %vm3061, %v3051, 0
    %v3096 = vsel %vm3061, %v3052, 0
    %v3099 = vsel %vm3061, %v3053, 0
    %v3102 = vsel %vm3061, %v3054, 0
    %v3105 = vsel %vm3061, %v3055, 0
    %v3108 = vsel %vm3061, %v3056, 0
    %3110 = vmatprep.subr.mxu0 0.0
    %3111 = vmatpush1.msra.mxu0 %v3057
    %3112 = vmatprep.subr.mxu0 0.0
    %3113 = vmatpush1.msra.mxu0 %v3058
    %3114 = vmatprep.subr.mxu0 0.0
    %3115 = vmatpush1.msra.mxu0 %v3059
    %3116 = vmatprep.subr.mxu0 0.0
    %3117 = vmatpush1.msra.mxu0 %v3060
    %3118 = vmatprep.subr.mxu0 0.0
    %3119 = vmatpush1.msra.mxu0 0.0
    %3120 = vmatprep.subr.mxu0 0.0
    %3121 = vmatpush1.msra.mxu0 0.0
    %3122 = vmatprep.subr.mxu0 0.0
    %3123 = vmatpush1.msra.mxu0 0.0
    %3124 = vmatprep.subr.mxu0 0.0
    %3125 = vmatpush1.msra.mxu0 0.0
    %3126 = vmatprep.subr.mxu0 0.0
    %3127 = vmatpush1.msra.mxu0 0.0
    %3128 = vmatprep.subr.mxu0 0.0
    %3129 = vmatpush1.msra.mxu0 0.0
    %3130 = vmatprep.subr.mxu0 0.0
    %3131 = vmatpush1.msra.mxu0 0.0
    %3132 = vmatprep.subr.mxu0 0.0
    %3133 = vmatpush1.msra.mxu0 0.0
    %3134 = vmatprep.subr.mxu0 0.0
    %3135 = vmatpush1.msra.mxu0 0.0
    %3136 = vmatprep.subr.mxu0 0.0
    %3137 = vmatpush1.msra.mxu0 0.0
    %3138 = vmatprep.subr.mxu0 0.0
    %3139 = vmatpush1.msra.mxu0 0.0
    %3140 = vmatprep.subr.mxu0 0.0
    %3141 = vmatpush1.msra.mxu0 0.0
    %3142 = vmatprep.subr.mxu0 0.0
    %3143 = vmatpush1.msra.mxu0 0.0
    %3144 = vmatprep.subr.mxu0 0.0
    %3145 = vmatpush1.msra.mxu0 0.0
    %3146 = vmatprep.subr.mxu0 0.0
    %3147 = vmatpush1.msra.mxu0 0.0
    %3148 = vmatprep.subr.mxu0 0.0
    %3149 = vmatpush1.msra.mxu0 0.0
    %3150 = vmatprep.subr.mxu0 0.0
    %3151 = vmatpush1.msra.mxu0 0.0
    %3152 = vmatprep.subr.mxu0 0.0
    %3153 = vmatpush1.msra.mxu0 0.0
    %3154 = vmatprep.subr.mxu0 0.0
    %3155 = vmatpush1.msra.mxu0 0.0
    %3156 = vmatprep.subr.mxu0 0.0
    %3157 = vmatpush1.msra.mxu0 0.0
    %3158 = vmatprep.subr.mxu0 0.0
    %3159 = vmatpush1.msra.mxu0 0.0
    %3160 = vmatprep.subr.mxu0 0.0
    %3161 = vmatpush1.msra.mxu0 0.0
    %3162 = vmatprep.subr.mxu0 0.0
    %3163 = vmatpush1.msra.mxu0 0.0
    %3164 = vmatprep.subr.mxu0 0.0
    %3165 = vmatpush1.msra.mxu0 0.0
    %3166 = vmatprep.subr.mxu0 0.0
    %3167 = vmatpush1.msra.mxu0 0.0
    %3168 = vmatprep.subr.mxu0 0.0
    %3169 = vmatpush1.msra.mxu0 0.0
    %3170 = vmatprep.subr.mxu0 0.0
    %3171 = vmatpush1.msra.mxu0 0.0
    %3172 = vmatprep.subr.mxu0 0.0
    %3173 = vmatpush1.msra.mxu0 0.0
    %3174 = vmatprep.mubr.f32.mxu0 0.0
    %3175 = vmatmul.mubr.f32.gmra.mrb[0].mxu0 %v3063
    %v3176 = vpop.f32.mrb[0].mxu0
    %v3177 = vadd.f32 0.0, %v3176
    %v3178 = vpop.f32.mrb[0].mxu0
    %3179 = vmatprep.mubr.f32.mxu0 0.0
    %3180 = vmatmul.mubr.f32.gmra.mrb[0].mxu0 %v3066
    %v3181 = vpop.f32.mrb[0].mxu0
    %v3182 = vadd.f32 0.0, %v3181
    %v3183 = vpop.f32.mrb[0].mxu0
    %3184 = vmatprep.mubr.f32.mxu0 0.0
    %3185 = vmatmul.mubr.f32.gmra.mrb[0].mxu0 %v3069
    %v3186 = vpop.f32.mrb[0].mxu0
    %v3187 = vadd.f32 0.0, %v3186
    %v3188 = vpop.f32.mrb[0].mxu0
    %3189 = vmatprep.mubr.f32.mxu0 0.0
    %3190 = vmatmul.mubr.f32.gmra.mrb[0].mxu0 %v3072
    %v3191 = vpop.f32.mrb[0].mxu0
    %v3192 = vadd.f32 0.0, %v3191
    %v3193 = vpop.f32.mrb[0].mxu0
    %3194 = vmatprep.mubr.f32.mxu0 0.0
    %3195 = vmatmul.mubr.f32.gmra.mrb[0].mxu0 %v3075
    %v3196 = vpop.f32.mrb[0].mxu0
    %v3197 = vadd.f32 0.0, %v3196
    %v3198 = vpop.f32.mrb[0].mxu0
    %3199 = vmatprep.mubr.f32.mxu0 0.0
    %3200 = vmatmul.mubr.f32.gmra.mrb[0].mxu0 %v3078
    %v3201 = vpop.f32.mrb[0].mxu0
    %v3202 = vadd.f32 0.0, %v3201
    %v3203 = vpop.f32.mrb[0].mxu0
    %3204 = vmatprep.mubr.f32.mxu0 0.0
    %3205 = vmatmul.mubr.f32.gmra.mrb[0].mxu0 %v3081
    %v3206 = vpop.f32.mrb[0].mxu0
    %v3207 = vadd.f32 0.0, %v3206
    %v3208 = vpop.f32.mrb[0].mxu0
    %3209 = vmatprep.mubr.f32.mxu0 0.0
    %3210 = vmatmul.mubr.f32.gmra.mrb[0].mxu0 %v3084
    %v3211 = vpop.f32.mrb[0].mxu0
    %v3212 = vadd.f32 0.0, %v3211
    %v3213 = vpop.f32.mrb[0].mxu0
    %3214 = vmatprep.mubr.f32.mxu0 0.0
    %3215 = vmatmul.mubr.f32.gmra.mrb[0].mxu0 %v3087
    %v3216 = vpop.f32.mrb[0].mxu0
    %v3217 = vadd.f32 0.0, %v3216
    %v3218 = vpop.f32.mrb[0].mxu0
    %3219 = vmatprep.mubr.f32.mxu0 0.0
    %3220 = vmatmul.mubr.f32.gmra.mrb[0].mxu0 %v3090
    %v3221 = vpop.f32.mrb[0].mxu0
    %v3222 = vadd.f32 0.0, %v3221
    %v3223 = vpop.f32.mrb[0].mxu0
    %3224 = vmatprep.mubr.f32.mxu0 0.0
    %3225 = vmatmul.mubr.f32.gmra.mrb[0].mxu0 %v3093
    %v3226 = vpop.f32.mrb[0].mxu0
    %v3227 = vadd.f32 0.0, %v3226
    %v3228 = vpop.f32.mrb[0].mxu0
    %3229 = vmatprep.mubr.f32.mxu0 0.0
    %3230 = vmatmul.mubr.f32.gmra.mrb[0].mxu0 %v3096
    %v3231 = vpop.f32.mrb[0].mxu0
    %v3232 = vadd.f32 0.0, %v3231
    %v3233 = vpop.f32.mrb[0].mxu0
    %3234 = vmatprep.mubr.f32.mxu0 0.0
    %3235 = vmatmul.mubr.f32.gmra.mrb[0].mxu0 %v3099
    %v3236 = vpop.f32.mrb[0].mxu0
    %v3237 = vadd.f32 0.0, %v3236
    %v3238 = vpop.f32.mrb[0].mxu0
    %3239 = vmatprep.mubr.f32.mxu0 0.0
    %3240 = vmatmul.mubr.f32.gmra.mrb[0].mxu0 %v3102
    %v3241 = vpop.f32.mrb[0].mxu0
    %v3242 = vadd.f32 0.0, %v3241
    %v3243 = vpop.f32.mrb[0].mxu0
    %3244 = vmatprep.mubr.f32.mxu0 0.0
    %3245 = vmatmul.mubr.f32.gmra.mrb[0].mxu0 %v3105
    %v3246 = vpop.f32.mrb[0].mxu0
    %v3247 = vadd.f32 0.0, %v3246
    %v3248 = vpop.f32.mrb[0].mxu0
    %3249 = vmatprep.mubr.f32.mxu0 0.0
    %3250 = vmatmul.mubr.f32.gmra.mrb[0].mxu0 %v3108
    %v3251 = vpop.f32.mrb[0].mxu0
    %v3252 = vadd.f32 0.0, %v3251
    %v3253 = vpop.f32.mrb[0].mxu0
    %3254 = vdwg.mxu0
    %vm3255 = vcmask 523264
    %3256 = vst.msk [vmem:[#allocation2] sm:$0xff] %vm3255, %v3177
    %3257 = vst.msk [vmem:[#allocation2 + $0x8] sm:$0xff] %vm3255, %v3182
    %3258 = vst.msk [vmem:[#allocation2 + $0x10] sm:$0xff] %vm3255, %v3187
    %3259 = vst.msk [vmem:[#allocation2 + $0x18] sm:$0xff] %vm3255, %v3192
    %3260 = vst.msk [vmem:[#allocation2 + $0x20] sm:$0xff] %vm3255, %v3197
    %3261 = vst.msk [vmem:[#allocation2 + $0x28] sm:$0xff] %vm3255, %v3202
    %3262 = vst.msk [vmem:[#allocation2 + $0x30] sm:$0xff] %vm3255, %v3207
    %3263 = vst.msk [vmem:[#allocation2 + $0x38] sm:$0xff] %vm3255, %v3212
    %3264 = vst.msk [vmem:[#allocation2 + $0x40] sm:$0xff] %vm3255, %v3217
    %3265 = vst.msk [vmem:[#allocation2 + $0x48] sm:$0xff] %vm3255, %v3222
    %3266 = vst.msk [vmem:[#allocation2 + $0x50] sm:$0xff] %vm3255, %v3227
    %3267 = vst.msk [vmem:[#allocation2 + $0x58] sm:$0xff] %vm3255, %v3232
    %3268 = vst.msk [vmem:[#allocation2 + $0x60] sm:$0xff] %vm3255, %v3237
    %3269 = vst.msk [vmem:[#allocation2 + $0x68] sm:$0xff] %vm3255, %v3242
    %3270 = vst.msk [vmem:[#allocation2 + $0x70] sm:$0xff] %vm3255, %v3247
    %3271 = vst.msk [vmem:[#allocation2 + $0x78] sm:$0xff] %vm3255, %v3252
    %s3272 = scalar_lea.vmem %s4, 32
    %v3273 = vld [vmem:[%s3272] sm:$0xff]
    %v3274 = vld [vmem:[%s3272 + $0x8] sm:$0xff]
    %v3275 = vld [vmem:[%s3272 + $0x10] sm:$0xff]
    %v3276 = vld [vmem:[%s3272 + $0x18] sm:$0xff]
    %3277 = vmatprep.subr.mxu0 0.0
    %3278 = vmatpush1.msra.mxu0 %v3273
    %3279 = vmatprep.subr.mxu0 0.0
    %3280 = vmatpush1.msra.mxu0 %v3274
    %3281 = vmatprep.subr.mxu0 0.0
    %3282 = vmatpush1.msra.mxu0 %v3275
    %3283 = vmatprep.subr.mxu0 0.0
    %3284 = vmatpush1.msra.mxu0 %v3276
    %3285 = vmatprep.subr.mxu0 0.0
    %3286 = vmatpush1.msra.mxu0 0.0
    %3287 = vmatprep.subr.mxu0 0.0
    %3288 = vmatpush1.msra.mxu0 0.0
    %3289 = vmatprep.subr.mxu0 0.0
    %3290 = vmatpush1.msra.mxu0 0.0
    %3291 = vmatprep.subr.mxu0 0.0
    %3292 = vmatpush1.msra.mxu0 0.0
    %3293 = vmatprep.subr.mxu0 0.0
    %3294 = vmatpush1.msra.mxu0 0.0
    %3295 = vmatprep.subr.mxu0 0.0
    %3296 = vmatpush1.msra.mxu0 0.0
    %3297 = vmatprep.subr.mxu0 0.0
    %3298 = vmatpush1.msra.mxu0 0.0
    %3299 = vmatprep.subr.mxu0 0.0
    %3300 = vmatpush1.msra.mxu0 0.0
    %3301 = vmatprep.subr.mxu0 0.0
    %3302 = vmatpush1.msra.mxu0 0.0
    %3303 = vmatprep.subr.mxu0 0.0
    %3304 = vmatpush1.msra.mxu0 0.0
    %3305 = vmatprep.subr.mxu0 0.0
    %3306 = vmatpush1.msra.mxu0 0.0
    %3307 = vmatprep.subr.mxu0 0.0
    %3308 = vmatpush1.msra.mxu0 0.0
    %3309 = vmatprep.subr.mxu0 0.0
    %3310 = vmatpush1.msra.mxu0 0.0
    %3311 = vmatprep.subr.mxu0 0.0
    %3312 = vmatpush1.msra.mxu0 0.0
    %3313 = vmatprep.subr.mxu0 0.0
    %3314 = vmatpush1.msra.mxu0 0.0
    %3315 = vmatprep.subr.mxu0 0.0
    %3316 = vmatpush1.msra.mxu0 0.0
    %3317 = vmatprep.subr.mxu0 0.0
    %3318 = vmatpush1.msra.mxu0 0.0
    %3319 = vmatprep.subr.mxu0 0.0
    %3320 = vmatpush1.msra.mxu0 0.0
    %3321 = vmatprep.subr.mxu0 0.0
    %3322 = vmatpush1.msra.mxu0 0.0
    %3323 = vmatprep.subr.mxu0 0.0
    %3324 = vmatpush1.msra.mxu0 0.0
    %3325 = vmatprep.subr.mxu0 0.0
    %3326 = vmatpush1.msra.mxu0 0.0
    %3327 = vmatprep.subr.mxu0 0.0
    %3328 = vmatpush1.msra.mxu0 0.0
    %3329 = vmatprep.subr.mxu0 0.0
    %3330 = vmatpush1.msra.mxu0 0.0
    %3331 = vmatprep.subr.mxu0 0.0
    %3332 = vmatpush1.msra.mxu0 0.0
    %3333 = vmatprep.subr.mxu0 0.0
    %3334 = vmatpush1.msra.mxu0 0.0
    %3335 = vmatprep.subr.mxu0 0.0
    %3336 = vmatpush1.msra.mxu0 0.0
    %3337 = vmatprep.subr.mxu0 0.0
    %3338 = vmatpush1.msra.mxu0 0.0
    %3339 = vmatprep.subr.mxu0 0.0
    %3340 = vmatpush1.msra.mxu0 0.0
    %3341 = vmatprep.mubr.f32.mxu0 0.0
    %3342 = vmatmul.mubr.f32.gmra.mrb[0].mxu0 %v3063
    %v3343 = vpop.f32.mrb[0].mxu0
    %v3344 = vadd.f32 0.0, %v3343
    %v3345 = vpop.f32.mrb[0].mxu0
    %3346 = vmatprep.mubr.f32.mxu0 0.0
    %3347 = vmatmul.mubr.f32.gmra.mrb[0].mxu0 %v3066
    %v3348 = vpop.f32.mrb[0].mxu0
    %v3349 = vadd.f32 0.0, %v3348
    %v3350 = vpop.f32.mrb[0].mxu0
    %3351 = vmatprep.mubr.f32.mxu0 0.0
    %3352 = vmatmul.mubr.f32.gmra.mrb[0].mxu0 %v3069
    %v3353 = vpop.f32.mrb[0].mxu0
    %v3354 = vadd.f32 0.0, %v3353
    %v3355 = vpop.f32.mrb[0].mxu0
    %3356 = vmatprep.mubr.f32.mxu0 0.0
    %3357 = vmatmul.mubr.f32.gmra.mrb[0].mxu0 %v3072
    %v3358 = vpop.f32.mrb[0].mxu0
    %v3359 = vadd.f32 0.0, %v3358
    %v3360 = vpop.f32.mrb[0].mxu0
    %3361 = vmatprep.mubr.f32.mxu0 0.0
    %3362 = vmatmul.mubr.f32.gmra.mrb[0].mxu0 %v3075
    %v3363 = vpop.f32.mrb[0].mxu0
    %v3364 = vadd.f32 0.0, %v3363
    %v3365 = vpop.f32.mrb[0].mxu0
    %3366 = vmatprep.mubr.f32.mxu0 0.0
    %3367 = vmatmul.mubr.f32.gmra.mrb[0].mxu0 %v3078
    %v3368 = vpop.f32.mrb[0].mxu0
    %v3369 = vadd.f32 0.0, %v3368
    %v3370 = vpop.f32.mrb[0].mxu0
    %3371 = vmatprep.mubr.f32.mxu0 0.0
    %3372 = vmatmul.mubr.f32.gmra.mrb[0].mxu0 %v3081
    %v3373 = vpop.f32.mrb[0].mxu0
    %v3374 = vadd.f32 0.0, %v3373
    %v3375 = vpop.f32.mrb[0].mxu0
    %3376 = vmatprep.mubr.f32.mxu0 0.0
    %3377 = vmatmul.mubr.f32.gmra.mrb[0].mxu0 %v3084
    %v3378 = vpop.f32.mrb[0].mxu0
    %v3379 = vadd.f32 0.0, %v3378
    %v3380 = vpop.f32.mrb[0].mxu0
    %3381 = vmatprep.mubr.f32.mxu0 0.0
    %3382 = vmatmul.mubr.f32.gmra.mrb[0].mxu0 %v3087
    %v3383 = vpop.f32.mrb[0].mxu0
    %v3384 = vadd.f32 0.0, %v3383
    %v3385 = vpop.f32.mrb[0].mxu0
    %3386 = vmatprep.mubr.f32.mxu0 0.0
    %3387 = vmatmul.mubr.f32.gmra.mrb[0].mxu0 %v3090
    %v3388 = vpop.f32.mrb[0].mxu0
    %v3389 = vadd.f32 0.0, %v3388
    %v3390 = vpop.f32.mrb[0].mxu0
    %3391 = vmatprep.mubr.f32.mxu0 0.0
    %3392 = vmatmul.mubr.f32.gmra.mrb[0].mxu0 %v3093
    %v3393 = vpop.f32.mrb[0].mxu0
    %v3394 = vadd.f32 0.0, %v3393
    %v3395 = vpop.f32.mrb[0].mxu0
    %3396 = vmatprep.mubr.f32.mxu0 0.0
    %3397 = vmatmul.mubr.f32.gmra.mrb[0].mxu0 %v3096
    %v3398 = vpop.f32.mrb[0].mxu0
    %v3399 = vadd.f32 0.0, %v3398
    %v3400 = vpop.f32.mrb[0].mxu0
    %3401 = vmatprep.mubr.f32.mxu0 0.0
    %3402 = vmatmul.mubr.f32.gmra.mrb[0].mxu0 %v3099
    %v3403 = vpop.f32.mrb[0].mxu0
    %v3404 = vadd.f32 0.0, %v3403
    %v3405 = vpop.f32.mrb[0].mxu0
    %3406 = vmatprep.mubr.f32.mxu0 0.0
    %3407 = vmatmul.mubr.f32.gmra.mrb[0].mxu0 %v3102
    %v3408 = vpop.f32.mrb[0].mxu0
    %v3409 = vadd.f32 0.0, %v3408
    %v3410 = vpop.f32.mrb[0].mxu0
    %3411 = vmatprep.mubr.f32.mxu0 0.0
    %3412 = vmatmul.mubr.f32.gmra.mrb[0].mxu0 %v3105
    %v3413 = vpop.f32.mrb[0].mxu0
    %v3414 = vadd.f32 0.0, %v3413
    %v3415 = vpop.f32.mrb[0].mxu0
    %3416 = vmatprep.mubr.f32.mxu0 0.0
    %3417 = vmatmul.mubr.f32.gmra.mrb[0].mxu0 %v3108
    %v3418 = vpop.f32.mrb[0].mxu0
    %v3419 = vadd.f32 0.0, %v3418
    %v3420 = vpop.f32.mrb[0].mxu0
    %3421 = vdwg.mxu0
    %3422 = vst.msk [vmem:[#allocation2 + $0x80] sm:$0xff] %vm3255, %v3344
    %3423 = vst.msk [vmem:[#allocation2 + $0x88] sm:$0xff] %vm3255, %v3349
    %3424 = vst.msk [vmem:[#allocation2 + $0x90] sm:$0xff] %vm3255, %v3354
    %3425 = vst.msk [vmem:[#allocation2 + $0x98] sm:$0xff] %vm3255, %v3359
    %3426 = vst.msk [vmem:[#allocation2 + $0xa0] sm:$0xff] %vm3255, %v3364
    %3427 = vst.msk [vmem:[#allocation2 + $0xa8] sm:$0xff] %vm3255, %v3369
    %3428 = vst.msk [vmem:[#allocation2 + $0xb0] sm:$0xff] %vm3255, %v3374
    %3429 = vst.msk [vmem:[#allocation2 + $0xb8] sm:$0xff] %vm3255, %v3379
    %3430 = vst.msk [vmem:[#allocation2 + $0xc0] sm:$0xff] %vm3255, %v3384
    %3431 = vst.msk [vmem:[#allocation2 + $0xc8] sm:$0xff] %vm3255, %v3389
    %3432 = vst.msk [vmem:[#allocation2 + $0xd0] sm:$0xff] %vm3255, %v3394
    %3433 = vst.msk [vmem:[#allocation2 + $0xd8] sm:$0xff] %vm3255, %v3399
    %3434 = vst.msk [vmem:[#allocation2 + $0xe0] sm:$0xff] %vm3255, %v3404
    %3435 = vst.msk [vmem:[#allocation2 + $0xe8] sm:$0xff] %vm3255, %v3409
    %3436 = vst.msk [vmem:[#allocation2 + $0xf0] sm:$0xff] %vm3255, %v3414
    %3437 = vst.msk [vmem:[#allocation2 + $0xf8] sm:$0xff] %vm3255, %v3419
    %s3438 = scalar_lea.vmem %s4, 64
    %v3439 = vld [vmem:[%s3438] sm:$0xff]
    %v3440 = vld [vmem:[%s3438 + $0x8] sm:$0xff]
    %v3441 = vld [vmem:[%s3438 + $0x10] sm:$0xff]
    %v3442 = vld [vmem:[%s3438 + $0x18] sm:$0xff]
    %3443 = vmatprep.subr.mxu0 0.0
    %3444 = vmatpush1.msra.mxu0 %v3439
    %3445 = vmatprep.subr.mxu0 0.0
    %3446 = vmatpush1.msra.mxu0 %v3440
    %3447 = vmatprep.subr.mxu0 0.0
    %3448 = vmatpush1.msra.mxu0 %v3441
    %3449 = vmatprep.subr.mxu0 0.0
    %3450 = vmatpush1.msra.mxu0 %v3442
    %3451 = vmatprep.subr.mxu0 0.0
    %3452 = vmatpush1.msra.mxu0 0.0
    %3453 = vmatprep.subr.mxu0 0.0
    %3454 = vmatpush1.msra.mxu0 0.0
    %3455 = vmatprep.subr.mxu0 0.0
    %3456 = vmatpush1.msra.mxu0 0.0
    %3457 = vmatprep.subr.mxu0 0.0
    %3458 = vmatpush1.msra.mxu0 0.0
    %3459 = vmatprep.subr.mxu0 0.0
    %3460 = vmatpush1.msra.mxu0 0.0
    %3461 = vmatprep.subr.mxu0 0.0
    %3462 = vmatpush1.msra.mxu0 0.0
    %3463 = vmatprep.subr.mxu0 0.0
    %3464 = vmatpush1.msra.mxu0 0.0
    %3465 = vmatprep.subr.mxu0 0.0
    %3466 = vmatpush1.msra.mxu0 0.0
    %3467 = vmatprep.subr.mxu0 0.0
    %3468 = vmatpush1.msra.mxu0 0.0
    %3469 = vmatprep.subr.mxu0 0.0
    %3470 = vmatpush1.msra.mxu0 0.0
    %3471 = vmatprep.subr.mxu0 0.0
    %3472 = vmatpush1.msra.mxu0 0.0
    %3473 = vmatprep.subr.mxu0 0.0
    %3474 = vmatpush1.msra.mxu0 0.0
    %3475 = vmatprep.subr.mxu0 0.0
    %3476 = vmatpush1.msra.mxu0 0.0
    %3477 = vmatprep.subr.mxu0 0.0
    %3478 = vmatpush1.msra.mxu0 0.0
    %3479 = vmatprep.subr.mxu0 0.0
    %3480 = vmatpush1.msra.mxu0 0.0
    %3481 = vmatprep.subr.mxu0 0.0
    %3482 = vmatpush1.msra.mxu0 0.0
    %3483 = vmatprep.subr.mxu0 0.0
    %3484 = vmatpush1.msra.mxu0 0.0
    %3485 = vmatprep.subr.mxu0 0.0
    %3486 = vmatpush1.msra.mxu0 0.0
    %3487 = vmatprep.subr.mxu0 0.0
    %3488 = vmatpush1.msra.mxu0 0.0
    %3489 = vmatprep.subr.mxu0 0.0
    %3490 = vmatpush1.msra.mxu0 0.0
    %3491 = vmatprep.subr.mxu0 0.0
    %3492 = vmatpush1.msra.mxu0 0.0
    %3493 = vmatprep.subr.mxu0 0.0
    %3494 = vmatpush1.msra.mxu0 0.0
    %3495 = vmatprep.subr.mxu0 0.0
    %3496 = vmatpush1.msra.mxu0 0.0
    %3497 = vmatprep.subr.mxu0 0.0
    %3498 = vmatpush1.msra.mxu0 0.0
    %3499 = vmatprep.subr.mxu0 0.0
    %3500 = vmatpush1.msra.mxu0 0.0
    %3501 = vmatprep.subr.mxu0 0.0
    %3502 = vmatpush1.msra.mxu0 0.0
    %3503 = vmatprep.subr.mxu0 0.0
    %3504 = vmatpush1.msra.mxu0 0.0
    %3505 = vmatprep.subr.mxu0 0.0
    %3506 = vmatpush1.msra.mxu0 0.0
    %3507 = vmatprep.mubr.f32.mxu0 0.0
    %3508 = vmatmul.mubr.f32.gmra.mrb[0].mxu0 %v3063
    %v3509 = vpop.f32.mrb[0].mxu0
    %v3510 = vadd.f32 0.0, %v3509
    %v3511 = vpop.f32.mrb[0].mxu0
    %3512 = vmatprep.mubr.f32.mxu0 0.0
    %3513 = vmatmul.mubr.f32.gmra.mrb[0].mxu0 %v3066
    %v3514 = vpop.f32.mrb[0].mxu0
    %v3515 = vadd.f32 0.0, %v3514
    %v3516 = vpop.f32.mrb[0].mxu0
    %3517 = vmatprep.mubr.f32.mxu0 0.0
    %3518 = vmatmul.mubr.f32.gmra.mrb[0].mxu0 %v3069
    %v3519 = vpop.f32.mrb[0].mxu0
    %v3520 = vadd.f32 0.0, %v3519
    %v3521 = vpop.f32.mrb[0].mxu0
    %3522 = vmatprep.mubr.f32.mxu0 0.0
    %3523 = vmatmul.mubr.f32.gmra.mrb[0].mxu0 %v3072
    %v3524 = vpop.f32.mrb[0].mxu0
    %v3525 = vadd.f32 0.0, %v3524
    %v3526 = vpop.f32.mrb[0].mxu0
    %3527 = vmatprep.mubr.f32.mxu0 0.0
    %3528 = vmatmul.mubr.f32.gmra.mrb[0].mxu0 %v3075
    %v3529 = vpop.f32.mrb[0].mxu0
    %v3530 = vadd.f32 0.0, %v3529
    %v3531 = vpop.f32.mrb[0].mxu0
    %3532 = vmatprep.mubr.f32.mxu0 0.0
    %3533 = vmatmul.mubr.f32.gmra.mrb[0].mxu0 %v3078
    %v3534 = vpop.f32.mrb[0].mxu0
    %v3535 = vadd.f32 0.0, %v3534
    %v3536 = vpop.f32.mrb[0].mxu0
    %3537 = vmatprep.mubr.f32.mxu0 0.0
    %3538 = vmatmul.mubr.f32.gmra.mrb[0].mxu0 %v3081
    %v3539 = vpop.f32.mrb[0].mxu0
    %v3540 = vadd.f32 0.0, %v3539
    %v3541 = vpop.f32.mrb[0].mxu0
    %3542 = vmatprep.mubr.f32.mxu0 0.0
    %3543 = vmatmul.mubr.f32.gmra.mrb[0].mxu0 %v3084
    %v3544 = vpop.f32.mrb[0].mxu0
    %v3545 = vadd.f32 0.0, %v3544
    %v3546 = vpop.f32.mrb[0].mxu0
    %3547 = vmatprep.mubr.f32.mxu0 0.0
    %3548 = vmatmul.mubr.f32.gmra.mrb[0].mxu0 %v3087
    %v3549 = vpop.f32.mrb[0].mxu0
    %v3550 = vadd.f32 0.0, %v3549
    %v3551 = vpop.f32.mrb[0].mxu0
    %3552 = vmatprep.mubr.f32.mxu0 0.0
    %3553 = vmatmul.mubr.f32.gmra.mrb[0].mxu0 %v3090
    %v3554 = vpop.f32.mrb[0].mxu0
    %v3555 = vadd.f32 0.0, %v3554
    %v3556 = vpop.f32.mrb[0].mxu0
    %3557 = vmatprep.mubr.f32.mxu0 0.0
    %3558 = vmatmul.mubr.f32.gmra.mrb[0].mxu0 %v3093
    %v3559 = vpop.f32.mrb[0].mxu0
    %v3560 = vadd.f32 0.0, %v3559
    %v3561 = vpop.f32.mrb[0].mxu0
    %3562 = vmatprep.mubr.f32.mxu0 0.0
    %3563 = vmatmul.mubr.f32.gmra.mrb[0].mxu0 %v3096
    %v3564 = vpop.f32.mrb[0].mxu0
    %v3565 = vadd.f32 0.0, %v3564
    %v3566 = vpop.f32.mrb[0].mxu0
    %3567 = vmatprep.mubr.f32.mxu0 0.0
    %3568 = vmatmul.mubr.f32.gmra.mrb[0].mxu0 %v3099
    %v3569 = vpop.f32.mrb[0].mxu0
    %v3570 = vadd.f32 0.0, %v3569
    %v3571 = vpop.f32.mrb[0].mxu0
    %3572 = vmatprep.mubr.f32.mxu0 0.0
    %3573 = vmatmul.mubr.f32.gmra.mrb[0].mxu0 %v3102
    %v3574 = vpop.f32.mrb[0].mxu0
    %v3575 = vadd.f32 0.0, %v3574
    %v3576 = vpop.f32.mrb[0].mxu0
    %3577 = vmatprep.mubr.f32.mxu0 0.0
    %3578 = vmatmul.mubr.f32.gmra.mrb[0].mxu0 %v3105
    %v3579 = vpop.f32.mrb[0].mxu0
    %v3580 = vadd.f32 0.0, %v3579
    %v3581 = vpop.f32.mrb[0].mxu0
    %3582 = vmatprep.mubr.f32.mxu0 0.0
    %3583 = vmatmul.mubr.f32.gmra.mrb[0].mxu0 %v3108
    %v3584 = vpop.f32.mrb[0].mxu0
    %v3585 = vadd.f32 0.0, %v3584
    %v3586 = vpop.f32.mrb[0].mxu0
    %3587 = vdwg.mxu0
    %3588 = vst.msk [vmem:[#allocation2 + $0x100] sm:$0xff] %vm3255, %v3510
    %3589 = vst.msk [vmem:[#allocation2 + $0x108] sm:$0xff] %vm3255, %v3515
    %3590 = vst.msk [vmem:[#allocation2 + $0x110] sm:$0xff] %vm3255, %v3520
    %3591 = vst.msk [vmem:[#allocation2 + $0x118] sm:$0xff] %vm3255, %v3525
    %3592 = vst.msk [vmem:[#allocation2 + $0x120] sm:$0xff] %vm3255, %v3530
    %3593 = vst.msk [vmem:[#allocation2 + $0x128] sm:$0xff] %vm3255, %v3535
    %3594 = vst.msk [vmem:[#allocation2 + $0x130] sm:$0xff] %vm3255, %v3540
    %3595 = vst.msk [vmem:[#allocation2 + $0x138] sm:$0xff] %vm3255, %v3545
    %3596 = vst.msk [vmem:[#allocation2 + $0x140] sm:$0xff] %vm3255, %v3550
    %3597 = vst.msk [vmem:[#allocation2 + $0x148] sm:$0xff] %vm3255, %v3555
    %3598 = vst.msk [vmem:[#allocation2 + $0x150] sm:$0xff] %vm3255, %v3560
    %3599 = vst.msk [vmem:[#allocation2 + $0x158] sm:$0xff] %vm3255, %v3565
    %3600 = vst.msk [vmem:[#allocation2 + $0x160] sm:$0xff] %vm3255, %v3570
    %3601 = vst.msk [vmem:[#allocation2 + $0x168] sm:$0xff] %vm3255, %v3575
    %3602 = vst.msk [vmem:[#allocation2 + $0x170] sm:$0xff] %vm3255, %v3580
    %3603 = vst.msk [vmem:[#allocation2 + $0x178] sm:$0xff] %vm3255, %v3585
    %s3604 = scalar_lea.vmem %s4, 96
    %v3605 = vld [vmem:[%s3604] sm:$0xff]
    %v3606 = vld [vmem:[%s3604 + $0x8] sm:$0xff]
    %v3607 = vld [vmem:[%s3604 + $0x10] sm:$0xff]
    %v3608 = vld [vmem:[%s3604 + $0x18] sm:$0xff]
    %3609 = vmatprep.subr.mxu0 0.0
    %3610 = vmatpush1.msra.mxu0 %v3605
    %3611 = vmatprep.subr.mxu0 0.0
    %3612 = vmatpush1.msra.mxu0 %v3606
    %3613 = vmatprep.subr.mxu0 0.0
    %3614 = vmatpush1.msra.mxu0 %v3607
    %3615 = vmatprep.subr.mxu0 0.0
    %3616 = vmatpush1.msra.mxu0 %v3608
    %3617 = vmatprep.subr.mxu0 0.0
    %3618 = vmatpush1.msra.mxu0 0.0
    %3619 = vmatprep.subr.mxu0 0.0
    %3620 = vmatpush1.msra.mxu0 0.0
    %3621 = vmatprep.subr.mxu0 0.0
    %3622 = vmatpush1.msra.mxu0 0.0
    %3623 = vmatprep.subr.mxu0 0.0
    %3624 = vmatpush1.msra.mxu0 0.0
    %3625 = vmatprep.subr.mxu0 0.0
    %3626 = vmatpush1.msra.mxu0 0.0
    %3627 = vmatprep.subr.mxu0 0.0
    %3628 = vmatpush1.msra.mxu0 0.0
    %3629 = vmatprep.subr.mxu0 0.0
    %3630 = vmatpush1.msra.mxu0 0.0
    %3631 = vmatprep.subr.mxu0 0.0
    %3632 = vmatpush1.msra.mxu0 0.0
    %3633 = vmatprep.subr.mxu0 0.0
    %3634 = vmatpush1.msra.mxu0 0.0
    %3635 = vmatprep.subr.mxu0 0.0
    %3636 = vmatpush1.msra.mxu0 0.0
    %3637 = vmatprep.subr.mxu0 0.0
    %3638 = vmatpush1.msra.mxu0 0.0
    %3639 = vmatprep.subr.mxu0 0.0
    %3640 = vmatpush1.msra.mxu0 0.0
    %3641 = vmatprep.subr.mxu0 0.0
    %3642 = vmatpush1.msra.mxu0 0.0
    %3643 = vmatprep.subr.mxu0 0.0
    %3644 = vmatpush1.msra.mxu0 0.0
    %3645 = vmatprep.subr.mxu0 0.0
    %3646 = vmatpush1.msra.mxu0 0.0
    %3647 = vmatprep.subr.mxu0 0.0
    %3648 = vmatpush1.msra.mxu0 0.0
    %3649 = vmatprep.subr.mxu0 0.0
    %3650 = vmatpush1.msra.mxu0 0.0
    %3651 = vmatprep.subr.mxu0 0.0
    %3652 = vmatpush1.msra.mxu0 0.0
    %3653 = vmatprep.subr.mxu0 0.0
    %3654 = vmatpush1.msra.mxu0 0.0
    %3655 = vmatprep.subr.mxu0 0.0
    %3656 = vmatpush1.msra.mxu0 0.0
    %3657 = vmatprep.subr.mxu0 0.0
    %3658 = vmatpush1.msra.mxu0 0.0
    %3659 = vmatprep.subr.mxu0 0.0
    %3660 = vmatpush1.msra.mxu0 0.0
    %3661 = vmatprep.subr.mxu0 0.0
    %3662 = vmatpush1.msra.mxu0 0.0
    %3663 = vmatprep.subr.mxu0 0.0
    %3664 = vmatpush1.msra.mxu0 0.0
    %3665 = vmatprep.subr.mxu0 0.0
    %3666 = vmatpush1.msra.mxu0 0.0
    %3667 = vmatprep.subr.mxu0 0.0
    %3668 = vmatpush1.msra.mxu0 0.0
    %3669 = vmatprep.subr.mxu0 0.0
    %3670 = vmatpush1.msra.mxu0 0.0
    %3671 = vmatprep.subr.mxu0 0.0
    %3672 = vmatpush1.msra.mxu0 0.0
    %3673 = vmatprep.mubr.f32.mxu0 0.0
    %3674 = vmatmul.mubr.f32.gmra.mrb[0].mxu0 %v3063
    %v3675 = vpop.f32.mrb[0].mxu0
    %v3676 = vadd.f32 0.0, %v3675
    %v3677 = vpop.f32.mrb[0].mxu0
    %3678 = vmatprep.mubr.f32.mxu0 0.0
    %3679 = vmatmul.mubr.f32.gmra.mrb[0].mxu0 %v3066
    %v3680 = vpop.f32.mrb[0].mxu0
    %v3681 = vadd.f32 0.0, %v3680
    %v3682 = vpop.f32.mrb[0].mxu0
    %3683 = vmatprep.mubr.f32.mxu0 0.0
    %3684 = vmatmul.mubr.f32.gmra.mrb[0].mxu0 %v3069
    %v3685 = vpop.f32.mrb[0].mxu0
    %v3686 = vadd.f32 0.0, %v3685
    %v3687 = vpop.f32.mrb[0].mxu0
    %3688 = vmatprep.mubr.f32.mxu0 0.0
    %3689 = vmatmul.mubr.f32.gmra.mrb[0].mxu0 %v3072
    %v3690 = vpop.f32.mrb[0].mxu0
    %v3691 = vadd.f32 0.0, %v3690
    %v3692 = vpop.f32.mrb[0].mxu0
    %3693 = vmatprep.mubr.f32.mxu0 0.0
    %3694 = vmatmul.mubr.f32.gmra.mrb[0].mxu0 %v3075
    %v3695 = vpop.f32.mrb[0].mxu0
    %v3696 = vadd.f32 0.0, %v3695
    %v3697 = vpop.f32.mrb[0].mxu0
    %3698 = vmatprep.mubr.f32.mxu0 0.0
    %3699 = vmatmul.mubr.f32.gmra.mrb[0].mxu0 %v3078
    %v3700 = vpop.f32.mrb[0].mxu0
    %v3701 = vadd.f32 0.0, %v3700
    %v3702 = vpop.f32.mrb[0].mxu0
    %3703 = vmatprep.mubr.f32.mxu0 0.0
    %3704 = vmatmul.mubr.f32.gmra.mrb[0].mxu0 %v3081
    %v3705 = vpop.f32.mrb[0].mxu0
    %v3706 = vadd.f32 0.0, %v3705
    %v3707 = vpop.f32.mrb[0].mxu0
    %3708 = vmatprep.mubr.f32.mxu0 0.0
    %3709 = vmatmul.mubr.f32.gmra.mrb[0].mxu0 %v3084
    %v3710 = vpop.f32.mrb[0].mxu0
    %v3711 = vadd.f32 0.0, %v3710
    %v3712 = vpop.f32.mrb[0].mxu0
    %3713 = vmatprep.mubr.f32.mxu0 0.0
    %3714 = vmatmul.mubr.f32.gmra.mrb[0].mxu0 %v3087
    %v3715 = vpop.f32.mrb[0].mxu0
    %v3716 = vadd.f32 0.0, %v3715
    %v3717 = vpop.f32.mrb[0].mxu0
    %3718 = vmatprep.mubr.f32.mxu0 0.0
    %3719 = vmatmul.mubr.f32.gmra.mrb[0].mxu0 %v3090
    %v3720 = vpop.f32.mrb[0].mxu0
    %v3721 = vadd.f32 0.0, %v3720
    %v3722 = vpop.f32.mrb[0].mxu0
    %3723 = vmatprep.mubr.f32.mxu0 0.0
    %3724 = vmatmul.mubr.f32.gmra.mrb[0].mxu0 %v3093
    %v3725 = vpop.f32.mrb[0].mxu0
    %v3726 = vadd.f32 0.0, %v3725
    %v3727 = vpop.f32.mrb[0].mxu0
    %3728 = vmatprep.mubr.f32.mxu0 0.0
    %3729 = vmatmul.mubr.f32.gmra.mrb[0].mxu0 %v3096
    %v3730 = vpop.f32.mrb[0].mxu0
    %v3731 = vadd.f32 0.0, %v3730
    %v3732 = vpop.f32.mrb[0].mxu0
    %3733 = vmatprep.mubr.f32.mxu0 0.0
    %3734 = vmatmul.mubr.f32.gmra.mrb[0].mxu0 %v3099
    %v3735 = vpop.f32.mrb[0].mxu0
    %v3736 = vadd.f32 0.0, %v3735
    %v3737 = vpop.f32.mrb[0].mxu0
    %3738 = vmatprep.mubr.f32.mxu0 0.0
    %3739 = vmatmul.mubr.f32.gmra.mrb[0].mxu0 %v3102
    %v3740 = vpop.f32.mrb[0].mxu0
    %v3741 = vadd.f32 0.0, %v3740
    %v3742 = vpop.f32.mrb[0].mxu0
    %3743 = vmatprep.mubr.f32.mxu0 0.0
    %3744 = vmatmul.mubr.f32.gmra.mrb[0].mxu0 %v3105
    %v3745 = vpop.f32.mrb[0].mxu0
    %v3746 = vadd.f32 0.0, %v3745
    %v3747 = vpop.f32.mrb[0].mxu0
    %3748 = vmatprep.mubr.f32.mxu0 0.0
    %3749 = vmatmul.mubr.f32.gmra.mrb[0].mxu0 %v3108
    %v3750 = vpop.f32.mrb[0].mxu0
    %v3751 = vadd.f32 0.0, %v3750
    %v3752 = vpop.f32.mrb[0].mxu0
    %3753 = vdwg.mxu0
    %3754 = vst.msk [vmem:[#allocation2 + $0x180] sm:$0xff] %vm3255, %v3676
    %3755 = vst.msk [vmem:[#allocation2 + $0x188] sm:$0xff] %vm3255, %v3681
    %3756 = vst.msk [vmem:[#allocation2 + $0x190] sm:$0xff] %vm3255, %v3686
    %3757 = vst.msk [vmem:[#allocation2 + $0x198] sm:$0xff] %vm3255, %v3691
    %3758 = vst.msk [vmem:[#allocation2 + $0x1a0] sm:$0xff] %vm3255, %v3696
    %3759 = vst.msk [vmem:[#allocation2 + $0x1a8] sm:$0xff] %vm3255, %v3701
    %3760 = vst.msk [vmem:[#allocation2 + $0x1b0] sm:$0xff] %vm3255, %v3706
    %3761 = vst.msk [vmem:[#allocation2 + $0x1b8] sm:$0xff] %vm3255, %v3711
    %3762 = vst.msk [vmem:[#allocation2 + $0x1c0] sm:$0xff] %vm3255, %v3716
    %3763 = vst.msk [vmem:[#allocation2 + $0x1c8] sm:$0xff] %vm3255, %v3721
    %3764 = vst.msk [vmem:[#allocation2 + $0x1d0] sm:$0xff] %vm3255, %v3726
    %3765 = vst.msk [vmem:[#allocation2 + $0x1d8] sm:$0xff] %vm3255, %v3731
    %3766 = vst.msk [vmem:[#allocation2 + $0x1e0] sm:$0xff] %vm3255, %v3736
    %3767 = vst.msk [vmem:[#allocation2 + $0x1e8] sm:$0xff] %vm3255, %v3741
    %3768 = vst.msk [vmem:[#allocation2 + $0x1f0] sm:$0xff] %vm3255, %v3746
    %3769 = vst.msk [vmem:[#allocation2 + $0x1f8] sm:$0xff] %vm3255, %v3751
    %s3770 = scalar_lea.vmem %s4, 128
    %v3771 = vld [vmem:[%s3770] sm:$0xff]
    %v3772 = vld [vmem:[%s3770 + $0x8] sm:$0xff]
    %v3773 = vld [vmem:[%s3770 + $0x10] sm:$0xff]
    %v3774 = vld [vmem:[%s3770 + $0x18] sm:$0xff]
    %3775 = vmatprep.subr.mxu0 0.0
    %3776 = vmatpush1.msra.mxu0 %v3771
    %3777 = vmatprep.subr.mxu0 0.0
    %3778 = vmatpush1.msra.mxu0 %v3772
    %3779 = vmatprep.subr.mxu0 0.0
    %3780 = vmatpush1.msra.mxu0 %v3773
    %3781 = vmatprep.subr.mxu0 0.0
    %3782 = vmatpush1.msra.mxu0 %v3774
    %3783 = vmatprep.subr.mxu0 0.0
    %3784 = vmatpush1.msra.mxu0 0.0
    %3785 = vmatprep.subr.mxu0 0.0
    %3786 = vmatpush1.msra.mxu0 0.0
    %3787 = vmatprep.subr.mxu0 0.0
    %3788 = vmatpush1.msra.mxu0 0.0
    %3789 = vmatprep.subr.mxu0 0.0
    %3790 = vmatpush1.msra.mxu0 0.0
    %3791 = vmatprep.subr.mxu0 0.0
    %3792 = vmatpush1.msra.mxu0 0.0
    %3793 = vmatprep.subr.mxu0 0.0
    %3794 = vmatpush1.msra.mxu0 0.0
    %3795 = vmatprep.subr.mxu0 0.0
    %3796 = vmatpush1.msra.mxu0 0.0
    %3797 = vmatprep.subr.mxu0 0.0
    %3798 = vmatpush1.msra.mxu0 0.0
    %3799 = vmatprep.subr.mxu0 0.0
    %3800 = vmatpush1.msra.mxu0 0.0
    %3801 = vmatprep.subr.mxu0 0.0
    %3802 = vmatpush1.msra.mxu0 0.0
    %3803 = vmatprep.subr.mxu0 0.0
    %3804 = vmatpush1.msra.mxu0 0.0
    %3805 = vmatprep.subr.mxu0 0.0
    %3806 = vmatpush1.msra.mxu0 0.0
    %3807 = vmatprep.subr.mxu0 0.0
    %3808 = vmatpush1.msra.mxu0 0.0
    %3809 = vmatprep.subr.mxu0 0.0
    %3810 = vmatpush1.msra.mxu0 0.0
    %3811 = vmatprep.subr.mxu0 0.0
    %3812 = vmatpush1.msra.mxu0 0.0
    %3813 = vmatprep.subr.mxu0 0.0
    %3814 = vmatpush1.msra.mxu0 0.0
    %3815 = vmatprep.subr.mxu0 0.0
    %3816 = vmatpush1.msra.mxu0 0.0
    %3817 = vmatprep.subr.mxu0 0.0
    %3818 = vmatpush1.msra.mxu0 0.0
    %3819 = vmatprep.subr.mxu0 0.0
    %3820 = vmatpush1.msra.mxu0 0.0
    %3821 = vmatprep.subr.mxu0 0.0
    %3822 = vmatpush1.msra.mxu0 0.0
    %3823 = vmatprep.subr.mxu0 0.0
    %3824 = vmatpush1.msra.mxu0 0.0
    %3825 = vmatprep.subr.mxu0 0.0
    %3826 = vmatpush1.msra.mxu0 0.0
    %3827 = vmatprep.subr.mxu0 0.0
    %3828 = vmatpush1.msra.mxu0 0.0
    %3829 = vmatprep.subr.mxu0 0.0
    %3830 = vmatpush1.msra.mxu0 0.0
    %3831 = vmatprep.subr.mxu0 0.0
    %3832 = vmatpush1.msra.mxu0 0.0
    %3833 = vmatprep.subr.mxu0 0.0
    %3834 = vmatpush1.msra.mxu0 0.0
    %3835 = vmatprep.subr.mxu0 0.0
    %3836 = vmatpush1.msra.mxu0 0.0
    %3837 = vmatprep.subr.mxu0 0.0
    %3838 = vmatpush1.msra.mxu0 0.0
    %3839 = vmatprep.mubr.f32.mxu0 0.0
    %3840 = vmatmul.mubr.f32.gmra.mrb[0].mxu0 %v3063
    %v3841 = vpop.f32.mrb[0].mxu0
    %v3842 = vadd.f32 0.0, %v3841
    %v3843 = vpop.f32.mrb[0].mxu0
    %3844 = vmatprep.mubr.f32.mxu0 0.0
    %3845 = vmatmul.mubr.f32.gmra.mrb[0].mxu0 %v3066
    %v3846 = vpop.f32.mrb[0].mxu0
    %v3847 = vadd.f32 0.0, %v3846
    %v3848 = vpop.f32.mrb[0].mxu0
    %3849 = vmatprep.mubr.f32.mxu0 0.0
    %3850 = vmatmul.mubr.f32.gmra.mrb[0].mxu0 %v3069
    %v3851 = vpop.f32.mrb[0].mxu0
    %v3852 = vadd.f32 0.0, %v3851
    %v3853 = vpop.f32.mrb[0].mxu0
    %3854 = vmatprep.mubr.f32.mxu0 0.0
    %3855 = vmatmul.mubr.f32.gmra.mrb[0].mxu0 %v3072
    %v3856 = vpop.f32.mrb[0].mxu0
    %v3857 = vadd.f32 0.0, %v3856
    %v3858 = vpop.f32.mrb[0].mxu0
    %3859 = vmatprep.mubr.f32.mxu0 0.0
    %3860 = vmatmul.mubr.f32.gmra.mrb[0].mxu0 %v3075
    %v3861 = vpop.f32.mrb[0].mxu0
    %v3862 = vadd.f32 0.0, %v3861
    %v3863 = vpop.f32.mrb[0].mxu0
    %3864 = vmatprep.mubr.f32.mxu0 0.0
    %3865 = vmatmul.mubr.f32.gmra.mrb[0].mxu0 %v3078
    %v3866 = vpop.f32.mrb[0].mxu0
    %v3867 = vadd.f32 0.0, %v3866
    %v3868 = vpop.f32.mrb[0].mxu0
    %3869 = vmatprep.mubr.f32.mxu0 0.0
    %3870 = vmatmul.mubr.f32.gmra.mrb[0].mxu0 %v3081
    %v3871 = vpop.f32.mrb[0].mxu0
    %v3872 = vadd.f32 0.0, %v3871
    %v3873 = vpop.f32.mrb[0].mxu0
    %3874 = vmatprep.mubr.f32.mxu0 0.0
    %3875 = vmatmul.mubr.f32.gmra.mrb[0].mxu0 %v3084
    %v3876 = vpop.f32.mrb[0].mxu0
    %v3877 = vadd.f32 0.0, %v3876
    %v3878 = vpop.f32.mrb[0].mxu0
    %3879 = vmatprep.mubr.f32.mxu0 0.0
    %3880 = vmatmul.mubr.f32.gmra.mrb[0].mxu0 %v3087
    %v3881 = vpop.f32.mrb[0].mxu0
    %v3882 = vadd.f32 0.0, %v3881
    %v3883 = vpop.f32.mrb[0].mxu0
    %3884 = vmatprep.mubr.f32.mxu0 0.0
    %3885 = vmatmul.mubr.f32.gmra.mrb[0].mxu0 %v3090
    %v3886 = vpop.f32.mrb[0].mxu0
    %v3887 = vadd.f32 0.0, %v3886
    %v3888 = vpop.f32.mrb[0].mxu0
    %3889 = vmatprep.mubr.f32.mxu0 0.0
    %3890 = vmatmul.mubr.f32.gmra.mrb[0].mxu0 %v3093
    %v3891 = vpop.f32.mrb[0].mxu0
    %v3892 = vadd.f32 0.0, %v3891
    %v3893 = vpop.f32.mrb[0].mxu0
    %3894 = vmatprep.mubr.f32.mxu0 0.0
    %3895 = vmatmul.mubr.f32.gmra.mrb[0].mxu0 %v3096
    %v3896 = vpop.f32.mrb[0].mxu0
    %v3897 = vadd.f32 0.0, %v3896
    %v3898 = vpop.f32.mrb[0].mxu0
    %3899 = vmatprep.mubr.f32.mxu0 0.0
    %3900 = vmatmul.mubr.f32.gmra.mrb[0].mxu0 %v3099
    %v3901 = vpop.f32.mrb[0].mxu0
    %v3902 = vadd.f32 0.0, %v3901
    %v3903 = vpop.f32.mrb[0].mxu0
    %3904 = vmatprep.mubr.f32.mxu0 0.0
    %3905 = vmatmul.mubr.f32.gmra.mrb[0].mxu0 %v3102
    %v3906 = vpop.f32.mrb[0].mxu0
    %v3907 = vadd.f32 0.0, %v3906
    %v3908 = vpop.f32.mrb[0].mxu0
    %3909 = vmatprep.mubr.f32.mxu0 0.0
    %3910 = vmatmul.mubr.f32.gmra.mrb[0].mxu0 %v3105
    %v3911 = vpop.f32.mrb[0].mxu0
    %v3912 = vadd.f32 0.0, %v3911
    %v3913 = vpop.f32.mrb[0].mxu0
    %3914 = vmatprep.mubr.f32.mxu0 0.0
    %3915 = vmatmul.mubr.f32.gmra.mrb[0].mxu0 %v3108
    %v3916 = vpop.f32.mrb[0].mxu0
    %v3917 = vadd.f32 0.0, %v3916
    %v3918 = vpop.f32.mrb[0].mxu0
    %3919 = vdwg.mxu0
    %3920 = vst.msk [vmem:[#allocation2 + $0x200] sm:$0xff] %vm3255, %v3842
    %3921 = vst.msk [vmem:[#allocation2 + $0x208] sm:$0xff] %vm3255, %v3847
    %3922 = vst.msk [vmem:[#allocation2 + $0x210] sm:$0xff] %vm3255, %v3852
    %3923 = vst.msk [vmem:[#allocation2 + $0x218] sm:$0xff] %vm3255, %v3857
    %3924 = vst.msk [vmem:[#allocation2 + $0x220] sm:$0xff] %vm3255, %v3862
    %3925 = vst.msk [vmem:[#allocation2 + $0x228] sm:$0xff] %vm3255, %v3867
    %3926 = vst.msk [vmem:[#allocation2 + $0x230] sm:$0xff] %vm3255, %v3872
    %3927 = vst.msk [vmem:[#allocation2 + $0x238] sm:$0xff] %vm3255, %v3877
    %3928 = vst.msk [vmem:[#allocation2 + $0x240] sm:$0xff] %vm3255, %v3882
    %3929 = vst.msk [vmem:[#allocation2 + $0x248] sm:$0xff] %vm3255, %v3887
    %3930 = vst.msk [vmem:[#allocation2 + $0x250] sm:$0xff] %vm3255, %v3892
    %3931 = vst.msk [vmem:[#allocation2 + $0x258] sm:$0xff] %vm3255, %v3897
    %3932 = vst.msk [vmem:[#allocation2 + $0x260] sm:$0xff] %vm3255, %v3902
    %3933 = vst.msk [vmem:[#allocation2 + $0x268] sm:$0xff] %vm3255, %v3907
    %3934 = vst.msk [vmem:[#allocation2 + $0x270] sm:$0xff] %vm3255, %v3912
    %3935 = vst.msk [vmem:[#allocation2 + $0x278] sm:$0xff] %vm3255, %v3917
    %s3936 = scalar_lea.vmem %s4, 160
    %v3937 = vld [vmem:[%s3936] sm:$0xff]
    %v3938 = vld [vmem:[%s3936 + $0x8] sm:$0xff]
    %v3939 = vld [vmem:[%s3936 + $0x10] sm:$0xff]
    %v3940 = vld [vmem:[%s3936 + $0x18] sm:$0xff]
    %3941 = vmatprep.subr.mxu0 0.0
    %3942 = vmatpush1.msra.mxu0 %v3937
    %3943 = vmatprep.subr.mxu0 0.0
    %3944 = vmatpush1.msra.mxu0 %v3938
    %3945 = vmatprep.subr.mxu0 0.0
    %3946 = vmatpush1.msra.mxu0 %v3939
    %3947 = vmatprep.subr.mxu0 0.0
    %3948 = vmatpush1.msra.mxu0 %v3940
    %3949 = vmatprep.subr.mxu0 0.0
    %3950 = vmatpush1.msra.mxu0 0.0
    %3951 = vmatprep.subr.mxu0 0.0
    %3952 = vmatpush1.msra.mxu0 0.0
    %3953 = vmatprep.subr.mxu0 0.0
    %3954 = vmatpush1.msra.mxu0 0.0
    %3955 = vmatprep.subr.mxu0 0.0
    %3956 = vmatpush1.msra.mxu0 0.0
    %3957 = vmatprep.subr.mxu0 0.0
    %3958 = vmatpush1.msra.mxu0 0.0
    %3959 = vmatprep.subr.mxu0 0.0
    %3960 = vmatpush1.msra.mxu0 0.0
    %3961 = vmatprep.subr.mxu0 0.0
    %3962 = vmatpush1.msra.mxu0 0.0
    %3963 = vmatprep.subr.mxu0 0.0
    %3964 = vmatpush1.msra.mxu0 0.0
    %3965 = vmatprep.subr.mxu0 0.0
    %3966 = vmatpush1.msra.mxu0 0.0
    %3967 = vmatprep.subr.mxu0 0.0
    %3968 = vmatpush1.msra.mxu0 0.0
    %3969 = vmatprep.subr.mxu0 0.0
    %3970 = vmatpush1.msra.mxu0 0.0
    %3971 = vmatprep.subr.mxu0 0.0
    %3972 = vmatpush1.msra.mxu0 0.0
    %3973 = vmatprep.subr.mxu0 0.0
    %3974 = vmatpush1.msra.mxu0 0.0
    %3975 = vmatprep.subr.mxu0 0.0
    %3976 = vmatpush1.msra.mxu0 0.0
    %3977 = vmatprep.subr.mxu0 0.0
    %3978 = vmatpush1.msra.mxu0 0.0
    %3979 = vmatprep.subr.mxu0 0.0
    %3980 = vmatpush1.msra.mxu0 0.0
    %3981 = vmatprep.subr.mxu0 0.0
    %3982 = vmatpush1.msra.mxu0 0.0
    %3983 = vmatprep.subr.mxu0 0.0
    %3984 = vmatpush1.msra.mxu0 0.0
    %3985 = vmatprep.subr.mxu0 0.0
    %3986 = vmatpush1.msra.mxu0 0.0
    %3987 = vmatprep.subr.mxu0 0.0
    %3988 = vmatpush1.msra.mxu0 0.0
    %3989 = vmatprep.subr.mxu0 0.0
    %3990 = vmatpush1.msra.mxu0 0.0
    %3991 = vmatprep.subr.mxu0 0.0
    %3992 = vmatpush1.msra.mxu0 0.0
    %3993 = vmatprep.subr.mxu0 0.0
    %3994 = vmatpush1.msra.mxu0 0.0
    %3995 = vmatprep.subr.mxu0 0.0
    %3996 = vmatpush1.msra.mxu0 0.0
    %3997 = vmatprep.subr.mxu0 0.0
    %3998 = vmatpush1.msra.mxu0 0.0
    %3999 = vmatprep.subr.mxu0 0.0
    %4000 = vmatpush1.msra.mxu0 0.0
    %4001 = vmatprep.subr.mxu0 0.0
    %4002 = vmatpush1.msra.mxu0 0.0
    %4003 = vmatprep.subr.mxu0 0.0
    %4004 = vmatpush1.msra.mxu0 0.0
    %4005 = vmatprep.mubr.f32.mxu0 0.0
    %4006 = vmatmul.mubr.f32.gmra.mrb[0].mxu0 %v3063
    %v4007 = vpop.f32.mrb[0].mxu0
    %v4008 = vadd.f32 0.0, %v4007
    %v4009 = vpop.f32.mrb[0].mxu0
    %4010 = vmatprep.mubr.f32.mxu0 0.0
    %4011 = vmatmul.mubr.f32.gmra.mrb[0].mxu0 %v3066
    %v4012 = vpop.f32.mrb[0].mxu0
    %v4013 = vadd.f32 0.0, %v4012
    %v4014 = vpop.f32.mrb[0].mxu0
    %4015 = vmatprep.mubr.f32.mxu0 0.0
    %4016 = vmatmul.mubr.f32.gmra.mrb[0].mxu0 %v3069
    %v4017 = vpop.f32.mrb[0].mxu0
    %v4018 = vadd.f32 0.0, %v4017
    %v4019 = vpop.f32.mrb[0].mxu0
    %4020 = vmatprep.mubr.f32.mxu0 0.0
    %4021 = vmatmul.mubr.f32.gmra.mrb[0].mxu0 %v3072
    %v4022 = vpop.f32.mrb[0].mxu0
    %v4023 = vadd.f32 0.0, %v4022
    %v4024 = vpop.f32.mrb[0].mxu0
    %4025 = vmatprep.mubr.f32.mxu0 0.0
    %4026 = vmatmul.mubr.f32.gmra.mrb[0].mxu0 %v3075
    %v4027 = vpop.f32.mrb[0].mxu0
    %v4028 = vadd.f32 0.0, %v4027
    %v4029 = vpop.f32.mrb[0].mxu0
    %4030 = vmatprep.mubr.f32.mxu0 0.0
    %4031 = vmatmul.mubr.f32.gmra.mrb[0].mxu0 %v3078
    %v4032 = vpop.f32.mrb[0].mxu0
    %v4033 = vadd.f32 0.0, %v4032
    %v4034 = vpop.f32.mrb[0].mxu0
    %4035 = vmatprep.mubr.f32.mxu0 0.0
    %4036 = vmatmul.mubr.f32.gmra.mrb[0].mxu0 %v3081
    %v4037 = vpop.f32.mrb[0].mxu0
    %v4038 = vadd.f32 0.0, %v4037
    %v4039 = vpop.f32.mrb[0].mxu0
    %4040 = vmatprep.mubr.f32.mxu0 0.0
    %4041 = vmatmul.mubr.f32.gmra.mrb[0].mxu0 %v3084
    %v4042 = vpop.f32.mrb[0].mxu0
    %v4043 = vadd.f32 0.0, %v4042
    %v4044 = vpop.f32.mrb[0].mxu0
    %4045 = vmatprep.mubr.f32.mxu0 0.0
    %4046 = vmatmul.mubr.f32.gmra.mrb[0].mxu0 %v3087
    %v4047 = vpop.f32.mrb[0].mxu0
    %v4048 = vadd.f32 0.0, %v4047
    %v4049 = vpop.f32.mrb[0].mxu0
    %4050 = vmatprep.mubr.f32.mxu0 0.0
    %4051 = vmatmul.mubr.f32.gmra.mrb[0].mxu0 %v3090
    %v4052 = vpop.f32.mrb[0].mxu0
    %v4053 = vadd.f32 0.0, %v4052
    %v4054 = vpop.f32.mrb[0].mxu0
    %4055 = vmatprep.mubr.f32.mxu0 0.0
    %4056 = vmatmul.mubr.f32.gmra.mrb[0].mxu0 %v3093
    %v4057 = vpop.f32.mrb[0].mxu0
    %v4058 = vadd.f32 0.0, %v4057
    %v4059 = vpop.f32.mrb[0].mxu0
    %4060 = vmatprep.mubr.f32.mxu0 0.0
    %4061 = vmatmul.mubr.f32.gmra.mrb[0].mxu0 %v3096
    %v4062 = vpop.f32.mrb[0].mxu0
    %v4063 = vadd.f32 0.0, %v4062
    %v4064 = vpop.f32.mrb[0].mxu0
    %4065 = vmatprep.mubr.f32.mxu0 0.0
    %4066 = vmatmul.mubr.f32.gmra.mrb[0].mxu0 %v3099
    %v4067 = vpop.f32.mrb[0].mxu0
    %v4068 = vadd.f32 0.0, %v4067
    %v4069 = vpop.f32.mrb[0].mxu0
    %4070 = vmatprep.mubr.f32.mxu0 0.0
    %4071 = vmatmul.mubr.f32.gmra.mrb[0].mxu0 %v3102
    %v4072 = vpop.f32.mrb[0].mxu0
    %v4073 = vadd.f32 0.0, %v4072
    %v4074 = vpop.f32.mrb[0].mxu0
    %4075 = vmatprep.mubr.f32.mxu0 0.0
    %4076 = vmatmul.mubr.f32.gmra.mrb[0].mxu0 %v3105
    %v4077 = vpop.f32.mrb[0].mxu0
    %v4078 = vadd.f32 0.0, %v4077
    %v4079 = vpop.f32.mrb[0].mxu0
    %4080 = vmatprep.mubr.f32.mxu0 0.0
    %4081 = vmatmul.mubr.f32.gmra.mrb[0].mxu0 %v3108
    %v4082 = vpop.f32.mrb[0].mxu0
    %v4083 = vadd.f32 0.0, %v4082
    %v4084 = vpop.f32.mrb[0].mxu0
    %4085 = vdwg.mxu0
    %4086 = vst.msk [vmem:[#allocation2 + $0x280] sm:$0xff] %vm3255, %v4008
    %4087 = vst.msk [vmem:[#allocation2 + $0x288] sm:$0xff] %vm3255, %v4013
    %4088 = vst.msk [vmem:[#allocation2 + $0x290] sm:$0xff] %vm3255, %v4018
    %4089 = vst.msk [vmem:[#allocation2 + $0x298] sm:$0xff] %vm3255, %v4023
    %4090 = vst.msk [vmem:[#allocation2 + $0x2a0] sm:$0xff] %vm3255, %v4028
    %4091 = vst.msk [vmem:[#allocation2 + $0x2a8] sm:$0xff] %vm3255, %v4033
    %4092 = vst.msk [vmem:[#allocation2 + $0x2b0] sm:$0xff] %vm3255, %v4038
    %4093 = vst.msk [vmem:[#allocation2 + $0x2b8] sm:$0xff] %vm3255, %v4043
    %4094 = vst.msk [vmem:[#allocation2 + $0x2c0] sm:$0xff] %vm3255, %v4048
    %4095 = vst.msk [vmem:[#allocation2 + $0x2c8] sm:$0xff] %vm3255, %v4053
    %4096 = vst.msk [vmem:[#allocation2 + $0x2d0] sm:$0xff] %vm3255, %v4058
    %4097 = vst.msk [vmem:[#allocation2 + $0x2d8] sm:$0xff] %vm3255, %v4063
    %4098 = vst.msk [vmem:[#allocation2 + $0x2e0] sm:$0xff] %vm3255, %v4068
    %4099 = vst.msk [vmem:[#allocation2 + $0x2e8] sm:$0xff] %vm3255, %v4073
    %4100 = vst.msk [vmem:[#allocation2 + $0x2f0] sm:$0xff] %vm3255, %v4078
    %4101 = vst.msk [vmem:[#allocation2 + $0x2f8] sm:$0xff] %vm3255, %v4083
    %s4102 = scalar_lea.vmem %s4, 192
    %v4103 = vld [vmem:[%s4102] sm:$0xff]
    %v4104 = vld [vmem:[%s4102 + $0x8] sm:$0xff]
    %v4105 = vld [vmem:[%s4102 + $0x10] sm:$0xff]
    %v4106 = vld [vmem:[%s4102 + $0x18] sm:$0xff]
    %4107 = vmatprep.subr.mxu0 0.0
    %4108 = vmatpush1.msra.mxu0 %v4103
    %4109 = vmatprep.subr.mxu0 0.0
    %4110 = vmatpush1.msra.mxu0 %v4104
    %4111 = vmatprep.subr.mxu0 0.0
    %4112 = vmatpush1.msra.mxu0 %v4105
    %4113 = vmatprep.subr.mxu0 0.0
    %4114 = vmatpush1.msra.mxu0 %v4106
    %4115 = vmatprep.subr.mxu0 0.0
    %4116 = vmatpush1.msra.mxu0 0.0
    %4117 = vmatprep.subr.mxu0 0.0
    %4118 = vmatpush1.msra.mxu0 0.0
    %4119 = vmatprep.subr.mxu0 0.0
    %4120 = vmatpush1.msra.mxu0 0.0
    %4121 = vmatprep.subr.mxu0 0.0
    %4122 = vmatpush1.msra.mxu0 0.0
    %4123 = vmatprep.subr.mxu0 0.0
    %4124 = vmatpush1.msra.mxu0 0.0
    %4125 = vmatprep.subr.mxu0 0.0
    %4126 = vmatpush1.msra.mxu0 0.0
    %4127 = vmatprep.subr.mxu0 0.0
    %4128 = vmatpush1.msra.mxu0 0.0
    %4129 = vmatprep.subr.mxu0 0.0
    %4130 = vmatpush1.msra.mxu0 0.0
    %4131 = vmatprep.subr.mxu0 0.0
    %4132 = vmatpush1.msra.mxu0 0.0
    %4133 = vmatprep.subr.mxu0 0.0
    %4134 = vmatpush1.msra.mxu0 0.0
    %4135 = vmatprep.subr.mxu0 0.0
    %4136 = vmatpush1.msra.mxu0 0.0
    %4137 = vmatprep.subr.mxu0 0.0
    %4138 = vmatpush1.msra.mxu0 0.0
    %4139 = vmatprep.subr.mxu0 0.0
    %4140 = vmatpush1.msra.mxu0 0.0
    %4141 = vmatprep.subr.mxu0 0.0
    %4142 = vmatpush1.msra.mxu0 0.0
    %4143 = vmatprep.subr.mxu0 0.0
    %4144 = vmatpush1.msra.mxu0 0.0
    %4145 = vmatprep.subr.mxu0 0.0
    %4146 = vmatpush1.msra.mxu0 0.0
    %4147 = vmatprep.subr.mxu0 0.0
    %4148 = vmatpush1.msra.mxu0 0.0
    %4149 = vmatprep.subr.mxu0 0.0
    %4150 = vmatpush1.msra.mxu0 0.0
    %4151 = vmatprep.subr.mxu0 0.0
    %4152 = vmatpush1.msra.mxu0 0.0
    %4153 = vmatprep.subr.mxu0 0.0
    %4154 = vmatpush1.msra.mxu0 0.0
    %4155 = vmatprep.subr.mxu0 0.0
    %4156 = vmatpush1.msra.mxu0 0.0
    %4157 = vmatprep.subr.mxu0 0.0
    %4158 = vmatpush1.msra.mxu0 0.0
    %4159 = vmatprep.subr.mxu0 0.0
    %4160 = vmatpush1.msra.mxu0 0.0
    %4161 = vmatprep.subr.mxu0 0.0
    %4162 = vmatpush1.msra.mxu0 0.0
    %4163 = vmatprep.subr.mxu0 0.0
    %4164 = vmatpush1.msra.mxu0 0.0
    %4165 = vmatprep.subr.mxu0 0.0
    %4166 = vmatpush1.msra.mxu0 0.0
    %4167 = vmatprep.subr.mxu0 0.0
    %4168 = vmatpush1.msra.mxu0 0.0
    %4169 = vmatprep.subr.mxu0 0.0
    %4170 = vmatpush1.msra.mxu0 0.0
    %4171 = vmatprep.mubr.f32.mxu0 0.0
    %4172 = vmatmul.mubr.f32.gmra.mrb[0].mxu0 %v3063
    %v4173 = vpop.f32.mrb[0].mxu0
    %v4174 = vadd.f32 0.0, %v4173
    %v4175 = vpop.f32.mrb[0].mxu0
    %4176 = vmatprep.mubr.f32.mxu0 0.0
    %4177 = vmatmul.mubr.f32.gmra.mrb[0].mxu0 %v3066
    %v4178 = vpop.f32.mrb[0].mxu0
    %v4179 = vadd.f32 0.0, %v4178
    %v4180 = vpop.f32.mrb[0].mxu0
    %4181 = vmatprep.mubr.f32.mxu0 0.0
    %4182 = vmatmul.mubr.f32.gmra.mrb[0].mxu0 %v3069
    %v4183 = vpop.f32.mrb[0].mxu0
    %v4184 = vadd.f32 0.0, %v4183
    %v4185 = vpop.f32.mrb[0].mxu0
    %4186 = vmatprep.mubr.f32.mxu0 0.0
    %4187 = vmatmul.mubr.f32.gmra.mrb[0].mxu0 %v3072
    %v4188 = vpop.f32.mrb[0].mxu0
    %v4189 = vadd.f32 0.0, %v4188
    %v4190 = vpop.f32.mrb[0].mxu0
    %4191 = vmatprep.mubr.f32.mxu0 0.0
    %4192 = vmatmul.mubr.f32.gmra.mrb[0].mxu0 %v3075
    %v4193 = vpop.f32.mrb[0].mxu0
    %v4194 = vadd.f32 0.0, %v4193
    %v4195 = vpop.f32.mrb[0].mxu0
    %4196 = vmatprep.mubr.f32.mxu0 0.0
    %4197 = vmatmul.mubr.f32.gmra.mrb[0].mxu0 %v3078
    %v4198 = vpop.f32.mrb[0].mxu0
    %v4199 = vadd.f32 0.0, %v4198
    %v4200 = vpop.f32.mrb[0].mxu0
    %4201 = vmatprep.mubr.f32.mxu0 0.0
    %4202 = vmatmul.mubr.f32.gmra.mrb[0].mxu0 %v3081
    %v4203 = vpop.f32.mrb[0].mxu0
    %v4204 = vadd.f32 0.0, %v4203
    %v4205 = vpop.f32.mrb[0].mxu0
    %4206 = vmatprep.mubr.f32.mxu0 0.0
    %4207 = vmatmul.mubr.f32.gmra.mrb[0].mxu0 %v3084
    %v4208 = vpop.f32.mrb[0].mxu0
    %v4209 = vadd.f32 0.0, %v4208
    %v4210 = vpop.f32.mrb[0].mxu0
    %4211 = vmatprep.mubr.f32.mxu0 0.0
    %4212 = vmatmul.mubr.f32.gmra.mrb[0].mxu0 %v3087
    %v4213 = vpop.f32.mrb[0].mxu0
    %v4214 = vadd.f32 0.0, %v4213
    %v4215 = vpop.f32.mrb[0].mxu0
    %4216 = vmatprep.mubr.f32.mxu0 0.0
    %4217 = vmatmul.mubr.f32.gmra.mrb[0].mxu0 %v3090
    %v4218 = vpop.f32.mrb[0].mxu0
    %v4219 = vadd.f32 0.0, %v4218
    %v4220 = vpop.f32.mrb[0].mxu0
    %4221 = vmatprep.mubr.f32.mxu0 0.0
    %4222 = vmatmul.mubr.f32.gmra.mrb[0].mxu0 %v3093
    %v4223 = vpop.f32.mrb[0].mxu0
    %v4224 = vadd.f32 0.0, %v4223
    %v4225 = vpop.f32.mrb[0].mxu0
    %4226 = vmatprep.mubr.f32.mxu0 0.0
    %4227 = vmatmul.mubr.f32.gmra.mrb[0].mxu0 %v3096
    %v4228 = vpop.f32.mrb[0].mxu0
    %v4229 = vadd.f32 0.0, %v4228
    %v4230 = vpop.f32.mrb[0].mxu0
    %4231 = vmatprep.mubr.f32.mxu0 0.0
    %4232 = vmatmul.mubr.f32.gmra.mrb[0].mxu0 %v3099
    %v4233 = vpop.f32.mrb[0].mxu0
    %v4234 = vadd.f32 0.0, %v4233
    %v4235 = vpop.f32.mrb[0].mxu0
    %4236 = vmatprep.mubr.f32.mxu0 0.0
    %4237 = vmatmul.mubr.f32.gmra.mrb[0].mxu0 %v3102
    %v4238 = vpop.f32.mrb[0].mxu0
    %v4239 = vadd.f32 0.0, %v4238
    %v4240 = vpop.f32.mrb[0].mxu0
    %4241 = vmatprep.mubr.f32.mxu0 0.0
    %4242 = vmatmul.mubr.f32.gmra.mrb[0].mxu0 %v3105
    %v4243 = vpop.f32.mrb[0].mxu0
    %v4244 = vadd.f32 0.0, %v4243
    %v4245 = vpop.f32.mrb[0].mxu0
    %4246 = vmatprep.mubr.f32.mxu0 0.0
    %4247 = vmatmul.mubr.f32.gmra.mrb[0].mxu0 %v3108
    %v4248 = vpop.f32.mrb[0].mxu0
    %v4249 = vadd.f32 0.0, %v4248
    %v4250 = vpop.f32.mrb[0].mxu0
    %4251 = vdwg.mxu0
    %4252 = vst.msk [vmem:[#allocation2 + $0x300] sm:$0xff] %vm3255, %v4174
    %4253 = vst.msk [vmem:[#allocation2 + $0x308] sm:$0xff] %vm3255, %v4179
    %4254 = vst.msk [vmem:[#allocation2 + $0x310] sm:$0xff] %vm3255, %v4184
    %4255 = vst.msk [vmem:[#allocation2 + $0x318] sm:$0xff] %vm3255, %v4189
    %4256 = vst.msk [vmem:[#allocation2 + $0x320] sm:$0xff] %vm3255, %v4194
    %4257 = vst.msk [vmem:[#allocation2 + $0x328] sm:$0xff] %vm3255, %v4199
    %4258 = vst.msk [vmem:[#allocation2 + $0x330] sm:$0xff] %vm3255, %v4204
    %4259 = vst.msk [vmem:[#allocation2 + $0x338] sm:$0xff] %vm3255, %v4209
    %4260 = vst.msk [vmem:[#allocation2 + $0x340] sm:$0xff] %vm3255, %v4214
    %4261 = vst.msk [vmem:[#allocation2 + $0x348] sm:$0xff] %vm3255, %v4219
    %4262 = vst.msk [vmem:[#allocation2 + $0x350] sm:$0xff] %vm3255, %v4224
    %4263 = vst.msk [vmem:[#allocation2 + $0x358] sm:$0xff] %vm3255, %v4229
    %4264 = vst.msk [vmem:[#allocation2 + $0x360] sm:$0xff] %vm3255, %v4234
    %4265 = vst.msk [vmem:[#allocation2 + $0x368] sm:$0xff] %vm3255, %v4239
    %4266 = vst.msk [vmem:[#allocation2 + $0x370] sm:$0xff] %vm3255, %v4244
    %4267 = vst.msk [vmem:[#allocation2 + $0x378] sm:$0xff] %vm3255, %v4249
    %s4268 = scalar_lea.vmem %s4, 224
    %v4269 = vld [vmem:[%s4268] sm:$0xff]
    %v4270 = vld [vmem:[%s4268 + $0x8] sm:$0xff]
    %v4271 = vld [vmem:[%s4268 + $0x10] sm:$0xff]
    %v4272 = vld [vmem:[%s4268 + $0x18] sm:$0xff]
    %4273 = vmatprep.subr.mxu0 0.0
    %4274 = vmatpush1.msra.mxu0 %v4269
    %4275 = vmatprep.subr.mxu0 0.0
    %4276 = vmatpush1.msra.mxu0 %v4270
    %4277 = vmatprep.subr.mxu0 0.0
    %4278 = vmatpush1.msra.mxu0 %v4271
    %4279 = vmatprep.subr.mxu0 0.0
    %4280 = vmatpush1.msra.mxu0 %v4272
    %4281 = vmatprep.subr.mxu0 0.0
    %4282 = vmatpush1.msra.mxu0 0.0
    %4283 = vmatprep.subr.mxu0 0.0
    %4284 = vmatpush1.msra.mxu0 0.0
    %4285 = vmatprep.subr.mxu0 0.0
    %4286 = vmatpush1.msra.mxu0 0.0
    %4287 = vmatprep.subr.mxu0 0.0
    %4288 = vmatpush1.msra.mxu0 0.0
    %4289 = vmatprep.subr.mxu0 0.0
    %4290 = vmatpush1.msra.mxu0 0.0
    %4291 = vmatprep.subr.mxu0 0.0
    %4292 = vmatpush1.msra.mxu0 0.0
    %4293 = vmatprep.subr.mxu0 0.0
    %4294 = vmatpush1.msra.mxu0 0.0
    %4295 = vmatprep.subr.mxu0 0.0
    %4296 = vmatpush1.msra.mxu0 0.0
    %4297 = vmatprep.subr.mxu0 0.0
    %4298 = vmatpush1.msra.mxu0 0.0
    %4299 = vmatprep.subr.mxu0 0.0
    %4300 = vmatpush1.msra.mxu0 0.0
    %4301 = vmatprep.subr.mxu0 0.0
    %4302 = vmatpush1.msra.mxu0 0.0
    %4303 = vmatprep.subr.mxu0 0.0
    %4304 = vmatpush1.msra.mxu0 0.0
    %4305 = vmatprep.subr.mxu0 0.0
    %4306 = vmatpush1.msra.mxu0 0.0
    %4307 = vmatprep.subr.mxu0 0.0
    %4308 = vmatpush1.msra.mxu0 0.0
    %4309 = vmatprep.subr.mxu0 0.0
    %4310 = vmatpush1.msra.mxu0 0.0
    %4311 = vmatprep.subr.mxu0 0.0
    %4312 = vmatpush1.msra.mxu0 0.0
    %4313 = vmatprep.subr.mxu0 0.0
    %4314 = vmatpush1.msra.mxu0 0.0
    %4315 = vmatprep.subr.mxu0 0.0
    %4316 = vmatpush1.msra.mxu0 0.0
    %4317 = vmatprep.subr.mxu0 0.0
    %4318 = vmatpush1.msra.mxu0 0.0
    %4319 = vmatprep.subr.mxu0 0.0
    %4320 = vmatpush1.msra.mxu0 0.0
    %4321 = vmatprep.subr.mxu0 0.0
    %4322 = vmatpush1.msra.mxu0 0.0
    %4323 = vmatprep.subr.mxu0 0.0
    %4324 = vmatpush1.msra.mxu0 0.0
    %4325 = vmatprep.subr.mxu0 0.0
    %4326 = vmatpush1.msra.mxu0 0.0
    %4327 = vmatprep.subr.mxu0 0.0
    %4328 = vmatpush1.msra.mxu0 0.0
    %4329 = vmatprep.subr.mxu0 0.0
    %4330 = vmatpush1.msra.mxu0 0.0
    %4331 = vmatprep.subr.mxu0 0.0
    %4332 = vmatpush1.msra.mxu0 0.0
    %4333 = vmatprep.subr.mxu0 0.0
    %4334 = vmatpush1.msra.mxu0 0.0
    %4335 = vmatprep.subr.mxu0 0.0
    %4336 = vmatpush1.msra.mxu0 0.0
    %4337 = vmatprep.mubr.f32.mxu0 0.0
    %4338 = vmatmul.mubr.f32.gmra.mrb[0].mxu0 %v3063
    %v4339 = vpop.f32.mrb[0].mxu0
    %v4340 = vadd.f32 0.0, %v4339
    %v4341 = vpop.f32.mrb[0].mxu0
    %4342 = vmatprep.mubr.f32.mxu0 0.0
    %4343 = vmatmul.mubr.f32.gmra.mrb[0].mxu0 %v3066
    %v4344 = vpop.f32.mrb[0].mxu0
    %v4345 = vadd.f32 0.0, %v4344
    %v4346 = vpop.f32.mrb[0].mxu0
    %4347 = vmatprep.mubr.f32.mxu0 0.0
    %4348 = vmatmul.mubr.f32.gmra.mrb[0].mxu0 %v3069
    %v4349 = vpop.f32.mrb[0].mxu0
    %v4350 = vadd.f32 0.0, %v4349
    %v4351 = vpop.f32.mrb[0].mxu0
    %4352 = vmatprep.mubr.f32.mxu0 0.0
    %4353 = vmatmul.mubr.f32.gmra.mrb[0].mxu0 %v3072
    %v4354 = vpop.f32.mrb[0].mxu0
    %v4355 = vadd.f32 0.0, %v4354
    %v4356 = vpop.f32.mrb[0].mxu0
    %4357 = vmatprep.mubr.f32.mxu0 0.0
    %4358 = vmatmul.mubr.f32.gmra.mrb[0].mxu0 %v3075
    %v4359 = vpop.f32.mrb[0].mxu0
    %v4360 = vadd.f32 0.0, %v4359
    %v4361 = vpop.f32.mrb[0].mxu0
    %4362 = vmatprep.mubr.f32.mxu0 0.0
    %4363 = vmatmul.mubr.f32.gmra.mrb[0].mxu0 %v3078
    %v4364 = vpop.f32.mrb[0].mxu0
    %v4365 = vadd.f32 0.0, %v4364
    %v4366 = vpop.f32.mrb[0].mxu0
    %4367 = vmatprep.mubr.f32.mxu0 0.0
    %4368 = vmatmul.mubr.f32.gmra.mrb[0].mxu0 %v3081
    %v4369 = vpop.f32.mrb[0].mxu0
    %v4370 = vadd.f32 0.0, %v4369
    %v4371 = vpop.f32.mrb[0].mxu0
    %4372 = vmatprep.mubr.f32.mxu0 0.0
    %4373 = vmatmul.mubr.f32.gmra.mrb[0].mxu0 %v3084
    %v4374 = vpop.f32.mrb[0].mxu0
    %v4375 = vadd.f32 0.0, %v4374
    %v4376 = vpop.f32.mrb[0].mxu0
    %4377 = vmatprep.mubr.f32.mxu0 0.0
    %4378 = vmatmul.mubr.f32.gmra.mrb[0].mxu0 %v3087
    %v4379 = vpop.f32.mrb[0].mxu0
    %v4380 = vadd.f32 0.0, %v4379
    %v4381 = vpop.f32.mrb[0].mxu0
    %4382 = vmatprep.mubr.f32.mxu0 0.0
    %4383 = vmatmul.mubr.f32.gmra.mrb[0].mxu0 %v3090
    %v4384 = vpop.f32.mrb[0].mxu0
    %v4385 = vadd.f32 0.0, %v4384
    %v4386 = vpop.f32.mrb[0].mxu0
    %4387 = vmatprep.mubr.f32.mxu0 0.0
    %4388 = vmatmul.mubr.f32.gmra.mrb[0].mxu0 %v3093
    %v4389 = vpop.f32.mrb[0].mxu0
    %v4390 = vadd.f32 0.0, %v4389
    %v4391 = vpop.f32.mrb[0].mxu0
    %4392 = vmatprep.mubr.f32.mxu0 0.0
    %4393 = vmatmul.mubr.f32.gmra.mrb[0].mxu0 %v3096
    %v4394 = vpop.f32.mrb[0].mxu0
    %v4395 = vadd.f32 0.0, %v4394
    %v4396 = vpop.f32.mrb[0].mxu0
    %4397 = vmatprep.mubr.f32.mxu0 0.0
    %4398 = vmatmul.mubr.f32.gmra.mrb[0].mxu0 %v3099
    %v4399 = vpop.f32.mrb[0].mxu0
    %v4400 = vadd.f32 0.0, %v4399
    %v4401 = vpop.f32.mrb[0].mxu0
    %4402 = vmatprep.mubr.f32.mxu0 0.0
    %4403 = vmatmul.mubr.f32.gmra.mrb[0].mxu0 %v3102
    %v4404 = vpop.f32.mrb[0].mxu0
    %v4405 = vadd.f32 0.0, %v4404
    %v4406 = vpop.f32.mrb[0].mxu0
    %4407 = vmatprep.mubr.f32.mxu0 0.0
    %4408 = vmatmul.mubr.f32.gmra.mrb[0].mxu0 %v3105
    %v4409 = vpop.f32.mrb[0].mxu0
    %v4410 = vadd.f32 0.0, %v4409
    %v4411 = vpop.f32.mrb[0].mxu0
    %4412 = vmatprep.mubr.f32.mxu0 0.0
    %4413 = vmatmul.mubr.f32.gmra.mrb[0].mxu0 %v3108
    %v4414 = vpop.f32.mrb[0].mxu0
    %v4415 = vadd.f32 0.0, %v4414
    %v4416 = vpop.f32.mrb[0].mxu0
    %4417 = vdwg.mxu0
    %4418 = vst.msk [vmem:[#allocation2 + $0x380] sm:$0xff] %vm3255, %v4340
    %4419 = vst.msk [vmem:[#allocation2 + $0x388] sm:$0xff] %vm3255, %v4345
    %4420 = vst.msk [vmem:[#allocation2 + $0x390] sm:$0xff] %vm3255, %v4350
    %4421 = vst.msk [vmem:[#allocation2 + $0x398] sm:$0xff] %vm3255, %v4355
    %4422 = vst.msk [vmem:[#allocation2 + $0x3a0] sm:$0xff] %vm3255, %v4360
    %4423 = vst.msk [vmem:[#allocation2 + $0x3a8] sm:$0xff] %vm3255, %v4365
    %4424 = vst.msk [vmem:[#allocation2 + $0x3b0] sm:$0xff] %vm3255, %v4370
    %4425 = vst.msk [vmem:[#allocation2 + $0x3b8] sm:$0xff] %vm3255, %v4375
    %4426 = vst.msk [vmem:[#allocation2 + $0x3c0] sm:$0xff] %vm3255, %v4380
    %4427 = vst.msk [vmem:[#allocation2 + $0x3c8] sm:$0xff] %vm3255, %v4385
    %4428 = vst.msk [vmem:[#allocation2 + $0x3d0] sm:$0xff] %vm3255, %v4390
    %4429 = vst.msk [vmem:[#allocation2 + $0x3d8] sm:$0xff] %vm3255, %v4395
    %4430 = vst.msk [vmem:[#allocation2 + $0x3e0] sm:$0xff] %vm3255, %v4400
    %4431 = vst.msk [vmem:[#allocation2 + $0x3e8] sm:$0xff] %vm3255, %v4405
    %4432 = vst.msk [vmem:[#allocation2 + $0x3f0] sm:$0xff] %vm3255, %v4410
    %4433 = vst.msk [vmem:[#allocation2 + $0x3f8] sm:$0xff] %vm3255, %v4415
    %s4434 = scalar_lea.vmem %s4, 256
    %v4435 = vld [vmem:[%s4434] sm:$0xff]
    %v4436 = vld [vmem:[%s4434 + $0x8] sm:$0xff]
    %v4437 = vld [vmem:[%s4434 + $0x10] sm:$0xff]
    %v4438 = vld [vmem:[%s4434 + $0x18] sm:$0xff]
    %4439 = vmatprep.subr.mxu0 0.0
    %4440 = vmatpush1.msra.mxu0 %v4435
    %4441 = vmatprep.subr.mxu0 0.0
    %4442 = vmatpush1.msra.mxu0 %v4436
    %4443 = vmatprep.subr.mxu0 0.0
    %4444 = vmatpush1.msra.mxu0 %v4437
    %4445 = vmatprep.subr.mxu0 0.0
    %4446 = vmatpush1.msra.mxu0 %v4438
    %4447 = vmatprep.subr.mxu0 0.0
    %4448 = vmatpush1.msra.mxu0 0.0
    %4449 = vmatprep.subr.mxu0 0.0
    %4450 = vmatpush1.msra.mxu0 0.0
    %4451 = vmatprep.subr.mxu0 0.0
    %4452 = vmatpush1.msra.mxu0 0.0
    %4453 = vmatprep.subr.mxu0 0.0
    %4454 = vmatpush1.msra.mxu0 0.0
    %4455 = vmatprep.subr.mxu0 0.0
    %4456 = vmatpush1.msra.mxu0 0.0
    %4457 = vmatprep.subr.mxu0 0.0
    %4458 = vmatpush1.msra.mxu0 0.0
    %4459 = vmatprep.subr.mxu0 0.0
    %4460 = vmatpush1.msra.mxu0 0.0
    %4461 = vmatprep.subr.mxu0 0.0
    %4462 = vmatpush1.msra.mxu0 0.0
    %4463 = vmatprep.subr.mxu0 0.0
    %4464 = vmatpush1.msra.mxu0 0.0
    %4465 = vmatprep.subr.mxu0 0.0
    %4466 = vmatpush1.msra.mxu0 0.0
    %4467 = vmatprep.subr.mxu0 0.0
    %4468 = vmatpush1.msra.mxu0 0.0
    %4469 = vmatprep.subr.mxu0 0.0
    %4470 = vmatpush1.msra.mxu0 0.0
    %4471 = vmatprep.subr.mxu0 0.0
    %4472 = vmatpush1.msra.mxu0 0.0
    %4473 = vmatprep.subr.mxu0 0.0
    %4474 = vmatpush1.msra.mxu0 0.0
    %4475 = vmatprep.subr.mxu0 0.0
    %4476 = vmatpush1.msra.mxu0 0.0
    %4477 = vmatprep.subr.mxu0 0.0
    %4478 = vmatpush1.msra.mxu0 0.0
    %4479 = vmatprep.subr.mxu0 0.0
    %4480 = vmatpush1.msra.mxu0 0.0
    %4481 = vmatprep.subr.mxu0 0.0
    %4482 = vmatpush1.msra.mxu0 0.0
    %4483 = vmatprep.subr.mxu0 0.0
    %4484 = vmatpush1.msra.mxu0 0.0
    %4485 = vmatprep.subr.mxu0 0.0
    %4486 = vmatpush1.msra.mxu0 0.0
    %4487 = vmatprep.subr.mxu0 0.0
    %4488 = vmatpush1.msra.mxu0 0.0
    %4489 = vmatprep.subr.mxu0 0.0
    %4490 = vmatpush1.msra.mxu0 0.0
    %4491 = vmatprep.subr.mxu0 0.0
    %4492 = vmatpush1.msra.mxu0 0.0
    %4493 = vmatprep.subr.mxu0 0.0
    %4494 = vmatpush1.msra.mxu0 0.0
    %4495 = vmatprep.subr.mxu0 0.0
    %4496 = vmatpush1.msra.mxu0 0.0
    %4497 = vmatprep.subr.mxu0 0.0
    %4498 = vmatpush1.msra.mxu0 0.0
    %4499 = vmatprep.subr.mxu0 0.0
    %4500 = vmatpush1.msra.mxu0 0.0
    %4501 = vmatprep.subr.mxu0 0.0
    %4502 = vmatpush1.msra.mxu0 0.0
    %4503 = vmatprep.mubr.f32.mxu0 0.0
    %4504 = vmatmul.mubr.f32.gmra.mrb[0].mxu0 %v3063
    %v4505 = vpop.f32.mrb[0].mxu0
    %v4506 = vadd.f32 0.0, %v4505
    %v4507 = vpop.f32.mrb[0].mxu0
    %4508 = vmatprep.mubr.f32.mxu0 0.0
    %4509 = vmatmul.mubr.f32.gmra.mrb[0].mxu0 %v3066
    %v4510 = vpop.f32.mrb[0].mxu0
    %v4511 = vadd.f32 0.0, %v4510
    %v4512 = vpop.f32.mrb[0].mxu0
    %4513 = vmatprep.mubr.f32.mxu0 0.0
    %4514 = vmatmul.mubr.f32.gmra.mrb[0].mxu0 %v3069
    %v4515 = vpop.f32.mrb[0].mxu0
    %v4516 = vadd.f32 0.0, %v4515
    %v4517 = vpop.f32.mrb[0].mxu0
    %4518 = vmatprep.mubr.f32.mxu0 0.0
    %4519 = vmatmul.mubr.f32.gmra.mrb[0].mxu0 %v3072
    %v4520 = vpop.f32.mrb[0].mxu0
    %v4521 = vadd.f32 0.0, %v4520
    %v4522 = vpop.f32.mrb[0].mxu0
    %4523 = vmatprep.mubr.f32.mxu0 0.0
    %4524 = vmatmul.mubr.f32.gmra.mrb[0].mxu0 %v3075
    %v4525 = vpop.f32.mrb[0].mxu0
    %v4526 = vadd.f32 0.0, %v4525
    %v4527 = vpop.f32.mrb[0].mxu0
    %4528 = vmatprep.mubr.f32.mxu0 0.0
    %4529 = vmatmul.mubr.f32.gmra.mrb[0].mxu0 %v3078
    %v4530 = vpop.f32.mrb[0].mxu0
    %v4531 = vadd.f32 0.0, %v4530
    %v4532 = vpop.f32.mrb[0].mxu0
    %4533 = vmatprep.mubr.f32.mxu0 0.0
    %4534 = vmatmul.mubr.f32.gmra.mrb[0].mxu0 %v3081
    %v4535 = vpop.f32.mrb[0].mxu0
    %v4536 = vadd.f32 0.0, %v4535
    %v4537 = vpop.f32.mrb[0].mxu0
    %4538 = vmatprep.mubr.f32.mxu0 0.0
    %4539 = vmatmul.mubr.f32.gmra.mrb[0].mxu0 %v3084
    %v4540 = vpop.f32.mrb[0].mxu0
    %v4541 = vadd.f32 0.0, %v4540
    %v4542 = vpop.f32.mrb[0].mxu0
    %4543 = vmatprep.mubr.f32.mxu0 0.0
    %4544 = vmatmul.mubr.f32.gmra.mrb[0].mxu0 %v3087
    %v4545 = vpop.f32.mrb[0].mxu0
    %v4546 = vadd.f32 0.0, %v4545
    %v4547 = vpop.f32.mrb[0].mxu0
    %4548 = vmatprep.mubr.f32.mxu0 0.0
    %4549 = vmatmul.mubr.f32.gmra.mrb[0].mxu0 %v3090
    %v4550 = vpop.f32.mrb[0].mxu0
    %v4551 = vadd.f32 0.0, %v4550
    %v4552 = vpop.f32.mrb[0].mxu0
    %4553 = vmatprep.mubr.f32.mxu0 0.0
    %4554 = vmatmul.mubr.f32.gmra.mrb[0].mxu0 %v3093
    %v4555 = vpop.f32.mrb[0].mxu0
    %v4556 = vadd.f32 0.0, %v4555
    %v4557 = vpop.f32.mrb[0].mxu0
    %4558 = vmatprep.mubr.f32.mxu0 0.0
    %4559 = vmatmul.mubr.f32.gmra.mrb[0].mxu0 %v3096
    %v4560 = vpop.f32.mrb[0].mxu0
    %v4561 = vadd.f32 0.0, %v4560
    %v4562 = vpop.f32.mrb[0].mxu0
    %4563 = vmatprep.mubr.f32.mxu0 0.0
    %4564 = vmatmul.mubr.f32.gmra.mrb[0].mxu0 %v3099
    %v4565 = vpop.f32.mrb[0].mxu0
    %v4566 = vadd.f32 0.0, %v4565
    %v4567 = vpop.f32.mrb[0].mxu0
    %4568 = vmatprep.mubr.f32.mxu0 0.0
    %4569 = vmatmul.mubr.f32.gmra.mrb[0].mxu0 %v3102
    %v4570 = vpop.f32.mrb[0].mxu0
    %v4571 = vadd.f32 0.0, %v4570
    %v4572 = vpop.f32.mrb[0].mxu0
    %4573 = vmatprep.mubr.f32.mxu0 0.0
    %4574 = vmatmul.mubr.f32.gmra.mrb[0].mxu0 %v3105
    %v4575 = vpop.f32.mrb[0].mxu0
    %v4576 = vadd.f32 0.0, %v4575
    %v4577 = vpop.f32.mrb[0].mxu0
    %4578 = vmatprep.mubr.f32.mxu0 0.0
    %4579 = vmatmul.mubr.f32.gmra.mrb[0].mxu0 %v3108
    %v4580 = vpop.f32.mrb[0].mxu0
    %v4581 = vadd.f32 0.0, %v4580
    %v4582 = vpop.f32.mrb[0].mxu0
    %4583 = vdwg.mxu0
    %4584 = vst.msk [vmem:[#allocation2 + $0x400] sm:$0xff] %vm3255, %v4506
    %4585 = vst.msk [vmem:[#allocation2 + $0x408] sm:$0xff] %vm3255, %v4511
    %4586 = vst.msk [vmem:[#allocation2 + $0x410] sm:$0xff] %vm3255, %v4516
    %4587 = vst.msk [vmem:[#allocation2 + $0x418] sm:$0xff] %vm3255, %v4521
    %4588 = vst.msk [vmem:[#allocation2 + $0x420] sm:$0xff] %vm3255, %v4526
    %4589 = vst.msk [vmem:[#allocation2 + $0x428] sm:$0xff] %vm3255, %v4531
    %4590 = vst.msk [vmem:[#allocation2 + $0x430] sm:$0xff] %vm3255, %v4536
    %4591 = vst.msk [vmem:[#allocation2 + $0x438] sm:$0xff] %vm3255, %v4541
    %4592 = vst.msk [vmem:[#allocation2 + $0x440] sm:$0xff] %vm3255, %v4546
    %4593 = vst.msk [vmem:[#allocation2 + $0x448] sm:$0xff] %vm3255, %v4551
    %4594 = vst.msk [vmem:[#allocation2 + $0x450] sm:$0xff] %vm3255, %v4556
    %4595 = vst.msk [vmem:[#allocation2 + $0x458] sm:$0xff] %vm3255, %v4561
    %4596 = vst.msk [vmem:[#allocation2 + $0x460] sm:$0xff] %vm3255, %v4566
    %4597 = vst.msk [vmem:[#allocation2 + $0x468] sm:$0xff] %vm3255, %v4571
    %4598 = vst.msk [vmem:[#allocation2 + $0x470] sm:$0xff] %vm3255, %v4576
    %4599 = vst.msk [vmem:[#allocation2 + $0x478] sm:$0xff] %vm3255, %v4581
    %s4600 = smul.u32 8, 64
    %s4601 = smul.u32 %s4600, 9
    %s4602 = sshll.u32 %s4601, 4
    %4603 = dma.done [#allocation5], %s4602
    %v4604 = vld [vmem:[#allocation3] sm:$0xff]
    %v4605 = vld [vmem:[#allocation3 + $0x8] sm:$0xff]
    %v4606 = vld [vmem:[#allocation3 + $0x10] sm:$0xff]
    %v4607 = vld [vmem:[#allocation3 + $0x18] sm:$0xff]
    %v4608 = vld [vmem:[#allocation3 + $0x20] sm:$0xff]
    %v4609 = vld [vmem:[#allocation3 + $0x28] sm:$0xff]
    %v4610 = vld [vmem:[#allocation3 + $0x30] sm:$0xff]
    %v4611 = vld [vmem:[#allocation3 + $0x38] sm:$0xff]
    %v4612 = vld [vmem:[#allocation3 + $0x40] sm:$0xff]
    %v4613 = vld [vmem:[#allocation3 + $0x48] sm:$0xff]
    %v4614 = vld [vmem:[#allocation3 + $0x50] sm:$0xff]
    %v4615 = vld [vmem:[#allocation3 + $0x58] sm:$0xff]
    %v4616 = vld [vmem:[#allocation3 + $0x60] sm:$0xff]
    %v4617 = vld [vmem:[#allocation3 + $0x68] sm:$0xff]
    %v4618 = vld [vmem:[#allocation3 + $0x70] sm:$0xff]
    %v4619 = vld [vmem:[#allocation3 + $0x78] sm:$0xff]
    %v4620 = vld [vmem:[#allocation3 + $0x80] sm:$0xff]
    %v4621 = vld [vmem:[#allocation3 + $0x88] sm:$0xff]
    %v4622 = vld [vmem:[#allocation3 + $0x90] sm:$0xff]
    %v4623 = vld [vmem:[#allocation3 + $0x98] sm:$0xff]
    %v4624 = vld [vmem:[#allocation3 + $0xa0] sm:$0xff]
    %v4625 = vld [vmem:[#allocation3 + $0xa8] sm:$0xff]
    %v4626 = vld [vmem:[#allocation3 + $0xb0] sm:$0xff]
    %v4627 = vld [vmem:[#allocation3 + $0xb8] sm:$0xff]
    %v4628 = vld [vmem:[#allocation3 + $0xc0] sm:$0xff]
    %v4629 = vld [vmem:[#allocation3 + $0xc8] sm:$0xff]
    %v4630 = vld [vmem:[#allocation3 + $0xd0] sm:$0xff]
    %v4631 = vld [vmem:[#allocation3 + $0xd8] sm:$0xff]
    %v4632 = vld [vmem:[#allocation3 + $0xe0] sm:$0xff]
    %v4633 = vld [vmem:[#allocation3 + $0xe8] sm:$0xff]
    %v4634 = vld [vmem:[#allocation3 + $0xf0] sm:$0xff]
    %v4635 = vld [vmem:[#allocation3 + $0xf8] sm:$0xff]
    %v4636 = vld [vmem:[#allocation3 + $0x100] sm:$0xff]
    %v4637 = vld [vmem:[#allocation3 + $0x108] sm:$0xff]
    %v4638 = vld [vmem:[#allocation3 + $0x110] sm:$0xff]
    %v4639 = vld [vmem:[#allocation3 + $0x118] sm:$0xff]
    %v4640 = vld [vmem:[#allocation3 + $0x120] sm:$0xff]
    %v4641 = vld [vmem:[#allocation3 + $0x128] sm:$0xff]
    %v4642 = vld [vmem:[#allocation3 + $0x130] sm:$0xff]
    %v4643 = vld [vmem:[#allocation3 + $0x138] sm:$0xff]
    %v4644 = vld [vmem:[#allocation3 + $0x140] sm:$0xff]
    %v4645 = vld [vmem:[#allocation3 + $0x148] sm:$0xff]
    %v4646 = vld [vmem:[#allocation3 + $0x150] sm:$0xff]
    %v4647 = vld [vmem:[#allocation3 + $0x158] sm:$0xff]
    %v4648 = vld [vmem:[#allocation3 + $0x160] sm:$0xff]
    %v4649 = vld [vmem:[#allocation3 + $0x168] sm:$0xff]
    %v4650 = vld [vmem:[#allocation3 + $0x170] sm:$0xff]
    %v4651 = vld [vmem:[#allocation3 + $0x178] sm:$0xff]
    %v4652 = vld [vmem:[#allocation3 + $0x180] sm:$0xff]
    %v4653 = vld [vmem:[#allocation3 + $0x188] sm:$0xff]
    %v4654 = vld [vmem:[#allocation3 + $0x190] sm:$0xff]
    %v4655 = vld [vmem:[#allocation3 + $0x198] sm:$0xff]
    %v4656 = vld [vmem:[#allocation3 + $0x1a0] sm:$0xff]
    %v4657 = vld [vmem:[#allocation3 + $0x1a8] sm:$0xff]
    %v4658 = vld [vmem:[#allocation3 + $0x1b0] sm:$0xff]
    %v4659 = vld [vmem:[#allocation3 + $0x1b8] sm:$0xff]
    %v4660 = vld [vmem:[#allocation3 + $0x1c0] sm:$0xff]
    %v4661 = vld [vmem:[#allocation3 + $0x1c8] sm:$0xff]
    %v4662 = vld [vmem:[#allocation3 + $0x1d0] sm:$0xff]
    %v4663 = vld [vmem:[#allocation3 + $0x1d8] sm:$0xff]
    %v4664 = vld [vmem:[#allocation3 + $0x1e0] sm:$0xff]
    %v4665 = vld [vmem:[#allocation3 + $0x1e8] sm:$0xff]
    %v4666 = vld [vmem:[#allocation3 + $0x1f0] sm:$0xff]
    %v4667 = vld [vmem:[#allocation3 + $0x1f8] sm:$0xff]
    %v4668 = vld [vmem:[#allocation3 + $0x200] sm:$0xff]
    %v4669 = vld [vmem:[#allocation3 + $0x208] sm:$0xff]
    %v4670 = vld [vmem:[#allocation3 + $0x210] sm:$0xff]
    %v4671 = vld [vmem:[#allocation3 + $0x218] sm:$0xff]
    %v4672 = vld [vmem:[#allocation3 + $0x220] sm:$0xff]
    %v4673 = vld [vmem:[#allocation3 + $0x228] sm:$0xff]
    %v4674 = vld [vmem:[#allocation3 + $0x230] sm:$0xff]
    %v4675 = vld [vmem:[#allocation3 + $0x238] sm:$0xff]
    %v4676 = vld [vmem:[#allocation3 + $0x240] sm:$0xff]
    %v4677 = vld [vmem:[#allocation3 + $0x248] sm:$0xff]
    %v4678 = vld [vmem:[#allocation3 + $0x250] sm:$0xff]
    %v4679 = vld [vmem:[#allocation3 + $0x258] sm:$0xff]
    %v4680 = vld [vmem:[#allocation3 + $0x260] sm:$0xff]
    %v4681 = vld [vmem:[#allocation3 + $0x268] sm:$0xff]
    %v4682 = vld [vmem:[#allocation3 + $0x270] sm:$0xff]
    %v4683 = vld [vmem:[#allocation3 + $0x278] sm:$0xff]
    %v4684 = vld [vmem:[#allocation3 + $0x280] sm:$0xff]
    %v4685 = vld [vmem:[#allocation3 + $0x288] sm:$0xff]
    %v4686 = vld [vmem:[#allocation3 + $0x290] sm:$0xff]
    %v4687 = vld [vmem:[#allocation3 + $0x298] sm:$0xff]
    %v4688 = vld [vmem:[#allocation3 + $0x2a0] sm:$0xff]
    %v4689 = vld [vmem:[#allocation3 + $0x2a8] sm:$0xff]
    %v4690 = vld [vmem:[#allocation3 + $0x2b0] sm:$0xff]
    %v4691 = vld [vmem:[#allocation3 + $0x2b8] sm:$0xff]
    %v4692 = vld [vmem:[#allocation3 + $0x2c0] sm:$0xff]
    %v4693 = vld [vmem:[#allocation3 + $0x2c8] sm:$0xff]
    %v4694 = vld [vmem:[#allocation3 + $0x2d0] sm:$0xff]
    %v4695 = vld [vmem:[#allocation3 + $0x2d8] sm:$0xff]
    %v4696 = vld [vmem:[#allocation3 + $0x2e0] sm:$0xff]
    %v4697 = vld [vmem:[#allocation3 + $0x2e8] sm:$0xff]
    %v4698 = vld [vmem:[#allocation3 + $0x2f0] sm:$0xff]
    %v4699 = vld [vmem:[#allocation3 + $0x2f8] sm:$0xff]
    %v4700 = vld [vmem:[#allocation3 + $0x300] sm:$0xff]
    %v4701 = vld [vmem:[#allocation3 + $0x308] sm:$0xff]
    %v4702 = vld [vmem:[#allocation3 + $0x310] sm:$0xff]
    %v4703 = vld [vmem:[#allocation3 + $0x318] sm:$0xff]
    %v4704 = vld [vmem:[#allocation3 + $0x320] sm:$0xff]
    %v4705 = vld [vmem:[#allocation3 + $0x328] sm:$0xff]
    %v4706 = vld [vmem:[#allocation3 + $0x330] sm:$0xff]
    %v4707 = vld [vmem:[#allocation3 + $0x338] sm:$0xff]
    %v4708 = vld [vmem:[#allocation3 + $0x340] sm:$0xff]
    %v4709 = vld [vmem:[#allocation3 + $0x348] sm:$0xff]
    %v4710 = vld [vmem:[#allocation3 + $0x350] sm:$0xff]
    %v4711 = vld [vmem:[#allocation3 + $0x358] sm:$0xff]
    %v4712 = vld [vmem:[#allocation3 + $0x360] sm:$0xff]
    %v4713 = vld [vmem:[#allocation3 + $0x368] sm:$0xff]
    %v4714 = vld [vmem:[#allocation3 + $0x370] sm:$0xff]
    %v4715 = vld [vmem:[#allocation3 + $0x378] sm:$0xff]
    %v4716 = vld [vmem:[#allocation3 + $0x380] sm:$0xff]
    %v4717 = vld [vmem:[#allocation3 + $0x388] sm:$0xff]
    %v4718 = vld [vmem:[#allocation3 + $0x390] sm:$0xff]
    %v4719 = vld [vmem:[#allocation3 + $0x398] sm:$0xff]
    %v4720 = vld [vmem:[#allocation3 + $0x3a0] sm:$0xff]
    %v4721 = vld [vmem:[#allocation3 + $0x3a8] sm:$0xff]
    %v4722 = vld [vmem:[#allocation3 + $0x3b0] sm:$0xff]
    %v4723 = vld [vmem:[#allocation3 + $0x3b8] sm:$0xff]
    %v4724 = vld [vmem:[#allocation3 + $0x3c0] sm:$0xff]
    %v4725 = vld [vmem:[#allocation3 + $0x3c8] sm:$0xff]
    %v4726 = vld [vmem:[#allocation3 + $0x3d0] sm:$0xff]
    %v4727 = vld [vmem:[#allocation3 + $0x3d8] sm:$0xff]
    %v4728 = vld [vmem:[#allocation3 + $0x3e0] sm:$0xff]
    %v4729 = vld [vmem:[#allocation3 + $0x3e8] sm:$0xff]
    %v4730 = vld [vmem:[#allocation3 + $0x3f0] sm:$0xff]
    %v4731 = vld [vmem:[#allocation3 + $0x3f8] sm:$0xff]
    %v4732 = vld [vmem:[#allocation3 + $0x400] sm:$0xff]
    %v4733 = vld [vmem:[#allocation3 + $0x408] sm:$0xff]
    %v4734 = vld [vmem:[#allocation3 + $0x410] sm:$0xff]
    %v4735 = vld [vmem:[#allocation3 + $0x418] sm:$0xff]
    %v4736 = vld [vmem:[#allocation3 + $0x420] sm:$0xff]
    %v4737 = vld [vmem:[#allocation3 + $0x428] sm:$0xff]
    %v4738 = vld [vmem:[#allocation3 + $0x430] sm:$0xff]
    %v4739 = vld [vmem:[#allocation3 + $0x438] sm:$0xff]
    %v4740 = vld [vmem:[#allocation3 + $0x440] sm:$0xff]
    %v4741 = vld [vmem:[#allocation3 + $0x448] sm:$0xff]
    %v4742 = vld [vmem:[#allocation3 + $0x450] sm:$0xff]
    %v4743 = vld [vmem:[#allocation3 + $0x458] sm:$0xff]
    %v4744 = vld [vmem:[#allocation3 + $0x460] sm:$0xff]
    %v4745 = vld [vmem:[#allocation3 + $0x468] sm:$0xff]
    %v4746 = vld [vmem:[#allocation3 + $0x470] sm:$0xff]
    %v4747 = vld [vmem:[#allocation3 + $0x478] sm:$0xff]
    %v4748 = vld [vmem:[#allocation3 + $0x480] sm:$0xff]
    %v4749 = vld [vmem:[#allocation3 + $0x488] sm:$0xff]
    %v4750 = vld [vmem:[#allocation3 + $0x490] sm:$0xff]
    %v4751 = vld [vmem:[#allocation3 + $0x498] sm:$0xff]
    %v4752 = vld [vmem:[#allocation3 + $0x4a0] sm:$0xff]
    %v4753 = vld [vmem:[#allocation3 + $0x4a8] sm:$0xff]
    %v4754 = vld [vmem:[#allocation3 + $0x4b0] sm:$0xff]
    %v4755 = vld [vmem:[#allocation3 + $0x4b8] sm:$0xff]
    %v4756 = vld [vmem:[#allocation3 + $0x4c0] sm:$0xff]
    %v4757 = vld [vmem:[#allocation3 + $0x4c8] sm:$0xff]
    %v4758 = vld [vmem:[#allocation3 + $0x4d0] sm:$0xff]
    %v4759 = vld [vmem:[#allocation3 + $0x4d8] sm:$0xff]
    %v4760 = vld [vmem:[#allocation3 + $0x4e0] sm:$0xff]
    %v4761 = vld [vmem:[#allocation3 + $0x4e8] sm:$0xff]
    %v4762 = vld [vmem:[#allocation3 + $0x4f0] sm:$0xff]
    %v4763 = vld [vmem:[#allocation3 + $0x4f8] sm:$0xff]
    %v4764 = vld [vmem:[#allocation3 + $0x500] sm:$0xff]
    %v4765 = vld [vmem:[#allocation3 + $0x508] sm:$0xff]
    %v4766 = vld [vmem:[#allocation3 + $0x510] sm:$0xff]
    %v4767 = vld [vmem:[#allocation3 + $0x518] sm:$0xff]
    %v4768 = vld [vmem:[#allocation3 + $0x520] sm:$0xff]
    %v4769 = vld [vmem:[#allocation3 + $0x528] sm:$0xff]
    %v4770 = vld [vmem:[#allocation3 + $0x530] sm:$0xff]
    %v4771 = vld [vmem:[#allocation3 + $0x538] sm:$0xff]
    %v4772 = vld [vmem:[#allocation3 + $0x540] sm:$0xff]
    %v4773 = vld [vmem:[#allocation3 + $0x548] sm:$0xff]
    %v4774 = vld [vmem:[#allocation3 + $0x550] sm:$0xff]
    %v4775 = vld [vmem:[#allocation3 + $0x558] sm:$0xff]
    %v4776 = vld [vmem:[#allocation3 + $0x560] sm:$0xff]
    %v4777 = vld [vmem:[#allocation3 + $0x568] sm:$0xff]
    %v4778 = vld [vmem:[#allocation3 + $0x570] sm:$0xff]
    %v4779 = vld [vmem:[#allocation3 + $0x578] sm:$0xff]
    %v4780 = vld [vmem:[#allocation3 + $0x580] sm:$0xff]
    %v4781 = vld [vmem:[#allocation3 + $0x588] sm:$0xff]
    %v4782 = vld [vmem:[#allocation3 + $0x590] sm:$0xff]
    %v4783 = vld [vmem:[#allocation3 + $0x598] sm:$0xff]
    %v4784 = vld [vmem:[#allocation3 + $0x5a0] sm:$0xff]
    %v4785 = vld [vmem:[#allocation3 + $0x5a8] sm:$0xff]
    %v4786 = vld [vmem:[#allocation3 + $0x5b0] sm:$0xff]
    %v4787 = vld [vmem:[#allocation3 + $0x5b8] sm:$0xff]
    %v4788 = vld [vmem:[#allocation3 + $0x5c0] sm:$0xff]
    %v4789 = vld [vmem:[#allocation3 + $0x5c8] sm:$0xff]
    %v4790 = vld [vmem:[#allocation3 + $0x5d0] sm:$0xff]
    %v4791 = vld [vmem:[#allocation3 + $0x5d8] sm:$0xff]
    %v4792 = vld [vmem:[#allocation3 + $0x5e0] sm:$0xff]
    %v4793 = vld [vmem:[#allocation3 + $0x5e8] sm:$0xff]
    %v4794 = vld [vmem:[#allocation3 + $0x5f0] sm:$0xff]
    %v4795 = vld [vmem:[#allocation3 + $0x5f8] sm:$0xff]
    %v4796 = vld [vmem:[#allocation3 + $0x600] sm:$0xff]
    %v4797 = vld [vmem:[#allocation3 + $0x608] sm:$0xff]
    %v4798 = vld [vmem:[#allocation3 + $0x610] sm:$0xff]
    %v4799 = vld [vmem:[#allocation3 + $0x618] sm:$0xff]
    %v4800 = vld [vmem:[#allocation3 + $0x620] sm:$0xff]
    %v4801 = vld [vmem:[#allocation3 + $0x628] sm:$0xff]
    %v4802 = vld [vmem:[#allocation3 + $0x630] sm:$0xff]
    %v4803 = vld [vmem:[#allocation3 + $0x638] sm:$0xff]
    %v4804 = vld [vmem:[#allocation3 + $0x640] sm:$0xff]
    %v4805 = vld [vmem:[#allocation3 + $0x648] sm:$0xff]
    %v4806 = vld [vmem:[#allocation3 + $0x650] sm:$0xff]
    %v4807 = vld [vmem:[#allocation3 + $0x658] sm:$0xff]
    %v4808 = vld [vmem:[#allocation3 + $0x660] sm:$0xff]
    %v4809 = vld [vmem:[#allocation3 + $0x668] sm:$0xff]
    %v4810 = vld [vmem:[#allocation3 + $0x670] sm:$0xff]
    %v4811 = vld [vmem:[#allocation3 + $0x678] sm:$0xff]
    %v4812 = vld [vmem:[#allocation3 + $0x680] sm:$0xff]
    %v4813 = vld [vmem:[#allocation3 + $0x688] sm:$0xff]
    %v4814 = vld [vmem:[#allocation3 + $0x690] sm:$0xff]
    %v4815 = vld [vmem:[#allocation3 + $0x698] sm:$0xff]
    %v4816 = vld [vmem:[#allocation3 + $0x6a0] sm:$0xff]
    %v4817 = vld [vmem:[#allocation3 + $0x6a8] sm:$0xff]
    %v4818 = vld [vmem:[#allocation3 + $0x6b0] sm:$0xff]
    %v4819 = vld [vmem:[#allocation3 + $0x6b8] sm:$0xff]
    %v4820 = vld [vmem:[#allocation3 + $0x6c0] sm:$0xff]
    %v4821 = vld [vmem:[#allocation3 + $0x6c8] sm:$0xff]
    %v4822 = vld [vmem:[#allocation3 + $0x6d0] sm:$0xff]
    %v4823 = vld [vmem:[#allocation3 + $0x6d8] sm:$0xff]
    %v4824 = vld [vmem:[#allocation3 + $0x6e0] sm:$0xff]
    %v4825 = vld [vmem:[#allocation3 + $0x6e8] sm:$0xff]
    %v4826 = vld [vmem:[#allocation3 + $0x6f0] sm:$0xff]
    %v4827 = vld [vmem:[#allocation3 + $0x6f8] sm:$0xff]
    %v4828 = vld [vmem:[#allocation3 + $0x700] sm:$0xff]
    %v4829 = vld [vmem:[#allocation3 + $0x708] sm:$0xff]
    %v4830 = vld [vmem:[#allocation3 + $0x710] sm:$0xff]
    %v4831 = vld [vmem:[#allocation3 + $0x718] sm:$0xff]
    %v4832 = vld [vmem:[#allocation3 + $0x720] sm:$0xff]
    %v4833 = vld [vmem:[#allocation3 + $0x728] sm:$0xff]
    %v4834 = vld [vmem:[#allocation3 + $0x730] sm:$0xff]
    %v4835 = vld [vmem:[#allocation3 + $0x738] sm:$0xff]
    %v4836 = vld [vmem:[#allocation3 + $0x740] sm:$0xff]
    %v4837 = vld [vmem:[#allocation3 + $0x748] sm:$0xff]
    %v4838 = vld [vmem:[#allocation3 + $0x750] sm:$0xff]
    %v4839 = vld [vmem:[#allocation3 + $0x758] sm:$0xff]
    %v4840 = vld [vmem:[#allocation3 + $0x760] sm:$0xff]
    %v4841 = vld [vmem:[#allocation3 + $0x768] sm:$0xff]
    %v4842 = vld [vmem:[#allocation3 + $0x770] sm:$0xff]
    %v4843 = vld [vmem:[#allocation3 + $0x778] sm:$0xff]
    %v4844 = vld [vmem:[#allocation3 + $0x780] sm:$0xff]
    %v4845 = vld [vmem:[#allocation3 + $0x788] sm:$0xff]
    %v4846 = vld [vmem:[#allocation3 + $0x790] sm:$0xff]
    %v4847 = vld [vmem:[#allocation3 + $0x798] sm:$0xff]
    %v4848 = vld [vmem:[#allocation3 + $0x7a0] sm:$0xff]
    %v4849 = vld [vmem:[#allocation3 + $0x7a8] sm:$0xff]
    %v4850 = vld [vmem:[#allocation3 + $0x7b0] sm:$0xff]
    %v4851 = vld [vmem:[#allocation3 + $0x7b8] sm:$0xff]
    %v4852 = vld [vmem:[#allocation3 + $0x7c0] sm:$0xff]
    %v4853 = vld [vmem:[#allocation3 + $0x7c8] sm:$0xff]
    %v4854 = vld [vmem:[#allocation3 + $0x7d0] sm:$0xff]
    %v4855 = vld [vmem:[#allocation3 + $0x7d8] sm:$0xff]
    %v4856 = vld [vmem:[#allocation3 + $0x7e0] sm:$0xff]
    %v4857 = vld [vmem:[#allocation3 + $0x7e8] sm:$0xff]
    %v4858 = vld [vmem:[#allocation3 + $0x7f0] sm:$0xff]
    %v4859 = vld [vmem:[#allocation3 + $0x7f8] sm:$0xff]
    %v4860 = vld [vmem:[#allocation3 + $0x800] sm:$0xff]
    %v4861 = vld [vmem:[#allocation3 + $0x808] sm:$0xff]
    %v4862 = vld [vmem:[#allocation3 + $0x810] sm:$0xff]
    %v4863 = vld [vmem:[#allocation3 + $0x818] sm:$0xff]
    %v4864 = vld [vmem:[#allocation3 + $0x820] sm:$0xff]
    %v4865 = vld [vmem:[#allocation3 + $0x828] sm:$0xff]
    %v4866 = vld [vmem:[#allocation3 + $0x830] sm:$0xff]
    %v4867 = vld [vmem:[#allocation3 + $0x838] sm:$0xff]
    %v4868 = vld [vmem:[#allocation3 + $0x840] sm:$0xff]
    %v4869 = vld [vmem:[#allocation3 + $0x848] sm:$0xff]
    %v4870 = vld [vmem:[#allocation3 + $0x850] sm:$0xff]
    %v4871 = vld [vmem:[#allocation3 + $0x858] sm:$0xff]
    %v4872 = vld [vmem:[#allocation3 + $0x860] sm:$0xff]
    %v4873 = vld [vmem:[#allocation3 + $0x868] sm:$0xff]
    %v4874 = vld [vmem:[#allocation3 + $0x870] sm:$0xff]
    %v4875 = vld [vmem:[#allocation3 + $0x878] sm:$0xff]
    %v4876 = vld [vmem:[#allocation3 + $0x880] sm:$0xff]
    %v4877 = vld [vmem:[#allocation3 + $0x888] sm:$0xff]
    %v4878 = vld [vmem:[#allocation3 + $0x890] sm:$0xff]
    %v4879 = vld [vmem:[#allocation3 + $0x898] sm:$0xff]
    %v4880 = vld [vmem:[#allocation3 + $0x8a0] sm:$0xff]
    %v4881 = vld [vmem:[#allocation3 + $0x8a8] sm:$0xff]
    %v4882 = vld [vmem:[#allocation3 + $0x8b0] sm:$0xff]
    %v4883 = vld [vmem:[#allocation3 + $0x8b8] sm:$0xff]
    %v4884 = vld [vmem:[#allocation3 + $0x8c0] sm:$0xff]
    %v4885 = vld [vmem:[#allocation3 + $0x8c8] sm:$0xff]
    %v4886 = vld [vmem:[#allocation3 + $0x8d0] sm:$0xff]
    %v4887 = vld [vmem:[#allocation3 + $0x8d8] sm:$0xff]
    %v4888 = vld [vmem:[#allocation3 + $0x8e0] sm:$0xff]
    %v4889 = vld [vmem:[#allocation3 + $0x8e8] sm:$0xff]
    %v4890 = vld [vmem:[#allocation3 + $0x8f0] sm:$0xff]
    %v4891 = vld [vmem:[#allocation3 + $0x8f8] sm:$0xff]
    %v4892 = vld [vmem:[#allocation3 + $0x900] sm:$0xff]
    %v4893 = vld [vmem:[#allocation3 + $0x908] sm:$0xff]
    %v4894 = vld [vmem:[#allocation3 + $0x910] sm:$0xff]
    %v4895 = vld [vmem:[#allocation3 + $0x918] sm:$0xff]
    %v4896 = vld [vmem:[#allocation3 + $0x920] sm:$0xff]
    %v4897 = vld [vmem:[#allocation3 + $0x928] sm:$0xff]
    %v4898 = vld [vmem:[#allocation3 + $0x930] sm:$0xff]
    %v4899 = vld [vmem:[#allocation3 + $0x938] sm:$0xff]
    %v4900 = vld [vmem:[#allocation3 + $0x940] sm:$0xff]
    %v4901 = vld [vmem:[#allocation3 + $0x948] sm:$0xff]
    %v4902 = vld [vmem:[#allocation3 + $0x950] sm:$0xff]
    %v4903 = vld [vmem:[#allocation3 + $0x958] sm:$0xff]
    %v4904 = vld [vmem:[#allocation3 + $0x960] sm:$0xff]
    %v4905 = vld [vmem:[#allocation3 + $0x968] sm:$0xff]
    %v4906 = vld [vmem:[#allocation3 + $0x970] sm:$0xff]
    %v4907 = vld [vmem:[#allocation3 + $0x978] sm:$0xff]
    %v4908 = vld [vmem:[#allocation3 + $0x980] sm:$0xff]
    %v4909 = vld [vmem:[#allocation3 + $0x988] sm:$0xff]
    %v4910 = vld [vmem:[#allocation3 + $0x990] sm:$0xff]
    %v4911 = vld [vmem:[#allocation3 + $0x998] sm:$0xff]
    %v4912 = vld [vmem:[#allocation3 + $0x9a0] sm:$0xff]
    %v4913 = vld [vmem:[#allocation3 + $0x9a8] sm:$0xff]
    %v4914 = vld [vmem:[#allocation3 + $0x9b0] sm:$0xff]
    %v4915 = vld [vmem:[#allocation3 + $0x9b8] sm:$0xff]
    %v4916 = vld [vmem:[#allocation3 + $0x9c0] sm:$0xff]
    %v4917 = vld [vmem:[#allocation3 + $0x9c8] sm:$0xff]
    %v4918 = vld [vmem:[#allocation3 + $0x9d0] sm:$0xff]
    %v4919 = vld [vmem:[#allocation3 + $0x9d8] sm:$0xff]
    %v4920 = vld [vmem:[#allocation3 + $0x9e0] sm:$0xff]
    %v4921 = vld [vmem:[#allocation3 + $0x9e8] sm:$0xff]
    %v4922 = vld [vmem:[#allocation3 + $0x9f0] sm:$0xff]
    %v4923 = vld [vmem:[#allocation3 + $0x9f8] sm:$0xff]
    %v4924 = vld [vmem:[#allocation3 + $0xa00] sm:$0xff]
    %v4925 = vld [vmem:[#allocation3 + $0xa08] sm:$0xff]
    %v4926 = vld [vmem:[#allocation3 + $0xa10] sm:$0xff]
    %v4927 = vld [vmem:[#allocation3 + $0xa18] sm:$0xff]
    %v4928 = vld [vmem:[#allocation3 + $0xa20] sm:$0xff]
    %v4929 = vld [vmem:[#allocation3 + $0xa28] sm:$0xff]
    %v4930 = vld [vmem:[#allocation3 + $0xa30] sm:$0xff]
    %v4931 = vld [vmem:[#allocation3 + $0xa38] sm:$0xff]
    %v4932 = vld [vmem:[#allocation3 + $0xa40] sm:$0xff]
    %v4933 = vld [vmem:[#allocation3 + $0xa48] sm:$0xff]
    %v4934 = vld [vmem:[#allocation3 + $0xa50] sm:$0xff]
    %v4935 = vld [vmem:[#allocation3 + $0xa58] sm:$0xff]
    %v4936 = vld [vmem:[#allocation3 + $0xa60] sm:$0xff]
    %v4937 = vld [vmem:[#allocation3 + $0xa68] sm:$0xff]
    %v4938 = vld [vmem:[#allocation3 + $0xa70] sm:$0xff]
    %v4939 = vld [vmem:[#allocation3 + $0xa78] sm:$0xff]
    %v4940 = vld [vmem:[#allocation3 + $0xa80] sm:$0xff]
    %v4941 = vld [vmem:[#allocation3 + $0xa88] sm:$0xff]
    %v4942 = vld [vmem:[#allocation3 + $0xa90] sm:$0xff]
    %v4943 = vld [vmem:[#allocation3 + $0xa98] sm:$0xff]
    %v4944 = vld [vmem:[#allocation3 + $0xaa0] sm:$0xff]
    %v4945 = vld [vmem:[#allocation3 + $0xaa8] sm:$0xff]
    %v4946 = vld [vmem:[#allocation3 + $0xab0] sm:$0xff]
    %v4947 = vld [vmem:[#allocation3 + $0xab8] sm:$0xff]
    %v4948 = vld [vmem:[#allocation3 + $0xac0] sm:$0xff]
    %v4949 = vld [vmem:[#allocation3 + $0xac8] sm:$0xff]
    %v4950 = vld [vmem:[#allocation3 + $0xad0] sm:$0xff]
    %v4951 = vld [vmem:[#allocation3 + $0xad8] sm:$0xff]
    %v4952 = vld [vmem:[#allocation3 + $0xae0] sm:$0xff]
    %v4953 = vld [vmem:[#allocation3 + $0xae8] sm:$0xff]
    %v4954 = vld [vmem:[#allocation3 + $0xaf0] sm:$0xff]
    %v4955 = vld [vmem:[#allocation3 + $0xaf8] sm:$0xff]
    %v4956 = vld [vmem:[#allocation3 + $0xb00] sm:$0xff]
    %v4957 = vld [vmem:[#allocation3 + $0xb08] sm:$0xff]
    %v4958 = vld [vmem:[#allocation3 + $0xb10] sm:$0xff]
    %v4959 = vld [vmem:[#allocation3 + $0xb18] sm:$0xff]
    %v4960 = vld [vmem:[#allocation3 + $0xb20] sm:$0xff]
    %v4961 = vld [vmem:[#allocation3 + $0xb28] sm:$0xff]
    %v4962 = vld [vmem:[#allocation3 + $0xb30] sm:$0xff]
    %v4963 = vld [vmem:[#allocation3 + $0xb38] sm:$0xff]
    %v4964 = vld [vmem:[#allocation3 + $0xb40] sm:$0xff]
    %v4965 = vld [vmem:[#allocation3 + $0xb48] sm:$0xff]
    %v4966 = vld [vmem:[#allocation3 + $0xb50] sm:$0xff]
    %v4967 = vld [vmem:[#allocation3 + $0xb58] sm:$0xff]
    %v4968 = vld [vmem:[#allocation3 + $0xb60] sm:$0xff]
    %v4969 = vld [vmem:[#allocation3 + $0xb68] sm:$0xff]
    %v4970 = vld [vmem:[#allocation3 + $0xb70] sm:$0xff]
    %v4971 = vld [vmem:[#allocation3 + $0xb78] sm:$0xff]
    %v4972 = vld [vmem:[#allocation3 + $0xb80] sm:$0xff]
    %v4973 = vld [vmem:[#allocation3 + $0xb88] sm:$0xff]
    %v4974 = vld [vmem:[#allocation3 + $0xb90] sm:$0xff]
    %v4975 = vld [vmem:[#allocation3 + $0xb98] sm:$0xff]
    %v4976 = vld [vmem:[#allocation3 + $0xba0] sm:$0xff]
    %v4977 = vld [vmem:[#allocation3 + $0xba8] sm:$0xff]
    %v4978 = vld [vmem:[#allocation3 + $0xbb0] sm:$0xff]
    %v4979 = vld [vmem:[#allocation3 + $0xbb8] sm:$0xff]
    %v4980 = vld [vmem:[#allocation3 + $0xbc0] sm:$0xff]
    %v4981 = vld [vmem:[#allocation3 + $0xbc8] sm:$0xff]
    %v4982 = vld [vmem:[#allocation3 + $0xbd0] sm:$0xff]
    %v4983 = vld [vmem:[#allocation3 + $0xbd8] sm:$0xff]
    %v4984 = vld [vmem:[#allocation3 + $0xbe0] sm:$0xff]
    %v4985 = vld [vmem:[#allocation3 + $0xbe8] sm:$0xff]
    %v4986 = vld [vmem:[#allocation3 + $0xbf0] sm:$0xff]
    %v4987 = vld [vmem:[#allocation3 + $0xbf8] sm:$0xff]
    %v4988 = vld [vmem:[#allocation3 + $0xc00] sm:$0xff]
    %v4989 = vld [vmem:[#allocation3 + $0xc08] sm:$0xff]
    %v4990 = vld [vmem:[#allocation3 + $0xc10] sm:$0xff]
    %v4991 = vld [vmem:[#allocation3 + $0xc18] sm:$0xff]
    %v4992 = vld [vmem:[#allocation3 + $0xc20] sm:$0xff]
    %v4993 = vld [vmem:[#allocation3 + $0xc28] sm:$0xff]
    %v4994 = vld [vmem:[#allocation3 + $0xc30] sm:$0xff]
    %v4995 = vld [vmem:[#allocation3 + $0xc38] sm:$0xff]
    %v4996 = vld [vmem:[#allocation3 + $0xc40] sm:$0xff]
    %v4997 = vld [vmem:[#allocation3 + $0xc48] sm:$0xff]
    %v4998 = vld [vmem:[#allocation3 + $0xc50] sm:$0xff]
    %v4999 = vld [vmem:[#allocation3 + $0xc58] sm:$0xff]
    %v5000 = vld [vmem:[#allocation3 + $0xc60] sm:$0xff]
    %v5001 = vld [vmem:[#allocation3 + $0xc68] sm:$0xff]
    %v5002 = vld [vmem:[#allocation3 + $0xc70] sm:$0xff]
    %v5003 = vld [vmem:[#allocation3 + $0xc78] sm:$0xff]
    %v5004 = vld [vmem:[#allocation3 + $0xc80] sm:$0xff]
    %v5005 = vld [vmem:[#allocation3 + $0xc88] sm:$0xff]
    %v5006 = vld [vmem:[#allocation3 + $0xc90] sm:$0xff]
    %v5007 = vld [vmem:[#allocation3 + $0xc98] sm:$0xff]
    %v5008 = vld [vmem:[#allocation3 + $0xca0] sm:$0xff]
    %v5009 = vld [vmem:[#allocation3 + $0xca8] sm:$0xff]
    %v5010 = vld [vmem:[#allocation3 + $0xcb0] sm:$0xff]
    %v5011 = vld [vmem:[#allocation3 + $0xcb8] sm:$0xff]
    %v5012 = vld [vmem:[#allocation3 + $0xcc0] sm:$0xff]
    %v5013 = vld [vmem:[#allocation3 + $0xcc8] sm:$0xff]
    %v5014 = vld [vmem:[#allocation3 + $0xcd0] sm:$0xff]
    %v5015 = vld [vmem:[#allocation3 + $0xcd8] sm:$0xff]
    %v5016 = vld [vmem:[#allocation3 + $0xce0] sm:$0xff]
    %v5017 = vld [vmem:[#allocation3 + $0xce8] sm:$0xff]
    %v5018 = vld [vmem:[#allocation3 + $0xcf0] sm:$0xff]
    %v5019 = vld [vmem:[#allocation3 + $0xcf8] sm:$0xff]
    %v5020 = vld [vmem:[#allocation3 + $0xd00] sm:$0xff]
    %v5021 = vld [vmem:[#allocation3 + $0xd08] sm:$0xff]
    %v5022 = vld [vmem:[#allocation3 + $0xd10] sm:$0xff]
    %v5023 = vld [vmem:[#allocation3 + $0xd18] sm:$0xff]
    %v5024 = vld [vmem:[#allocation3 + $0xd20] sm:$0xff]
    %v5025 = vld [vmem:[#allocation3 + $0xd28] sm:$0xff]
    %v5026 = vld [vmem:[#allocation3 + $0xd30] sm:$0xff]
    %v5027 = vld [vmem:[#allocation3 + $0xd38] sm:$0xff]
    %v5028 = vld [vmem:[#allocation3 + $0xd40] sm:$0xff]
    %v5029 = vld [vmem:[#allocation3 + $0xd48] sm:$0xff]
    %v5030 = vld [vmem:[#allocation3 + $0xd50] sm:$0xff]
    %v5031 = vld [vmem:[#allocation3 + $0xd58] sm:$0xff]
    %v5032 = vld [vmem:[#allocation3 + $0xd60] sm:$0xff]
    %v5033 = vld [vmem:[#allocation3 + $0xd68] sm:$0xff]
    %v5034 = vld [vmem:[#allocation3 + $0xd70] sm:$0xff]
    %v5035 = vld [vmem:[#allocation3 + $0xd78] sm:$0xff]
    %v5036 = vld [vmem:[#allocation3 + $0xd80] sm:$0xff]
    %v5037 = vld [vmem:[#allocation3 + $0xd88] sm:$0xff]
    %v5038 = vld [vmem:[#allocation3 + $0xd90] sm:$0xff]
    %v5039 = vld [vmem:[#allocation3 + $0xd98] sm:$0xff]
    %v5040 = vld [vmem:[#allocation3 + $0xda0] sm:$0xff]
    %v5041 = vld [vmem:[#allocation3 + $0xda8] sm:$0xff]
    %v5042 = vld [vmem:[#allocation3 + $0xdb0] sm:$0xff]
    %v5043 = vld [vmem:[#allocation3 + $0xdb8] sm:$0xff]
    %v5044 = vld [vmem:[#allocation3 + $0xdc0] sm:$0xff]
    %v5045 = vld [vmem:[#allocation3 + $0xdc8] sm:$0xff]
    %v5046 = vld [vmem:[#allocation3 + $0xdd0] sm:$0xff]
    %v5047 = vld [vmem:[#allocation3 + $0xdd8] sm:$0xff]
    %v5048 = vld [vmem:[#allocation3 + $0xde0] sm:$0xff]
    %v5049 = vld [vmem:[#allocation3 + $0xde8] sm:$0xff]
    %v5050 = vld [vmem:[#allocation3 + $0xdf0] sm:$0xff]
    %v5051 = vld [vmem:[#allocation3 + $0xdf8] sm:$0xff]
    %v5052 = vld [vmem:[#allocation3 + $0xe00] sm:$0xff]
    %v5053 = vld [vmem:[#allocation3 + $0xe08] sm:$0xff]
    %v5054 = vld [vmem:[#allocation3 + $0xe10] sm:$0xff]
    %v5055 = vld [vmem:[#allocation3 + $0xe18] sm:$0xff]
    %v5056 = vld [vmem:[#allocation3 + $0xe20] sm:$0xff]
    %v5057 = vld [vmem:[#allocation3 + $0xe28] sm:$0xff]
    %v5058 = vld [vmem:[#allocation3 + $0xe30] sm:$0xff]
    %v5059 = vld [vmem:[#allocation3 + $0xe38] sm:$0xff]
    %v5060 = vld [vmem:[#allocation3 + $0xe40] sm:$0xff]
    %v5061 = vld [vmem:[#allocation3 + $0xe48] sm:$0xff]
    %v5062 = vld [vmem:[#allocation3 + $0xe50] sm:$0xff]
    %v5063 = vld [vmem:[#allocation3 + $0xe58] sm:$0xff]
    %v5064 = vld [vmem:[#allocation3 + $0xe60] sm:$0xff]
    %v5065 = vld [vmem:[#allocation3 + $0xe68] sm:$0xff]
    %v5066 = vld [vmem:[#allocation3 + $0xe70] sm:$0xff]
    %v5067 = vld [vmem:[#allocation3 + $0xe78] sm:$0xff]
    %v5068 = vld [vmem:[#allocation3 + $0xe80] sm:$0xff]
    %v5069 = vld [vmem:[#allocation3 + $0xe88] sm:$0xff]
    %v5070 = vld [vmem:[#allocation3 + $0xe90] sm:$0xff]
    %v5071 = vld [vmem:[#allocation3 + $0xe98] sm:$0xff]
    %v5072 = vld [vmem:[#allocation3 + $0xea0] sm:$0xff]
    %v5073 = vld [vmem:[#allocation3 + $0xea8] sm:$0xff]
    %v5074 = vld [vmem:[#allocation3 + $0xeb0] sm:$0xff]
    %v5075 = vld [vmem:[#allocation3 + $0xeb8] sm:$0xff]
    %v5076 = vld [vmem:[#allocation3 + $0xec0] sm:$0xff]
    %v5077 = vld [vmem:[#allocation3 + $0xec8] sm:$0xff]
    %v5078 = vld [vmem:[#allocation3 + $0xed0] sm:$0xff]
    %v5079 = vld [vmem:[#allocation3 + $0xed8] sm:$0xff]
    %v5080 = vld [vmem:[#allocation3 + $0xee0] sm:$0xff]
    %v5081 = vld [vmem:[#allocation3 + $0xee8] sm:$0xff]
    %v5082 = vld [vmem:[#allocation3 + $0xef0] sm:$0xff]
    %v5083 = vld [vmem:[#allocation3 + $0xef8] sm:$0xff]
    %v5084 = vld [vmem:[#allocation3 + $0xf00] sm:$0xff]
    %v5085 = vld [vmem:[#allocation3 + $0xf08] sm:$0xff]
    %v5086 = vld [vmem:[#allocation3 + $0xf10] sm:$0xff]
    %v5087 = vld [vmem:[#allocation3 + $0xf18] sm:$0xff]
    %v5088 = vld [vmem:[#allocation3 + $0xf20] sm:$0xff]
    %v5089 = vld [vmem:[#allocation3 + $0xf28] sm:$0xff]
    %v5090 = vld [vmem:[#allocation3 + $0xf30] sm:$0xff]
    %v5091 = vld [vmem:[#allocation3 + $0xf38] sm:$0xff]
    %v5092 = vld [vmem:[#allocation3 + $0xf40] sm:$0xff]
    %v5093 = vld [vmem:[#allocation3 + $0xf48] sm:$0xff]
    %v5094 = vld [vmem:[#allocation3 + $0xf50] sm:$0xff]
    %v5095 = vld [vmem:[#allocation3 + $0xf58] sm:$0xff]
    %v5096 = vld [vmem:[#allocation3 + $0xf60] sm:$0xff]
    %v5097 = vld [vmem:[#allocation3 + $0xf68] sm:$0xff]
    %v5098 = vld [vmem:[#allocation3 + $0xf70] sm:$0xff]
    %v5099 = vld [vmem:[#allocation3 + $0xf78] sm:$0xff]
    %v5100 = vld [vmem:[#allocation3 + $0xf80] sm:$0xff]
    %v5101 = vld [vmem:[#allocation3 + $0xf88] sm:$0xff]
    %v5102 = vld [vmem:[#allocation3 + $0xf90] sm:$0xff]
    %v5103 = vld [vmem:[#allocation3 + $0xf98] sm:$0xff]
    %v5104 = vld [vmem:[#allocation3 + $0xfa0] sm:$0xff]
    %v5105 = vld [vmem:[#allocation3 + $0xfa8] sm:$0xff]
    %v5106 = vld [vmem:[#allocation3 + $0xfb0] sm:$0xff]
    %v5107 = vld [vmem:[#allocation3 + $0xfb8] sm:$0xff]
    %v5108 = vld [vmem:[#allocation3 + $0xfc0] sm:$0xff]
    %v5109 = vld [vmem:[#allocation3 + $0xfc8] sm:$0xff]
    %v5110 = vld [vmem:[#allocation3 + $0xfd0] sm:$0xff]
    %v5111 = vld [vmem:[#allocation3 + $0xfd8] sm:$0xff]
    %v5112 = vld [vmem:[#allocation3 + $0xfe0] sm:$0xff]
    %v5113 = vld [vmem:[#allocation3 + $0xfe8] sm:$0xff]
    %v5114 = vld [vmem:[#allocation3 + $0xff0] sm:$0xff]
    %v5115 = vld [vmem:[#allocation3 + $0xff8] sm:$0xff]
    %v5116 = vld [vmem:[#allocation3 + $0x1000] sm:$0xff]
    %v5117 = vld [vmem:[#allocation3 + $0x1008] sm:$0xff]
    %v5118 = vld [vmem:[#allocation3 + $0x1010] sm:$0xff]
    %v5119 = vld [vmem:[#allocation3 + $0x1018] sm:$0xff]
    %v5120 = vld [vmem:[#allocation3 + $0x1020] sm:$0xff]
    %v5121 = vld [vmem:[#allocation3 + $0x1028] sm:$0xff]
    %v5122 = vld [vmem:[#allocation3 + $0x1030] sm:$0xff]
    %v5123 = vld [vmem:[#allocation3 + $0x1038] sm:$0xff]
    %v5124 = vld [vmem:[#allocation3 + $0x1040] sm:$0xff]
    %v5125 = vld [vmem:[#allocation3 + $0x1048] sm:$0xff]
    %v5126 = vld [vmem:[#allocation3 + $0x1050] sm:$0xff]
    %v5127 = vld [vmem:[#allocation3 + $0x1058] sm:$0xff]
    %v5128 = vld [vmem:[#allocation3 + $0x1060] sm:$0xff]
    %v5129 = vld [vmem:[#allocation3 + $0x1068] sm:$0xff]
    %v5130 = vld [vmem:[#allocation3 + $0x1070] sm:$0xff]
    %v5131 = vld [vmem:[#allocation3 + $0x1078] sm:$0xff]
    %v5132 = vld [vmem:[#allocation3 + $0x1080] sm:$0xff]
    %v5133 = vld [vmem:[#allocation3 + $0x1088] sm:$0xff]
    %v5134 = vld [vmem:[#allocation3 + $0x1090] sm:$0xff]
    %v5135 = vld [vmem:[#allocation3 + $0x1098] sm:$0xff]
    %v5136 = vld [vmem:[#allocation3 + $0x10a0] sm:$0xff]
    %v5137 = vld [vmem:[#allocation3 + $0x10a8] sm:$0xff]
    %v5138 = vld [vmem:[#allocation3 + $0x10b0] sm:$0xff]
    %v5139 = vld [vmem:[#allocation3 + $0x10b8] sm:$0xff]
    %v5140 = vld [vmem:[#allocation3 + $0x10c0] sm:$0xff]
    %v5141 = vld [vmem:[#allocation3 + $0x10c8] sm:$0xff]
    %v5142 = vld [vmem:[#allocation3 + $0x10d0] sm:$0xff]
    %v5143 = vld [vmem:[#allocation3 + $0x10d8] sm:$0xff]
    %v5144 = vld [vmem:[#allocation3 + $0x10e0] sm:$0xff]
    %v5145 = vld [vmem:[#allocation3 + $0x10e8] sm:$0xff]
    %v5146 = vld [vmem:[#allocation3 + $0x10f0] sm:$0xff]
    %v5147 = vld [vmem:[#allocation3 + $0x10f8] sm:$0xff]
    %v5148 = vld [vmem:[#allocation3 + $0x1100] sm:$0xff]
    %v5149 = vld [vmem:[#allocation3 + $0x1108] sm:$0xff]
    %v5150 = vld [vmem:[#allocation3 + $0x1110] sm:$0xff]
    %v5151 = vld [vmem:[#allocation3 + $0x1118] sm:$0xff]
    %v5152 = vld [vmem:[#allocation3 + $0x1120] sm:$0xff]
    %v5153 = vld [vmem:[#allocation3 + $0x1128] sm:$0xff]
    %v5154 = vld [vmem:[#allocation3 + $0x1130] sm:$0xff]
    %v5155 = vld [vmem:[#allocation3 + $0x1138] sm:$0xff]
    %v5156 = vld [vmem:[#allocation3 + $0x1140] sm:$0xff]
    %v5157 = vld [vmem:[#allocation3 + $0x1148] sm:$0xff]
    %v5158 = vld [vmem:[#allocation3 + $0x1150] sm:$0xff]
    %v5159 = vld [vmem:[#allocation3 + $0x1158] sm:$0xff]
    %v5160 = vld [vmem:[#allocation3 + $0x1160] sm:$0xff]
    %v5161 = vld [vmem:[#allocation3 + $0x1168] sm:$0xff]
    %v5162 = vld [vmem:[#allocation3 + $0x1170] sm:$0xff]
    %v5163 = vld [vmem:[#allocation3 + $0x1178] sm:$0xff]
    %v5164 = vld [vmem:[#allocation3 + $0x1180] sm:$0xff]
    %v5165 = vld [vmem:[#allocation3 + $0x1188] sm:$0xff]
    %v5166 = vld [vmem:[#allocation3 + $0x1190] sm:$0xff]
    %v5167 = vld [vmem:[#allocation3 + $0x1198] sm:$0xff]
    %v5168 = vld [vmem:[#allocation3 + $0x11a0] sm:$0xff]
    %v5169 = vld [vmem:[#allocation3 + $0x11a8] sm:$0xff]
    %v5170 = vld [vmem:[#allocation3 + $0x11b0] sm:$0xff]
    %v5171 = vld [vmem:[#allocation3 + $0x11b8] sm:$0xff]
    %v5172 = vld [vmem:[#allocation3 + $0x11c0] sm:$0xff]
    %v5173 = vld [vmem:[#allocation3 + $0x11c8] sm:$0xff]
    %v5174 = vld [vmem:[#allocation3 + $0x11d0] sm:$0xff]
    %v5175 = vld [vmem:[#allocation3 + $0x11d8] sm:$0xff]
    %v5176 = vld [vmem:[#allocation3 + $0x11e0] sm:$0xff]
    %v5177 = vld [vmem:[#allocation3 + $0x11e8] sm:$0xff]
    %v5178 = vld [vmem:[#allocation3 + $0x11f0] sm:$0xff]
    %v5179 = vld [vmem:[#allocation3 + $0x11f8] sm:$0xff]
    %v5180 = vld [vmem:[#allocation2] sm:$0xff]
    %v5181 = vld [vmem:[#allocation2 + $0x8] sm:$0xff]
    %v5182 = vld [vmem:[#allocation2 + $0x10] sm:$0xff]
    %v5183 = vld [vmem:[#allocation2 + $0x18] sm:$0xff]
    %v5184 = vld [vmem:[#allocation2 + $0x20] sm:$0xff]
    %v5185 = vld [vmem:[#allocation2 + $0x28] sm:$0xff]
    %v5186 = vld [vmem:[#allocation2 + $0x30] sm:$0xff]
    %v5187 = vld [vmem:[#allocation2 + $0x38] sm:$0xff]
    %v5188 = vld [vmem:[#allocation2 + $0x40] sm:$0xff]
    %v5189 = vld [vmem:[#allocation2 + $0x48] sm:$0xff]
    %v5190 = vld [vmem:[#allocation2 + $0x50] sm:$0xff]
    %v5191 = vld [vmem:[#allocation2 + $0x58] sm:$0xff]
    %v5192 = vld [vmem:[#allocation2 + $0x60] sm:$0xff]
    %v5193 = vld [vmem:[#allocation2 + $0x68] sm:$0xff]
    %v5194 = vld [vmem:[#allocation2 + $0x70] sm:$0xff]
    %v5195 = vld [vmem:[#allocation2 + $0x78] sm:$0xff]
    %v5196 = vld [vmem:[#allocation2 + $0x80] sm:$0xff]
    %v5197 = vld [vmem:[#allocation2 + $0x88] sm:$0xff]
    %v5198 = vld [vmem:[#allocation2 + $0x90] sm:$0xff]
    %v5199 = vld [vmem:[#allocation2 + $0x98] sm:$0xff]
    %v5200 = vld [vmem:[#allocation2 + $0xa0] sm:$0xff]
    %v5201 = vld [vmem:[#allocation2 + $0xa8] sm:$0xff]
    %v5202 = vld [vmem:[#allocation2 + $0xb0] sm:$0xff]
    %v5203 = vld [vmem:[#allocation2 + $0xb8] sm:$0xff]
    %v5204 = vld [vmem:[#allocation2 + $0xc0] sm:$0xff]
    %v5205 = vld [vmem:[#allocation2 + $0xc8] sm:$0xff]
    %v5206 = vld [vmem:[#allocation2 + $0xd0] sm:$0xff]
    %v5207 = vld [vmem:[#allocation2 + $0xd8] sm:$0xff]
    %v5208 = vld [vmem:[#allocation2 + $0xe0] sm:$0xff]
    %v5209 = vld [vmem:[#allocation2 + $0xe8] sm:$0xff]
    %v5210 = vld [vmem:[#allocation2 + $0xf0] sm:$0xff]
    %v5211 = vld [vmem:[#allocation2 + $0xf8] sm:$0xff]
    %v5212 = vld [vmem:[#allocation2 + $0x100] sm:$0xff]
    %v5213 = vld [vmem:[#allocation2 + $0x108] sm:$0xff]
    %v5214 = vld [vmem:[#allocation2 + $0x110] sm:$0xff]
    %v5215 = vld [vmem:[#allocation2 + $0x118] sm:$0xff]
    %v5216 = vld [vmem:[#allocation2 + $0x120] sm:$0xff]
    %v5217 = vld [vmem:[#allocation2 + $0x128] sm:$0xff]
    %v5218 = vld [vmem:[#allocation2 + $0x130] sm:$0xff]
    %v5219 = vld [vmem:[#allocation2 + $0x138] sm:$0xff]
    %v5220 = vld [vmem:[#allocation2 + $0x140] sm:$0xff]
    %v5221 = vld [vmem:[#allocation2 + $0x148] sm:$0xff]
    %v5222 = vld [vmem:[#allocation2 + $0x150] sm:$0xff]
    %v5223 = vld [vmem:[#allocation2 + $0x158] sm:$0xff]
    %v5224 = vld [vmem:[#allocation2 + $0x160] sm:$0xff]
    %v5225 = vld [vmem:[#allocation2 + $0x168] sm:$0xff]
    %v5226 = vld [vmem:[#allocation2 + $0x170] sm:$0xff]
    %v5227 = vld [vmem:[#allocation2 + $0x178] sm:$0xff]
    %v5228 = vld [vmem:[#allocation2 + $0x180] sm:$0xff]
    %v5229 = vld [vmem:[#allocation2 + $0x188] sm:$0xff]
    %v5230 = vld [vmem:[#allocation2 + $0x190] sm:$0xff]
    %v5231 = vld [vmem:[#allocation2 + $0x198] sm:$0xff]
    %v5232 = vld [vmem:[#allocation2 + $0x1a0] sm:$0xff]
    %v5233 = vld [vmem:[#allocation2 + $0x1a8] sm:$0xff]
    %v5234 = vld [vmem:[#allocation2 + $0x1b0] sm:$0xff]
    %v5235 = vld [vmem:[#allocation2 + $0x1b8] sm:$0xff]
    %v5236 = vld [vmem:[#allocation2 + $0x1c0] sm:$0xff]
    %v5237 = vld [vmem:[#allocation2 + $0x1c8] sm:$0xff]
    %v5238 = vld [vmem:[#allocation2 + $0x1d0] sm:$0xff]
    %v5239 = vld [vmem:[#allocation2 + $0x1d8] sm:$0xff]
    %v5240 = vld [vmem:[#allocation2 + $0x1e0] sm:$0xff]
    %v5241 = vld [vmem:[#allocation2 + $0x1e8] sm:$0xff]
    %v5242 = vld [vmem:[#allocation2 + $0x1f0] sm:$0xff]
    %v5243 = vld [vmem:[#allocation2 + $0x1f8] sm:$0xff]
    %v5244 = vld [vmem:[#allocation2 + $0x200] sm:$0xff]
    %v5245 = vld [vmem:[#allocation2 + $0x208] sm:$0xff]
    %v5246 = vld [vmem:[#allocation2 + $0x210] sm:$0xff]
    %v5247 = vld [vmem:[#allocation2 + $0x218] sm:$0xff]
    %v5248 = vld [vmem:[#allocation2 + $0x220] sm:$0xff]
    %v5249 = vld [vmem:[#allocation2 + $0x228] sm:$0xff]
    %v5250 = vld [vmem:[#allocation2 + $0x230] sm:$0xff]
    %v5251 = vld [vmem:[#allocation2 + $0x238] sm:$0xff]
    %v5252 = vld [vmem:[#allocation2 + $0x240] sm:$0xff]
    %v5253 = vld [vmem:[#allocation2 + $0x248] sm:$0xff]
    %v5254 = vld [vmem:[#allocation2 + $0x250] sm:$0xff]
    %v5255 = vld [vmem:[#allocation2 + $0x258] sm:$0xff]
    %v5256 = vld [vmem:[#allocation2 + $0x260] sm:$0xff]
    %v5257 = vld [vmem:[#allocation2 + $0x268] sm:$0xff]
    %v5258 = vld [vmem:[#allocation2 + $0x270] sm:$0xff]
    %v5259 = vld [vmem:[#allocation2 + $0x278] sm:$0xff]
    %v5260 = vld [vmem:[#allocation2 + $0x280] sm:$0xff]
    %v5261 = vld [vmem:[#allocation2 + $0x288] sm:$0xff]
    %v5262 = vld [vmem:[#allocation2 + $0x290] sm:$0xff]
    %v5263 = vld [vmem:[#allocation2 + $0x298] sm:$0xff]
    %v5264 = vld [vmem:[#allocation2 + $0x2a0] sm:$0xff]
    %v5265 = vld [vmem:[#allocation2 + $0x2a8] sm:$0xff]
    %v5266 = vld [vmem:[#allocation2 + $0x2b0] sm:$0xff]
    %v5267 = vld [vmem:[#allocation2 + $0x2b8] sm:$0xff]
    %v5268 = vld [vmem:[#allocation2 + $0x2c0] sm:$0xff]
    %v5269 = vld [vmem:[#allocation2 + $0x2c8] sm:$0xff]
    %v5270 = vld [vmem:[#allocation2 + $0x2d0] sm:$0xff]
    %v5271 = vld [vmem:[#allocation2 + $0x2d8] sm:$0xff]
    %v5272 = vld [vmem:[#allocation2 + $0x2e0] sm:$0xff]
    %v5273 = vld [vmem:[#allocation2 + $0x2e8] sm:$0xff]
    %v5274 = vld [vmem:[#allocation2 + $0x2f0] sm:$0xff]
    %v5275 = vld [vmem:[#allocation2 + $0x2f8] sm:$0xff]
    %v5276 = vld [vmem:[#allocation2 + $0x300] sm:$0xff]
    %v5277 = vld [vmem:[#allocation2 + $0x308] sm:$0xff]
    %v5278 = vld [vmem:[#allocation2 + $0x310] sm:$0xff]
    %v5279 = vld [vmem:[#allocation2 + $0x318] sm:$0xff]
    %v5280 = vld [vmem:[#allocation2 + $0x320] sm:$0xff]
    %v5281 = vld [vmem:[#allocation2 + $0x328] sm:$0xff]
    %v5282 = vld [vmem:[#allocation2 + $0x330] sm:$0xff]
    %v5283 = vld [vmem:[#allocation2 + $0x338] sm:$0xff]
    %v5284 = vld [vmem:[#allocation2 + $0x340] sm:$0xff]
    %v5285 = vld [vmem:[#allocation2 + $0x348] sm:$0xff]
    %v5286 = vld [vmem:[#allocation2 + $0x350] sm:$0xff]
    %v5287 = vld [vmem:[#allocation2 + $0x358] sm:$0xff]
    %v5288 = vld [vmem:[#allocation2 + $0x360] sm:$0xff]
    %v5289 = vld [vmem:[#allocation2 + $0x368] sm:$0xff]
    %v5290 = vld [vmem:[#allocation2 + $0x370] sm:$0xff]
    %v5291 = vld [vmem:[#allocation2 + $0x378] sm:$0xff]
    %v5292 = vld [vmem:[#allocation2 + $0x380] sm:$0xff]
    %v5293 = vld [vmem:[#allocation2 + $0x388] sm:$0xff]
    %v5294 = vld [vmem:[#allocation2 + $0x390] sm:$0xff]
    %v5295 = vld [vmem:[#allocation2 + $0x398] sm:$0xff]
    %v5296 = vld [vmem:[#allocation2 + $0x3a0] sm:$0xff]
    %v5297 = vld [vmem:[#allocation2 + $0x3a8] sm:$0xff]
    %v5298 = vld [vmem:[#allocation2 + $0x3b0] sm:$0xff]
    %v5299 = vld [vmem:[#allocation2 + $0x3b8] sm:$0xff]
    %v5300 = vld [vmem:[#allocation2 + $0x3c0] sm:$0xff]
    %v5301 = vld [vmem:[#allocation2 + $0x3c8] sm:$0xff]
    %v5302 = vld [vmem:[#allocation2 + $0x3d0] sm:$0xff]
    %v5303 = vld [vmem:[#allocation2 + $0x3d8] sm:$0xff]
    %v5304 = vld [vmem:[#allocation2 + $0x3e0] sm:$0xff]
    %v5305 = vld [vmem:[#allocation2 + $0x3e8] sm:$0xff]
    %v5306 = vld [vmem:[#allocation2 + $0x3f0] sm:$0xff]
    %v5307 = vld [vmem:[#allocation2 + $0x3f8] sm:$0xff]
    %v5308 = vld [vmem:[#allocation2 + $0x400] sm:$0xff]
    %v5309 = vld [vmem:[#allocation2 + $0x408] sm:$0xff]
    %v5310 = vld [vmem:[#allocation2 + $0x410] sm:$0xff]
    %v5311 = vld [vmem:[#allocation2 + $0x418] sm:$0xff]
    %v5312 = vld [vmem:[#allocation2 + $0x420] sm:$0xff]
    %v5313 = vld [vmem:[#allocation2 + $0x428] sm:$0xff]
    %v5314 = vld [vmem:[#allocation2 + $0x430] sm:$0xff]
    %v5315 = vld [vmem:[#allocation2 + $0x438] sm:$0xff]
    %v5316 = vld [vmem:[#allocation2 + $0x440] sm:$0xff]
    %v5317 = vld [vmem:[#allocation2 + $0x448] sm:$0xff]
    %v5318 = vld [vmem:[#allocation2 + $0x450] sm:$0xff]
    %v5319 = vld [vmem:[#allocation2 + $0x458] sm:$0xff]
    %v5320 = vld [vmem:[#allocation2 + $0x460] sm:$0xff]
    %v5321 = vld [vmem:[#allocation2 + $0x468] sm:$0xff]
    %v5322 = vld [vmem:[#allocation2 + $0x470] sm:$0xff]
    %v5323 = vld [vmem:[#allocation2 + $0x478] sm:$0xff]
    %5324 = vmatprep.subr.mxu0 0.0
    %5325 = vmatpush1.msra.mxu0 %v5180
    %5326 = vmatprep.subr.mxu0 0.0
    %5327 = vmatpush1.msra.mxu0 %v5181
    %5328 = vmatprep.subr.mxu0 0.0
    %5329 = vmatpush1.msra.mxu0 %v5182
    %5330 = vmatprep.subr.mxu0 0.0
    %5331 = vmatpush1.msra.mxu0 %v5183
    %5332 = vmatprep.subr.mxu0 0.0
    %5333 = vmatpush1.msra.mxu0 %v5184
    %5334 = vmatprep.subr.mxu0 0.0
    %5335 = vmatpush1.msra.mxu0 %v5185
    %5336 = vmatprep.subr.mxu0 0.0
    %5337 = vmatpush1.msra.mxu0 %v5186
    %5338 = vmatprep.subr.mxu0 0.0
    %5339 = vmatpush1.msra.mxu0 %v5187
    %5340 = vmatprep.subr.mxu0 0.0
    %5341 = vmatpush1.msra.mxu0 %v5188
    %5342 = vmatprep.subr.mxu0 0.0
    %5343 = vmatpush1.msra.mxu0 %v5189
    %5344 = vmatprep.subr.mxu0 0.0
    %5345 = vmatpush1.msra.mxu0 %v5190
    %5346 = vmatprep.subr.mxu0 0.0
    %5347 = vmatpush1.msra.mxu0 %v5191
    %5348 = vmatprep.subr.mxu0 0.0
    %5349 = vmatpush1.msra.mxu0 %v5192
    %5350 = vmatprep.subr.mxu0 0.0
    %5351 = vmatpush1.msra.mxu0 %v5193
    %5352 = vmatprep.subr.mxu0 0.0
    %5353 = vmatpush1.msra.mxu0 %v5194
    %5354 = vmatprep.subr.mxu0 0.0
    %5355 = vmatpush1.msra.mxu0 %v5195
    %5356 = vmatprep.subr.mxu0 0.0
    %5357 = vmatpush1.msra.mxu0 %v5196
    %5358 = vmatprep.subr.mxu0 0.0
    %5359 = vmatpush1.msra.mxu0 %v5197
    %5360 = vmatprep.subr.mxu0 0.0
    %5361 = vmatpush1.msra.mxu0 %v5198
    %5362 = vmatprep.subr.mxu0 0.0
    %5363 = vmatpush1.msra.mxu0 %v5199
    %5364 = vmatprep.subr.mxu0 0.0
    %5365 = vmatpush1.msra.mxu0 %v5200
    %5366 = vmatprep.subr.mxu0 0.0
    %5367 = vmatpush1.msra.mxu0 %v5201
    %5368 = vmatprep.subr.mxu0 0.0
    %5369 = vmatpush1.msra.mxu0 %v5202
    %5370 = vmatprep.subr.mxu0 0.0
    %5371 = vmatpush1.msra.mxu0 %v5203
    %5372 = vmatprep.subr.mxu0 0.0
    %5373 = vmatpush1.msra.mxu0 %v5204
    %5374 = vmatprep.subr.mxu0 0.0
    %5375 = vmatpush1.msra.mxu0 %v5205
    %5376 = vmatprep.subr.mxu0 0.0
    %5377 = vmatpush1.msra.mxu0 %v5206
    %5378 = vmatprep.subr.mxu0 0.0
    %5379 = vmatpush1.msra.mxu0 %v5207
    %5380 = vmatprep.subr.mxu0 0.0
    %5381 = vmatpush1.msra.mxu0 %v5208
    %5382 = vmatprep.subr.mxu0 0.0
    %5383 = vmatpush1.msra.mxu0 %v5209
    %5384 = vmatprep.subr.mxu0 0.0
    %5385 = vmatpush1.msra.mxu0 %v5210
    %5386 = vmatprep.subr.mxu0 0.0
    %5387 = vmatpush1.msra.mxu0 %v5211
    %5388 = vmatprep.mubr.f32.mxu0 %v4605
    %5389 = vmatmul.mubr.f32.gmra.mrb[0].mxu0 %v4604
    %v5390 = vpop.f32.mrb[0].mxu0
    %v5391 = vadd.f32 0.0, %v5390
    %v5392 = vpop.f32.mrb[0].mxu0
    %5393 = vmatprep.mubr.f32.mxu0 %v4614
    %5394 = vmatmul.mubr.f32.gmra.mrb[0].mxu0 %v4613
    %v5395 = vpop.f32.mrb[0].mxu0
    %v5396 = vadd.f32 0.0, %v5395
    %v5397 = vpop.f32.mrb[0].mxu0
    %5398 = vmatprep.mubr.f32.mxu0 %v4623
    %5399 = vmatmul.mubr.f32.gmra.mrb[0].mxu0 %v4622
    %v5400 = vpop.f32.mrb[0].mxu0
    %v5401 = vadd.f32 0.0, %v5400
    %v5402 = vpop.f32.mrb[0].mxu0
    %5403 = vmatprep.mubr.f32.mxu0 %v4632
    %5404 = vmatmul.mubr.f32.gmra.mrb[0].mxu0 %v4631
    %v5405 = vpop.f32.mrb[0].mxu0
    %v5406 = vadd.f32 0.0, %v5405
    %v5407 = vpop.f32.mrb[0].mxu0
    %5408 = vmatprep.mubr.f32.mxu0 %v4641
    %5409 = vmatmul.mubr.f32.gmra.mrb[0].mxu0 %v4640
    %v5410 = vpop.f32.mrb[0].mxu0
    %v5411 = vadd.f32 0.0, %v5410
    %v5412 = vpop.f32.mrb[0].mxu0
    %5413 = vmatprep.mubr.f32.mxu0 %v4650
    %5414 = vmatmul.mubr.f32.gmra.mrb[0].mxu0 %v4649
    %v5415 = vpop.f32.mrb[0].mxu0
    %v5416 = vadd.f32 0.0, %v5415
    %v5417 = vpop.f32.mrb[0].mxu0
    %5418 = vmatprep.mubr.f32.mxu0 %v4659
    %5419 = vmatmul.mubr.f32.gmra.mrb[0].mxu0 %v4658
    %v5420 = vpop.f32.mrb[0].mxu0
    %v5421 = vadd.f32 0.0, %v5420
    %v5422 = vpop.f32.mrb[0].mxu0
    %5423 = vmatprep.mubr.f32.mxu0 %v4668
    %5424 = vmatmul.mubr.f32.gmra.mrb[0].mxu0 %v4667
    %v5425 = vpop.f32.mrb[0].mxu0
    %v5426 = vadd.f32 0.0, %v5425
    %v5427 = vpop.f32.mrb[0].mxu0
    %5428 = vmatprep.mubr.f32.mxu0 %v4677
    %5429 = vmatmul.mubr.f32.gmra.mrb[0].mxu0 %v4676
    %v5430 = vpop.f32.mrb[0].mxu0
    %v5431 = vadd.f32 0.0, %v5430
    %v5432 = vpop.f32.mrb[0].mxu0
    %5433 = vmatprep.mubr.f32.mxu0 %v4686
    %5434 = vmatmul.mubr.f32.gmra.mrb[0].mxu0 %v4685
    %v5435 = vpop.f32.mrb[0].mxu0
    %v5436 = vadd.f32 0.0, %v5435
    %v5437 = vpop.f32.mrb[0].mxu0
    %5438 = vmatprep.mubr.f32.mxu0 %v4695
    %5439 = vmatmul.mubr.f32.gmra.mrb[0].mxu0 %v4694
    %v5440 = vpop.f32.mrb[0].mxu0
    %v5441 = vadd.f32 0.0, %v5440
    %v5442 = vpop.f32.mrb[0].mxu0
    %5443 = vmatprep.mubr.f32.mxu0 %v4704
    %5444 = vmatmul.mubr.f32.gmra.mrb[0].mxu0 %v4703
    %v5445 = vpop.f32.mrb[0].mxu0
    %v5446 = vadd.f32 0.0, %v5445
    %v5447 = vpop.f32.mrb[0].mxu0
    %5448 = vmatprep.mubr.f32.mxu0 %v4713
    %5449 = vmatmul.mubr.f32.gmra.mrb[0].mxu0 %v4712
    %v5450 = vpop.f32.mrb[0].mxu0
    %v5451 = vadd.f32 0.0, %v5450
    %v5452 = vpop.f32.mrb[0].mxu0
    %5453 = vmatprep.mubr.f32.mxu0 %v4722
    %5454 = vmatmul.mubr.f32.gmra.mrb[0].mxu0 %v4721
    %v5455 = vpop.f32.mrb[0].mxu0
    %v5456 = vadd.f32 0.0, %v5455
    %v5457 = vpop.f32.mrb[0].mxu0
    %5458 = vmatprep.mubr.f32.mxu0 %v4731
    %5459 = vmatmul.mubr.f32.gmra.mrb[0].mxu0 %v4730
    %v5460 = vpop.f32.mrb[0].mxu0
    %v5461 = vadd.f32 0.0, %v5460
    %v5462 = vpop.f32.mrb[0].mxu0
    %5463 = vmatprep.mubr.f32.mxu0 %v4740
    %5464 = vmatmul.mubr.f32.gmra.mrb[0].mxu0 %v4739
    %v5465 = vpop.f32.mrb[0].mxu0
    %v5466 = vadd.f32 0.0, %v5465
    %v5467 = vpop.f32.mrb[0].mxu0
    %5468 = vmatprep.mubr.f32.mxu0 %v4749
    %5469 = vmatmul.mubr.f32.gmra.mrb[0].mxu0 %v4748
    %v5470 = vpop.f32.mrb[0].mxu0
    %v5471 = vadd.f32 0.0, %v5470
    %v5472 = vpop.f32.mrb[0].mxu0
    %5473 = vmatprep.mubr.f32.mxu0 %v4758
    %5474 = vmatmul.mubr.f32.gmra.mrb[0].mxu0 %v4757
    %v5475 = vpop.f32.mrb[0].mxu0
    %v5476 = vadd.f32 0.0, %v5475
    %v5477 = vpop.f32.mrb[0].mxu0
    %5478 = vmatprep.mubr.f32.mxu0 %v4767
    %5479 = vmatmul.mubr.f32.gmra.mrb[0].mxu0 %v4766
    %v5480 = vpop.f32.mrb[0].mxu0
    %v5481 = vadd.f32 0.0, %v5480
    %v5482 = vpop.f32.mrb[0].mxu0
    %5483 = vmatprep.mubr.f32.mxu0 %v4776
    %5484 = vmatmul.mubr.f32.gmra.mrb[0].mxu0 %v4775
    %v5485 = vpop.f32.mrb[0].mxu0
    %v5486 = vadd.f32 0.0, %v5485
    %v5487 = vpop.f32.mrb[0].mxu0
    %5488 = vmatprep.mubr.f32.mxu0 %v4785
    %5489 = vmatmul.mubr.f32.gmra.mrb[0].mxu0 %v4784
    %v5490 = vpop.f32.mrb[0].mxu0
    %v5491 = vadd.f32 0.0, %v5490
    %v5492 = vpop.f32.mrb[0].mxu0
    %5493 = vmatprep.mubr.f32.mxu0 %v4794
    %5494 = vmatmul.mubr.f32.gmra.mrb[0].mxu0 %v4793
    %v5495 = vpop.f32.mrb[0].mxu0
    %v5496 = vadd.f32 0.0, %v5495
    %v5497 = vpop.f32.mrb[0].mxu0
    %5498 = vmatprep.mubr.f32.mxu0 %v4803
    %5499 = vmatmul.mubr.f32.gmra.mrb[0].mxu0 %v4802
    %v5500 = vpop.f32.mrb[0].mxu0
    %v5501 = vadd.f32 0.0, %v5500
    %v5502 = vpop.f32.mrb[0].mxu0
    %5503 = vmatprep.mubr.f32.mxu0 %v4812
    %5504 = vmatmul.mubr.f32.gmra.mrb[0].mxu0 %v4811
    %v5505 = vpop.f32.mrb[0].mxu0
    %v5506 = vadd.f32 0.0, %v5505
    %v5507 = vpop.f32.mrb[0].mxu0
    %5508 = vmatprep.mubr.f32.mxu0 %v4821
    %5509 = vmatmul.mubr.f32.gmra.mrb[0].mxu0 %v4820
    %v5510 = vpop.f32.mrb[0].mxu0
    %v5511 = vadd.f32 0.0, %v5510
    %v5512 = vpop.f32.mrb[0].mxu0
    %5513 = vmatprep.mubr.f32.mxu0 %v4830
    %5514 = vmatmul.mubr.f32.gmra.mrb[0].mxu0 %v4829
    %v5515 = vpop.f32.mrb[0].mxu0
    %v5516 = vadd.f32 0.0, %v5515
    %v5517 = vpop.f32.mrb[0].mxu0
    %5518 = vmatprep.mubr.f32.mxu0 %v4839
    %5519 = vmatmul.mubr.f32.gmra.mrb[0].mxu0 %v4838
    %v5520 = vpop.f32.mrb[0].mxu0
    %v5521 = vadd.f32 0.0, %v5520
    %v5522 = vpop.f32.mrb[0].mxu0
    %5523 = vmatprep.mubr.f32.mxu0 %v4848
    %5524 = vmatmul.mubr.f32.gmra.mrb[0].mxu0 %v4847
    %v5525 = vpop.f32.mrb[0].mxu0
    %v5526 = vadd.f32 0.0, %v5525
    %v5527 = vpop.f32.mrb[0].mxu0
    %5528 = vmatprep.mubr.f32.mxu0 %v4857
    %5529 = vmatmul.mubr.f32.gmra.mrb[0].mxu0 %v4856
    %v5530 = vpop.f32.mrb[0].mxu0
    %v5531 = vadd.f32 0.0, %v5530
    %v5532 = vpop.f32.mrb[0].mxu0
    %5533 = vmatprep.mubr.f32.mxu0 %v4866
    %5534 = vmatmul.mubr.f32.gmra.mrb[0].mxu0 %v4865
    %v5535 = vpop.f32.mrb[0].mxu0
    %v5536 = vadd.f32 0.0, %v5535
    %v5537 = vpop.f32.mrb[0].mxu0
    %5538 = vmatprep.mubr.f32.mxu0 %v4875
    %5539 = vmatmul.mubr.f32.gmra.mrb[0].mxu0 %v4874
    %v5540 = vpop.f32.mrb[0].mxu0
    %v5541 = vadd.f32 0.0, %v5540
    %v5542 = vpop.f32.mrb[0].mxu0
    %5543 = vmatprep.mubr.f32.mxu0 %v4884
    %5544 = vmatmul.mubr.f32.gmra.mrb[0].mxu0 %v4883
    %v5545 = vpop.f32.mrb[0].mxu0
    %v5546 = vadd.f32 0.0, %v5545
    %v5547 = vpop.f32.mrb[0].mxu0
    %5548 = vmatprep.mubr.f32.mxu0 %v4893
    %5549 = vmatmul.mubr.f32.gmra.mrb[0].mxu0 %v4892
    %v5550 = vpop.f32.mrb[0].mxu0
    %v5551 = vadd.f32 0.0, %v5550
    %v5552 = vpop.f32.mrb[0].mxu0
    %5553 = vmatprep.mubr.f32.mxu0 %v4902
    %5554 = vmatmul.mubr.f32.gmra.mrb[0].mxu0 %v4901
    %v5555 = vpop.f32.mrb[0].mxu0
    %v5556 = vadd.f32 0.0, %v5555
    %v5557 = vpop.f32.mrb[0].mxu0
    %5558 = vmatprep.mubr.f32.mxu0 %v4911
    %5559 = vmatmul.mubr.f32.gmra.mrb[0].mxu0 %v4910
    %v5560 = vpop.f32.mrb[0].mxu0
    %v5561 = vadd.f32 0.0, %v5560
    %v5562 = vpop.f32.mrb[0].mxu0
    %5563 = vmatprep.mubr.f32.mxu0 %v4920
    %5564 = vmatmul.mubr.f32.gmra.mrb[0].mxu0 %v4919
    %v5565 = vpop.f32.mrb[0].mxu0
    %v5566 = vadd.f32 0.0, %v5565
    %v5567 = vpop.f32.mrb[0].mxu0
    %5568 = vmatprep.mubr.f32.mxu0 %v4929
    %5569 = vmatmul.mubr.f32.gmra.mrb[0].mxu0 %v4928
    %v5570 = vpop.f32.mrb[0].mxu0
    %v5571 = vadd.f32 0.0, %v5570
    %v5572 = vpop.f32.mrb[0].mxu0
    %5573 = vmatprep.mubr.f32.mxu0 %v4938
    %5574 = vmatmul.mubr.f32.gmra.mrb[0].mxu0 %v4937
    %v5575 = vpop.f32.mrb[0].mxu0
    %v5576 = vadd.f32 0.0, %v5575
    %v5577 = vpop.f32.mrb[0].mxu0
    %5578 = vmatprep.mubr.f32.mxu0 %v4947
    %5579 = vmatmul.mubr.f32.gmra.mrb[0].mxu0 %v4946
    %v5580 = vpop.f32.mrb[0].mxu0
    %v5581 = vadd.f32 0.0, %v5580
    %v5582 = vpop.f32.mrb[0].mxu0
    %5583 = vmatprep.mubr.f32.mxu0 %v4956
    %5584 = vmatmul.mubr.f32.gmra.mrb[0].mxu0 %v4955
    %v5585 = vpop.f32.mrb[0].mxu0
    %v5586 = vadd.f32 0.0, %v5585
    %v5587 = vpop.f32.mrb[0].mxu0
    %5588 = vmatprep.mubr.f32.mxu0 %v4965
    %5589 = vmatmul.mubr.f32.gmra.mrb[0].mxu0 %v4964
    %v5590 = vpop.f32.mrb[0].mxu0
    %v5591 = vadd.f32 0.0, %v5590
    %v5592 = vpop.f32.mrb[0].mxu0
    %5593 = vmatprep.mubr.f32.mxu0 %v4974
    %5594 = vmatmul.mubr.f32.gmra.mrb[0].mxu0 %v4973
    %v5595 = vpop.f32.mrb[0].mxu0
    %v5596 = vadd.f32 0.0, %v5595
    %v5597 = vpop.f32.mrb[0].mxu0
    %5598 = vmatprep.mubr.f32.mxu0 %v4983
    %5599 = vmatmul.mubr.f32.gmra.mrb[0].mxu0 %v4982
    %v5600 = vpop.f32.mrb[0].mxu0
    %v5601 = vadd.f32 0.0, %v5600
    %v5602 = vpop.f32.mrb[0].mxu0
    %5603 = vmatprep.mubr.f32.mxu0 %v4992
    %5604 = vmatmul.mubr.f32.gmra.mrb[0].mxu0 %v4991
    %v5605 = vpop.f32.mrb[0].mxu0
    %v5606 = vadd.f32 0.0, %v5605
    %v5607 = vpop.f32.mrb[0].mxu0
    %5608 = vmatprep.mubr.f32.mxu0 %v5001
    %5609 = vmatmul.mubr.f32.gmra.mrb[0].mxu0 %v5000
    %v5610 = vpop.f32.mrb[0].mxu0
    %v5611 = vadd.f32 0.0, %v5610
    %v5612 = vpop.f32.mrb[0].mxu0
    %5613 = vmatprep.mubr.f32.mxu0 %v5010
    %5614 = vmatmul.mubr.f32.gmra.mrb[0].mxu0 %v5009
    %v5615 = vpop.f32.mrb[0].mxu0
    %v5616 = vadd.f32 0.0, %v5615
    %v5617 = vpop.f32.mrb[0].mxu0
    %5618 = vmatprep.mubr.f32.mxu0 %v5019
    %5619 = vmatmul.mubr.f32.gmra.mrb[0].mxu0 %v5018
    %v5620 = vpop.f32.mrb[0].mxu0
    %v5621 = vadd.f32 0.0, %v5620
    %v5622 = vpop.f32.mrb[0].mxu0
    %5623 = vmatprep.mubr.f32.mxu0 %v5028
    %5624 = vmatmul.mubr.f32.gmra.mrb[0].mxu0 %v5027
    %v5625 = vpop.f32.mrb[0].mxu0
    %v5626 = vadd.f32 0.0, %v5625
    %v5627 = vpop.f32.mrb[0].mxu0
    %5628 = vmatprep.mubr.f32.mxu0 %v5037
    %5629 = vmatmul.mubr.f32.gmra.mrb[0].mxu0 %v5036
    %v5630 = vpop.f32.mrb[0].mxu0
    %v5631 = vadd.f32 0.0, %v5630
    %v5632 = vpop.f32.mrb[0].mxu0
    %5633 = vmatprep.mubr.f32.mxu0 %v5046
    %5634 = vmatmul.mubr.f32.gmra.mrb[0].mxu0 %v5045
    %v5635 = vpop.f32.mrb[0].mxu0
    %v5636 = vadd.f32 0.0, %v5635
    %v5637 = vpop.f32.mrb[0].mxu0
    %5638 = vmatprep.mubr.f32.mxu0 %v5055
    %5639 = vmatmul.mubr.f32.gmra.mrb[0].mxu0 %v5054
    %v5640 = vpop.f32.mrb[0].mxu0
    %v5641 = vadd.f32 0.0, %v5640
    %v5642 = vpop.f32.mrb[0].mxu0
    %5643 = vmatprep.mubr.f32.mxu0 %v5064
    %5644 = vmatmul.mubr.f32.gmra.mrb[0].mxu0 %v5063
    %v5645 = vpop.f32.mrb[0].mxu0
    %v5646 = vadd.f32 0.0, %v5645
    %v5647 = vpop.f32.mrb[0].mxu0
    %5648 = vmatprep.mubr.f32.mxu0 %v5073
    %5649 = vmatmul.mubr.f32.gmra.mrb[0].mxu0 %v5072
    %v5650 = vpop.f32.mrb[0].mxu0
    %v5651 = vadd.f32 0.0, %v5650
    %v5652 = vpop.f32.mrb[0].mxu0
    %5653 = vmatprep.mubr.f32.mxu0 %v5082
    %5654 = vmatmul.mubr.f32.gmra.mrb[0].mxu0 %v5081
    %v5655 = vpop.f32.mrb[0].mxu0
    %v5656 = vadd.f32 0.0, %v5655
    %v5657 = vpop.f32.mrb[0].mxu0
    %5658 = vmatprep.mubr.f32.mxu0 %v5091
    %5659 = vmatmul.mubr.f32.gmra.mrb[0].mxu0 %v5090
    %v5660 = vpop.f32.mrb[0].mxu0
    %v5661 = vadd.f32 0.0, %v5660
    %v5662 = vpop.f32.mrb[0].mxu0
    %5663 = vmatprep.mubr.f32.mxu0 %v5100
    %5664 = vmatmul.mubr.f32.gmra.mrb[0].mxu0 %v5099
    %v5665 = vpop.f32.mrb[0].mxu0
    %v5666 = vadd.f32 0.0, %v5665
    %v5667 = vpop.f32.mrb[0].mxu0
    %5668 = vmatprep.mubr.f32.mxu0 %v5109
    %5669 = vmatmul.mubr.f32.gmra.mrb[0].mxu0 %v5108
    %v5670 = vpop.f32.mrb[0].mxu0
    %v5671 = vadd.f32 0.0, %v5670
    %v5672 = vpop.f32.mrb[0].mxu0
    %5673 = vmatprep.mubr.f32.mxu0 %v5118
    %5674 = vmatmul.mubr.f32.gmra.mrb[0].mxu0 %v5117
    %v5675 = vpop.f32.mrb[0].mxu0
    %v5676 = vadd.f32 0.0, %v5675
    %v5677 = vpop.f32.mrb[0].mxu0
    %5678 = vmatprep.mubr.f32.mxu0 %v5127
    %5679 = vmatmul.mubr.f32.gmra.mrb[0].mxu0 %v5126
    %v5680 = vpop.f32.mrb[0].mxu0
    %v5681 = vadd.f32 0.0, %v5680
    %v5682 = vpop.f32.mrb[0].mxu0
    %5683 = vmatprep.mubr.f32.mxu0 %v5136
    %5684 = vmatmul.mubr.f32.gmra.mrb[0].mxu0 %v5135
    %v5685 = vpop.f32.mrb[0].mxu0
    %v5686 = vadd.f32 0.0, %v5685
    %v5687 = vpop.f32.mrb[0].mxu0
    %5688 = vmatprep.mubr.f32.mxu0 %v5145
    %5689 = vmatmul.mubr.f32.gmra.mrb[0].mxu0 %v5144
    %v5690 = vpop.f32.mrb[0].mxu0
    %v5691 = vadd.f32 0.0, %v5690
    %v5692 = vpop.f32.mrb[0].mxu0
    %5693 = vmatprep.mubr.f32.mxu0 %v5154
    %5694 = vmatmul.mubr.f32.gmra.mrb[0].mxu0 %v5153
    %v5695 = vpop.f32.mrb[0].mxu0
    %v5696 = vadd.f32 0.0, %v5695
    %v5697 = vpop.f32.mrb[0].mxu0
    %5698 = vmatprep.mubr.f32.mxu0 %v5163
    %5699 = vmatmul.mubr.f32.gmra.mrb[0].mxu0 %v5162
    %v5700 = vpop.f32.mrb[0].mxu0
    %v5701 = vadd.f32 0.0, %v5700
    %v5702 = vpop.f32.mrb[0].mxu0
    %5703 = vmatprep.mubr.f32.mxu0 %v5172
    %5704 = vmatmul.mubr.f32.gmra.mrb[0].mxu0 %v5171
    %v5705 = vpop.f32.mrb[0].mxu0
    %v5706 = vadd.f32 0.0, %v5705
    %v5707 = vpop.f32.mrb[0].mxu0
    %5708 = vdwg.mxu0
    %5709 = vmatprep.subr.mxu0 0.0
    %5710 = vmatpush1.msra.mxu0 %v5212
    %5711 = vmatprep.subr.mxu0 0.0
    %5712 = vmatpush1.msra.mxu0 %v5213
    %5713 = vmatprep.subr.mxu0 0.0
    %5714 = vmatpush1.msra.mxu0 %v5214
    %5715 = vmatprep.subr.mxu0 0.0
    %5716 = vmatpush1.msra.mxu0 %v5215
    %5717 = vmatprep.subr.mxu0 0.0
    %5718 = vmatpush1.msra.mxu0 %v5216
    %5719 = vmatprep.subr.mxu0 0.0
    %5720 = vmatpush1.msra.mxu0 %v5217
    %5721 = vmatprep.subr.mxu0 0.0
    %5722 = vmatpush1.msra.mxu0 %v5218
    %5723 = vmatprep.subr.mxu0 0.0
    %5724 = vmatpush1.msra.mxu0 %v5219
    %5725 = vmatprep.subr.mxu0 0.0
    %5726 = vmatpush1.msra.mxu0 %v5220
    %5727 = vmatprep.subr.mxu0 0.0
    %5728 = vmatpush1.msra.mxu0 %v5221
    %5729 = vmatprep.subr.mxu0 0.0
    %5730 = vmatpush1.msra.mxu0 %v5222
    %5731 = vmatprep.subr.mxu0 0.0
    %5732 = vmatpush1.msra.mxu0 %v5223
    %5733 = vmatprep.subr.mxu0 0.0
    %5734 = vmatpush1.msra.mxu0 %v5224
    %5735 = vmatprep.subr.mxu0 0.0
    %5736 = vmatpush1.msra.mxu0 %v5225
    %5737 = vmatprep.subr.mxu0 0.0
    %5738 = vmatpush1.msra.mxu0 %v5226
    %5739 = vmatprep.subr.mxu0 0.0
    %5740 = vmatpush1.msra.mxu0 %v5227
    %5741 = vmatprep.subr.mxu0 0.0
    %5742 = vmatpush1.msra.mxu0 %v5228
    %5743 = vmatprep.subr.mxu0 0.0
    %5744 = vmatpush1.msra.mxu0 %v5229
    %5745 = vmatprep.subr.mxu0 0.0
    %5746 = vmatpush1.msra.mxu0 %v5230
    %5747 = vmatprep.subr.mxu0 0.0
    %5748 = vmatpush1.msra.mxu0 %v5231
    %5749 = vmatprep.subr.mxu0 0.0
    %5750 = vmatpush1.msra.mxu0 %v5232
    %5751 = vmatprep.subr.mxu0 0.0
    %5752 = vmatpush1.msra.mxu0 %v5233
    %5753 = vmatprep.subr.mxu0 0.0
    %5754 = vmatpush1.msra.mxu0 %v5234
    %5755 = vmatprep.subr.mxu0 0.0
    %5756 = vmatpush1.msra.mxu0 %v5235
    %5757 = vmatprep.subr.mxu0 0.0
    %5758 = vmatpush1.msra.mxu0 %v5236
    %5759 = vmatprep.subr.mxu0 0.0
    %5760 = vmatpush1.msra.mxu0 %v5237
    %5761 = vmatprep.subr.mxu0 0.0
    %5762 = vmatpush1.msra.mxu0 %v5238
    %5763 = vmatprep.subr.mxu0 0.0
    %5764 = vmatpush1.msra.mxu0 %v5239
    %5765 = vmatprep.subr.mxu0 0.0
    %5766 = vmatpush1.msra.mxu0 %v5240
    %5767 = vmatprep.subr.mxu0 0.0
    %5768 = vmatpush1.msra.mxu0 %v5241
    %5769 = vmatprep.subr.mxu0 0.0
    %5770 = vmatpush1.msra.mxu0 %v5242
    %5771 = vmatprep.subr.mxu0 0.0
    %5772 = vmatpush1.msra.mxu0 %v5243
    %5773 = vmatprep.mubr.f32.mxu0 %v4607
    %5774 = vmatmul.mubr.f32.gmra.mrb[0].mxu0 %v4606
    %v5775 = vpop.f32.mrb[0].mxu0
    %v5776 = vadd.f32 %v5391, %v5775
    %v5777 = vpop.f32.mrb[0].mxu0
    %5778 = vmatprep.mubr.f32.mxu0 %v4616
    %5779 = vmatmul.mubr.f32.gmra.mrb[0].mxu0 %v4615
    %v5780 = vpop.f32.mrb[0].mxu0
    %v5781 = vadd.f32 %v5396, %v5780
    %v5782 = vpop.f32.mrb[0].mxu0
    %5783 = vmatprep.mubr.f32.mxu0 %v4625
    %5784 = vmatmul.mubr.f32.gmra.mrb[0].mxu0 %v4624
    %v5785 = vpop.f32.mrb[0].mxu0
    %v5786 = vadd.f32 %v5401, %v5785
    %v5787 = vpop.f32.mrb[0].mxu0
    %5788 = vmatprep.mubr.f32.mxu0 %v4634
    %5789 = vmatmul.mubr.f32.gmra.mrb[0].mxu0 %v4633
    %v5790 = vpop.f32.mrb[0].mxu0
    %v5791 = vadd.f32 %v5406, %v5790
    %v5792 = vpop.f32.mrb[0].mxu0
    %5793 = vmatprep.mubr.f32.mxu0 %v4643
    %5794 = vmatmul.mubr.f32.gmra.mrb[0].mxu0 %v4642
    %v5795 = vpop.f32.mrb[0].mxu0
    %v5796 = vadd.f32 %v5411, %v5795
    %v5797 = vpop.f32.mrb[0].mxu0
    %5798 = vmatprep.mubr.f32.mxu0 %v4652
    %5799 = vmatmul.mubr.f32.gmra.mrb[0].mxu0 %v4651
    %v5800 = vpop.f32.mrb[0].mxu0
    %v5801 = vadd.f32 %v5416, %v5800
    %v5802 = vpop.f32.mrb[0].mxu0
    %5803 = vmatprep.mubr.f32.mxu0 %v4661
    %5804 = vmatmul.mubr.f32.gmra.mrb[0].mxu0 %v4660
    %v5805 = vpop.f32.mrb[0].mxu0
    %v5806 = vadd.f32 %v5421, %v5805
    %v5807 = vpop.f32.mrb[0].mxu0
    %5808 = vmatprep.mubr.f32.mxu0 %v4670
    %5809 = vmatmul.mubr.f32.gmra.mrb[0].mxu0 %v4669
    %v5810 = vpop.f32.mrb[0].mxu0
    %v5811 = vadd.f32 %v5426, %v5810
    %v5812 = vpop.f32.mrb[0].mxu0
    %5813 = vmatprep.mubr.f32.mxu0 %v4679
    %5814 = vmatmul.mubr.f32.gmra.mrb[0].mxu0 %v4678
    %v5815 = vpop.f32.mrb[0].mxu0
    %v5816 = vadd.f32 %v5431, %v5815
    %v5817 = vpop.f32.mrb[0].mxu0
    %5818 = vmatprep.mubr.f32.mxu0 %v4688
    %5819 = vmatmul.mubr.f32.gmra.mrb[0].mxu0 %v4687
    %v5820 = vpop.f32.mrb[0].mxu0
    %v5821 = vadd.f32 %v5436, %v5820
    %v5822 = vpop.f32.mrb[0].mxu0
    %5823 = vmatprep.mubr.f32.mxu0 %v4697
    %5824 = vmatmul.mubr.f32.gmra.mrb[0].mxu0 %v4696
    %v5825 = vpop.f32.mrb[0].mxu0
    %v5826 = vadd.f32 %v5441, %v5825
    %v5827 = vpop.f32.mrb[0].mxu0
    %5828 = vmatprep.mubr.f32.mxu0 %v4706
    %5829 = vmatmul.mubr.f32.gmra.mrb[0].mxu0 %v4705
    %v5830 = vpop.f32.mrb[0].mxu0
    %v5831 = vadd.f32 %v5446, %v5830
    %v5832 = vpop.f32.mrb[0].mxu0
    %5833 = vmatprep.mubr.f32.mxu0 %v4715
    %5834 = vmatmul.mubr.f32.gmra.mrb[0].mxu0 %v4714
    %v5835 = vpop.f32.mrb[0].mxu0
    %v5836 = vadd.f32 %v5451, %v5835
    %v5837 = vpop.f32.mrb[0].mxu0
    %5838 = vmatprep.mubr.f32.mxu0 %v4724
    %5839 = vmatmul.mubr.f32.gmra.mrb[0].mxu0 %v4723
    %v5840 = vpop.f32.mrb[0].mxu0
    %v5841 = vadd.f32 %v5456, %v5840
    %v5842 = vpop.f32.mrb[0].mxu0
    %5843 = vmatprep.mubr.f32.mxu0 %v4733
    %5844 = vmatmul.mubr.f32.gmra.mrb[0].mxu0 %v4732
    %v5845 = vpop.f32.mrb[0].mxu0
    %v5846 = vadd.f32 %v5461, %v5845
    %v5847 = vpop.f32.mrb[0].mxu0
    %5848 = vmatprep.mubr.f32.mxu0 %v4742
    %5849 = vmatmul.mubr.f32.gmra.mrb[0].mxu0 %v4741
    %v5850 = vpop.f32.mrb[0].mxu0
    %v5851 = vadd.f32 %v5466, %v5850
    %v5852 = vpop.f32.mrb[0].mxu0
    %5853 = vmatprep.mubr.f32.mxu0 %v4751
    %5854 = vmatmul.mubr.f32.gmra.mrb[0].mxu0 %v4750
    %v5855 = vpop.f32.mrb[0].mxu0
    %v5856 = vadd.f32 %v5471, %v5855
    %v5857 = vpop.f32.mrb[0].mxu0
    %5858 = vmatprep.mubr.f32.mxu0 %v4760
    %5859 = vmatmul.mubr.f32.gmra.mrb[0].mxu0 %v4759
    %v5860 = vpop.f32.mrb[0].mxu0
    %v5861 = vadd.f32 %v5476, %v5860
    %v5862 = vpop.f32.mrb[0].mxu0
    %5863 = vmatprep.mubr.f32.mxu0 %v4769
    %5864 = vmatmul.mubr.f32.gmra.mrb[0].mxu0 %v4768
    %v5865 = vpop.f32.mrb[0].mxu0
    %v5866 = vadd.f32 %v5481, %v5865
    %v5867 = vpop.f32.mrb[0].mxu0
    %5868 = vmatprep.mubr.f32.mxu0 %v4778
    %5869 = vmatmul.mubr.f32.gmra.mrb[0].mxu0 %v4777
    %v5870 = vpop.f32.mrb[0].mxu0
    %v5871 = vadd.f32 %v5486, %v5870
    %v5872 = vpop.f32.mrb[0].mxu0
    %5873 = vmatprep.mubr.f32.mxu0 %v4787
    %5874 = vmatmul.mubr.f32.gmra.mrb[0].mxu0 %v4786
    %v5875 = vpop.f32.mrb[0].mxu0
    %v5876 = vadd.f32 %v5491, %v5875
    %v5877 = vpop.f32.mrb[0].mxu0
    %5878 = vmatprep.mubr.f32.mxu0 %v4796
    %5879 = vmatmul.mubr.f32.gmra.mrb[0].mxu0 %v4795
    %v5880 = vpop.f32.mrb[0].mxu0
    %v5881 = vadd.f32 %v5496, %v5880
    %v5882 = vpop.f32.mrb[0].mxu0
    %5883 = vmatprep.mubr.f32.mxu0 %v4805
    %5884 = vmatmul.mubr.f32.gmra.mrb[0].mxu0 %v4804
    %v5885 = vpop.f32.mrb[0].mxu0
    %v5886 = vadd.f32 %v5501, %v5885
    %v5887 = vpop.f32.mrb[0].mxu0
    %5888 = vmatprep.mubr.f32.mxu0 %v4814
    %5889 = vmatmul.mubr.f32.gmra.mrb[0].mxu0 %v4813
    %v5890 = vpop.f32.mrb[0].mxu0
    %v5891 = vadd.f32 %v5506, %v5890
    %v5892 = vpop.f32.mrb[0].mxu0
    %5893 = vmatprep.mubr.f32.mxu0 %v4823
    %5894 = vmatmul.mubr.f32.gmra.mrb[0].mxu0 %v4822
    %v5895 = vpop.f32.mrb[0].mxu0
    %v5896 = vadd.f32 %v5511, %v5895
    %v5897 = vpop.f32.mrb[0].mxu0
    %5898 = vmatprep.mubr.f32.mxu0 %v4832
    %5899 = vmatmul.mubr.f32.gmra.mrb[0].mxu0 %v4831
    %v5900 = vpop.f32.mrb[0].mxu0
    %v5901 = vadd.f32 %v5516, %v5900
    %v5902 = vpop.f32.mrb[0].mxu0
    %5903 = vmatprep.mubr.f32.mxu0 %v4841
    %5904 = vmatmul.mubr.f32.gmra.mrb[0].mxu0 %v4840
    %v5905 = vpop.f32.mrb[0].mxu0
    %v5906 = vadd.f32 %v5521, %v5905
    %v5907 = vpop.f32.mrb[0].mxu0
    %5908 = vmatprep.mubr.f32.mxu0 %v4850
    %5909 = vmatmul.mubr.f32.gmra.mrb[0].mxu0 %v4849
    %v5910 = vpop.f32.mrb[0].mxu0
    %v5911 = vadd.f32 %v5526, %v5910
    %v5912 = vpop.f32.mrb[0].mxu0
    %5913 = vmatprep.mubr.f32.mxu0 %v4859
    %5914 = vmatmul.mubr.f32.gmra.mrb[0].mxu0 %v4858
    %v5915 = vpop.f32.mrb[0].mxu0
    %v5916 = vadd.f32 %v5531, %v5915
    %v5917 = vpop.f32.mrb[0].mxu0
    %5918 = vmatprep.mubr.f32.mxu0 %v4868
    %5919 = vmatmul.mubr.f32.gmra.mrb[0].mxu0 %v4867
    %v5920 = vpop.f32.mrb[0].mxu0
    %v5921 = vadd.f32 %v5536, %v5920
    %v5922 = vpop.f32.mrb[0].mxu0
    %5923 = vmatprep.mubr.f32.mxu0 %v4877
    %5924 = vmatmul.mubr.f32.gmra.mrb[0].mxu0 %v4876
    %v5925 = vpop.f32.mrb[0].mxu0
    %v5926 = vadd.f32 %v5541, %v5925
    %v5927 = vpop.f32.mrb[0].mxu0
    %5928 = vmatprep.mubr.f32.mxu0 %v4886
    %5929 = vmatmul.mubr.f32.gmra.mrb[0].mxu0 %v4885
    %v5930 = vpop.f32.mrb[0].mxu0
    %v5931 = vadd.f32 %v5546, %v5930
    %v5932 = vpop.f32.mrb[0].mxu0
    %5933 = vmatprep.mubr.f32.mxu0 %v4895
    %5934 = vmatmul.mubr.f32.gmra.mrb[0].mxu0 %v4894
    %v5935 = vpop.f32.mrb[0].mxu0
    %v5936 = vadd.f32 %v5551, %v5935
    %v5937 = vpop.f32.mrb[0].mxu0
    %5938 = vmatprep.mubr.f32.mxu0 %v4904
    %5939 = vmatmul.mubr.f32.gmra.mrb[0].mxu0 %v4903
    %v5940 = vpop.f32.mrb[0].mxu0
    %v5941 = vadd.f32 %v5556, %v5940
    %v5942 = vpop.f32.mrb[0].mxu0
    %5943 = vmatprep.mubr.f32.mxu0 %v4913
    %5944 = vmatmul.mubr.f32.gmra.mrb[0].mxu0 %v4912
    %v5945 = vpop.f32.mrb[0].mxu0
    %v5946 = vadd.f32 %v5561, %v5945
    %v5947 = vpop.f32.mrb[0].mxu0
    %5948 = vmatprep.mubr.f32.mxu0 %v4922
    %5949 = vmatmul.mubr.f32.gmra.mrb[0].mxu0 %v4921
    %v5950 = vpop.f32.mrb[0].mxu0
    %v5951 = vadd.f32 %v5566, %v5950
    %v5952 = vpop.f32.mrb[0].mxu0
    %5953 = vmatprep.mubr.f32.mxu0 %v4931
    %5954 = vmatmul.mubr.f32.gmra.mrb[0].mxu0 %v4930
    %v5955 = vpop.f32.mrb[0].mxu0
    %v5956 = vadd.f32 %v5571, %v5955
    %v5957 = vpop.f32.mrb[0].mxu0
    %5958 = vmatprep.mubr.f32.mxu0 %v4940
    %5959 = vmatmul.mubr.f32.gmra.mrb[0].mxu0 %v4939
    %v5960 = vpop.f32.mrb[0].mxu0
    %v5961 = vadd.f32 %v5576, %v5960
    %v5962 = vpop.f32.mrb[0].mxu0
    %5963 = vmatprep.mubr.f32.mxu0 %v4949
    %5964 = vmatmul.mubr.f32.gmra.mrb[0].mxu0 %v4948
    %v5965 = vpop.f32.mrb[0].mxu0
    %v5966 = vadd.f32 %v5581, %v5965
    %v5967 = vpop.f32.mrb[0].mxu0
    %5968 = vmatprep.mubr.f32.mxu0 %v4958
    %5969 = vmatmul.mubr.f32.gmra.mrb[0].mxu0 %v4957
    %v5970 = vpop.f32.mrb[0].mxu0
    %v5971 = vadd.f32 %v5586, %v5970
    %v5972 = vpop.f32.mrb[0].mxu0
    %5973 = vmatprep.mubr.f32.mxu0 %v4967
    %5974 = vmatmul.mubr.f32.gmra.mrb[0].mxu0 %v4966
    %v5975 = vpop.f32.mrb[0].mxu0
    %v5976 = vadd.f32 %v5591, %v5975
    %v5977 = vpop.f32.mrb[0].mxu0
    %5978 = vmatprep.mubr.f32.mxu0 %v4976
    %5979 = vmatmul.mubr.f32.gmra.mrb[0].mxu0 %v4975
    %v5980 = vpop.f32.mrb[0].mxu0
    %v5981 = vadd.f32 %v5596, %v5980
    %v5982 = vpop.f32.mrb[0].mxu0
    %5983 = vmatprep.mubr.f32.mxu0 %v4985
    %5984 = vmatmul.mubr.f32.gmra.mrb[0].mxu0 %v4984
    %v5985 = vpop.f32.mrb[0].mxu0
    %v5986 = vadd.f32 %v5601, %v5985
    %v5987 = vpop.f32.mrb[0].mxu0
    %5988 = vmatprep.mubr.f32.mxu0 %v4994
    %5989 = vmatmul.mubr.f32.gmra.mrb[0].mxu0 %v4993
    %v5990 = vpop.f32.mrb[0].mxu0
    %v5991 = vadd.f32 %v5606, %v5990
    %v5992 = vpop.f32.mrb[0].mxu0
    %5993 = vmatprep.mubr.f32.mxu0 %v5003
    %5994 = vmatmul.mubr.f32.gmra.mrb[0].mxu0 %v5002
    %v5995 = vpop.f32.mrb[0].mxu0
    %v5996 = vadd.f32 %v5611, %v5995
    %v5997 = vpop.f32.mrb[0].mxu0
    %5998 = vmatprep.mubr.f32.mxu0 %v5012
    %5999 = vmatmul.mubr.f32.gmra.mrb[0].mxu0 %v5011
    %v6000 = vpop.f32.mrb[0].mxu0
    %v6001 = vadd.f32 %v5616, %v6000
    %v6002 = vpop.f32.mrb[0].mxu0
    %6003 = vmatprep.mubr.f32.mxu0 %v5021
    %6004 = vmatmul.mubr.f32.gmra.mrb[0].mxu0 %v5020
    %v6005 = vpop.f32.mrb[0].mxu0
    %v6006 = vadd.f32 %v5621, %v6005
    %v6007 = vpop.f32.mrb[0].mxu0
    %6008 = vmatprep.mubr.f32.mxu0 %v5030
    %6009 = vmatmul.mubr.f32.gmra.mrb[0].mxu0 %v5029
    %v6010 = vpop.f32.mrb[0].mxu0
    %v6011 = vadd.f32 %v5626, %v6010
    %v6012 = vpop.f32.mrb[0].mxu0
    %6013 = vmatprep.mubr.f32.mxu0 %v5039
    %6014 = vmatmul.mubr.f32.gmra.mrb[0].mxu0 %v5038
    %v6015 = vpop.f32.mrb[0].mxu0
    %v6016 = vadd.f32 %v5631, %v6015
    %v6017 = vpop.f32.mrb[0].mxu0
    %6018 = vmatprep.mubr.f32.mxu0 %v5048
    %6019 = vmatmul.mubr.f32.gmra.mrb[0].mxu0 %v5047
    %v6020 = vpop.f32.mrb[0].mxu0
    %v6021 = vadd.f32 %v5636, %v6020
    %v6022 = vpop.f32.mrb[0].mxu0
    %6023 = vmatprep.mubr.f32.mxu0 %v5057
    %6024 = vmatmul.mubr.f32.gmra.mrb[0].mxu0 %v5056
    %v6025 = vpop.f32.mrb[0].mxu0
    %v6026 = vadd.f32 %v5641, %v6025
    %v6027 = vpop.f32.mrb[0].mxu0
    %6028 = vmatprep.mubr.f32.mxu0 %v5066
    %6029 = vmatmul.mubr.f32.gmra.mrb[0].mxu0 %v5065
    %v6030 = vpop.f32.mrb[0].mxu0
    %v6031 = vadd.f32 %v5646, %v6030
    %v6032 = vpop.f32.mrb[0].mxu0
    %6033 = vmatprep.mubr.f32.mxu0 %v5075
    %6034 = vmatmul.mubr.f32.gmra.mrb[0].mxu0 %v5074
    %v6035 = vpop.f32.mrb[0].mxu0
    %v6036 = vadd.f32 %v5651, %v6035
    %v6037 = vpop.f32.mrb[0].mxu0
    %6038 = vmatprep.mubr.f32.mxu0 %v5084
    %6039 = vmatmul.mubr.f32.gmra.mrb[0].mxu0 %v5083
    %v6040 = vpop.f32.mrb[0].mxu0
    %v6041 = vadd.f32 %v5656, %v6040
    %v6042 = vpop.f32.mrb[0].mxu0
    %6043 = vmatprep.mubr.f32.mxu0 %v5093
    %6044 = vmatmul.mubr.f32.gmra.mrb[0].mxu0 %v5092
    %v6045 = vpop.f32.mrb[0].mxu0
    %v6046 = vadd.f32 %v5661, %v6045
    %v6047 = vpop.f32.mrb[0].mxu0
    %6048 = vmatprep.mubr.f32.mxu0 %v5102
    %6049 = vmatmul.mubr.f32.gmra.mrb[0].mxu0 %v5101
    %v6050 = vpop.f32.mrb[0].mxu0
    %v6051 = vadd.f32 %v5666, %v6050
    %v6052 = vpop.f32.mrb[0].mxu0
    %6053 = vmatprep.mubr.f32.mxu0 %v5111
    %6054 = vmatmul.mubr.f32.gmra.mrb[0].mxu0 %v5110
    %v6055 = vpop.f32.mrb[0].mxu0
    %v6056 = vadd.f32 %v5671, %v6055
    %v6057 = vpop.f32.mrb[0].mxu0
    %6058 = vmatprep.mubr.f32.mxu0 %v5120
    %6059 = vmatmul.mubr.f32.gmra.mrb[0].mxu0 %v5119
    %v6060 = vpop.f32.mrb[0].mxu0
    %v6061 = vadd.f32 %v5676, %v6060
    %v6062 = vpop.f32.mrb[0].mxu0
    %6063 = vmatprep.mubr.f32.mxu0 %v5129
    %6064 = vmatmul.mubr.f32.gmra.mrb[0].mxu0 %v5128
    %v6065 = vpop.f32.mrb[0].mxu0
    %v6066 = vadd.f32 %v5681, %v6065
    %v6067 = vpop.f32.mrb[0].mxu0
    %6068 = vmatprep.mubr.f32.mxu0 %v5138
    %6069 = vmatmul.mubr.f32.gmra.mrb[0].mxu0 %v5137
    %v6070 = vpop.f32.mrb[0].mxu0
    %v6071 = vadd.f32 %v5686, %v6070
    %v6072 = vpop.f32.mrb[0].mxu0
    %6073 = vmatprep.mubr.f32.mxu0 %v5147
    %6074 = vmatmul.mubr.f32.gmra.mrb[0].mxu0 %v5146
    %v6075 = vpop.f32.mrb[0].mxu0
    %v6076 = vadd.f32 %v5691, %v6075
    %v6077 = vpop.f32.mrb[0].mxu0
    %6078 = vmatprep.mubr.f32.mxu0 %v5156
    %6079 = vmatmul.mubr.f32.gmra.mrb[0].mxu0 %v5155
    %v6080 = vpop.f32.mrb[0].mxu0
    %v6081 = vadd.f32 %v5696, %v6080
    %v6082 = vpop.f32.mrb[0].mxu0
    %6083 = vmatprep.mubr.f32.mxu0 %v5165
    %6084 = vmatmul.mubr.f32.gmra.mrb[0].mxu0 %v5164
    %v6085 = vpop.f32.mrb[0].mxu0
    %v6086 = vadd.f32 %v5701, %v6085
    %v6087 = vpop.f32.mrb[0].mxu0
    %6088 = vmatprep.mubr.f32.mxu0 %v5174
    %6089 = vmatmul.mubr.f32.gmra.mrb[0].mxu0 %v5173
    %v6090 = vpop.f32.mrb[0].mxu0
    %v6091 = vadd.f32 %v5706, %v6090
    %v6092 = vpop.f32.mrb[0].mxu0
    %6093 = vdwg.mxu0
    %6094 = vmatprep.subr.mxu0 0.0
    %6095 = vmatpush1.msra.mxu0 %v5244
    %6096 = vmatprep.subr.mxu0 0.0
    %6097 = vmatpush1.msra.mxu0 %v5245
    %6098 = vmatprep.subr.mxu0 0.0
    %6099 = vmatpush1.msra.mxu0 %v5246
    %6100 = vmatprep.subr.mxu0 0.0
    %6101 = vmatpush1.msra.mxu0 %v5247
    %6102 = vmatprep.subr.mxu0 0.0
    %6103 = vmatpush1.msra.mxu0 %v5248
    %6104 = vmatprep.subr.mxu0 0.0
    %6105 = vmatpush1.msra.mxu0 %v5249
    %6106 = vmatprep.subr.mxu0 0.0
    %6107 = vmatpush1.msra.mxu0 %v5250
    %6108 = vmatprep.subr.mxu0 0.0
    %6109 = vmatpush1.msra.mxu0 %v5251
    %6110 = vmatprep.subr.mxu0 0.0
    %6111 = vmatpush1.msra.mxu0 %v5252
    %6112 = vmatprep.subr.mxu0 0.0
    %6113 = vmatpush1.msra.mxu0 %v5253
    %6114 = vmatprep.subr.mxu0 0.0
    %6115 = vmatpush1.msra.mxu0 %v5254
    %6116 = vmatprep.subr.mxu0 0.0
    %6117 = vmatpush1.msra.mxu0 %v5255
    %6118 = vmatprep.subr.mxu0 0.0
    %6119 = vmatpush1.msra.mxu0 %v5256
    %6120 = vmatprep.subr.mxu0 0.0
    %6121 = vmatpush1.msra.mxu0 %v5257
    %6122 = vmatprep.subr.mxu0 0.0
    %6123 = vmatpush1.msra.mxu0 %v5258
    %6124 = vmatprep.subr.mxu0 0.0
    %6125 = vmatpush1.msra.mxu0 %v5259
    %6126 = vmatprep.subr.mxu0 0.0
    %6127 = vmatpush1.msra.mxu0 %v5260
    %6128 = vmatprep.subr.mxu0 0.0
    %6129 = vmatpush1.msra.mxu0 %v5261
    %6130 = vmatprep.subr.mxu0 0.0
    %6131 = vmatpush1.msra.mxu0 %v5262
    %6132 = vmatprep.subr.mxu0 0.0
    %6133 = vmatpush1.msra.mxu0 %v5263
    %6134 = vmatprep.subr.mxu0 0.0
    %6135 = vmatpush1.msra.mxu0 %v5264
    %6136 = vmatprep.subr.mxu0 0.0
    %6137 = vmatpush1.msra.mxu0 %v5265
    %6138 = vmatprep.subr.mxu0 0.0
    %6139 = vmatpush1.msra.mxu0 %v5266
    %6140 = vmatprep.subr.mxu0 0.0
    %6141 = vmatpush1.msra.mxu0 %v5267
    %6142 = vmatprep.subr.mxu0 0.0
    %6143 = vmatpush1.msra.mxu0 %v5268
    %6144 = vmatprep.subr.mxu0 0.0
    %6145 = vmatpush1.msra.mxu0 %v5269
    %6146 = vmatprep.subr.mxu0 0.0
    %6147 = vmatpush1.msra.mxu0 %v5270
    %6148 = vmatprep.subr.mxu0 0.0
    %6149 = vmatpush1.msra.mxu0 %v5271
    %6150 = vmatprep.subr.mxu0 0.0
    %6151 = vmatpush1.msra.mxu0 %v5272
    %6152 = vmatprep.subr.mxu0 0.0
    %6153 = vmatpush1.msra.mxu0 %v5273
    %6154 = vmatprep.subr.mxu0 0.0
    %6155 = vmatpush1.msra.mxu0 %v5274
    %6156 = vmatprep.subr.mxu0 0.0
    %6157 = vmatpush1.msra.mxu0 %v5275
    %6158 = vmatprep.mubr.f32.mxu0 %v4609
    %6159 = vmatmul.mubr.f32.gmra.mrb[0].mxu0 %v4608
    %v6160 = vpop.f32.mrb[0].mxu0
    %v6161 = vadd.f32 %v5776, %v6160
    %v6162 = vpop.f32.mrb[0].mxu0
    %6163 = vmatprep.mubr.f32.mxu0 %v4618
    %6164 = vmatmul.mubr.f32.gmra.mrb[0].mxu0 %v4617
    %v6165 = vpop.f32.mrb[0].mxu0
    %v6166 = vadd.f32 %v5781, %v6165
    %v6167 = vpop.f32.mrb[0].mxu0
    %6168 = vmatprep.mubr.f32.mxu0 %v4627
    %6169 = vmatmul.mubr.f32.gmra.mrb[0].mxu0 %v4626
    %v6170 = vpop.f32.mrb[0].mxu0
    %v6171 = vadd.f32 %v5786, %v6170
    %v6172 = vpop.f32.mrb[0].mxu0
    %6173 = vmatprep.mubr.f32.mxu0 %v4636
    %6174 = vmatmul.mubr.f32.gmra.mrb[0].mxu0 %v4635
    %v6175 = vpop.f32.mrb[0].mxu0
    %v6176 = vadd.f32 %v5791, %v6175
    %v6177 = vpop.f32.mrb[0].mxu0
    %6178 = vmatprep.mubr.f32.mxu0 %v4645
    %6179 = vmatmul.mubr.f32.gmra.mrb[0].mxu0 %v4644
    %v6180 = vpop.f32.mrb[0].mxu0
    %v6181 = vadd.f32 %v5796, %v6180
    %v6182 = vpop.f32.mrb[0].mxu0
    %6183 = vmatprep.mubr.f32.mxu0 %v4654
    %6184 = vmatmul.mubr.f32.gmra.mrb[0].mxu0 %v4653
    %v6185 = vpop.f32.mrb[0].mxu0
    %v6186 = vadd.f32 %v5801, %v6185
    %v6187 = vpop.f32.mrb[0].mxu0
    %6188 = vmatprep.mubr.f32.mxu0 %v4663
    %6189 = vmatmul.mubr.f32.gmra.mrb[0].mxu0 %v4662
    %v6190 = vpop.f32.mrb[0].mxu0
    %v6191 = vadd.f32 %v5806, %v6190
    %v6192 = vpop.f32.mrb[0].mxu0
    %6193 = vmatprep.mubr.f32.mxu0 %v4672
    %6194 = vmatmul.mubr.f32.gmra.mrb[0].mxu0 %v4671
    %v6195 = vpop.f32.mrb[0].mxu0
    %v6196 = vadd.f32 %v5811, %v6195
    %v6197 = vpop.f32.mrb[0].mxu0
    %6198 = vmatprep.mubr.f32.mxu0 %v4681
    %6199 = vmatmul.mubr.f32.gmra.mrb[0].mxu0 %v4680
    %v6200 = vpop.f32.mrb[0].mxu0
    %v6201 = vadd.f32 %v5816, %v6200
    %v6202 = vpop.f32.mrb[0].mxu0
    %6203 = vmatprep.mubr.f32.mxu0 %v4690
    %6204 = vmatmul.mubr.f32.gmra.mrb[0].mxu0 %v4689
    %v6205 = vpop.f32.mrb[0].mxu0
    %v6206 = vadd.f32 %v5821, %v6205
    %v6207 = vpop.f32.mrb[0].mxu0
    %6208 = vmatprep.mubr.f32.mxu0 %v4699
    %6209 = vmatmul.mubr.f32.gmra.mrb[0].mxu0 %v4698
    %v6210 = vpop.f32.mrb[0].mxu0
    %v6211 = vadd.f32 %v5826, %v6210
    %v6212 = vpop.f32.mrb[0].mxu0
    %6213 = vmatprep.mubr.f32.mxu0 %v4708
    %6214 = vmatmul.mubr.f32.gmra.mrb[0].mxu0 %v4707
    %v6215 = vpop.f32.mrb[0].mxu0
    %v6216 = vadd.f32 %v5831, %v6215
    %v6217 = vpop.f32.mrb[0].mxu0
    %6218 = vmatprep.mubr.f32.mxu0 %v4717
    %6219 = vmatmul.mubr.f32.gmra.mrb[0].mxu0 %v4716
    %v6220 = vpop.f32.mrb[0].mxu0
    %v6221 = vadd.f32 %v5836, %v6220
    %v6222 = vpop.f32.mrb[0].mxu0
    %6223 = vmatprep.mubr.f32.mxu0 %v4726
    %6224 = vmatmul.mubr.f32.gmra.mrb[0].mxu0 %v4725
    %v6225 = vpop.f32.mrb[0].mxu0
    %v6226 = vadd.f32 %v5841, %v6225
    %v6227 = vpop.f32.mrb[0].mxu0
    %6228 = vmatprep.mubr.f32.mxu0 %v4735
    %6229 = vmatmul.mubr.f32.gmra.mrb[0].mxu0 %v4734
    %v6230 = vpop.f32.mrb[0].mxu0
    %v6231 = vadd.f32 %v5846, %v6230
    %v6232 = vpop.f32.mrb[0].mxu0
    %6233 = vmatprep.mubr.f32.mxu0 %v4744
    %6234 = vmatmul.mubr.f32.gmra.mrb[0].mxu0 %v4743
    %v6235 = vpop.f32.mrb[0].mxu0
    %v6236 = vadd.f32 %v5851, %v6235
    %v6237 = vpop.f32.mrb[0].mxu0
    %6238 = vmatprep.mubr.f32.mxu0 %v4753
    %6239 = vmatmul.mubr.f32.gmra.mrb[0].mxu0 %v4752
    %v6240 = vpop.f32.mrb[0].mxu0
    %v6241 = vadd.f32 %v5856, %v6240
    %v6242 = vpop.f32.mrb[0].mxu0
    %6243 = vmatprep.mubr.f32.mxu0 %v4762
    %6244 = vmatmul.mubr.f32.gmra.mrb[0].mxu0 %v4761
    %v6245 = vpop.f32.mrb[0].mxu0
    %v6246 = vadd.f32 %v5861, %v6245
    %v6247 = vpop.f32.mrb[0].mxu0
    %6248 = vmatprep.mubr.f32.mxu0 %v4771
    %6249 = vmatmul.mubr.f32.gmra.mrb[0].mxu0 %v4770
    %v6250 = vpop.f32.mrb[0].mxu0
    %v6251 = vadd.f32 %v5866, %v6250
    %v6252 = vpop.f32.mrb[0].mxu0
    %6253 = vmatprep.mubr.f32.mxu0 %v4780
    %6254 = vmatmul.mubr.f32.gmra.mrb[0].mxu0 %v4779
    %v6255 = vpop.f32.mrb[0].mxu0
    %v6256 = vadd.f32 %v5871, %v6255
    %v6257 = vpop.f32.mrb[0].mxu0
    %6258 = vmatprep.mubr.f32.mxu0 %v4789
    %6259 = vmatmul.mubr.f32.gmra.mrb[0].mxu0 %v4788
    %v6260 = vpop.f32.mrb[0].mxu0
    %v6261 = vadd.f32 %v5876, %v6260
    %v6262 = vpop.f32.mrb[0].mxu0
    %6263 = vmatprep.mubr.f32.mxu0 %v4798
    %6264 = vmatmul.mubr.f32.gmra.mrb[0].mxu0 %v4797
    %v6265 = vpop.f32.mrb[0].mxu0
    %v6266 = vadd.f32 %v5881, %v6265
    %v6267 = vpop.f32.mrb[0].mxu0
    %6268 = vmatprep.mubr.f32.mxu0 %v4807
    %6269 = vmatmul.mubr.f32.gmra.mrb[0].mxu0 %v4806
    %v6270 = vpop.f32.mrb[0].mxu0
    %v6271 = vadd.f32 %v5886, %v6270
    %v6272 = vpop.f32.mrb[0].mxu0
    %6273 = vmatprep.mubr.f32.mxu0 %v4816
    %6274 = vmatmul.mubr.f32.gmra.mrb[0].mxu0 %v4815
    %v6275 = vpop.f32.mrb[0].mxu0
    %v6276 = vadd.f32 %v5891, %v6275
    %v6277 = vpop.f32.mrb[0].mxu0
    %6278 = vmatprep.mubr.f32.mxu0 %v4825
    %6279 = vmatmul.mubr.f32.gmra.mrb[0].mxu0 %v4824
    %v6280 = vpop.f32.mrb[0].mxu0
    %v6281 = vadd.f32 %v5896, %v6280
    %v6282 = vpop.f32.mrb[0].mxu0
    %6283 = vmatprep.mubr.f32.mxu0 %v4834
    %6284 = vmatmul.mubr.f32.gmra.mrb[0].mxu0 %v4833
    %v6285 = vpop.f32.mrb[0].mxu0
    %v6286 = vadd.f32 %v5901, %v6285
    %v6287 = vpop.f32.mrb[0].mxu0
    %6288 = vmatprep.mubr.f32.mxu0 %v4843
    %6289 = vmatmul.mubr.f32.gmra.mrb[0].mxu0 %v4842
    %v6290 = vpop.f32.mrb[0].mxu0
    %v6291 = vadd.f32 %v5906, %v6290
    %v6292 = vpop.f32.mrb[0].mxu0
    %6293 = vmatprep.mubr.f32.mxu0 %v4852
    %6294 = vmatmul.mubr.f32.gmra.mrb[0].mxu0 %v4851
    %v6295 = vpop.f32.mrb[0].mxu0
    %v6296 = vadd.f32 %v5911, %v6295
    %v6297 = vpop.f32.mrb[0].mxu0
    %6298 = vmatprep.mubr.f32.mxu0 %v4861
    %6299 = vmatmul.mubr.f32.gmra.mrb[0].mxu0 %v4860
    %v6300 = vpop.f32.mrb[0].mxu0
    %v6301 = vadd.f32 %v5916, %v6300
    %v6302 = vpop.f32.mrb[0].mxu0
    %6303 = vmatprep.mubr.f32.mxu0 %v4870
    %6304 = vmatmul.mubr.f32.gmra.mrb[0].mxu0 %v4869
    %v6305 = vpop.f32.mrb[0].mxu0
    %v6306 = vadd.f32 %v5921, %v6305
    %v6307 = vpop.f32.mrb[0].mxu0
    %6308 = vmatprep.mubr.f32.mxu0 %v4879
    %6309 = vmatmul.mubr.f32.gmra.mrb[0].mxu0 %v4878
    %v6310 = vpop.f32.mrb[0].mxu0
    %v6311 = vadd.f32 %v5926, %v6310
    %v6312 = vpop.f32.mrb[0].mxu0
    %6313 = vmatprep.mubr.f32.mxu0 %v4888
    %6314 = vmatmul.mubr.f32.gmra.mrb[0].mxu0 %v4887
    %v6315 = vpop.f32.mrb[0].mxu0
    %v6316 = vadd.f32 %v5931, %v6315
    %v6317 = vpop.f32.mrb[0].mxu0
    %6318 = vmatprep.mubr.f32.mxu0 %v4897
    %6319 = vmatmul.mubr.f32.gmra.mrb[0].mxu0 %v4896
    %v6320 = vpop.f32.mrb[0].mxu0
    %v6321 = vadd.f32 %v5936, %v6320
    %v6322 = vpop.f32.mrb[0].mxu0
    %6323 = vmatprep.mubr.f32.mxu0 %v4906
    %6324 = vmatmul.mubr.f32.gmra.mrb[0].mxu0 %v4905
    %v6325 = vpop.f32.mrb[0].mxu0
    %v6326 = vadd.f32 %v5941, %v6325
    %v6327 = vpop.f32.mrb[0].mxu0
    %6328 = vmatprep.mubr.f32.mxu0 %v4915
    %6329 = vmatmul.mubr.f32.gmra.mrb[0].mxu0 %v4914
    %v6330 = vpop.f32.mrb[0].mxu0
    %v6331 = vadd.f32 %v5946, %v6330
    %v6332 = vpop.f32.mrb[0].mxu0
    %6333 = vmatprep.mubr.f32.mxu0 %v4924
    %6334 = vmatmul.mubr.f32.gmra.mrb[0].mxu0 %v4923
    %v6335 = vpop.f32.mrb[0].mxu0
    %v6336 = vadd.f32 %v5951, %v6335
    %v6337 = vpop.f32.mrb[0].mxu0
    %6338 = vmatprep.mubr.f32.mxu0 %v4933
    %6339 = vmatmul.mubr.f32.gmra.mrb[0].mxu0 %v4932
    %v6340 = vpop.f32.mrb[0].mxu0
    %v6341 = vadd.f32 %v5956, %v6340
    %v6342 = vpop.f32.mrb[0].mxu0
    %6343 = vmatprep.mubr.f32.mxu0 %v4942
    %6344 = vmatmul.mubr.f32.gmra.mrb[0].mxu0 %v4941
    %v6345 = vpop.f32.mrb[0].mxu0
    %v6346 = vadd.f32 %v5961, %v6345
    %v6347 = vpop.f32.mrb[0].mxu0
    %6348 = vmatprep.mubr.f32.mxu0 %v4951
    %6349 = vmatmul.mubr.f32.gmra.mrb[0].mxu0 %v4950
    %v6350 = vpop.f32.mrb[0].mxu0
    %v6351 = vadd.f32 %v5966, %v6350
    %v6352 = vpop.f32.mrb[0].mxu0
    %6353 = vmatprep.mubr.f32.mxu0 %v4960
    %6354 = vmatmul.mubr.f32.gmra.mrb[0].mxu0 %v4959
    %v6355 = vpop.f32.mrb[0].mxu0
    %v6356 = vadd.f32 %v5971, %v6355
    %v6357 = vpop.f32.mrb[0].mxu0
    %6358 = vmatprep.mubr.f32.mxu0 %v4969
    %6359 = vmatmul.mubr.f32.gmra.mrb[0].mxu0 %v4968
    %v6360 = vpop.f32.mrb[0].mxu0
    %v6361 = vadd.f32 %v5976, %v6360
    %v6362 = vpop.f32.mrb[0].mxu0
    %6363 = vmatprep.mubr.f32.mxu0 %v4978
    %6364 = vmatmul.mubr.f32.gmra.mrb[0].mxu0 %v4977
    %v6365 = vpop.f32.mrb[0].mxu0
    %v6366 = vadd.f32 %v5981, %v6365
    %v6367 = vpop.f32.mrb[0].mxu0
    %6368 = vmatprep.mubr.f32.mxu0 %v4987
    %6369 = vmatmul.mubr.f32.gmra.mrb[0].mxu0 %v4986
    %v6370 = vpop.f32.mrb[0].mxu0
    %v6371 = vadd.f32 %v5986, %v6370
    %v6372 = vpop.f32.mrb[0].mxu0
    %6373 = vmatprep.mubr.f32.mxu0 %v4996
    %6374 = vmatmul.mubr.f32.gmra.mrb[0].mxu0 %v4995
    %v6375 = vpop.f32.mrb[0].mxu0
    %v6376 = vadd.f32 %v5991, %v6375
    %v6377 = vpop.f32.mrb[0].mxu0
    %6378 = vmatprep.mubr.f32.mxu0 %v5005
    %6379 = vmatmul.mubr.f32.gmra.mrb[0].mxu0 %v5004
    %v6380 = vpop.f32.mrb[0].mxu0
    %v6381 = vadd.f32 %v5996, %v6380
    %v6382 = vpop.f32.mrb[0].mxu0
    %6383 = vmatprep.mubr.f32.mxu0 %v5014
    %6384 = vmatmul.mubr.f32.gmra.mrb[0].mxu0 %v5013
    %v6385 = vpop.f32.mrb[0].mxu0
    %v6386 = vadd.f32 %v6001, %v6385
    %v6387 = vpop.f32.mrb[0].mxu0
    %6388 = vmatprep.mubr.f32.mxu0 %v5023
    %6389 = vmatmul.mubr.f32.gmra.mrb[0].mxu0 %v5022
    %v6390 = vpop.f32.mrb[0].mxu0
    %v6391 = vadd.f32 %v6006, %v6390
    %v6392 = vpop.f32.mrb[0].mxu0
    %6393 = vmatprep.mubr.f32.mxu0 %v5032
    %6394 = vmatmul.mubr.f32.gmra.mrb[0].mxu0 %v5031
    %v6395 = vpop.f32.mrb[0].mxu0
    %v6396 = vadd.f32 %v6011, %v6395
    %v6397 = vpop.f32.mrb[0].mxu0
    %6398 = vmatprep.mubr.f32.mxu0 %v5041
    %6399 = vmatmul.mubr.f32.gmra.mrb[0].mxu0 %v5040
    %v6400 = vpop.f32.mrb[0].mxu0
    %v6401 = vadd.f32 %v6016, %v6400
    %v6402 = vpop.f32.mrb[0].mxu0
    %6403 = vmatprep.mubr.f32.mxu0 %v5050
    %6404 = vmatmul.mubr.f32.gmra.mrb[0].mxu0 %v5049
    %v6405 = vpop.f32.mrb[0].mxu0
    %v6406 = vadd.f32 %v6021, %v6405
    %v6407 = vpop.f32.mrb[0].mxu0
    %6408 = vmatprep.mubr.f32.mxu0 %v5059
    %6409 = vmatmul.mubr.f32.gmra.mrb[0].mxu0 %v5058
    %v6410 = vpop.f32.mrb[0].mxu0
    %v6411 = vadd.f32 %v6026, %v6410
    %v6412 = vpop.f32.mrb[0].mxu0
    %6413 = vmatprep.mubr.f32.mxu0 %v5068
    %6414 = vmatmul.mubr.f32.gmra.mrb[0].mxu0 %v5067
    %v6415 = vpop.f32.mrb[0].mxu0
    %v6416 = vadd.f32 %v6031, %v6415
    %v6417 = vpop.f32.mrb[0].mxu0
    %6418 = vmatprep.mubr.f32.mxu0 %v5077
    %6419 = vmatmul.mubr.f32.gmra.mrb[0].mxu0 %v5076
    %v6420 = vpop.f32.mrb[0].mxu0
    %v6421 = vadd.f32 %v6036, %v6420
    %v6422 = vpop.f32.mrb[0].mxu0
    %6423 = vmatprep.mubr.f32.mxu0 %v5086
    %6424 = vmatmul.mubr.f32.gmra.mrb[0].mxu0 %v5085
    %v6425 = vpop.f32.mrb[0].mxu0
    %v6426 = vadd.f32 %v6041, %v6425
    %v6427 = vpop.f32.mrb[0].mxu0
    %6428 = vmatprep.mubr.f32.mxu0 %v5095
    %6429 = vmatmul.mubr.f32.gmra.mrb[0].mxu0 %v5094
    %v6430 = vpop.f32.mrb[0].mxu0
    %v6431 = vadd.f32 %v6046, %v6430
    %v6432 = vpop.f32.mrb[0].mxu0
    %6433 = vmatprep.mubr.f32.mxu0 %v5104
    %6434 = vmatmul.mubr.f32.gmra.mrb[0].mxu0 %v5103
    %v6435 = vpop.f32.mrb[0].mxu0
    %v6436 = vadd.f32 %v6051, %v6435
    %v6437 = vpop.f32.mrb[0].mxu0
    %6438 = vmatprep.mubr.f32.mxu0 %v5113
    %6439 = vmatmul.mubr.f32.gmra.mrb[0].mxu0 %v5112
    %v6440 = vpop.f32.mrb[0].mxu0
    %v6441 = vadd.f32 %v6056, %v6440
    %v6442 = vpop.f32.mrb[0].mxu0
    %6443 = vmatprep.mubr.f32.mxu0 %v5122
    %6444 = vmatmul.mubr.f32.gmra.mrb[0].mxu0 %v5121
    %v6445 = vpop.f32.mrb[0].mxu0
    %v6446 = vadd.f32 %v6061, %v6445
    %v6447 = vpop.f32.mrb[0].mxu0
    %6448 = vmatprep.mubr.f32.mxu0 %v5131
    %6449 = vmatmul.mubr.f32.gmra.mrb[0].mxu0 %v5130
    %v6450 = vpop.f32.mrb[0].mxu0
    %v6451 = vadd.f32 %v6066, %v6450
    %v6452 = vpop.f32.mrb[0].mxu0
    %6453 = vmatprep.mubr.f32.mxu0 %v5140
    %6454 = vmatmul.mubr.f32.gmra.mrb[0].mxu0 %v5139
    %v6455 = vpop.f32.mrb[0].mxu0
    %v6456 = vadd.f32 %v6071, %v6455
    %v6457 = vpop.f32.mrb[0].mxu0
    %6458 = vmatprep.mubr.f32.mxu0 %v5149
    %6459 = vmatmul.mubr.f32.gmra.mrb[0].mxu0 %v5148
    %v6460 = vpop.f32.mrb[0].mxu0
    %v6461 = vadd.f32 %v6076, %v6460
    %v6462 = vpop.f32.mrb[0].mxu0
    %6463 = vmatprep.mubr.f32.mxu0 %v5158
    %6464 = vmatmul.mubr.f32.gmra.mrb[0].mxu0 %v5157
    %v6465 = vpop.f32.mrb[0].mxu0
    %v6466 = vadd.f32 %v6081, %v6465
    %v6467 = vpop.f32.mrb[0].mxu0
    %6468 = vmatprep.mubr.f32.mxu0 %v5167
    %6469 = vmatmul.mubr.f32.gmra.mrb[0].mxu0 %v5166
    %v6470 = vpop.f32.mrb[0].mxu0
    %v6471 = vadd.f32 %v6086, %v6470
    %v6472 = vpop.f32.mrb[0].mxu0
    %6473 = vmatprep.mubr.f32.mxu0 %v5176
    %6474 = vmatmul.mubr.f32.gmra.mrb[0].mxu0 %v5175
    %v6475 = vpop.f32.mrb[0].mxu0
    %v6476 = vadd.f32 %v6091, %v6475
    %v6477 = vpop.f32.mrb[0].mxu0
    %6478 = vdwg.mxu0
    %6479 = vmatprep.subr.mxu0 0.0
    %6480 = vmatpush1.msra.mxu0 %v5276
    %6481 = vmatprep.subr.mxu0 0.0
    %6482 = vmatpush1.msra.mxu0 %v5277
    %6483 = vmatprep.subr.mxu0 0.0
    %6484 = vmatpush1.msra.mxu0 %v5278
    %6485 = vmatprep.subr.mxu0 0.0
    %6486 = vmatpush1.msra.mxu0 %v5279
    %6487 = vmatprep.subr.mxu0 0.0
    %6488 = vmatpush1.msra.mxu0 %v5280
    %6489 = vmatprep.subr.mxu0 0.0
    %6490 = vmatpush1.msra.mxu0 %v5281
    %6491 = vmatprep.subr.mxu0 0.0
    %6492 = vmatpush1.msra.mxu0 %v5282
    %6493 = vmatprep.subr.mxu0 0.0
    %6494 = vmatpush1.msra.mxu0 %v5283
    %6495 = vmatprep.subr.mxu0 0.0
    %6496 = vmatpush1.msra.mxu0 %v5284
    %6497 = vmatprep.subr.mxu0 0.0
    %6498 = vmatpush1.msra.mxu0 %v5285
    %6499 = vmatprep.subr.mxu0 0.0
    %6500 = vmatpush1.msra.mxu0 %v5286
    %6501 = vmatprep.subr.mxu0 0.0
    %6502 = vmatpush1.msra.mxu0 %v5287
    %6503 = vmatprep.subr.mxu0 0.0
    %6504 = vmatpush1.msra.mxu0 %v5288
    %6505 = vmatprep.subr.mxu0 0.0
    %6506 = vmatpush1.msra.mxu0 %v5289
    %6507 = vmatprep.subr.mxu0 0.0
    %6508 = vmatpush1.msra.mxu0 %v5290
    %6509 = vmatprep.subr.mxu0 0.0
    %6510 = vmatpush1.msra.mxu0 %v5291
    %6511 = vmatprep.subr.mxu0 0.0
    %6512 = vmatpush1.msra.mxu0 %v5292
    %6513 = vmatprep.subr.mxu0 0.0
    %6514 = vmatpush1.msra.mxu0 %v5293
    %6515 = vmatprep.subr.mxu0 0.0
    %6516 = vmatpush1.msra.mxu0 %v5294
    %6517 = vmatprep.subr.mxu0 0.0
    %6518 = vmatpush1.msra.mxu0 %v5295
    %6519 = vmatprep.subr.mxu0 0.0
    %6520 = vmatpush1.msra.mxu0 %v5296
    %6521 = vmatprep.subr.mxu0 0.0
    %6522 = vmatpush1.msra.mxu0 %v5297
    %6523 = vmatprep.subr.mxu0 0.0
    %6524 = vmatpush1.msra.mxu0 %v5298
    %6525 = vmatprep.subr.mxu0 0.0
    %6526 = vmatpush1.msra.mxu0 %v5299
    %6527 = vmatprep.subr.mxu0 0.0
    %6528 = vmatpush1.msra.mxu0 %v5300
    %6529 = vmatprep.subr.mxu0 0.0
    %6530 = vmatpush1.msra.mxu0 %v5301
    %6531 = vmatprep.subr.mxu0 0.0
    %6532 = vmatpush1.msra.mxu0 %v5302
    %6533 = vmatprep.subr.mxu0 0.0
    %6534 = vmatpush1.msra.mxu0 %v5303
    %6535 = vmatprep.subr.mxu0 0.0
    %6536 = vmatpush1.msra.mxu0 %v5304
    %6537 = vmatprep.subr.mxu0 0.0
    %6538 = vmatpush1.msra.mxu0 %v5305
    %6539 = vmatprep.subr.mxu0 0.0
    %6540 = vmatpush1.msra.mxu0 %v5306
    %6541 = vmatprep.subr.mxu0 0.0
    %6542 = vmatpush1.msra.mxu0 %v5307
    %6543 = vmatprep.mubr.f32.mxu0 %v4611
    %6544 = vmatmul.mubr.f32.gmra.mrb[0].mxu0 %v4610
    %v6545 = vpop.f32.mrb[0].mxu0
    %v6546 = vadd.f32 %v6161, %v6545
    %v6547 = vpop.f32.mrb[0].mxu0
    %6548 = vmatprep.mubr.f32.mxu0 %v4620
    %6549 = vmatmul.mubr.f32.gmra.mrb[0].mxu0 %v4619
    %v6550 = vpop.f32.mrb[0].mxu0
    %v6551 = vadd.f32 %v6166, %v6550
    %v6552 = vpop.f32.mrb[0].mxu0
    %6553 = vmatprep.mubr.f32.mxu0 %v4629
    %6554 = vmatmul.mubr.f32.gmra.mrb[0].mxu0 %v4628
    %v6555 = vpop.f32.mrb[0].mxu0
    %v6556 = vadd.f32 %v6171, %v6555
    %v6557 = vpop.f32.mrb[0].mxu0
    %6558 = vmatprep.mubr.f32.mxu0 %v4638
    %6559 = vmatmul.mubr.f32.gmra.mrb[0].mxu0 %v4637
    %v6560 = vpop.f32.mrb[0].mxu0
    %v6561 = vadd.f32 %v6176, %v6560
    %v6562 = vpop.f32.mrb[0].mxu0
    %6563 = vmatprep.mubr.f32.mxu0 %v4647
    %6564 = vmatmul.mubr.f32.gmra.mrb[0].mxu0 %v4646
    %v6565 = vpop.f32.mrb[0].mxu0
    %v6566 = vadd.f32 %v6181, %v6565
    %v6567 = vpop.f32.mrb[0].mxu0
    %6568 = vmatprep.mubr.f32.mxu0 %v4656
    %6569 = vmatmul.mubr.f32.gmra.mrb[0].mxu0 %v4655
    %v6570 = vpop.f32.mrb[0].mxu0
    %v6571 = vadd.f32 %v6186, %v6570
    %v6572 = vpop.f32.mrb[0].mxu0
    %6573 = vmatprep.mubr.f32.mxu0 %v4665
    %6574 = vmatmul.mubr.f32.gmra.mrb[0].mxu0 %v4664
    %v6575 = vpop.f32.mrb[0].mxu0
    %v6576 = vadd.f32 %v6191, %v6575
    %v6577 = vpop.f32.mrb[0].mxu0
    %6578 = vmatprep.mubr.f32.mxu0 %v4674
    %6579 = vmatmul.mubr.f32.gmra.mrb[0].mxu0 %v4673
    %v6580 = vpop.f32.mrb[0].mxu0
    %v6581 = vadd.f32 %v6196, %v6580
    %v6582 = vpop.f32.mrb[0].mxu0
    %6583 = vmatprep.mubr.f32.mxu0 %v4683
    %6584 = vmatmul.mubr.f32.gmra.mrb[0].mxu0 %v4682
    %v6585 = vpop.f32.mrb[0].mxu0
    %v6586 = vadd.f32 %v6201, %v6585
    %v6587 = vpop.f32.mrb[0].mxu0
    %6588 = vmatprep.mubr.f32.mxu0 %v4692
    %6589 = vmatmul.mubr.f32.gmra.mrb[0].mxu0 %v4691
    %v6590 = vpop.f32.mrb[0].mxu0
    %v6591 = vadd.f32 %v6206, %v6590
    %v6592 = vpop.f32.mrb[0].mxu0
    %6593 = vmatprep.mubr.f32.mxu0 %v4701
    %6594 = vmatmul.mubr.f32.gmra.mrb[0].mxu0 %v4700
    %v6595 = vpop.f32.mrb[0].mxu0
    %v6596 = vadd.f32 %v6211, %v6595
    %v6597 = vpop.f32.mrb[0].mxu0
    %6598 = vmatprep.mubr.f32.mxu0 %v4710
    %6599 = vmatmul.mubr.f32.gmra.mrb[0].mxu0 %v4709
    %v6600 = vpop.f32.mrb[0].mxu0
    %v6601 = vadd.f32 %v6216, %v6600
    %v6602 = vpop.f32.mrb[0].mxu0
    %6603 = vmatprep.mubr.f32.mxu0 %v4719
    %6604 = vmatmul.mubr.f32.gmra.mrb[0].mxu0 %v4718
    %v6605 = vpop.f32.mrb[0].mxu0
    %v6606 = vadd.f32 %v6221, %v6605
    %v6607 = vpop.f32.mrb[0].mxu0
    %6608 = vmatprep.mubr.f32.mxu0 %v4728
    %6609 = vmatmul.mubr.f32.gmra.mrb[0].mxu0 %v4727
    %v6610 = vpop.f32.mrb[0].mxu0
    %v6611 = vadd.f32 %v6226, %v6610
    %v6612 = vpop.f32.mrb[0].mxu0
    %6613 = vmatprep.mubr.f32.mxu0 %v4737
    %6614 = vmatmul.mubr.f32.gmra.mrb[0].mxu0 %v4736
    %v6615 = vpop.f32.mrb[0].mxu0
    %v6616 = vadd.f32 %v6231, %v6615
    %v6617 = vpop.f32.mrb[0].mxu0
    %6618 = vmatprep.mubr.f32.mxu0 %v4746
    %6619 = vmatmul.mubr.f32.gmra.mrb[0].mxu0 %v4745
    %v6620 = vpop.f32.mrb[0].mxu0
    %v6621 = vadd.f32 %v6236, %v6620
    %v6622 = vpop.f32.mrb[0].mxu0
    %6623 = vmatprep.mubr.f32.mxu0 %v4755
    %6624 = vmatmul.mubr.f32.gmra.mrb[0].mxu0 %v4754
    %v6625 = vpop.f32.mrb[0].mxu0
    %v6626 = vadd.f32 %v6241, %v6625
    %v6627 = vpop.f32.mrb[0].mxu0
    %6628 = vmatprep.mubr.f32.mxu0 %v4764
    %6629 = vmatmul.mubr.f32.gmra.mrb[0].mxu0 %v4763
    %v6630 = vpop.f32.mrb[0].mxu0
    %v6631 = vadd.f32 %v6246, %v6630
    %v6632 = vpop.f32.mrb[0].mxu0
    %6633 = vmatprep.mubr.f32.mxu0 %v4773
    %6634 = vmatmul.mubr.f32.gmra.mrb[0].mxu0 %v4772
    %v6635 = vpop.f32.mrb[0].mxu0
    %v6636 = vadd.f32 %v6251, %v6635
    %v6637 = vpop.f32.mrb[0].mxu0
    %6638 = vmatprep.mubr.f32.mxu0 %v4782
    %6639 = vmatmul.mubr.f32.gmra.mrb[0].mxu0 %v4781
    %v6640 = vpop.f32.mrb[0].mxu0
    %v6641 = vadd.f32 %v6256, %v6640
    %v6642 = vpop.f32.mrb[0].mxu0
    %6643 = vmatprep.mubr.f32.mxu0 %v4791
    %6644 = vmatmul.mubr.f32.gmra.mrb[0].mxu0 %v4790
    %v6645 = vpop.f32.mrb[0].mxu0
    %v6646 = vadd.f32 %v6261, %v6645
    %v6647 = vpop.f32.mrb[0].mxu0
    %6648 = vmatprep.mubr.f32.mxu0 %v4800
    %6649 = vmatmul.mubr.f32.gmra.mrb[0].mxu0 %v4799
    %v6650 = vpop.f32.mrb[0].mxu0
    %v6651 = vadd.f32 %v6266, %v6650
    %v6652 = vpop.f32.mrb[0].mxu0
    %6653 = vmatprep.mubr.f32.mxu0 %v4809
    %6654 = vmatmul.mubr.f32.gmra.mrb[0].mxu0 %v4808
    %v6655 = vpop.f32.mrb[0].mxu0
    %v6656 = vadd.f32 %v6271, %v6655
    %v6657 = vpop.f32.mrb[0].mxu0
    %6658 = vmatprep.mubr.f32.mxu0 %v4818
    %6659 = vmatmul.mubr.f32.gmra.mrb[0].mxu0 %v4817
    %v6660 = vpop.f32.mrb[0].mxu0
    %v6661 = vadd.f32 %v6276, %v6660
    %v6662 = vpop.f32.mrb[0].mxu0
    %6663 = vmatprep.mubr.f32.mxu0 %v4827
    %6664 = vmatmul.mubr.f32.gmra.mrb[0].mxu0 %v4826
    %v6665 = vpop.f32.mrb[0].mxu0
    %v6666 = vadd.f32 %v6281, %v6665
    %v6667 = vpop.f32.mrb[0].mxu0
    %6668 = vmatprep.mubr.f32.mxu0 %v4836
    %6669 = vmatmul.mubr.f32.gmra.mrb[0].mxu0 %v4835
    %v6670 = vpop.f32.mrb[0].mxu0
    %v6671 = vadd.f32 %v6286, %v6670
    %v6672 = vpop.f32.mrb[0].mxu0
    %6673 = vmatprep.mubr.f32.mxu0 %v4845
    %6674 = vmatmul.mubr.f32.gmra.mrb[0].mxu0 %v4844
    %v6675 = vpop.f32.mrb[0].mxu0
    %v6676 = vadd.f32 %v6291, %v6675
    %v6677 = vpop.f32.mrb[0].mxu0
    %6678 = vmatprep.mubr.f32.mxu0 %v4854
    %6679 = vmatmul.mubr.f32.gmra.mrb[0].mxu0 %v4853
    %v6680 = vpop.f32.mrb[0].mxu0
    %v6681 = vadd.f32 %v6296, %v6680
    %v6682 = vpop.f32.mrb[0].mxu0
    %6683 = vmatprep.mubr.f32.mxu0 %v4863
    %6684 = vmatmul.mubr.f32.gmra.mrb[0].mxu0 %v4862
    %v6685 = vpop.f32.mrb[0].mxu0
    %v6686 = vadd.f32 %v6301, %v6685
    %v6687 = vpop.f32.mrb[0].mxu0
    %6688 = vmatprep.mubr.f32.mxu0 %v4872
    %6689 = vmatmul.mubr.f32.gmra.mrb[0].mxu0 %v4871
    %v6690 = vpop.f32.mrb[0].mxu0
    %v6691 = vadd.f32 %v6306, %v6690
    %v6692 = vpop.f32.mrb[0].mxu0
    %6693 = vmatprep.mubr.f32.mxu0 %v4881
    %6694 = vmatmul.mubr.f32.gmra.mrb[0].mxu0 %v4880
    %v6695 = vpop.f32.mrb[0].mxu0
    %v6696 = vadd.f32 %v6311, %v6695
    %v6697 = vpop.f32.mrb[0].mxu0
    %6698 = vmatprep.mubr.f32.mxu0 %v4890
    %6699 = vmatmul.mubr.f32.gmra.mrb[0].mxu0 %v4889
    %v6700 = vpop.f32.mrb[0].mxu0
    %v6701 = vadd.f32 %v6316, %v6700
    %v6702 = vpop.f32.mrb[0].mxu0
    %6703 = vmatprep.mubr.f32.mxu0 %v4899
    %6704 = vmatmul.mubr.f32.gmra.mrb[0].mxu0 %v4898
    %v6705 = vpop.f32.mrb[0].mxu0
    %v6706 = vadd.f32 %v6321, %v6705
    %v6707 = vpop.f32.mrb[0].mxu0
    %6708 = vmatprep.mubr.f32.mxu0 %v4908
    %6709 = vmatmul.mubr.f32.gmra.mrb[0].mxu0 %v4907
    %v6710 = vpop.f32.mrb[0].mxu0
    %v6711 = vadd.f32 %v6326, %v6710
    %v6712 = vpop.f32.mrb[0].mxu0
    %6713 = vmatprep.mubr.f32.mxu0 %v4917
    %6714 = vmatmul.mubr.f32.gmra.mrb[0].mxu0 %v4916
    %v6715 = vpop.f32.mrb[0].mxu0
    %v6716 = vadd.f32 %v6331, %v6715
    %v6717 = vpop.f32.mrb[0].mxu0
    %6718 = vmatprep.mubr.f32.mxu0 %v4926
    %6719 = vmatmul.mubr.f32.gmra.mrb[0].mxu0 %v4925
    %v6720 = vpop.f32.mrb[0].mxu0
    %v6721 = vadd.f32 %v6336, %v6720
    %v6722 = vpop.f32.mrb[0].mxu0
    %6723 = vmatprep.mubr.f32.mxu0 %v4935
    %6724 = vmatmul.mubr.f32.gmra.mrb[0].mxu0 %v4934
    %v6725 = vpop.f32.mrb[0].mxu0
    %v6726 = vadd.f32 %v6341, %v6725
    %v6727 = vpop.f32.mrb[0].mxu0
    %6728 = vmatprep.mubr.f32.mxu0 %v4944
    %6729 = vmatmul.mubr.f32.gmra.mrb[0].mxu0 %v4943
    %v6730 = vpop.f32.mrb[0].mxu0
    %v6731 = vadd.f32 %v6346, %v6730
    %v6732 = vpop.f32.mrb[0].mxu0
    %6733 = vmatprep.mubr.f32.mxu0 %v4953
    %6734 = vmatmul.mubr.f32.gmra.mrb[0].mxu0 %v4952
    %v6735 = vpop.f32.mrb[0].mxu0
    %v6736 = vadd.f32 %v6351, %v6735
    %v6737 = vpop.f32.mrb[0].mxu0
    %6738 = vmatprep.mubr.f32.mxu0 %v4962
    %6739 = vmatmul.mubr.f32.gmra.mrb[0].mxu0 %v4961
    %v6740 = vpop.f32.mrb[0].mxu0
    %v6741 = vadd.f32 %v6356, %v6740
    %v6742 = vpop.f32.mrb[0].mxu0
    %6743 = vmatprep.mubr.f32.mxu0 %v4971
    %6744 = vmatmul.mubr.f32.gmra.mrb[0].mxu0 %v4970
    %v6745 = vpop.f32.mrb[0].mxu0
    %v6746 = vadd.f32 %v6361, %v6745
    %v6747 = vpop.f32.mrb[0].mxu0
    %6748 = vmatprep.mubr.f32.mxu0 %v4980
    %6749 = vmatmul.mubr.f32.gmra.mrb[0].mxu0 %v4979
    %v6750 = vpop.f32.mrb[0].mxu0
    %v6751 = vadd.f32 %v6366, %v6750
    %v6752 = vpop.f32.mrb[0].mxu0
    %6753 = vmatprep.mubr.f32.mxu0 %v4989
    %6754 = vmatmul.mubr.f32.gmra.mrb[0].mxu0 %v4988
    %v6755 = vpop.f32.mrb[0].mxu0
    %v6756 = vadd.f32 %v6371, %v6755
    %v6757 = vpop.f32.mrb[0].mxu0
    %6758 = vmatprep.mubr.f32.mxu0 %v4998
    %6759 = vmatmul.mubr.f32.gmra.mrb[0].mxu0 %v4997
    %v6760 = vpop.f32.mrb[0].mxu0
    %v6761 = vadd.f32 %v6376, %v6760
    %v6762 = vpop.f32.mrb[0].mxu0
    %6763 = vmatprep.mubr.f32.mxu0 %v5007
    %6764 = vmatmul.mubr.f32.gmra.mrb[0].mxu0 %v5006
    %v6765 = vpop.f32.mrb[0].mxu0
    %v6766 = vadd.f32 %v6381, %v6765
    %v6767 = vpop.f32.mrb[0].mxu0
    %6768 = vmatprep.mubr.f32.mxu0 %v5016
    %6769 = vmatmul.mubr.f32.gmra.mrb[0].mxu0 %v5015
    %v6770 = vpop.f32.mrb[0].mxu0
    %v6771 = vadd.f32 %v6386, %v6770
    %v6772 = vpop.f32.mrb[0].mxu0
    %6773 = vmatprep.mubr.f32.mxu0 %v5025
    %6774 = vmatmul.mubr.f32.gmra.mrb[0].mxu0 %v5024
    %v6775 = vpop.f32.mrb[0].mxu0
    %v6776 = vadd.f32 %v6391, %v6775
    %v6777 = vpop.f32.mrb[0].mxu0
    %6778 = vmatprep.mubr.f32.mxu0 %v5034
    %6779 = vmatmul.mubr.f32.gmra.mrb[0].mxu0 %v5033
    %v6780 = vpop.f32.mrb[0].mxu0
    %v6781 = vadd.f32 %v6396, %v6780
    %v6782 = vpop.f32.mrb[0].mxu0
    %6783 = vmatprep.mubr.f32.mxu0 %v5043
    %6784 = vmatmul.mubr.f32.gmra.mrb[0].mxu0 %v5042
    %v6785 = vpop.f32.mrb[0].mxu0
    %v6786 = vadd.f32 %v6401, %v6785
    %v6787 = vpop.f32.mrb[0].mxu0
    %6788 = vmatprep.mubr.f32.mxu0 %v5052
    %6789 = vmatmul.mubr.f32.gmra.mrb[0].mxu0 %v5051
    %v6790 = vpop.f32.mrb[0].mxu0
    %v6791 = vadd.f32 %v6406, %v6790
    %v6792 = vpop.f32.mrb[0].mxu0
    %6793 = vmatprep.mubr.f32.mxu0 %v5061
    %6794 = vmatmul.mubr.f32.gmra.mrb[0].mxu0 %v5060
    %v6795 = vpop.f32.mrb[0].mxu0
    %v6796 = vadd.f32 %v6411, %v6795
    %v6797 = vpop.f32.mrb[0].mxu0
    %6798 = vmatprep.mubr.f32.mxu0 %v5070
    %6799 = vmatmul.mubr.f32.gmra.mrb[0].mxu0 %v5069
    %v6800 = vpop.f32.mrb[0].mxu0
    %v6801 = vadd.f32 %v6416, %v6800
    %v6802 = vpop.f32.mrb[0].mxu0
    %6803 = vmatprep.mubr.f32.mxu0 %v5079
    %6804 = vmatmul.mubr.f32.gmra.mrb[0].mxu0 %v5078
    %v6805 = vpop.f32.mrb[0].mxu0
    %v6806 = vadd.f32 %v6421, %v6805
    %v6807 = vpop.f32.mrb[0].mxu0
    %6808 = vmatprep.mubr.f32.mxu0 %v5088
    %6809 = vmatmul.mubr.f32.gmra.mrb[0].mxu0 %v5087
    %v6810 = vpop.f32.mrb[0].mxu0
    %v6811 = vadd.f32 %v6426, %v6810
    %v6812 = vpop.f32.mrb[0].mxu0
    %6813 = vmatprep.mubr.f32.mxu0 %v5097
    %6814 = vmatmul.mubr.f32.gmra.mrb[0].mxu0 %v5096
    %v6815 = vpop.f32.mrb[0].mxu0
    %v6816 = vadd.f32 %v6431, %v6815
    %v6817 = vpop.f32.mrb[0].mxu0
    %6818 = vmatprep.mubr.f32.mxu0 %v5106
    %6819 = vmatmul.mubr.f32.gmra.mrb[0].mxu0 %v5105
    %v6820 = vpop.f32.mrb[0].mxu0
    %v6821 = vadd.f32 %v6436, %v6820
    %v6822 = vpop.f32.mrb[0].mxu0
    %6823 = vmatprep.mubr.f32.mxu0 %v5115
    %6824 = vmatmul.mubr.f32.gmra.mrb[0].mxu0 %v5114
    %v6825 = vpop.f32.mrb[0].mxu0
    %v6826 = vadd.f32 %v6441, %v6825
    %v6827 = vpop.f32.mrb[0].mxu0
    %6828 = vmatprep.mubr.f32.mxu0 %v5124
    %6829 = vmatmul.mubr.f32.gmra.mrb[0].mxu0 %v5123
    %v6830 = vpop.f32.mrb[0].mxu0
    %v6831 = vadd.f32 %v6446, %v6830
    %v6832 = vpop.f32.mrb[0].mxu0
    %6833 = vmatprep.mubr.f32.mxu0 %v5133
    %6834 = vmatmul.mubr.f32.gmra.mrb[0].mxu0 %v5132
    %v6835 = vpop.f32.mrb[0].mxu0
    %v6836 = vadd.f32 %v6451, %v6835
    %v6837 = vpop.f32.mrb[0].mxu0
    %6838 = vmatprep.mubr.f32.mxu0 %v5142
    %6839 = vmatmul.mubr.f32.gmra.mrb[0].mxu0 %v5141
    %v6840 = vpop.f32.mrb[0].mxu0
    %v6841 = vadd.f32 %v6456, %v6840
    %v6842 = vpop.f32.mrb[0].mxu0
    %6843 = vmatprep.mubr.f32.mxu0 %v5151
    %6844 = vmatmul.mubr.f32.gmra.mrb[0].mxu0 %v5150
    %v6845 = vpop.f32.mrb[0].mxu0
    %v6846 = vadd.f32 %v6461, %v6845
    %v6847 = vpop.f32.mrb[0].mxu0
    %6848 = vmatprep.mubr.f32.mxu0 %v5160
    %6849 = vmatmul.mubr.f32.gmra.mrb[0].mxu0 %v5159
    %v6850 = vpop.f32.mrb[0].mxu0
    %v6851 = vadd.f32 %v6466, %v6850
    %v6852 = vpop.f32.mrb[0].mxu0
    %6853 = vmatprep.mubr.f32.mxu0 %v5169
    %6854 = vmatmul.mubr.f32.gmra.mrb[0].mxu0 %v5168
    %v6855 = vpop.f32.mrb[0].mxu0
    %v6856 = vadd.f32 %v6471, %v6855
    %v6857 = vpop.f32.mrb[0].mxu0
    %6858 = vmatprep.mubr.f32.mxu0 %v5178
    %6859 = vmatmul.mubr.f32.gmra.mrb[0].mxu0 %v5177
    %v6860 = vpop.f32.mrb[0].mxu0
    %v6861 = vadd.f32 %v6476, %v6860
    %v6862 = vpop.f32.mrb[0].mxu0
    %6863 = vdwg.mxu0
    %6864 = vmatprep.subr.mxu0 0.0
    %6865 = vmatpush1.msra.mxu0 %v5308
    %6866 = vmatprep.subr.mxu0 0.0
    %6867 = vmatpush1.msra.mxu0 %v5309
    %6868 = vmatprep.subr.mxu0 0.0
    %6869 = vmatpush1.msra.mxu0 %v5310
    %6870 = vmatprep.subr.mxu0 0.0
    %6871 = vmatpush1.msra.mxu0 %v5311
    %6872 = vmatprep.subr.mxu0 0.0
    %6873 = vmatpush1.msra.mxu0 %v5312
    %6874 = vmatprep.subr.mxu0 0.0
    %6875 = vmatpush1.msra.mxu0 %v5313
    %6876 = vmatprep.subr.mxu0 0.0
    %6877 = vmatpush1.msra.mxu0 %v5314
    %6878 = vmatprep.subr.mxu0 0.0
    %6879 = vmatpush1.msra.mxu0 %v5315
    %6880 = vmatprep.subr.mxu0 0.0
    %6881 = vmatpush1.msra.mxu0 %v5316
    %6882 = vmatprep.subr.mxu0 0.0
    %6883 = vmatpush1.msra.mxu0 %v5317
    %6884 = vmatprep.subr.mxu0 0.0
    %6885 = vmatpush1.msra.mxu0 %v5318
    %6886 = vmatprep.subr.mxu0 0.0
    %6887 = vmatpush1.msra.mxu0 %v5319
    %6888 = vmatprep.subr.mxu0 0.0
    %6889 = vmatpush1.msra.mxu0 %v5320
    %6890 = vmatprep.subr.mxu0 0.0
    %6891 = vmatpush1.msra.mxu0 %v5321
    %6892 = vmatprep.subr.mxu0 0.0
    %6893 = vmatpush1.msra.mxu0 %v5322
    %6894 = vmatprep.subr.mxu0 0.0
    %6895 = vmatpush1.msra.mxu0 %v5323
    %6896 = vmatprep.subr.mxu0 0.0
    %6897 = vmatpush1.msra.mxu0 0.0
    %6898 = vmatprep.subr.mxu0 0.0
    %6899 = vmatpush1.msra.mxu0 0.0
    %6900 = vmatprep.subr.mxu0 0.0
    %6901 = vmatpush1.msra.mxu0 0.0
    %6902 = vmatprep.subr.mxu0 0.0
    %6903 = vmatpush1.msra.mxu0 0.0
    %6904 = vmatprep.subr.mxu0 0.0
    %6905 = vmatpush1.msra.mxu0 0.0
    %6906 = vmatprep.subr.mxu0 0.0
    %6907 = vmatpush1.msra.mxu0 0.0
    %6908 = vmatprep.subr.mxu0 0.0
    %6909 = vmatpush1.msra.mxu0 0.0
    %6910 = vmatprep.subr.mxu0 0.0
    %6911 = vmatpush1.msra.mxu0 0.0
    %6912 = vmatprep.subr.mxu0 0.0
    %6913 = vmatpush1.msra.mxu0 0.0
    %6914 = vmatprep.subr.mxu0 0.0
    %6915 = vmatpush1.msra.mxu0 0.0
    %6916 = vmatprep.subr.mxu0 0.0
    %6917 = vmatpush1.msra.mxu0 0.0
    %6918 = vmatprep.subr.mxu0 0.0
    %6919 = vmatpush1.msra.mxu0 0.0
    %6920 = vmatprep.subr.mxu0 0.0
    %6921 = vmatpush1.msra.mxu0 0.0
    %6922 = vmatprep.subr.mxu0 0.0
    %6923 = vmatpush1.msra.mxu0 0.0
    %6924 = vmatprep.subr.mxu0 0.0
    %6925 = vmatpush1.msra.mxu0 0.0
    %6926 = vmatprep.subr.mxu0 0.0
    %6927 = vmatpush1.msra.mxu0 0.0
    %6928 = vmatprep.mubr.f32.mxu0 0.0
    %6929 = vmatmul.mubr.f32.gmra.mrb[0].mxu0 %v4612
    %v6930 = vpop.f32.mrb[0].mxu0
    %v6931 = vadd.f32 %v6546, %v6930
    %v6932 = vpop.f32.mrb[0].mxu0
    %6933 = vmatprep.mubr.f32.mxu0 0.0
    %6934 = vmatmul.mubr.f32.gmra.mrb[0].mxu0 %v4621
    %v6935 = vpop.f32.mrb[0].mxu0
    %v6936 = vadd.f32 %v6551, %v6935
    %v6937 = vpop.f32.mrb[0].mxu0
    %6938 = vmatprep.mubr.f32.mxu0 0.0
    %6939 = vmatmul.mubr.f32.gmra.mrb[0].mxu0 %v4630
    %v6940 = vpop.f32.mrb[0].mxu0
    %v6941 = vadd.f32 %v6556, %v6940
    %v6942 = vpop.f32.mrb[0].mxu0
    %6943 = vmatprep.mubr.f32.mxu0 0.0
    %6944 = vmatmul.mubr.f32.gmra.mrb[0].mxu0 %v4639
    %v6945 = vpop.f32.mrb[0].mxu0
    %v6946 = vadd.f32 %v6561, %v6945
    %v6947 = vpop.f32.mrb[0].mxu0
    %6948 = vmatprep.mubr.f32.mxu0 0.0
    %6949 = vmatmul.mubr.f32.gmra.mrb[0].mxu0 %v4648
    %v6950 = vpop.f32.mrb[0].mxu0
    %v6951 = vadd.f32 %v6566, %v6950
    %v6952 = vpop.f32.mrb[0].mxu0
    %6953 = vmatprep.mubr.f32.mxu0 0.0
    %6954 = vmatmul.mubr.f32.gmra.mrb[0].mxu0 %v4657
    %v6955 = vpop.f32.mrb[0].mxu0
    %v6956 = vadd.f32 %v6571, %v6955
    %v6957 = vpop.f32.mrb[0].mxu0
    %6958 = vmatprep.mubr.f32.mxu0 0.0
    %6959 = vmatmul.mubr.f32.gmra.mrb[0].mxu0 %v4666
    %v6960 = vpop.f32.mrb[0].mxu0
    %v6961 = vadd.f32 %v6576, %v6960
    %v6962 = vpop.f32.mrb[0].mxu0
    %6963 = vmatprep.mubr.f32.mxu0 0.0
    %6964 = vmatmul.mubr.f32.gmra.mrb[0].mxu0 %v4675
    %v6965 = vpop.f32.mrb[0].mxu0
    %v6966 = vadd.f32 %v6581, %v6965
    %v6967 = vpop.f32.mrb[0].mxu0
    %6968 = vmatprep.mubr.f32.mxu0 0.0
    %6969 = vmatmul.mubr.f32.gmra.mrb[0].mxu0 %v4684
    %v6970 = vpop.f32.mrb[0].mxu0
    %v6971 = vadd.f32 %v6586, %v6970
    %v6972 = vpop.f32.mrb[0].mxu0
    %6973 = vmatprep.mubr.f32.mxu0 0.0
    %6974 = vmatmul.mubr.f32.gmra.mrb[0].mxu0 %v4693
    %v6975 = vpop.f32.mrb[0].mxu0
    %v6976 = vadd.f32 %v6591, %v6975
    %v6977 = vpop.f32.mrb[0].mxu0
    %6978 = vmatprep.mubr.f32.mxu0 0.0
    %6979 = vmatmul.mubr.f32.gmra.mrb[0].mxu0 %v4702
    %v6980 = vpop.f32.mrb[0].mxu0
    %v6981 = vadd.f32 %v6596, %v6980
    %v6982 = vpop.f32.mrb[0].mxu0
    %6983 = vmatprep.mubr.f32.mxu0 0.0
    %6984 = vmatmul.mubr.f32.gmra.mrb[0].mxu0 %v4711
    %v6985 = vpop.f32.mrb[0].mxu0
    %v6986 = vadd.f32 %v6601, %v6985
    %v6987 = vpop.f32.mrb[0].mxu0
    %6988 = vmatprep.mubr.f32.mxu0 0.0
    %6989 = vmatmul.mubr.f32.gmra.mrb[0].mxu0 %v4720
    %v6990 = vpop.f32.mrb[0].mxu0
    %v6991 = vadd.f32 %v6606, %v6990
    %v6992 = vpop.f32.mrb[0].mxu0
    %6993 = vmatprep.mubr.f32.mxu0 0.0
    %6994 = vmatmul.mubr.f32.gmra.mrb[0].mxu0 %v4729
    %v6995 = vpop.f32.mrb[0].mxu0
    %v6996 = vadd.f32 %v6611, %v6995
    %v6997 = vpop.f32.mrb[0].mxu0
    %6998 = vmatprep.mubr.f32.mxu0 0.0
    %6999 = vmatmul.mubr.f32.gmra.mrb[0].mxu0 %v4738
    %v7000 = vpop.f32.mrb[0].mxu0
    %v7001 = vadd.f32 %v6616, %v7000
    %v7002 = vpop.f32.mrb[0].mxu0
    %7003 = vmatprep.mubr.f32.mxu0 0.0
    %7004 = vmatmul.mubr.f32.gmra.mrb[0].mxu0 %v4747
    %v7005 = vpop.f32.mrb[0].mxu0
    %v7006 = vadd.f32 %v6621, %v7005
    %v7007 = vpop.f32.mrb[0].mxu0
    %7008 = vmatprep.mubr.f32.mxu0 0.0
    %7009 = vmatmul.mubr.f32.gmra.mrb[0].mxu0 %v4756
    %v7010 = vpop.f32.mrb[0].mxu0
    %v7011 = vadd.f32 %v6626, %v7010
    %v7012 = vpop.f32.mrb[0].mxu0
    %7013 = vmatprep.mubr.f32.mxu0 0.0
    %7014 = vmatmul.mubr.f32.gmra.mrb[0].mxu0 %v4765
    %v7015 = vpop.f32.mrb[0].mxu0
    %v7016 = vadd.f32 %v6631, %v7015
    %v7017 = vpop.f32.mrb[0].mxu0
    %7018 = vmatprep.mubr.f32.mxu0 0.0
    %7019 = vmatmul.mubr.f32.gmra.mrb[0].mxu0 %v4774
    %v7020 = vpop.f32.mrb[0].mxu0
    %v7021 = vadd.f32 %v6636, %v7020
    %v7022 = vpop.f32.mrb[0].mxu0
    %7023 = vmatprep.mubr.f32.mxu0 0.0
    %7024 = vmatmul.mubr.f32.gmra.mrb[0].mxu0 %v4783
    %v7025 = vpop.f32.mrb[0].mxu0
    %v7026 = vadd.f32 %v6641, %v7025
    %v7027 = vpop.f32.mrb[0].mxu0
    %7028 = vmatprep.mubr.f32.mxu0 0.0
    %7029 = vmatmul.mubr.f32.gmra.mrb[0].mxu0 %v4792
    %v7030 = vpop.f32.mrb[0].mxu0
    %v7031 = vadd.f32 %v6646, %v7030
    %v7032 = vpop.f32.mrb[0].mxu0
    %7033 = vmatprep.mubr.f32.mxu0 0.0
    %7034 = vmatmul.mubr.f32.gmra.mrb[0].mxu0 %v4801
    %v7035 = vpop.f32.mrb[0].mxu0
    %v7036 = vadd.f32 %v6651, %v7035
    %v7037 = vpop.f32.mrb[0].mxu0
    %7038 = vmatprep.mubr.f32.mxu0 0.0
    %7039 = vmatmul.mubr.f32.gmra.mrb[0].mxu0 %v4810
    %v7040 = vpop.f32.mrb[0].mxu0
    %v7041 = vadd.f32 %v6656, %v7040
    %v7042 = vpop.f32.mrb[0].mxu0
    %7043 = vmatprep.mubr.f32.mxu0 0.0
    %7044 = vmatmul.mubr.f32.gmra.mrb[0].mxu0 %v4819
    %v7045 = vpop.f32.mrb[0].mxu0
    %v7046 = vadd.f32 %v6661, %v7045
    %v7047 = vpop.f32.mrb[0].mxu0
    %7048 = vmatprep.mubr.f32.mxu0 0.0
    %7049 = vmatmul.mubr.f32.gmra.mrb[0].mxu0 %v4828
    %v7050 = vpop.f32.mrb[0].mxu0
    %v7051 = vadd.f32 %v6666, %v7050
    %v7052 = vpop.f32.mrb[0].mxu0
    %7053 = vmatprep.mubr.f32.mxu0 0.0
    %7054 = vmatmul.mubr.f32.gmra.mrb[0].mxu0 %v4837
    %v7055 = vpop.f32.mrb[0].mxu0
    %v7056 = vadd.f32 %v6671, %v7055
    %v7057 = vpop.f32.mrb[0].mxu0
    %7058 = vmatprep.mubr.f32.mxu0 0.0
    %7059 = vmatmul.mubr.f32.gmra.mrb[0].mxu0 %v4846
    %v7060 = vpop.f32.mrb[0].mxu0
    %v7061 = vadd.f32 %v6676, %v7060
    %v7062 = vpop.f32.mrb[0].mxu0
    %7063 = vmatprep.mubr.f32.mxu0 0.0
    %7064 = vmatmul.mubr.f32.gmra.mrb[0].mxu0 %v4855
    %v7065 = vpop.f32.mrb[0].mxu0
    %v7066 = vadd.f32 %v6681, %v7065
    %v7067 = vpop.f32.mrb[0].mxu0
    %7068 = vmatprep.mubr.f32.mxu0 0.0
    %7069 = vmatmul.mubr.f32.gmra.mrb[0].mxu0 %v4864
    %v7070 = vpop.f32.mrb[0].mxu0
    %v7071 = vadd.f32 %v6686, %v7070
    %v7072 = vpop.f32.mrb[0].mxu0
    %7073 = vmatprep.mubr.f32.mxu0 0.0
    %7074 = vmatmul.mubr.f32.gmra.mrb[0].mxu0 %v4873
    %v7075 = vpop.f32.mrb[0].mxu0
    %v7076 = vadd.f32 %v6691, %v7075
    %v7077 = vpop.f32.mrb[0].mxu0
    %7078 = vmatprep.mubr.f32.mxu0 0.0
    %7079 = vmatmul.mubr.f32.gmra.mrb[0].mxu0 %v4882
    %v7080 = vpop.f32.mrb[0].mxu0
    %v7081 = vadd.f32 %v6696, %v7080
    %v7082 = vpop.f32.mrb[0].mxu0
    %7083 = vmatprep.mubr.f32.mxu0 0.0
    %7084 = vmatmul.mubr.f32.gmra.mrb[0].mxu0 %v4891
    %v7085 = vpop.f32.mrb[0].mxu0
    %v7086 = vadd.f32 %v6701, %v7085
    %v7087 = vpop.f32.mrb[0].mxu0
    %7088 = vmatprep.mubr.f32.mxu0 0.0
    %7089 = vmatmul.mubr.f32.gmra.mrb[0].mxu0 %v4900
    %v7090 = vpop.f32.mrb[0].mxu0
    %v7091 = vadd.f32 %v6706, %v7090
    %v7092 = vpop.f32.mrb[0].mxu0
    %7093 = vmatprep.mubr.f32.mxu0 0.0
    %7094 = vmatmul.mubr.f32.gmra.mrb[0].mxu0 %v4909
    %v7095 = vpop.f32.mrb[0].mxu0
    %v7096 = vadd.f32 %v6711, %v7095
    %v7097 = vpop.f32.mrb[0].mxu0
    %7098 = vmatprep.mubr.f32.mxu0 0.0
    %7099 = vmatmul.mubr.f32.gmra.mrb[0].mxu0 %v4918
    %v7100 = vpop.f32.mrb[0].mxu0
    %v7101 = vadd.f32 %v6716, %v7100
    %v7102 = vpop.f32.mrb[0].mxu0
    %7103 = vmatprep.mubr.f32.mxu0 0.0
    %7104 = vmatmul.mubr.f32.gmra.mrb[0].mxu0 %v4927
    %v7105 = vpop.f32.mrb[0].mxu0
    %v7106 = vadd.f32 %v6721, %v7105
    %v7107 = vpop.f32.mrb[0].mxu0
    %7108 = vmatprep.mubr.f32.mxu0 0.0
    %7109 = vmatmul.mubr.f32.gmra.mrb[0].mxu0 %v4936
    %v7110 = vpop.f32.mrb[0].mxu0
    %v7111 = vadd.f32 %v6726, %v7110
    %v7112 = vpop.f32.mrb[0].mxu0
    %7113 = vmatprep.mubr.f32.mxu0 0.0
    %7114 = vmatmul.mubr.f32.gmra.mrb[0].mxu0 %v4945
    %v7115 = vpop.f32.mrb[0].mxu0
    %v7116 = vadd.f32 %v6731, %v7115
    %v7117 = vpop.f32.mrb[0].mxu0
    %7118 = vmatprep.mubr.f32.mxu0 0.0
    %7119 = vmatmul.mubr.f32.gmra.mrb[0].mxu0 %v4954
    %v7120 = vpop.f32.mrb[0].mxu0
    %v7121 = vadd.f32 %v6736, %v7120
    %v7122 = vpop.f32.mrb[0].mxu0
    %7123 = vmatprep.mubr.f32.mxu0 0.0
    %7124 = vmatmul.mubr.f32.gmra.mrb[0].mxu0 %v4963
    %v7125 = vpop.f32.mrb[0].mxu0
    %v7126 = vadd.f32 %v6741, %v7125
    %v7127 = vpop.f32.mrb[0].mxu0
    %7128 = vmatprep.mubr.f32.mxu0 0.0
    %7129 = vmatmul.mubr.f32.gmra.mrb[0].mxu0 %v4972
    %v7130 = vpop.f32.mrb[0].mxu0
    %v7131 = vadd.f32 %v6746, %v7130
    %v7132 = vpop.f32.mrb[0].mxu0
    %7133 = vmatprep.mubr.f32.mxu0 0.0
    %7134 = vmatmul.mubr.f32.gmra.mrb[0].mxu0 %v4981
    %v7135 = vpop.f32.mrb[0].mxu0
    %v7136 = vadd.f32 %v6751, %v7135
    %v7137 = vpop.f32.mrb[0].mxu0
    %7138 = vmatprep.mubr.f32.mxu0 0.0
    %7139 = vmatmul.mubr.f32.gmra.mrb[0].mxu0 %v4990
    %v7140 = vpop.f32.mrb[0].mxu0
    %v7141 = vadd.f32 %v6756, %v7140
    %v7142 = vpop.f32.mrb[0].mxu0
    %7143 = vmatprep.mubr.f32.mxu0 0.0
    %7144 = vmatmul.mubr.f32.gmra.mrb[0].mxu0 %v4999
    %v7145 = vpop.f32.mrb[0].mxu0
    %v7146 = vadd.f32 %v6761, %v7145
    %v7147 = vpop.f32.mrb[0].mxu0
    %7148 = vmatprep.mubr.f32.mxu0 0.0
    %7149 = vmatmul.mubr.f32.gmra.mrb[0].mxu0 %v5008
    %v7150 = vpop.f32.mrb[0].mxu0
    %v7151 = vadd.f32 %v6766, %v7150
    %v7152 = vpop.f32.mrb[0].mxu0
    %7153 = vmatprep.mubr.f32.mxu0 0.0
    %7154 = vmatmul.mubr.f32.gmra.mrb[0].mxu0 %v5017
    %v7155 = vpop.f32.mrb[0].mxu0
    %v7156 = vadd.f32 %v6771, %v7155
    %v7157 = vpop.f32.mrb[0].mxu0
    %7158 = vmatprep.mubr.f32.mxu0 0.0
    %7159 = vmatmul.mubr.f32.gmra.mrb[0].mxu0 %v5026
    %v7160 = vpop.f32.mrb[0].mxu0
    %v7161 = vadd.f32 %v6776, %v7160
    %v7162 = vpop.f32.mrb[0].mxu0
    %7163 = vmatprep.mubr.f32.mxu0 0.0
    %7164 = vmatmul.mubr.f32.gmra.mrb[0].mxu0 %v5035
    %v7165 = vpop.f32.mrb[0].mxu0
    %v7166 = vadd.f32 %v6781, %v7165
    %v7167 = vpop.f32.mrb[0].mxu0
    %7168 = vmatprep.mubr.f32.mxu0 0.0
    %7169 = vmatmul.mubr.f32.gmra.mrb[0].mxu0 %v5044
    %v7170 = vpop.f32.mrb[0].mxu0
    %v7171 = vadd.f32 %v6786, %v7170
    %v7172 = vpop.f32.mrb[0].mxu0
    %7173 = vmatprep.mubr.f32.mxu0 0.0
    %7174 = vmatmul.mubr.f32.gmra.mrb[0].mxu0 %v5053
    %v7175 = vpop.f32.mrb[0].mxu0
    %v7176 = vadd.f32 %v6791, %v7175
    %v7177 = vpop.f32.mrb[0].mxu0
    %7178 = vmatprep.mubr.f32.mxu0 0.0
    %7179 = vmatmul.mubr.f32.gmra.mrb[0].mxu0 %v5062
    %v7180 = vpop.f32.mrb[0].mxu0
    %v7181 = vadd.f32 %v6796, %v7180
    %v7182 = vpop.f32.mrb[0].mxu0
    %7183 = vmatprep.mubr.f32.mxu0 0.0
    %7184 = vmatmul.mubr.f32.gmra.mrb[0].mxu0 %v5071
    %v7185 = vpop.f32.mrb[0].mxu0
    %v7186 = vadd.f32 %v6801, %v7185
    %v7187 = vpop.f32.mrb[0].mxu0
    %7188 = vmatprep.mubr.f32.mxu0 0.0
    %7189 = vmatmul.mubr.f32.gmra.mrb[0].mxu0 %v5080
    %v7190 = vpop.f32.mrb[0].mxu0
    %v7191 = vadd.f32 %v6806, %v7190
    %v7192 = vpop.f32.mrb[0].mxu0
    %7193 = vmatprep.mubr.f32.mxu0 0.0
    %7194 = vmatmul.mubr.f32.gmra.mrb[0].mxu0 %v5089
    %v7195 = vpop.f32.mrb[0].mxu0
    %v7196 = vadd.f32 %v6811, %v7195
    %v7197 = vpop.f32.mrb[0].mxu0
    %7198 = vmatprep.mubr.f32.mxu0 0.0
    %7199 = vmatmul.mubr.f32.gmra.mrb[0].mxu0 %v5098
    %v7200 = vpop.f32.mrb[0].mxu0
    %v7201 = vadd.f32 %v6816, %v7200
    %v7202 = vpop.f32.mrb[0].mxu0
    %7203 = vmatprep.mubr.f32.mxu0 0.0
    %7204 = vmatmul.mubr.f32.gmra.mrb[0].mxu0 %v5107
    %v7205 = vpop.f32.mrb[0].mxu0
    %v7206 = vadd.f32 %v6821, %v7205
    %v7207 = vpop.f32.mrb[0].mxu0
    %7208 = vmatprep.mubr.f32.mxu0 0.0
    %7209 = vmatmul.mubr.f32.gmra.mrb[0].mxu0 %v5116
    %v7210 = vpop.f32.mrb[0].mxu0
    %v7211 = vadd.f32 %v6826, %v7210
    %v7212 = vpop.f32.mrb[0].mxu0
    %7213 = vmatprep.mubr.f32.mxu0 0.0
    %7214 = vmatmul.mubr.f32.gmra.mrb[0].mxu0 %v5125
    %v7215 = vpop.f32.mrb[0].mxu0
    %v7216 = vadd.f32 %v6831, %v7215
    %v7217 = vpop.f32.mrb[0].mxu0
    %7218 = vmatprep.mubr.f32.mxu0 0.0
    %7219 = vmatmul.mubr.f32.gmra.mrb[0].mxu0 %v5134
    %v7220 = vpop.f32.mrb[0].mxu0
    %v7221 = vadd.f32 %v6836, %v7220
    %v7222 = vpop.f32.mrb[0].mxu0
    %7223 = vmatprep.mubr.f32.mxu0 0.0
    %7224 = vmatmul.mubr.f32.gmra.mrb[0].mxu0 %v5143
    %v7225 = vpop.f32.mrb[0].mxu0
    %v7226 = vadd.f32 %v6841, %v7225
    %v7227 = vpop.f32.mrb[0].mxu0
    %7228 = vmatprep.mubr.f32.mxu0 0.0
    %7229 = vmatmul.mubr.f32.gmra.mrb[0].mxu0 %v5152
    %v7230 = vpop.f32.mrb[0].mxu0
    %v7231 = vadd.f32 %v6846, %v7230
    %v7232 = vpop.f32.mrb[0].mxu0
    %7233 = vmatprep.mubr.f32.mxu0 0.0
    %7234 = vmatmul.mubr.f32.gmra.mrb[0].mxu0 %v5161
    %v7235 = vpop.f32.mrb[0].mxu0
    %v7236 = vadd.f32 %v6851, %v7235
    %v7237 = vpop.f32.mrb[0].mxu0
    %7238 = vmatprep.mubr.f32.mxu0 0.0
    %7239 = vmatmul.mubr.f32.gmra.mrb[0].mxu0 %v5170
    %v7240 = vpop.f32.mrb[0].mxu0
    %v7241 = vadd.f32 %v6856, %v7240
    %v7242 = vpop.f32.mrb[0].mxu0
    %7243 = vmatprep.mubr.f32.mxu0 0.0
    %7244 = vmatmul.mubr.f32.gmra.mrb[0].mxu0 %v5179
    %v7245 = vpop.f32.mrb[0].mxu0
    %v7246 = vadd.f32 %v6861, %v7245
    %v7247 = vpop.f32.mrb[0].mxu0
    %7248 = vdwg.mxu0
    %v7249 = vmax.f32 %v6931, %v7011
    %v7250 = vmax.f32 %v6936, %v7016
    %v7251 = vmax.f32 %v6941, %v7021
    %v7252 = vmax.f32 %v6946, %v7026
    %v7253 = vmax.f32 %v6951, %v7031
    %v7254 = vmax.f32 %v6956, %v7036
    %v7255 = vmax.f32 %v6961, %v7041
    %v7256 = vmax.f32 %v6966, %v7046
    %v7257 = vmax.f32 %v6971, %v7051
    %v7258 = vmax.f32 %v6976, %v7056
    %v7259 = vmax.f32 %v6981, %v7061
    %v7260 = vmax.f32 %v6986, %v7066
    %v7261 = vmax.f32 %v6991, %v7071
    %v7262 = vmax.f32 %v6996, %v7076
    %v7263 = vmax.f32 %v7001, %v7081
    %v7264 = vmax.f32 %v7006, %v7086
    %v7265 = vmax.f32 %v7091, %v7171
    %v7266 = vmax.f32 %v7096, %v7176
    %v7267 = vmax.f32 %v7101, %v7181
    %v7268 = vmax.f32 %v7106, %v7186
    %v7269 = vmax.f32 %v7111, %v7191
    %v7270 = vmax.f32 %v7116, %v7196
    %v7271 = vmax.f32 %v7121, %v7201
    %v7272 = vmax.f32 %v7126, %v7206
    %v7273 = vmax.f32 %v7131, %v7211
    %v7274 = vmax.f32 %v7136, %v7216
    %v7275 = vmax.f32 %v7141, %v7221
    %v7276 = vmax.f32 %v7146, %v7226
    %v7277 = vmax.f32 %v7151, %v7231
    %v7278 = vmax.f32 %v7156, %v7236
    %v7279 = vmax.f32 %v7161, %v7241
    %v7280 = vmax.f32 %v7166, %v7246
    %v7281 = vmax.f32 %v7249, %v7265
    %v7282 = vmax.f32 %v7250, %v7266
    %v7283 = vmax.f32 %v7251, %v7267
    %v7284 = vmax.f32 %v7252, %v7268
    %v7285 = vmax.f32 %v7253, %v7269
    %v7286 = vmax.f32 %v7254, %v7270
    %v7287 = vmax.f32 %v7255, %v7271
    %v7288 = vmax.f32 %v7256, %v7272
    %v7289 = vmax.f32 %v7257, %v7273
    %v7290 = vmax.f32 %v7258, %v7274
    %v7291 = vmax.f32 %v7259, %v7275
    %v7292 = vmax.f32 %v7260, %v7276
    %v7293 = vmax.f32 %v7261, %v7277
    %v7294 = vmax.f32 %v7262, %v7278
    %v7295 = vmax.f32 %v7263, %v7279
    %v7296 = vmax.f32 %v7264, %v7280
    %v7297 = vld [vmem:[%s5] sm:$0x1]
    %v7299 = vlaneseq
    %v7300 = vshrl.u32 %v7299, 7
    %v7301 = vsub.s32 0, %v7300
    %v7302 = vrot.slane %v7297, %v7301
    %v7304 = vadd.f32 %v7281, %v7302
    %v7305 = vadd.f32 %v7282, %v7302
    %v7306 = vadd.f32 %v7283, %v7302
    %v7307 = vadd.f32 %v7284, %v7302
    %v7308 = vadd.f32 %v7285, %v7302
    %v7309 = vadd.f32 %v7286, %v7302
    %v7310 = vadd.f32 %v7287, %v7302
    %v7311 = vadd.f32 %v7288, %v7302
    %v7312 = vadd.f32 %v7289, %v7302
    %v7313 = vadd.f32 %v7290, %v7302
    %v7314 = vadd.f32 %v7291, %v7302
    %v7315 = vadd.f32 %v7292, %v7302
    %v7316 = vadd.f32 %v7293, %v7302
    %v7317 = vadd.f32 %v7294, %v7302
    %v7318 = vadd.f32 %v7295, %v7302
    %v7319 = vadd.f32 %v7296, %v7302
    %v7320 = vmax.f32 %v7304, 0.0
    %v7321 = vmax.f32 %v7305, 0.0
    %v7322 = vmax.f32 %v7306, 0.0
    %v7323 = vmax.f32 %v7307, 0.0
    %v7324 = vmax.f32 %v7308, 0.0
    %v7325 = vmax.f32 %v7309, 0.0
    %v7326 = vmax.f32 %v7310, 0.0
    %v7327 = vmax.f32 %v7311, 0.0
    %v7328 = vmax.f32 %v7312, 0.0
    %v7329 = vmax.f32 %v7313, 0.0
    %v7330 = vmax.f32 %v7314, 0.0
    %v7331 = vmax.f32 %v7315, 0.0
    %v7332 = vmax.f32 %v7316, 0.0
    %v7333 = vmax.f32 %v7317, 0.0
    %v7334 = vmax.f32 %v7318, 0.0
    %v7335 = vmax.f32 %v7319, 0.0
    %7337 = vrot.lane.b32.xlu0 %v7321, 64
    %v7338 = vpop.permute.xlu0 %7337
    %v7340 = vsel %vm3255, %v7320, %v7338
    %7342 = vrot.lane.b32.xlu0 %v7323, 64
    %v7343 = vpop.permute.xlu0 %7342
    %v7345 = vsel %vm3255, %v7322, %v7343
    %7347 = vrot.lane.b32.xlu0 %v7325, 64
    %v7348 = vpop.permute.xlu0 %7347
    %v7350 = vsel %vm3255, %v7324, %v7348
    %7352 = vrot.lane.b32.xlu0 %v7327, 64
    %v7353 = vpop.permute.xlu0 %7352
    %v7355 = vsel %vm3255, %v7326, %v7353
    %7357 = vrot.lane.b32.xlu0 %v7329, 64
    %v7358 = vpop.permute.xlu0 %7357
    %v7360 = vsel %vm3255, %v7328, %v7358
    %7362 = vrot.lane.b32.xlu0 %v7331, 64
    %v7363 = vpop.permute.xlu0 %7362
    %v7365 = vsel %vm3255, %v7330, %v7363
    %7367 = vrot.lane.b32.xlu0 %v7333, 64
    %v7368 = vpop.permute.xlu0 %7367
    %v7370 = vsel %vm3255, %v7332, %v7368
    %7372 = vrot.lane.b32.xlu0 %v7335, 64
    %v7373 = vpop.permute.xlu0 %7372
    %v7375 = vsel %vm3255, %v7334, %v7373
    %s7376 = smul.u32 8, 128
    %s7377 = smul.u32 %s7376, 4
    %s7378 = sshll.u32 %s7377, 4
    %7379 = dma.done %s1224, %s7378
    %v7380 = vld [vmem:[#allocation4] sm:$0xff]
    %v7381 = vld [vmem:[#allocation4 + $0x8] sm:$0xff]
    %v7382 = vld [vmem:[#allocation4 + $0x10] sm:$0xff]
    %v7383 = vld [vmem:[#allocation4 + $0x18] sm:$0xff]
    %v7384 = vld [vmem:[#allocation4 + $0x20] sm:$0xff]
    %v7385 = vld [vmem:[#allocation4 + $0x28] sm:$0xff]
    %v7386 = vld [vmem:[#allocation4 + $0x30] sm:$0xff]
    %v7387 = vld [vmem:[#allocation4 + $0x38] sm:$0xff]
    %v7388 = vld [vmem:[#allocation4 + $0x40] sm:$0xff]
    %v7389 = vld [vmem:[#allocation4 + $0x48] sm:$0xff]
    %v7390 = vld [vmem:[#allocation4 + $0x50] sm:$0xff]
    %v7391 = vld [vmem:[#allocation4 + $0x58] sm:$0xff]
    %v7392 = vld [vmem:[#allocation4 + $0x60] sm:$0xff]
    %v7393 = vld [vmem:[#allocation4 + $0x68] sm:$0xff]
    %v7394 = vld [vmem:[#allocation4 + $0x70] sm:$0xff]
    %v7395 = vld [vmem:[#allocation4 + $0x78] sm:$0xff]
    %v7396 = vld [vmem:[#allocation4 + $0x80] sm:$0xff]
    %v7397 = vld [vmem:[#allocation4 + $0x88] sm:$0xff]
    %v7398 = vld [vmem:[#allocation4 + $0x90] sm:$0xff]
    %v7399 = vld [vmem:[#allocation4 + $0x98] sm:$0xff]
    %v7400 = vld [vmem:[#allocation4 + $0xa0] sm:$0xff]
    %v7401 = vld [vmem:[#allocation4 + $0xa8] sm:$0xff]
    %v7402 = vld [vmem:[#allocation4 + $0xb0] sm:$0xff]
    %v7403 = vld [vmem:[#allocation4 + $0xb8] sm:$0xff]
    %v7404 = vld [vmem:[#allocation4 + $0xc0] sm:$0xff]
    %v7405 = vld [vmem:[#allocation4 + $0xc8] sm:$0xff]
    %v7406 = vld [vmem:[#allocation4 + $0xd0] sm:$0xff]
    %v7407 = vld [vmem:[#allocation4 + $0xd8] sm:$0xff]
    %v7408 = vld [vmem:[#allocation4 + $0xe0] sm:$0xff]
    %v7409 = vld [vmem:[#allocation4 + $0xe8] sm:$0xff]
    %v7410 = vld [vmem:[#allocation4 + $0xf0] sm:$0xff]
    %v7411 = vld [vmem:[#allocation4 + $0xf8] sm:$0xff]
    %v7412 = vld [vmem:[#allocation4 + $0x100] sm:$0xff]
    %v7413 = vld [vmem:[#allocation4 + $0x108] sm:$0xff]
    %v7414 = vld [vmem:[#allocation4 + $0x110] sm:$0xff]
    %v7415 = vld [vmem:[#allocation4 + $0x118] sm:$0xff]
    %v7416 = vld [vmem:[#allocation4 + $0x120] sm:$0xff]
    %v7417 = vld [vmem:[#allocation4 + $0x128] sm:$0xff]
    %v7418 = vld [vmem:[#allocation4 + $0x130] sm:$0xff]
    %v7419 = vld [vmem:[#allocation4 + $0x138] sm:$0xff]
    %v7420 = vld [vmem:[#allocation4 + $0x140] sm:$0xff]
    %v7421 = vld [vmem:[#allocation4 + $0x148] sm:$0xff]
    %v7422 = vld [vmem:[#allocation4 + $0x150] sm:$0xff]
    %v7423 = vld [vmem:[#allocation4 + $0x158] sm:$0xff]
    %v7424 = vld [vmem:[#allocation4 + $0x160] sm:$0xff]
    %v7425 = vld [vmem:[#allocation4 + $0x168] sm:$0xff]
    %v7426 = vld [vmem:[#allocation4 + $0x170] sm:$0xff]
    %v7427 = vld [vmem:[#allocation4 + $0x178] sm:$0xff]
    %v7428 = vld [vmem:[#allocation4 + $0x180] sm:$0xff]
    %v7429 = vld [vmem:[#allocation4 + $0x188] sm:$0xff]
    %v7430 = vld [vmem:[#allocation4 + $0x190] sm:$0xff]
    %v7431 = vld [vmem:[#allocation4 + $0x198] sm:$0xff]
    %v7432 = vld [vmem:[#allocation4 + $0x1a0] sm:$0xff]
    %v7433 = vld [vmem:[#allocation4 + $0x1a8] sm:$0xff]
    %v7434 = vld [vmem:[#allocation4 + $0x1b0] sm:$0xff]
    %v7435 = vld [vmem:[#allocation4 + $0x1b8] sm:$0xff]
    %v7436 = vld [vmem:[#allocation4 + $0x1c0] sm:$0xff]
    %v7437 = vld [vmem:[#allocation4 + $0x1c8] sm:$0xff]
    %v7438 = vld [vmem:[#allocation4 + $0x1d0] sm:$0xff]
    %v7439 = vld [vmem:[#allocation4 + $0x1d8] sm:$0xff]
    %v7440 = vld [vmem:[#allocation4 + $0x1e0] sm:$0xff]
    %v7441 = vld [vmem:[#allocation4 + $0x1e8] sm:$0xff]
    %v7442 = vld [vmem:[#allocation4 + $0x1f0] sm:$0xff]
    %v7443 = vld [vmem:[#allocation4 + $0x1f8] sm:$0xff]
    %v7444 = vld [vmem:[#allocation4 + $0x200] sm:$0xff]
    %v7445 = vld [vmem:[#allocation4 + $0x208] sm:$0xff]
    %v7446 = vld [vmem:[#allocation4 + $0x210] sm:$0xff]
    %v7447 = vld [vmem:[#allocation4 + $0x218] sm:$0xff]
    %v7448 = vld [vmem:[#allocation4 + $0x220] sm:$0xff]
    %v7449 = vld [vmem:[#allocation4 + $0x228] sm:$0xff]
    %v7450 = vld [vmem:[#allocation4 + $0x230] sm:$0xff]
    %v7451 = vld [vmem:[#allocation4 + $0x238] sm:$0xff]
    %v7452 = vld [vmem:[#allocation4 + $0x240] sm:$0xff]
    %v7453 = vld [vmem:[#allocation4 + $0x248] sm:$0xff]
    %v7454 = vld [vmem:[#allocation4 + $0x250] sm:$0xff]
    %v7455 = vld [vmem:[#allocation4 + $0x258] sm:$0xff]
    %v7456 = vld [vmem:[#allocation4 + $0x260] sm:$0xff]
    %v7457 = vld [vmem:[#allocation4 + $0x268] sm:$0xff]
    %v7458 = vld [vmem:[#allocation4 + $0x270] sm:$0xff]
    %v7459 = vld [vmem:[#allocation4 + $0x278] sm:$0xff]
    %v7460 = vld [vmem:[#allocation4 + $0x280] sm:$0xff]
    %v7461 = vld [vmem:[#allocation4 + $0x288] sm:$0xff]
    %v7462 = vld [vmem:[#allocation4 + $0x290] sm:$0xff]
    %v7463 = vld [vmem:[#allocation4 + $0x298] sm:$0xff]
    %v7464 = vld [vmem:[#allocation4 + $0x2a0] sm:$0xff]
    %v7465 = vld [vmem:[#allocation4 + $0x2a8] sm:$0xff]
    %v7466 = vld [vmem:[#allocation4 + $0x2b0] sm:$0xff]
    %v7467 = vld [vmem:[#allocation4 + $0x2b8] sm:$0xff]
    %v7468 = vld [vmem:[#allocation4 + $0x2c0] sm:$0xff]
    %v7469 = vld [vmem:[#allocation4 + $0x2c8] sm:$0xff]
    %v7470 = vld [vmem:[#allocation4 + $0x2d0] sm:$0xff]
    %v7471 = vld [vmem:[#allocation4 + $0x2d8] sm:$0xff]
    %v7472 = vld [vmem:[#allocation4 + $0x2e0] sm:$0xff]
    %v7473 = vld [vmem:[#allocation4 + $0x2e8] sm:$0xff]
    %v7474 = vld [vmem:[#allocation4 + $0x2f0] sm:$0xff]
    %v7475 = vld [vmem:[#allocation4 + $0x2f8] sm:$0xff]
    %v7476 = vld [vmem:[#allocation4 + $0x300] sm:$0xff]
    %v7477 = vld [vmem:[#allocation4 + $0x308] sm:$0xff]
    %v7478 = vld [vmem:[#allocation4 + $0x310] sm:$0xff]
    %v7479 = vld [vmem:[#allocation4 + $0x318] sm:$0xff]
    %v7480 = vld [vmem:[#allocation4 + $0x320] sm:$0xff]
    %v7481 = vld [vmem:[#allocation4 + $0x328] sm:$0xff]
    %v7482 = vld [vmem:[#allocation4 + $0x330] sm:$0xff]
    %v7483 = vld [vmem:[#allocation4 + $0x338] sm:$0xff]
    %v7484 = vld [vmem:[#allocation4 + $0x340] sm:$0xff]
    %v7485 = vld [vmem:[#allocation4 + $0x348] sm:$0xff]
    %v7486 = vld [vmem:[#allocation4 + $0x350] sm:$0xff]
    %v7487 = vld [vmem:[#allocation4 + $0x358] sm:$0xff]
    %v7488 = vld [vmem:[#allocation4 + $0x360] sm:$0xff]
    %v7489 = vld [vmem:[#allocation4 + $0x368] sm:$0xff]
    %v7490 = vld [vmem:[#allocation4 + $0x370] sm:$0xff]
    %v7491 = vld [vmem:[#allocation4 + $0x378] sm:$0xff]
    %v7492 = vld [vmem:[#allocation4 + $0x380] sm:$0xff]
    %v7493 = vld [vmem:[#allocation4 + $0x388] sm:$0xff]
    %v7494 = vld [vmem:[#allocation4 + $0x390] sm:$0xff]
    %v7495 = vld [vmem:[#allocation4 + $0x398] sm:$0xff]
    %v7496 = vld [vmem:[#allocation4 + $0x3a0] sm:$0xff]
    %v7497 = vld [vmem:[#allocation4 + $0x3a8] sm:$0xff]
    %v7498 = vld [vmem:[#allocation4 + $0x3b0] sm:$0xff]
    %v7499 = vld [vmem:[#allocation4 + $0x3b8] sm:$0xff]
    %v7500 = vld [vmem:[#allocation4 + $0x3c0] sm:$0xff]
    %v7501 = vld [vmem:[#allocation4 + $0x3c8] sm:$0xff]
    %v7502 = vld [vmem:[#allocation4 + $0x3d0] sm:$0xff]
    %v7503 = vld [vmem:[#allocation4 + $0x3d8] sm:$0xff]
    %v7504 = vld [vmem:[#allocation4 + $0x3e0] sm:$0xff]
    %v7505 = vld [vmem:[#allocation4 + $0x3e8] sm:$0xff]
    %v7506 = vld [vmem:[#allocation4 + $0x3f0] sm:$0xff]
    %v7507 = vld [vmem:[#allocation4 + $0x3f8] sm:$0xff]
    %v7508 = vld [vmem:[#allocation4 + $0x400] sm:$0xff]
    %v7509 = vld [vmem:[#allocation4 + $0x408] sm:$0xff]
    %v7510 = vld [vmem:[#allocation4 + $0x410] sm:$0xff]
    %v7511 = vld [vmem:[#allocation4 + $0x418] sm:$0xff]
    %v7512 = vld [vmem:[#allocation4 + $0x420] sm:$0xff]
    %v7513 = vld [vmem:[#allocation4 + $0x428] sm:$0xff]
    %v7514 = vld [vmem:[#allocation4 + $0x430] sm:$0xff]
    %v7515 = vld [vmem:[#allocation4 + $0x438] sm:$0xff]
    %v7516 = vld [vmem:[#allocation4 + $0x440] sm:$0xff]
    %v7517 = vld [vmem:[#allocation4 + $0x448] sm:$0xff]
    %v7518 = vld [vmem:[#allocation4 + $0x450] sm:$0xff]
    %v7519 = vld [vmem:[#allocation4 + $0x458] sm:$0xff]
    %v7520 = vld [vmem:[#allocation4 + $0x460] sm:$0xff]
    %v7521 = vld [vmem:[#allocation4 + $0x468] sm:$0xff]
    %v7522 = vld [vmem:[#allocation4 + $0x470] sm:$0xff]
    %v7523 = vld [vmem:[#allocation4 + $0x478] sm:$0xff]
    %v7524 = vld [vmem:[#allocation4 + $0x480] sm:$0xff]
    %v7525 = vld [vmem:[#allocation4 + $0x488] sm:$0xff]
    %v7526 = vld [vmem:[#allocation4 + $0x490] sm:$0xff]
    %v7527 = vld [vmem:[#allocation4 + $0x498] sm:$0xff]
    %v7528 = vld [vmem:[#allocation4 + $0x4a0] sm:$0xff]
    %v7529 = vld [vmem:[#allocation4 + $0x4a8] sm:$0xff]
    %v7530 = vld [vmem:[#allocation4 + $0x4b0] sm:$0xff]
    %v7531 = vld [vmem:[#allocation4 + $0x4b8] sm:$0xff]
    %v7532 = vld [vmem:[#allocation4 + $0x4c0] sm:$0xff]
    %v7533 = vld [vmem:[#allocation4 + $0x4c8] sm:$0xff]
    %v7534 = vld [vmem:[#allocation4 + $0x4d0] sm:$0xff]
    %v7535 = vld [vmem:[#allocation4 + $0x4d8] sm:$0xff]
    %v7536 = vld [vmem:[#allocation4 + $0x4e0] sm:$0xff]
    %v7537 = vld [vmem:[#allocation4 + $0x4e8] sm:$0xff]
    %v7538 = vld [vmem:[#allocation4 + $0x4f0] sm:$0xff]
    %v7539 = vld [vmem:[#allocation4 + $0x4f8] sm:$0xff]
    %v7540 = vld [vmem:[#allocation4 + $0x500] sm:$0xff]
    %v7541 = vld [vmem:[#allocation4 + $0x508] sm:$0xff]
    %v7542 = vld [vmem:[#allocation4 + $0x510] sm:$0xff]
    %v7543 = vld [vmem:[#allocation4 + $0x518] sm:$0xff]
    %v7544 = vld [vmem:[#allocation4 + $0x520] sm:$0xff]
    %v7545 = vld [vmem:[#allocation4 + $0x528] sm:$0xff]
    %v7546 = vld [vmem:[#allocation4 + $0x530] sm:$0xff]
    %v7547 = vld [vmem:[#allocation4 + $0x538] sm:$0xff]
    %v7548 = vld [vmem:[#allocation4 + $0x540] sm:$0xff]
    %v7549 = vld [vmem:[#allocation4 + $0x548] sm:$0xff]
    %v7550 = vld [vmem:[#allocation4 + $0x550] sm:$0xff]
    %v7551 = vld [vmem:[#allocation4 + $0x558] sm:$0xff]
    %v7552 = vld [vmem:[#allocation4 + $0x560] sm:$0xff]
    %v7553 = vld [vmem:[#allocation4 + $0x568] sm:$0xff]
    %v7554 = vld [vmem:[#allocation4 + $0x570] sm:$0xff]
    %v7555 = vld [vmem:[#allocation4 + $0x578] sm:$0xff]
    %v7556 = vld [vmem:[#allocation4 + $0x580] sm:$0xff]
    %v7557 = vld [vmem:[#allocation4 + $0x588] sm:$0xff]
    %v7558 = vld [vmem:[#allocation4 + $0x590] sm:$0xff]
    %v7559 = vld [vmem:[#allocation4 + $0x598] sm:$0xff]
    %v7560 = vld [vmem:[#allocation4 + $0x5a0] sm:$0xff]
    %v7561 = vld [vmem:[#allocation4 + $0x5a8] sm:$0xff]
    %v7562 = vld [vmem:[#allocation4 + $0x5b0] sm:$0xff]
    %v7563 = vld [vmem:[#allocation4 + $0x5b8] sm:$0xff]
    %v7564 = vld [vmem:[#allocation4 + $0x5c0] sm:$0xff]
    %v7565 = vld [vmem:[#allocation4 + $0x5c8] sm:$0xff]
    %v7566 = vld [vmem:[#allocation4 + $0x5d0] sm:$0xff]
    %v7567 = vld [vmem:[#allocation4 + $0x5d8] sm:$0xff]
    %v7568 = vld [vmem:[#allocation4 + $0x5e0] sm:$0xff]
    %v7569 = vld [vmem:[#allocation4 + $0x5e8] sm:$0xff]
    %v7570 = vld [vmem:[#allocation4 + $0x5f0] sm:$0xff]
    %v7571 = vld [vmem:[#allocation4 + $0x5f8] sm:$0xff]
    %v7572 = vld [vmem:[#allocation4 + $0x600] sm:$0xff]
    %v7573 = vld [vmem:[#allocation4 + $0x608] sm:$0xff]
    %v7574 = vld [vmem:[#allocation4 + $0x610] sm:$0xff]
    %v7575 = vld [vmem:[#allocation4 + $0x618] sm:$0xff]
    %v7576 = vld [vmem:[#allocation4 + $0x620] sm:$0xff]
    %v7577 = vld [vmem:[#allocation4 + $0x628] sm:$0xff]
    %v7578 = vld [vmem:[#allocation4 + $0x630] sm:$0xff]
    %v7579 = vld [vmem:[#allocation4 + $0x638] sm:$0xff]
    %v7580 = vld [vmem:[#allocation4 + $0x640] sm:$0xff]
    %v7581 = vld [vmem:[#allocation4 + $0x648] sm:$0xff]
    %v7582 = vld [vmem:[#allocation4 + $0x650] sm:$0xff]
    %v7583 = vld [vmem:[#allocation4 + $0x658] sm:$0xff]
    %v7584 = vld [vmem:[#allocation4 + $0x660] sm:$0xff]
    %v7585 = vld [vmem:[#allocation4 + $0x668] sm:$0xff]
    %v7586 = vld [vmem:[#allocation4 + $0x670] sm:$0xff]
    %v7587 = vld [vmem:[#allocation4 + $0x678] sm:$0xff]
    %v7588 = vld [vmem:[#allocation4 + $0x680] sm:$0xff]
    %v7589 = vld [vmem:[#allocation4 + $0x688] sm:$0xff]
    %v7590 = vld [vmem:[#allocation4 + $0x690] sm:$0xff]
    %v7591 = vld [vmem:[#allocation4 + $0x698] sm:$0xff]
    %v7592 = vld [vmem:[#allocation4 + $0x6a0] sm:$0xff]
    %v7593 = vld [vmem:[#allocation4 + $0x6a8] sm:$0xff]
    %v7594 = vld [vmem:[#allocation4 + $0x6b0] sm:$0xff]
    %v7595 = vld [vmem:[#allocation4 + $0x6b8] sm:$0xff]
    %v7596 = vld [vmem:[#allocation4 + $0x6c0] sm:$0xff]
    %v7597 = vld [vmem:[#allocation4 + $0x6c8] sm:$0xff]
    %v7598 = vld [vmem:[#allocation4 + $0x6d0] sm:$0xff]
    %v7599 = vld [vmem:[#allocation4 + $0x6d8] sm:$0xff]
    %v7600 = vld [vmem:[#allocation4 + $0x6e0] sm:$0xff]
    %v7601 = vld [vmem:[#allocation4 + $0x6e8] sm:$0xff]
    %v7602 = vld [vmem:[#allocation4 + $0x6f0] sm:$0xff]
    %v7603 = vld [vmem:[#allocation4 + $0x6f8] sm:$0xff]
    %v7604 = vld [vmem:[#allocation4 + $0x700] sm:$0xff]
    %v7605 = vld [vmem:[#allocation4 + $0x708] sm:$0xff]
    %v7606 = vld [vmem:[#allocation4 + $0x710] sm:$0xff]
    %v7607 = vld [vmem:[#allocation4 + $0x718] sm:$0xff]
    %v7608 = vld [vmem:[#allocation4 + $0x720] sm:$0xff]
    %v7609 = vld [vmem:[#allocation4 + $0x728] sm:$0xff]
    %v7610 = vld [vmem:[#allocation4 + $0x730] sm:$0xff]
    %v7611 = vld [vmem:[#allocation4 + $0x738] sm:$0xff]
    %v7612 = vld [vmem:[#allocation4 + $0x740] sm:$0xff]
    %v7613 = vld [vmem:[#allocation4 + $0x748] sm:$0xff]
    %v7614 = vld [vmem:[#allocation4 + $0x750] sm:$0xff]
    %v7615 = vld [vmem:[#allocation4 + $0x758] sm:$0xff]
    %v7616 = vld [vmem:[#allocation4 + $0x760] sm:$0xff]
    %v7617 = vld [vmem:[#allocation4 + $0x768] sm:$0xff]
    %v7618 = vld [vmem:[#allocation4 + $0x770] sm:$0xff]
    %v7619 = vld [vmem:[#allocation4 + $0x778] sm:$0xff]
    %v7620 = vld [vmem:[#allocation4 + $0x780] sm:$0xff]
    %v7621 = vld [vmem:[#allocation4 + $0x788] sm:$0xff]
    %v7622 = vld [vmem:[#allocation4 + $0x790] sm:$0xff]
    %v7623 = vld [vmem:[#allocation4 + $0x798] sm:$0xff]
    %v7624 = vld [vmem:[#allocation4 + $0x7a0] sm:$0xff]
    %v7625 = vld [vmem:[#allocation4 + $0x7a8] sm:$0xff]
    %v7626 = vld [vmem:[#allocation4 + $0x7b0] sm:$0xff]
    %v7627 = vld [vmem:[#allocation4 + $0x7b8] sm:$0xff]
    %v7628 = vld [vmem:[#allocation4 + $0x7c0] sm:$0xff]
    %v7629 = vld [vmem:[#allocation4 + $0x7c8] sm:$0xff]
    %v7630 = vld [vmem:[#allocation4 + $0x7d0] sm:$0xff]
    %v7631 = vld [vmem:[#allocation4 + $0x7d8] sm:$0xff]
    %v7632 = vld [vmem:[#allocation4 + $0x7e0] sm:$0xff]
    %v7633 = vld [vmem:[#allocation4 + $0x7e8] sm:$0xff]
    %v7634 = vld [vmem:[#allocation4 + $0x7f0] sm:$0xff]
    %v7635 = vld [vmem:[#allocation4 + $0x7f8] sm:$0xff]
    %v7636 = vld [vmem:[#allocation4 + $0x800] sm:$0xff]
    %v7637 = vld [vmem:[#allocation4 + $0x808] sm:$0xff]
    %v7638 = vld [vmem:[#allocation4 + $0x810] sm:$0xff]
    %v7639 = vld [vmem:[#allocation4 + $0x818] sm:$0xff]
    %v7640 = vld [vmem:[#allocation4 + $0x820] sm:$0xff]
    %v7641 = vld [vmem:[#allocation4 + $0x828] sm:$0xff]
    %v7642 = vld [vmem:[#allocation4 + $0x830] sm:$0xff]
    %v7643 = vld [vmem:[#allocation4 + $0x838] sm:$0xff]
    %v7644 = vld [vmem:[#allocation4 + $0x840] sm:$0xff]
    %v7645 = vld [vmem:[#allocation4 + $0x848] sm:$0xff]
    %v7646 = vld [vmem:[#allocation4 + $0x850] sm:$0xff]
    %v7647 = vld [vmem:[#allocation4 + $0x858] sm:$0xff]
    %v7648 = vld [vmem:[#allocation4 + $0x860] sm:$0xff]
    %v7649 = vld [vmem:[#allocation4 + $0x868] sm:$0xff]
    %v7650 = vld [vmem:[#allocation4 + $0x870] sm:$0xff]
    %v7651 = vld [vmem:[#allocation4 + $0x878] sm:$0xff]
    %v7652 = vld [vmem:[#allocation4 + $0x880] sm:$0xff]
    %v7653 = vld [vmem:[#allocation4 + $0x888] sm:$0xff]
    %v7654 = vld [vmem:[#allocation4 + $0x890] sm:$0xff]
    %v7655 = vld [vmem:[#allocation4 + $0x898] sm:$0xff]
    %v7656 = vld [vmem:[#allocation4 + $0x8a0] sm:$0xff]
    %v7657 = vld [vmem:[#allocation4 + $0x8a8] sm:$0xff]
    %v7658 = vld [vmem:[#allocation4 + $0x8b0] sm:$0xff]
    %v7659 = vld [vmem:[#allocation4 + $0x8b8] sm:$0xff]
    %v7660 = vld [vmem:[#allocation4 + $0x8c0] sm:$0xff]
    %v7661 = vld [vmem:[#allocation4 + $0x8c8] sm:$0xff]
    %v7662 = vld [vmem:[#allocation4 + $0x8d0] sm:$0xff]
    %v7663 = vld [vmem:[#allocation4 + $0x8d8] sm:$0xff]
    %v7664 = vld [vmem:[#allocation4 + $0x8e0] sm:$0xff]
    %v7665 = vld [vmem:[#allocation4 + $0x8e8] sm:$0xff]
    %v7666 = vld [vmem:[#allocation4 + $0x8f0] sm:$0xff]
    %v7667 = vld [vmem:[#allocation4 + $0x8f8] sm:$0xff]
    %v7668 = vld [vmem:[#allocation4 + $0x900] sm:$0xff]
    %v7669 = vld [vmem:[#allocation4 + $0x908] sm:$0xff]
    %v7670 = vld [vmem:[#allocation4 + $0x910] sm:$0xff]
    %v7671 = vld [vmem:[#allocation4 + $0x918] sm:$0xff]
    %v7672 = vld [vmem:[#allocation4 + $0x920] sm:$0xff]
    %v7673 = vld [vmem:[#allocation4 + $0x928] sm:$0xff]
    %v7674 = vld [vmem:[#allocation4 + $0x930] sm:$0xff]
    %v7675 = vld [vmem:[#allocation4 + $0x938] sm:$0xff]
    %v7676 = vld [vmem:[#allocation4 + $0x940] sm:$0xff]
    %v7677 = vld [vmem:[#allocation4 + $0x948] sm:$0xff]
    %v7678 = vld [vmem:[#allocation4 + $0x950] sm:$0xff]
    %v7679 = vld [vmem:[#allocation4 + $0x958] sm:$0xff]
    %v7680 = vld [vmem:[#allocation4 + $0x960] sm:$0xff]
    %v7681 = vld [vmem:[#allocation4 + $0x968] sm:$0xff]
    %v7682 = vld [vmem:[#allocation4 + $0x970] sm:$0xff]
    %v7683 = vld [vmem:[#allocation4 + $0x978] sm:$0xff]
    %v7684 = vld [vmem:[#allocation4 + $0x980] sm:$0xff]
    %v7685 = vld [vmem:[#allocation4 + $0x988] sm:$0xff]
    %v7686 = vld [vmem:[#allocation4 + $0x990] sm:$0xff]
    %v7687 = vld [vmem:[#allocation4 + $0x998] sm:$0xff]
    %v7688 = vld [vmem:[#allocation4 + $0x9a0] sm:$0xff]
    %v7689 = vld [vmem:[#allocation4 + $0x9a8] sm:$0xff]
    %v7690 = vld [vmem:[#allocation4 + $0x9b0] sm:$0xff]
    %v7691 = vld [vmem:[#allocation4 + $0x9b8] sm:$0xff]
    %v7692 = vld [vmem:[#allocation4 + $0x9c0] sm:$0xff]
    %v7693 = vld [vmem:[#allocation4 + $0x9c8] sm:$0xff]
    %v7694 = vld [vmem:[#allocation4 + $0x9d0] sm:$0xff]
    %v7695 = vld [vmem:[#allocation4 + $0x9d8] sm:$0xff]
    %v7696 = vld [vmem:[#allocation4 + $0x9e0] sm:$0xff]
    %v7697 = vld [vmem:[#allocation4 + $0x9e8] sm:$0xff]
    %v7698 = vld [vmem:[#allocation4 + $0x9f0] sm:$0xff]
    %v7699 = vld [vmem:[#allocation4 + $0x9f8] sm:$0xff]
    %v7700 = vld [vmem:[#allocation4 + $0xa00] sm:$0xff]
    %v7701 = vld [vmem:[#allocation4 + $0xa08] sm:$0xff]
    %v7702 = vld [vmem:[#allocation4 + $0xa10] sm:$0xff]
    %v7703 = vld [vmem:[#allocation4 + $0xa18] sm:$0xff]
    %v7704 = vld [vmem:[#allocation4 + $0xa20] sm:$0xff]
    %v7705 = vld [vmem:[#allocation4 + $0xa28] sm:$0xff]
    %v7706 = vld [vmem:[#allocation4 + $0xa30] sm:$0xff]
    %v7707 = vld [vmem:[#allocation4 + $0xa38] sm:$0xff]
    %v7708 = vld [vmem:[#allocation4 + $0xa40] sm:$0xff]
    %v7709 = vld [vmem:[#allocation4 + $0xa48] sm:$0xff]
    %v7710 = vld [vmem:[#allocation4 + $0xa50] sm:$0xff]
    %v7711 = vld [vmem:[#allocation4 + $0xa58] sm:$0xff]
    %v7712 = vld [vmem:[#allocation4 + $0xa60] sm:$0xff]
    %v7713 = vld [vmem:[#allocation4 + $0xa68] sm:$0xff]
    %v7714 = vld [vmem:[#allocation4 + $0xa70] sm:$0xff]
    %v7715 = vld [vmem:[#allocation4 + $0xa78] sm:$0xff]
    %v7716 = vld [vmem:[#allocation4 + $0xa80] sm:$0xff]
    %v7717 = vld [vmem:[#allocation4 + $0xa88] sm:$0xff]
    %v7718 = vld [vmem:[#allocation4 + $0xa90] sm:$0xff]
    %v7719 = vld [vmem:[#allocation4 + $0xa98] sm:$0xff]
    %v7720 = vld [vmem:[#allocation4 + $0xaa0] sm:$0xff]
    %v7721 = vld [vmem:[#allocation4 + $0xaa8] sm:$0xff]
    %v7722 = vld [vmem:[#allocation4 + $0xab0] sm:$0xff]
    %v7723 = vld [vmem:[#allocation4 + $0xab8] sm:$0xff]
    %v7724 = vld [vmem:[#allocation4 + $0xac0] sm:$0xff]
    %v7725 = vld [vmem:[#allocation4 + $0xac8] sm:$0xff]
    %v7726 = vld [vmem:[#allocation4 + $0xad0] sm:$0xff]
    %v7727 = vld [vmem:[#allocation4 + $0xad8] sm:$0xff]
    %v7728 = vld [vmem:[#allocation4 + $0xae0] sm:$0xff]
    %v7729 = vld [vmem:[#allocation4 + $0xae8] sm:$0xff]
    %v7730 = vld [vmem:[#allocation4 + $0xaf0] sm:$0xff]
    %v7731 = vld [vmem:[#allocation4 + $0xaf8] sm:$0xff]
    %v7732 = vld [vmem:[#allocation4 + $0xb00] sm:$0xff]
    %v7733 = vld [vmem:[#allocation4 + $0xb08] sm:$0xff]
    %v7734 = vld [vmem:[#allocation4 + $0xb10] sm:$0xff]
    %v7735 = vld [vmem:[#allocation4 + $0xb18] sm:$0xff]
    %v7736 = vld [vmem:[#allocation4 + $0xb20] sm:$0xff]
    %v7737 = vld [vmem:[#allocation4 + $0xb28] sm:$0xff]
    %v7738 = vld [vmem:[#allocation4 + $0xb30] sm:$0xff]
    %v7739 = vld [vmem:[#allocation4 + $0xb38] sm:$0xff]
    %v7740 = vld [vmem:[#allocation4 + $0xb40] sm:$0xff]
    %v7741 = vld [vmem:[#allocation4 + $0xb48] sm:$0xff]
    %v7742 = vld [vmem:[#allocation4 + $0xb50] sm:$0xff]
    %v7743 = vld [vmem:[#allocation4 + $0xb58] sm:$0xff]
    %v7744 = vld [vmem:[#allocation4 + $0xb60] sm:$0xff]
    %v7745 = vld [vmem:[#allocation4 + $0xb68] sm:$0xff]
    %v7746 = vld [vmem:[#allocation4 + $0xb70] sm:$0xff]
    %v7747 = vld [vmem:[#allocation4 + $0xb78] sm:$0xff]
    %v7748 = vld [vmem:[#allocation4 + $0xb80] sm:$0xff]
    %v7749 = vld [vmem:[#allocation4 + $0xb88] sm:$0xff]
    %v7750 = vld [vmem:[#allocation4 + $0xb90] sm:$0xff]
    %v7751 = vld [vmem:[#allocation4 + $0xb98] sm:$0xff]
    %v7752 = vld [vmem:[#allocation4 + $0xba0] sm:$0xff]
    %v7753 = vld [vmem:[#allocation4 + $0xba8] sm:$0xff]
    %v7754 = vld [vmem:[#allocation4 + $0xbb0] sm:$0xff]
    %v7755 = vld [vmem:[#allocation4 + $0xbb8] sm:$0xff]
    %v7756 = vld [vmem:[#allocation4 + $0xbc0] sm:$0xff]
    %v7757 = vld [vmem:[#allocation4 + $0xbc8] sm:$0xff]
    %v7758 = vld [vmem:[#allocation4 + $0xbd0] sm:$0xff]
    %v7759 = vld [vmem:[#allocation4 + $0xbd8] sm:$0xff]
    %v7760 = vld [vmem:[#allocation4 + $0xbe0] sm:$0xff]
    %v7761 = vld [vmem:[#allocation4 + $0xbe8] sm:$0xff]
    %v7762 = vld [vmem:[#allocation4 + $0xbf0] sm:$0xff]
    %v7763 = vld [vmem:[#allocation4 + $0xbf8] sm:$0xff]
    %v7764 = vld [vmem:[#allocation4 + $0xc00] sm:$0xff]
    %v7765 = vld [vmem:[#allocation4 + $0xc08] sm:$0xff]
    %v7766 = vld [vmem:[#allocation4 + $0xc10] sm:$0xff]
    %v7767 = vld [vmem:[#allocation4 + $0xc18] sm:$0xff]
    %v7768 = vld [vmem:[#allocation4 + $0xc20] sm:$0xff]
    %v7769 = vld [vmem:[#allocation4 + $0xc28] sm:$0xff]
    %v7770 = vld [vmem:[#allocation4 + $0xc30] sm:$0xff]
    %v7771 = vld [vmem:[#allocation4 + $0xc38] sm:$0xff]
    %v7772 = vld [vmem:[#allocation4 + $0xc40] sm:$0xff]
    %v7773 = vld [vmem:[#allocation4 + $0xc48] sm:$0xff]
    %v7774 = vld [vmem:[#allocation4 + $0xc50] sm:$0xff]
    %v7775 = vld [vmem:[#allocation4 + $0xc58] sm:$0xff]
    %v7776 = vld [vmem:[#allocation4 + $0xc60] sm:$0xff]
    %v7777 = vld [vmem:[#allocation4 + $0xc68] sm:$0xff]
    %v7778 = vld [vmem:[#allocation4 + $0xc70] sm:$0xff]
    %v7779 = vld [vmem:[#allocation4 + $0xc78] sm:$0xff]
    %v7780 = vld [vmem:[#allocation4 + $0xc80] sm:$0xff]
    %v7781 = vld [vmem:[#allocation4 + $0xc88] sm:$0xff]
    %v7782 = vld [vmem:[#allocation4 + $0xc90] sm:$0xff]
    %v7783 = vld [vmem:[#allocation4 + $0xc98] sm:$0xff]
    %v7784 = vld [vmem:[#allocation4 + $0xca0] sm:$0xff]
    %v7785 = vld [vmem:[#allocation4 + $0xca8] sm:$0xff]
    %v7786 = vld [vmem:[#allocation4 + $0xcb0] sm:$0xff]
    %v7787 = vld [vmem:[#allocation4 + $0xcb8] sm:$0xff]
    %v7788 = vld [vmem:[#allocation4 + $0xcc0] sm:$0xff]
    %v7789 = vld [vmem:[#allocation4 + $0xcc8] sm:$0xff]
    %v7790 = vld [vmem:[#allocation4 + $0xcd0] sm:$0xff]
    %v7791 = vld [vmem:[#allocation4 + $0xcd8] sm:$0xff]
    %v7792 = vld [vmem:[#allocation4 + $0xce0] sm:$0xff]
    %v7793 = vld [vmem:[#allocation4 + $0xce8] sm:$0xff]
    %v7794 = vld [vmem:[#allocation4 + $0xcf0] sm:$0xff]
    %v7795 = vld [vmem:[#allocation4 + $0xcf8] sm:$0xff]
    %v7796 = vld [vmem:[#allocation4 + $0xd00] sm:$0xff]
    %v7797 = vld [vmem:[#allocation4 + $0xd08] sm:$0xff]
    %v7798 = vld [vmem:[#allocation4 + $0xd10] sm:$0xff]
    %v7799 = vld [vmem:[#allocation4 + $0xd18] sm:$0xff]
    %v7800 = vld [vmem:[#allocation4 + $0xd20] sm:$0xff]
    %v7801 = vld [vmem:[#allocation4 + $0xd28] sm:$0xff]
    %v7802 = vld [vmem:[#allocation4 + $0xd30] sm:$0xff]
    %v7803 = vld [vmem:[#allocation4 + $0xd38] sm:$0xff]
    %v7804 = vld [vmem:[#allocation4 + $0xd40] sm:$0xff]
    %v7805 = vld [vmem:[#allocation4 + $0xd48] sm:$0xff]
    %v7806 = vld [vmem:[#allocation4 + $0xd50] sm:$0xff]
    %v7807 = vld [vmem:[#allocation4 + $0xd58] sm:$0xff]
    %v7808 = vld [vmem:[#allocation4 + $0xd60] sm:$0xff]
    %v7809 = vld [vmem:[#allocation4 + $0xd68] sm:$0xff]
    %v7810 = vld [vmem:[#allocation4 + $0xd70] sm:$0xff]
    %v7811 = vld [vmem:[#allocation4 + $0xd78] sm:$0xff]
    %v7812 = vld [vmem:[#allocation4 + $0xd80] sm:$0xff]
    %v7813 = vld [vmem:[#allocation4 + $0xd88] sm:$0xff]
    %v7814 = vld [vmem:[#allocation4 + $0xd90] sm:$0xff]
    %v7815 = vld [vmem:[#allocation4 + $0xd98] sm:$0xff]
    %v7816 = vld [vmem:[#allocation4 + $0xda0] sm:$0xff]
    %v7817 = vld [vmem:[#allocation4 + $0xda8] sm:$0xff]
    %v7818 = vld [vmem:[#allocation4 + $0xdb0] sm:$0xff]
    %v7819 = vld [vmem:[#allocation4 + $0xdb8] sm:$0xff]
    %v7820 = vld [vmem:[#allocation4 + $0xdc0] sm:$0xff]
    %v7821 = vld [vmem:[#allocation4 + $0xdc8] sm:$0xff]
    %v7822 = vld [vmem:[#allocation4 + $0xdd0] sm:$0xff]
    %v7823 = vld [vmem:[#allocation4 + $0xdd8] sm:$0xff]
    %v7824 = vld [vmem:[#allocation4 + $0xde0] sm:$0xff]
    %v7825 = vld [vmem:[#allocation4 + $0xde8] sm:$0xff]
    %v7826 = vld [vmem:[#allocation4 + $0xdf0] sm:$0xff]
    %v7827 = vld [vmem:[#allocation4 + $0xdf8] sm:$0xff]
    %v7828 = vld [vmem:[#allocation4 + $0xe00] sm:$0xff]
    %v7829 = vld [vmem:[#allocation4 + $0xe08] sm:$0xff]
    %v7830 = vld [vmem:[#allocation4 + $0xe10] sm:$0xff]
    %v7831 = vld [vmem:[#allocation4 + $0xe18] sm:$0xff]
    %v7832 = vld [vmem:[#allocation4 + $0xe20] sm:$0xff]
    %v7833 = vld [vmem:[#allocation4 + $0xe28] sm:$0xff]
    %v7834 = vld [vmem:[#allocation4 + $0xe30] sm:$0xff]
    %v7835 = vld [vmem:[#allocation4 + $0xe38] sm:$0xff]
    %v7836 = vld [vmem:[#allocation4 + $0xe40] sm:$0xff]
    %v7837 = vld [vmem:[#allocation4 + $0xe48] sm:$0xff]
    %v7838 = vld [vmem:[#allocation4 + $0xe50] sm:$0xff]
    %v7839 = vld [vmem:[#allocation4 + $0xe58] sm:$0xff]
    %v7840 = vld [vmem:[#allocation4 + $0xe60] sm:$0xff]
    %v7841 = vld [vmem:[#allocation4 + $0xe68] sm:$0xff]
    %v7842 = vld [vmem:[#allocation4 + $0xe70] sm:$0xff]
    %v7843 = vld [vmem:[#allocation4 + $0xe78] sm:$0xff]
    %v7844 = vld [vmem:[#allocation4 + $0xe80] sm:$0xff]
    %v7845 = vld [vmem:[#allocation4 + $0xe88] sm:$0xff]
    %v7846 = vld [vmem:[#allocation4 + $0xe90] sm:$0xff]
    %v7847 = vld [vmem:[#allocation4 + $0xe98] sm:$0xff]
    %v7848 = vld [vmem:[#allocation4 + $0xea0] sm:$0xff]
    %v7849 = vld [vmem:[#allocation4 + $0xea8] sm:$0xff]
    %v7850 = vld [vmem:[#allocation4 + $0xeb0] sm:$0xff]
    %v7851 = vld [vmem:[#allocation4 + $0xeb8] sm:$0xff]
    %v7852 = vld [vmem:[#allocation4 + $0xec0] sm:$0xff]
    %v7853 = vld [vmem:[#allocation4 + $0xec8] sm:$0xff]
    %v7854 = vld [vmem:[#allocation4 + $0xed0] sm:$0xff]
    %v7855 = vld [vmem:[#allocation4 + $0xed8] sm:$0xff]
    %v7856 = vld [vmem:[#allocation4 + $0xee0] sm:$0xff]
    %v7857 = vld [vmem:[#allocation4 + $0xee8] sm:$0xff]
    %v7858 = vld [vmem:[#allocation4 + $0xef0] sm:$0xff]
    %v7859 = vld [vmem:[#allocation4 + $0xef8] sm:$0xff]
    %v7860 = vld [vmem:[#allocation4 + $0xf00] sm:$0xff]
    %v7861 = vld [vmem:[#allocation4 + $0xf08] sm:$0xff]
    %v7862 = vld [vmem:[#allocation4 + $0xf10] sm:$0xff]
    %v7863 = vld [vmem:[#allocation4 + $0xf18] sm:$0xff]
    %v7864 = vld [vmem:[#allocation4 + $0xf20] sm:$0xff]
    %v7865 = vld [vmem:[#allocation4 + $0xf28] sm:$0xff]
    %v7866 = vld [vmem:[#allocation4 + $0xf30] sm:$0xff]
    %v7867 = vld [vmem:[#allocation4 + $0xf38] sm:$0xff]
    %v7868 = vld [vmem:[#allocation4 + $0xf40] sm:$0xff]
    %v7869 = vld [vmem:[#allocation4 + $0xf48] sm:$0xff]
    %v7870 = vld [vmem:[#allocation4 + $0xf50] sm:$0xff]
    %v7871 = vld [vmem:[#allocation4 + $0xf58] sm:$0xff]
    %v7872 = vld [vmem:[#allocation4 + $0xf60] sm:$0xff]
    %v7873 = vld [vmem:[#allocation4 + $0xf68] sm:$0xff]
    %v7874 = vld [vmem:[#allocation4 + $0xf70] sm:$0xff]
    %v7875 = vld [vmem:[#allocation4 + $0xf78] sm:$0xff]
    %v7876 = vld [vmem:[#allocation4 + $0xf80] sm:$0xff]
    %v7877 = vld [vmem:[#allocation4 + $0xf88] sm:$0xff]
    %v7878 = vld [vmem:[#allocation4 + $0xf90] sm:$0xff]
    %v7879 = vld [vmem:[#allocation4 + $0xf98] sm:$0xff]
    %v7880 = vld [vmem:[#allocation4 + $0xfa0] sm:$0xff]
    %v7881 = vld [vmem:[#allocation4 + $0xfa8] sm:$0xff]
    %v7882 = vld [vmem:[#allocation4 + $0xfb0] sm:$0xff]
    %v7883 = vld [vmem:[#allocation4 + $0xfb8] sm:$0xff]
    %v7884 = vld [vmem:[#allocation4 + $0xfc0] sm:$0xff]
    %v7885 = vld [vmem:[#allocation4 + $0xfc8] sm:$0xff]
    %v7886 = vld [vmem:[#allocation4 + $0xfd0] sm:$0xff]
    %v7887 = vld [vmem:[#allocation4 + $0xfd8] sm:$0xff]
    %v7888 = vld [vmem:[#allocation4 + $0xfe0] sm:$0xff]
    %v7889 = vld [vmem:[#allocation4 + $0xfe8] sm:$0xff]
    %v7890 = vld [vmem:[#allocation4 + $0xff0] sm:$0xff]
    %v7891 = vld [vmem:[#allocation4 + $0xff8] sm:$0xff]
    %v7892 = vld [vmem:[%s7] sm:$0xf]
    %v7894 = vlaneseq
    %v7895 = vshrl.u32 %v7894, 7
    %v7896 = vsub.s32 0, %v7895
    %v7897 = vrot.slane %v7892, %v7896
    %v7898 = vlaneseq
    %v7899 = vshrl.u32 %v7898, 7
    %v7900 = vsub.s32 1, %v7899
    %v7901 = vrot.slane %v7892, %v7900
    %v7902 = vlaneseq
    %v7903 = vshrl.u32 %v7902, 7
    %v7904 = vsub.s32 2, %v7903
    %v7905 = vrot.slane %v7892, %v7904
    %v7906 = vlaneseq
    %v7907 = vshrl.u32 %v7906, 7
    %v7908 = vsub.s32 3, %v7907
    %v7909 = vrot.slane %v7892, %v7908
    %7914 = vmatprep.subr.mxu0 %v7381
    %7915 = vmatpush1.msra.mxu0 %v7380
    %7916 = vmatprep.subr.mxu0 %v7385
    %7917 = vmatpush1.msra.mxu0 %v7384
    %7918 = vmatprep.subr.mxu0 %v7389
    %7919 = vmatpush1.msra.mxu0 %v7388
    %7920 = vmatprep.subr.mxu0 %v7393
    %7921 = vmatpush1.msra.mxu0 %v7392
    %7922 = vmatprep.subr.mxu0 %v7397
    %7923 = vmatpush1.msra.mxu0 %v7396
    %7924 = vmatprep.subr.mxu0 %v7401
    %7925 = vmatpush1.msra.mxu0 %v7400
    %7926 = vmatprep.subr.mxu0 %v7405
    %7927 = vmatpush1.msra.mxu0 %v7404
    %7928 = vmatprep.subr.mxu0 %v7409
    %7929 = vmatpush1.msra.mxu0 %v7408
    %7930 = vmatprep.subr.mxu0 %v7413
    %7931 = vmatpush1.msra.mxu0 %v7412
    %7932 = vmatprep.subr.mxu0 %v7417
    %7933 = vmatpush1.msra.mxu0 %v7416
    %7934 = vmatprep.subr.mxu0 %v7421
    %7935 = vmatpush1.msra.mxu0 %v7420
    %7936 = vmatprep.subr.mxu0 %v7425
    %7937 = vmatpush1.msra.mxu0 %v7424
    %7938 = vmatprep.subr.mxu0 %v7429
    %7939 = vmatpush1.msra.mxu0 %v7428
    %7940 = vmatprep.subr.mxu0 %v7433
    %7941 = vmatpush1.msra.mxu0 %v7432
    %7942 = vmatprep.subr.mxu0 %v7437
    %7943 = vmatpush1.msra.mxu0 %v7436
    %7944 = vmatprep.subr.mxu0 %v7441
    %7945 = vmatpush1.msra.mxu0 %v7440
    %7946 = vmatprep.subr.mxu0 %v7445
    %7947 = vmatpush1.msra.mxu0 %v7444
    %7948 = vmatprep.subr.mxu0 %v7449
    %7949 = vmatpush1.msra.mxu0 %v7448
    %7950 = vmatprep.subr.mxu0 %v7453
    %7951 = vmatpush1.msra.mxu0 %v7452
    %7952 = vmatprep.subr.mxu0 %v7457
    %7953 = vmatpush1.msra.mxu0 %v7456
    %7954 = vmatprep.subr.mxu0 %v7461
    %7955 = vmatpush1.msra.mxu0 %v7460
    %7956 = vmatprep.subr.mxu0 %v7465
    %7957 = vmatpush1.msra.mxu0 %v7464
    %7958 = vmatprep.subr.mxu0 %v7469
    %7959 = vmatpush1.msra.mxu0 %v7468
    %7960 = vmatprep.subr.mxu0 %v7473
    %7961 = vmatpush1.msra.mxu0 %v7472
    %7962 = vmatprep.subr.mxu0 %v7477
    %7963 = vmatpush1.msra.mxu0 %v7476
    %7964 = vmatprep.subr.mxu0 %v7481
    %7965 = vmatpush1.msra.mxu0 %v7480
    %7966 = vmatprep.subr.mxu0 %v7485
    %7967 = vmatpush1.msra.mxu0 %v7484
    %7968 = vmatprep.subr.mxu0 %v7489
    %7969 = vmatpush1.msra.mxu0 %v7488
    %7970 = vmatprep.subr.mxu0 %v7493
    %7971 = vmatpush1.msra.mxu0 %v7492
    %7972 = vmatprep.subr.mxu0 %v7497
    %7973 = vmatpush1.msra.mxu0 %v7496
    %7974 = vmatprep.subr.mxu0 %v7501
    %7975 = vmatpush1.msra.mxu0 %v7500
    %7976 = vmatprep.subr.mxu0 %v7505
    %7977 = vmatpush1.msra.mxu0 %v7504
    %7978 = vmatprep.mubr.f32.mxu0 %v7345
    %7979 = vmatmul.mubr.f32.gmra.mrb[0].mxu0 %v7340
    %v7980 = vpop.f32.mrb[0].mxu0
    %v7981 = vadd.f32 %v7897, %v7980
    %v7982 = vpop.f32.mrb[0].mxu0
    %v7983 = vadd.f32 %v7901, %v7982
    %7984 = vdwg.mxu0
    %7985 = vmatprep.subr.mxu0 %v7509
    %7986 = vmatpush1.msra.mxu0 %v7508
    %7987 = vmatprep.subr.mxu0 %v7513
    %7988 = vmatpush1.msra.mxu0 %v7512
    %7989 = vmatprep.subr.mxu0 %v7517
    %7990 = vmatpush1.msra.mxu0 %v7516
    %7991 = vmatprep.subr.mxu0 %v7521
    %7992 = vmatpush1.msra.mxu0 %v7520
    %7993 = vmatprep.subr.mxu0 %v7525
    %7994 = vmatpush1.msra.mxu0 %v7524
    %7995 = vmatprep.subr.mxu0 %v7529
    %7996 = vmatpush1.msra.mxu0 %v7528
    %7997 = vmatprep.subr.mxu0 %v7533
    %7998 = vmatpush1.msra.mxu0 %v7532
    %7999 = vmatprep.subr.mxu0 %v7537
    %8000 = vmatpush1.msra.mxu0 %v7536
    %8001 = vmatprep.subr.mxu0 %v7541
    %8002 = vmatpush1.msra.mxu0 %v7540
    %8003 = vmatprep.subr.mxu0 %v7545
    %8004 = vmatpush1.msra.mxu0 %v7544
    %8005 = vmatprep.subr.mxu0 %v7549
    %8006 = vmatpush1.msra.mxu0 %v7548
    %8007 = vmatprep.subr.mxu0 %v7553
    %8008 = vmatpush1.msra.mxu0 %v7552
    %8009 = vmatprep.subr.mxu0 %v7557
    %8010 = vmatpush1.msra.mxu0 %v7556
    %8011 = vmatprep.subr.mxu0 %v7561
    %8012 = vmatpush1.msra.mxu0 %v7560
    %8013 = vmatprep.subr.mxu0 %v7565
    %8014 = vmatpush1.msra.mxu0 %v7564
    %8015 = vmatprep.subr.mxu0 %v7569
    %8016 = vmatpush1.msra.mxu0 %v7568
    %8017 = vmatprep.subr.mxu0 %v7573
    %8018 = vmatpush1.msra.mxu0 %v7572
    %8019 = vmatprep.subr.mxu0 %v7577
    %8020 = vmatpush1.msra.mxu0 %v7576
    %8021 = vmatprep.subr.mxu0 %v7581
    %8022 = vmatpush1.msra.mxu0 %v7580
    %8023 = vmatprep.subr.mxu0 %v7585
    %8024 = vmatpush1.msra.mxu0 %v7584
    %8025 = vmatprep.subr.mxu0 %v7589
    %8026 = vmatpush1.msra.mxu0 %v7588
    %8027 = vmatprep.subr.mxu0 %v7593
    %8028 = vmatpush1.msra.mxu0 %v7592
    %8029 = vmatprep.subr.mxu0 %v7597
    %8030 = vmatpush1.msra.mxu0 %v7596
    %8031 = vmatprep.subr.mxu0 %v7601
    %8032 = vmatpush1.msra.mxu0 %v7600
    %8033 = vmatprep.subr.mxu0 %v7605
    %8034 = vmatpush1.msra.mxu0 %v7604
    %8035 = vmatprep.subr.mxu0 %v7609
    %8036 = vmatpush1.msra.mxu0 %v7608
    %8037 = vmatprep.subr.mxu0 %v7613
    %8038 = vmatpush1.msra.mxu0 %v7612
    %8039 = vmatprep.subr.mxu0 %v7617
    %8040 = vmatpush1.msra.mxu0 %v7616
    %8041 = vmatprep.subr.mxu0 %v7621
    %8042 = vmatpush1.msra.mxu0 %v7620
    %8043 = vmatprep.subr.mxu0 %v7625
    %8044 = vmatpush1.msra.mxu0 %v7624
    %8045 = vmatprep.subr.mxu0 %v7629
    %8046 = vmatpush1.msra.mxu0 %v7628
    %8047 = vmatprep.subr.mxu0 %v7633
    %8048 = vmatpush1.msra.mxu0 %v7632
    %8049 = vmatprep.mubr.f32.mxu0 %v7355
    %8050 = vmatmul.mubr.f32.gmra.mrb[0].mxu0 %v7350
    %v8051 = vpop.f32.mrb[0].mxu0
    %v8052 = vadd.f32 %v7981, %v8051
    %v8053 = vpop.f32.mrb[0].mxu0
    %v8054 = vadd.f32 %v7983, %v8053
    %8055 = vdwg.mxu0
    %8056 = vmatprep.subr.mxu0 %v7637
    %8057 = vmatpush1.msra.mxu0 %v7636
    %8058 = vmatprep.subr.mxu0 %v7641
    %8059 = vmatpush1.msra.mxu0 %v7640
    %8060 = vmatprep.subr.mxu0 %v7645
    %8061 = vmatpush1.msra.mxu0 %v7644
    %8062 = vmatprep.subr.mxu0 %v7649
    %8063 = vmatpush1.msra.mxu0 %v7648
    %8064 = vmatprep.subr.mxu0 %v7653
    %8065 = vmatpush1.msra.mxu0 %v7652
    %8066 = vmatprep.subr.mxu0 %v7657
    %8067 = vmatpush1.msra.mxu0 %v7656
    %8068 = vmatprep.subr.mxu0 %v7661
    %8069 = vmatpush1.msra.mxu0 %v7660
    %8070 = vmatprep.subr.mxu0 %v7665
    %8071 = vmatpush1.msra.mxu0 %v7664
    %8072 = vmatprep.subr.mxu0 %v7669
    %8073 = vmatpush1.msra.mxu0 %v7668
    %8074 = vmatprep.subr.mxu0 %v7673
    %8075 = vmatpush1.msra.mxu0 %v7672
    %8076 = vmatprep.subr.mxu0 %v7677
    %8077 = vmatpush1.msra.mxu0 %v7676
    %8078 = vmatprep.subr.mxu0 %v7681
    %8079 = vmatpush1.msra.mxu0 %v7680
    %8080 = vmatprep.subr.mxu0 %v7685
    %8081 = vmatpush1.msra.mxu0 %v7684
    %8082 = vmatprep.subr.mxu0 %v7689
    %8083 = vmatpush1.msra.mxu0 %v7688
    %8084 = vmatprep.subr.mxu0 %v7693
    %8085 = vmatpush1.msra.mxu0 %v7692
    %8086 = vmatprep.subr.mxu0 %v7697
    %8087 = vmatpush1.msra.mxu0 %v7696
    %8088 = vmatprep.subr.mxu0 %v7701
    %8089 = vmatpush1.msra.mxu0 %v7700
    %8090 = vmatprep.subr.mxu0 %v7705
    %8091 = vmatpush1.msra.mxu0 %v7704
    %8092 = vmatprep.subr.mxu0 %v7709
    %8093 = vmatpush1.msra.mxu0 %v7708
    %8094 = vmatprep.subr.mxu0 %v7713
    %8095 = vmatpush1.msra.mxu0 %v7712
    %8096 = vmatprep.subr.mxu0 %v7717
    %8097 = vmatpush1.msra.mxu0 %v7716
    %8098 = vmatprep.subr.mxu0 %v7721
    %8099 = vmatpush1.msra.mxu0 %v7720
    %8100 = vmatprep.subr.mxu0 %v7725
    %8101 = vmatpush1.msra.mxu0 %v7724
    %8102 = vmatprep.subr.mxu0 %v7729
    %8103 = vmatpush1.msra.mxu0 %v7728
    %8104 = vmatprep.subr.mxu0 %v7733
    %8105 = vmatpush1.msra.mxu0 %v7732
    %8106 = vmatprep.subr.mxu0 %v7737
    %8107 = vmatpush1.msra.mxu0 %v7736
    %8108 = vmatprep.subr.mxu0 %v7741
    %8109 = vmatpush1.msra.mxu0 %v7740
    %8110 = vmatprep.subr.mxu0 %v7745
    %8111 = vmatpush1.msra.mxu0 %v7744
    %8112 = vmatprep.subr.mxu0 %v7749
    %8113 = vmatpush1.msra.mxu0 %v7748
    %8114 = vmatprep.subr.mxu0 %v7753
    %8115 = vmatpush1.msra.mxu0 %v7752
    %8116 = vmatprep.subr.mxu0 %v7757
    %8117 = vmatpush1.msra.mxu0 %v7756
    %8118 = vmatprep.subr.mxu0 %v7761
    %8119 = vmatpush1.msra.mxu0 %v7760
    %8120 = vmatprep.mubr.f32.mxu0 %v7365
    %8121 = vmatmul.mubr.f32.gmra.mrb[0].mxu0 %v7360
    %v8122 = vpop.f32.mrb[0].mxu0
    %v8123 = vadd.f32 %v8052, %v8122
    %v8124 = vpop.f32.mrb[0].mxu0
    %v8125 = vadd.f32 %v8054, %v8124
    %8126 = vdwg.mxu0
    %8127 = vmatprep.subr.mxu0 %v7765
    %8128 = vmatpush1.msra.mxu0 %v7764
    %8129 = vmatprep.subr.mxu0 %v7769
    %8130 = vmatpush1.msra.mxu0 %v7768
    %8131 = vmatprep.subr.mxu0 %v7773
    %8132 = vmatpush1.msra.mxu0 %v7772
    %8133 = vmatprep.subr.mxu0 %v7777
    %8134 = vmatpush1.msra.mxu0 %v7776
    %8135 = vmatprep.subr.mxu0 %v7781
    %8136 = vmatpush1.msra.mxu0 %v7780
    %8137 = vmatprep.subr.mxu0 %v7785
    %8138 = vmatpush1.msra.mxu0 %v7784
    %8139 = vmatprep.subr.mxu0 %v7789
    %8140 = vmatpush1.msra.mxu0 %v7788
    %8141 = vmatprep.subr.mxu0 %v7793
    %8142 = vmatpush1.msra.mxu0 %v7792
    %8143 = vmatprep.subr.mxu0 %v7797
    %8144 = vmatpush1.msra.mxu0 %v7796
    %8145 = vmatprep.subr.mxu0 %v7801
    %8146 = vmatpush1.msra.mxu0 %v7800
    %8147 = vmatprep.subr.mxu0 %v7805
    %8148 = vmatpush1.msra.mxu0 %v7804
    %8149 = vmatprep.subr.mxu0 %v7809
    %8150 = vmatpush1.msra.mxu0 %v7808
    %8151 = vmatprep.subr.mxu0 %v7813
    %8152 = vmatpush1.msra.mxu0 %v7812
    %8153 = vmatprep.subr.mxu0 %v7817
    %8154 = vmatpush1.msra.mxu0 %v7816
    %8155 = vmatprep.subr.mxu0 %v7821
    %8156 = vmatpush1.msra.mxu0 %v7820
    %8157 = vmatprep.subr.mxu0 %v7825
    %8158 = vmatpush1.msra.mxu0 %v7824
    %8159 = vmatprep.subr.mxu0 %v7829
    %8160 = vmatpush1.msra.mxu0 %v7828
    %8161 = vmatprep.subr.mxu0 %v7833
    %8162 = vmatpush1.msra.mxu0 %v7832
    %8163 = vmatprep.subr.mxu0 %v7837
    %8164 = vmatpush1.msra.mxu0 %v7836
    %8165 = vmatprep.subr.mxu0 %v7841
    %8166 = vmatpush1.msra.mxu0 %v7840
    %8167 = vmatprep.subr.mxu0 %v7845
    %8168 = vmatpush1.msra.mxu0 %v7844
    %8169 = vmatprep.subr.mxu0 %v7849
    %8170 = vmatpush1.msra.mxu0 %v7848
    %8171 = vmatprep.subr.mxu0 %v7853
    %8172 = vmatpush1.msra.mxu0 %v7852
    %8173 = vmatprep.subr.mxu0 %v7857
    %8174 = vmatpush1.msra.mxu0 %v7856
    %8175 = vmatprep.subr.mxu0 %v7861
    %8176 = vmatpush1.msra.mxu0 %v7860
    %8177 = vmatprep.subr.mxu0 %v7865
    %8178 = vmatpush1.msra.mxu0 %v7864
    %8179 = vmatprep.subr.mxu0 %v7869
    %8180 = vmatpush1.msra.mxu0 %v7868
    %8181 = vmatprep.subr.mxu0 %v7873
    %8182 = vmatpush1.msra.mxu0 %v7872
    %8183 = vmatprep.subr.mxu0 %v7877
    %8184 = vmatpush1.msra.mxu0 %v7876
    %8185 = vmatprep.subr.mxu0 %v7881
    %8186 = vmatpush1.msra.mxu0 %v7880
    %8187 = vmatprep.subr.mxu0 %v7885
    %8188 = vmatpush1.msra.mxu0 %v7884
    %8189 = vmatprep.subr.mxu0 %v7889
    %8190 = vmatpush1.msra.mxu0 %v7888
    %8191 = vmatprep.mubr.f32.mxu0 %v7375
    %8192 = vmatmul.mubr.f32.gmra.mrb[0].mxu0 %v7370
    %v8193 = vpop.f32.mrb[0].mxu0
    %v8194 = vadd.f32 %v8123, %v8193
    %v8195 = vpop.f32.mrb[0].mxu0
    %v8196 = vadd.f32 %v8125, %v8195
    %8197 = vdwg.mxu0
    %8198 = vmatprep.subr.mxu0 %v7383
    %8199 = vmatpush1.msra.mxu0 %v7382
    %8200 = vmatprep.subr.mxu0 %v7387
    %8201 = vmatpush1.msra.mxu0 %v7386
    %8202 = vmatprep.subr.mxu0 %v7391
    %8203 = vmatpush1.msra.mxu0 %v7390
    %8204 = vmatprep.subr.mxu0 %v7395
    %8205 = vmatpush1.msra.mxu0 %v7394
    %8206 = vmatprep.subr.mxu0 %v7399
    %8207 = vmatpush1.msra.mxu0 %v7398
    %8208 = vmatprep.subr.mxu0 %v7403
    %8209 = vmatpush1.msra.mxu0 %v7402
    %8210 = vmatprep.subr.mxu0 %v7407
    %8211 = vmatpush1.msra.mxu0 %v7406
    %8212 = vmatprep.subr.mxu0 %v7411
    %8213 = vmatpush1.msra.mxu0 %v7410
    %8214 = vmatprep.subr.mxu0 %v7415
    %8215 = vmatpush1.msra.mxu0 %v7414
    %8216 = vmatprep.subr.mxu0 %v7419
    %8217 = vmatpush1.msra.mxu0 %v7418
    %8218 = vmatprep.subr.mxu0 %v7423
    %8219 = vmatpush1.msra.mxu0 %v7422
    %8220 = vmatprep.subr.mxu0 %v7427
    %8221 = vmatpush1.msra.mxu0 %v7426
    %8222 = vmatprep.subr.mxu0 %v7431
    %8223 = vmatpush1.msra.mxu0 %v7430
    %8224 = vmatprep.subr.mxu0 %v7435
    %8225 = vmatpush1.msra.mxu0 %v7434
    %8226 = vmatprep.subr.mxu0 %v7439
    %8227 = vmatpush1.msra.mxu0 %v7438
    %8228 = vmatprep.subr.mxu0 %v7443
    %8229 = vmatpush1.msra.mxu0 %v7442
    %8230 = vmatprep.subr.mxu0 %v7447
    %8231 = vmatpush1.msra.mxu0 %v7446
    %8232 = vmatprep.subr.mxu0 %v7451
    %8233 = vmatpush1.msra.mxu0 %v7450
    %8234 = vmatprep.subr.mxu0 %v7455
    %8235 = vmatpush1.msra.mxu0 %v7454
    %8236 = vmatprep.subr.mxu0 %v7459
    %8237 = vmatpush1.msra.mxu0 %v7458
    %8238 = vmatprep.subr.mxu0 %v7463
    %8239 = vmatpush1.msra.mxu0 %v7462
    %8240 = vmatprep.subr.mxu0 %v7467
    %8241 = vmatpush1.msra.mxu0 %v7466
    %8242 = vmatprep.subr.mxu0 %v7471
    %8243 = vmatpush1.msra.mxu0 %v7470
    %8244 = vmatprep.subr.mxu0 %v7475
    %8245 = vmatpush1.msra.mxu0 %v7474
    %8246 = vmatprep.subr.mxu0 %v7479
    %8247 = vmatpush1.msra.mxu0 %v7478
    %8248 = vmatprep.subr.mxu0 %v7483
    %8249 = vmatpush1.msra.mxu0 %v7482
    %8250 = vmatprep.subr.mxu0 %v7487
    %8251 = vmatpush1.msra.mxu0 %v7486
    %8252 = vmatprep.subr.mxu0 %v7491
    %8253 = vmatpush1.msra.mxu0 %v7490
    %8254 = vmatprep.subr.mxu0 %v7495
    %8255 = vmatpush1.msra.mxu0 %v7494
    %8256 = vmatprep.subr.mxu0 %v7499
    %8257 = vmatpush1.msra.mxu0 %v7498
    %8258 = vmatprep.subr.mxu0 %v7503
    %8259 = vmatpush1.msra.mxu0 %v7502
    %8260 = vmatprep.subr.mxu0 %v7507
    %8261 = vmatpush1.msra.mxu0 %v7506
    %8262 = vmatprep.mubr.f32.mxu0 %v7345
    %8263 = vmatmul.mubr.f32.gmra.mrb[0].mxu0 %v7340
    %v8264 = vpop.f32.mrb[0].mxu0
    %v8265 = vadd.f32 %v7905, %v8264
    %v8266 = vpop.f32.mrb[0].mxu0
    %v8267 = vadd.f32 %v7909, %v8266
    %8268 = vdwg.mxu0
    %8269 = vmatprep.subr.mxu0 %v7511
    %8270 = vmatpush1.msra.mxu0 %v7510
    %8271 = vmatprep.subr.mxu0 %v7515
    %8272 = vmatpush1.msra.mxu0 %v7514
    %8273 = vmatprep.subr.mxu0 %v7519
    %8274 = vmatpush1.msra.mxu0 %v7518
    %8275 = vmatprep.subr.mxu0 %v7523
    %8276 = vmatpush1.msra.mxu0 %v7522
    %8277 = vmatprep.subr.mxu0 %v7527
    %8278 = vmatpush1.msra.mxu0 %v7526
    %8279 = vmatprep.subr.mxu0 %v7531
    %8280 = vmatpush1.msra.mxu0 %v7530
    %8281 = vmatprep.subr.mxu0 %v7535
    %8282 = vmatpush1.msra.mxu0 %v7534
    %8283 = vmatprep.subr.mxu0 %v7539
    %8284 = vmatpush1.msra.mxu0 %v7538
    %8285 = vmatprep.subr.mxu0 %v7543
    %8286 = vmatpush1.msra.mxu0 %v7542
    %8287 = vmatprep.subr.mxu0 %v7547
    %8288 = vmatpush1.msra.mxu0 %v7546
    %8289 = vmatprep.subr.mxu0 %v7551
    %8290 = vmatpush1.msra.mxu0 %v7550
    %8291 = vmatprep.subr.mxu0 %v7555
    %8292 = vmatpush1.msra.mxu0 %v7554
    %8293 = vmatprep.subr.mxu0 %v7559
    %8294 = vmatpush1.msra.mxu0 %v7558
    %8295 = vmatprep.subr.mxu0 %v7563
    %8296 = vmatpush1.msra.mxu0 %v7562
    %8297 = vmatprep.subr.mxu0 %v7567
    %8298 = vmatpush1.msra.mxu0 %v7566
    %8299 = vmatprep.subr.mxu0 %v7571
    %8300 = vmatpush1.msra.mxu0 %v7570
    %8301 = vmatprep.subr.mxu0 %v7575
    %8302 = vmatpush1.msra.mxu0 %v7574
    %8303 = vmatprep.subr.mxu0 %v7579
    %8304 = vmatpush1.msra.mxu0 %v7578
    %8305 = vmatprep.subr.mxu0 %v7583
    %8306 = vmatpush1.msra.mxu0 %v7582
    %8307 = vmatprep.subr.mxu0 %v7587
    %8308 = vmatpush1.msra.mxu0 %v7586
    %8309 = vmatprep.subr.mxu0 %v7591
    %8310 = vmatpush1.msra.mxu0 %v7590
    %8311 = vmatprep.subr.mxu0 %v7595
    %8312 = vmatpush1.msra.mxu0 %v7594
    %8313 = vmatprep.subr.mxu0 %v7599
    %8314 = vmatpush1.msra.mxu0 %v7598
    %8315 = vmatprep.subr.mxu0 %v7603
    %8316 = vmatpush1.msra.mxu0 %v7602
    %8317 = vmatprep.subr.mxu0 %v7607
    %8318 = vmatpush1.msra.mxu0 %v7606
    %8319 = vmatprep.subr.mxu0 %v7611
    %8320 = vmatpush1.msra.mxu0 %v7610
    %8321 = vmatprep.subr.mxu0 %v7615
    %8322 = vmatpush1.msra.mxu0 %v7614
    %8323 = vmatprep.subr.mxu0 %v7619
    %8324 = vmatpush1.msra.mxu0 %v7618
    %8325 = vmatprep.subr.mxu0 %v7623
    %8326 = vmatpush1.msra.mxu0 %v7622
    %8327 = vmatprep.subr.mxu0 %v7627
    %8328 = vmatpush1.msra.mxu0 %v7626
    %8329 = vmatprep.subr.mxu0 %v7631
    %8330 = vmatpush1.msra.mxu0 %v7630
    %8331 = vmatprep.subr.mxu0 %v7635
    %8332 = vmatpush1.msra.mxu0 %v7634
    %8333 = vmatprep.mubr.f32.mxu0 %v7355
    %8334 = vmatmul.mubr.f32.gmra.mrb[0].mxu0 %v7350
    %v8335 = vpop.f32.mrb[0].mxu0
    %v8336 = vadd.f32 %v8265, %v8335
    %v8337 = vpop.f32.mrb[0].mxu0
    %v8338 = vadd.f32 %v8267, %v8337
    %8339 = vdwg.mxu0
    %8340 = vmatprep.subr.mxu0 %v7639
    %8341 = vmatpush1.msra.mxu0 %v7638
    %8342 = vmatprep.subr.mxu0 %v7643
    %8343 = vmatpush1.msra.mxu0 %v7642
    %8344 = vmatprep.subr.mxu0 %v7647
    %8345 = vmatpush1.msra.mxu0 %v7646
    %8346 = vmatprep.subr.mxu0 %v7651
    %8347 = vmatpush1.msra.mxu0 %v7650
    %8348 = vmatprep.subr.mxu0 %v7655
    %8349 = vmatpush1.msra.mxu0 %v7654
    %8350 = vmatprep.subr.mxu0 %v7659
    %8351 = vmatpush1.msra.mxu0 %v7658
    %8352 = vmatprep.subr.mxu0 %v7663
    %8353 = vmatpush1.msra.mxu0 %v7662
    %8354 = vmatprep.subr.mxu0 %v7667
    %8355 = vmatpush1.msra.mxu0 %v7666
    %8356 = vmatprep.subr.mxu0 %v7671
    %8357 = vmatpush1.msra.mxu0 %v7670
    %8358 = vmatprep.subr.mxu0 %v7675
    %8359 = vmatpush1.msra.mxu0 %v7674
    %8360 = vmatprep.subr.mxu0 %v7679
    %8361 = vmatpush1.msra.mxu0 %v7678
    %8362 = vmatprep.subr.mxu0 %v7683
    %8363 = vmatpush1.msra.mxu0 %v7682
    %8364 = vmatprep.subr.mxu0 %v7687
    %8365 = vmatpush1.msra.mxu0 %v7686
    %8366 = vmatprep.subr.mxu0 %v7691
    %8367 = vmatpush1.msra.mxu0 %v7690
    %8368 = vmatprep.subr.mxu0 %v7695
    %8369 = vmatpush1.msra.mxu0 %v7694
    %8370 = vmatprep.subr.mxu0 %v7699
    %8371 = vmatpush1.msra.mxu0 %v7698
    %8372 = vmatprep.subr.mxu0 %v7703
    %8373 = vmatpush1.msra.mxu0 %v7702
    %8374 = vmatprep.subr.mxu0 %v7707
    %8375 = vmatpush1.msra.mxu0 %v7706
    %8376 = vmatprep.subr.mxu0 %v7711
    %8377 = vmatpush1.msra.mxu0 %v7710
    %8378 = vmatprep.subr.mxu0 %v7715
    %8379 = vmatpush1.msra.mxu0 %v7714
    %8380 = vmatprep.subr.mxu0 %v7719
    %8381 = vmatpush1.msra.mxu0 %v7718
    %8382 = vmatprep.subr.mxu0 %v7723
    %8383 = vmatpush1.msra.mxu0 %v7722
    %8384 = vmatprep.subr.mxu0 %v7727
    %8385 = vmatpush1.msra.mxu0 %v7726
    %8386 = vmatprep.subr.mxu0 %v7731
    %8387 = vmatpush1.msra.mxu0 %v7730
    %8388 = vmatprep.subr.mxu0 %v7735
    %8389 = vmatpush1.msra.mxu0 %v7734
    %8390 = vmatprep.subr.mxu0 %v7739
    %8391 = vmatpush1.msra.mxu0 %v7738
    %8392 = vmatprep.subr.mxu0 %v7743
    %8393 = vmatpush1.msra.mxu0 %v7742
    %8394 = vmatprep.subr.mxu0 %v7747
    %8395 = vmatpush1.msra.mxu0 %v7746
    %8396 = vmatprep.subr.mxu0 %v7751
    %8397 = vmatpush1.msra.mxu0 %v7750
    %8398 = vmatprep.subr.mxu0 %v7755
    %8399 = vmatpush1.msra.mxu0 %v7754
    %8400 = vmatprep.subr.mxu0 %v7759
    %8401 = vmatpush1.msra.mxu0 %v7758
    %8402 = vmatprep.subr.mxu0 %v7763
    %8403 = vmatpush1.msra.mxu0 %v7762
    %8404 = vmatprep.mubr.f32.mxu0 %v7365
    %8405 = vmatmul.mubr.f32.gmra.mrb[0].mxu0 %v7360
    %v8406 = vpop.f32.mrb[0].mxu0
    %v8407 = vadd.f32 %v8336, %v8406
    %v8408 = vpop.f32.mrb[0].mxu0
    %v8409 = vadd.f32 %v8338, %v8408
    %8410 = vdwg.mxu0
    %8411 = vmatprep.subr.mxu0 %v7767
    %8412 = vmatpush1.msra.mxu0 %v7766
    %8413 = vmatprep.subr.mxu0 %v7771
    %8414 = vmatpush1.msra.mxu0 %v7770
    %8415 = vmatprep.subr.mxu0 %v7775
    %8416 = vmatpush1.msra.mxu0 %v7774
    %8417 = vmatprep.subr.mxu0 %v7779
    %8418 = vmatpush1.msra.mxu0 %v7778
    %8419 = vmatprep.subr.mxu0 %v7783
    %8420 = vmatpush1.msra.mxu0 %v7782
    %8421 = vmatprep.subr.mxu0 %v7787
    %8422 = vmatpush1.msra.mxu0 %v7786
    %8423 = vmatprep.subr.mxu0 %v7791
    %8424 = vmatpush1.msra.mxu0 %v7790
    %8425 = vmatprep.subr.mxu0 %v7795
    %8426 = vmatpush1.msra.mxu0 %v7794
    %8427 = vmatprep.subr.mxu0 %v7799
    %8428 = vmatpush1.msra.mxu0 %v7798
    %8429 = vmatprep.subr.mxu0 %v7803
    %8430 = vmatpush1.msra.mxu0 %v7802
    %8431 = vmatprep.subr.mxu0 %v7807
    %8432 = vmatpush1.msra.mxu0 %v7806
    %8433 = vmatprep.subr.mxu0 %v7811
    %8434 = vmatpush1.msra.mxu0 %v7810
    %8435 = vmatprep.subr.mxu0 %v7815
    %8436 = vmatpush1.msra.mxu0 %v7814
    %8437 = vmatprep.subr.mxu0 %v7819
    %8438 = vmatpush1.msra.mxu0 %v7818
    %8439 = vmatprep.subr.mxu0 %v7823
    %8440 = vmatpush1.msra.mxu0 %v7822
    %8441 = vmatprep.subr.mxu0 %v7827
    %8442 = vmatpush1.msra.mxu0 %v7826
    %8443 = vmatprep.subr.mxu0 %v7831
    %8444 = vmatpush1.msra.mxu0 %v7830
    %8445 = vmatprep.subr.mxu0 %v7835
    %8446 = vmatpush1.msra.mxu0 %v7834
    %8447 = vmatprep.subr.mxu0 %v7839
    %8448 = vmatpush1.msra.mxu0 %v7838
    %8449 = vmatprep.subr.mxu0 %v7843
    %8450 = vmatpush1.msra.mxu0 %v7842
    %8451 = vmatprep.subr.mxu0 %v7847
    %8452 = vmatpush1.msra.mxu0 %v7846
    %8453 = vmatprep.subr.mxu0 %v7851
    %8454 = vmatpush1.msra.mxu0 %v7850
    %8455 = vmatprep.subr.mxu0 %v7855
    %8456 = vmatpush1.msra.mxu0 %v7854
    %8457 = vmatprep.subr.mxu0 %v7859
    %8458 = vmatpush1.msra.mxu0 %v7858
    %8459 = vmatprep.subr.mxu0 %v7863
    %8460 = vmatpush1.msra.mxu0 %v7862
    %8461 = vmatprep.subr.mxu0 %v7867
    %8462 = vmatpush1.msra.mxu0 %v7866
    %8463 = vmatprep.subr.mxu0 %v7871
    %8464 = vmatpush1.msra.mxu0 %v7870
    %8465 = vmatprep.subr.mxu0 %v7875
    %8466 = vmatpush1.msra.mxu0 %v7874
    %8467 = vmatprep.subr.mxu0 %v7879
    %8468 = vmatpush1.msra.mxu0 %v7878
    %8469 = vmatprep.subr.mxu0 %v7883
    %8470 = vmatpush1.msra.mxu0 %v7882
    %8471 = vmatprep.subr.mxu0 %v7887
    %8472 = vmatpush1.msra.mxu0 %v7886
    %8473 = vmatprep.subr.mxu0 %v7891
    %8474 = vmatpush1.msra.mxu0 %v7890
    %8475 = vmatprep.mubr.f32.mxu0 %v7375
    %8476 = vmatmul.mubr.f32.gmra.mrb[0].mxu0 %v7370
    %v8477 = vpop.f32.mrb[0].mxu0
    %v8478 = vadd.f32 %v8407, %v8477
    %v8479 = vpop.f32.mrb[0].mxu0
    %v8480 = vadd.f32 %v8409, %v8479
    %8481 = vdwg.mxu0
    %v8482 = vmax.f32 %v8194, 0.0
    %v8483 = vmax.f32 %v8196, 0.0
    %v8484 = vmax.f32 %v8478, 0.0
    %v8485 = vmax.f32 %v8480, 0.0
    %v8486 = vld [vmem:[%s8] sm:$0xff]
    %v8487 = vld [vmem:[%s8 + $0x8] sm:$0xff]
    %v8488 = vld [vmem:[%s8 + $0x10] sm:$0xff]
    %v8489 = vld [vmem:[%s8 + $0x18] sm:$0xff]
    %v8490 = vld [vmem:[%s8 + $0x20] sm:$0xff]
    %v8491 = vld [vmem:[%s8 + $0x28] sm:$0xff]
    %v8492 = vld [vmem:[%s8 + $0x30] sm:$0xff]
    %v8493 = vld [vmem:[%s8 + $0x38] sm:$0xff]
    %v8494 = vld [vmem:[%s8 + $0x40] sm:$0xff]
    %v8495 = vld [vmem:[%s8 + $0x48] sm:$0xff]
    %v8496 = vld [vmem:[%s8 + $0x50] sm:$0xff]
    %v8497 = vld [vmem:[%s8 + $0x58] sm:$0xff]
    %v8498 = vld [vmem:[%s8 + $0x60] sm:$0xff]
    %v8499 = vld [vmem:[%s8 + $0x68] sm:$0xff]
    %v8500 = vld [vmem:[%s8 + $0x70] sm:$0xff]
    %v8501 = vld [vmem:[%s8 + $0x78] sm:$0xff]
    %v8502 = vld [vmem:[%s8 + $0x80] sm:$0xff]
    %v8503 = vld [vmem:[%s8 + $0x88] sm:$0xff]
    %v8504 = vld [vmem:[%s8 + $0x90] sm:$0xff]
    %v8505 = vld [vmem:[%s8 + $0x98] sm:$0xff]
    %v8506 = vld [vmem:[%s8 + $0xa0] sm:$0xff]
    %v8507 = vld [vmem:[%s8 + $0xa8] sm:$0xff]
    %v8508 = vld [vmem:[%s8 + $0xb0] sm:$0xff]
    %v8509 = vld [vmem:[%s8 + $0xb8] sm:$0xff]
    %v8510 = vld [vmem:[%s8 + $0xc0] sm:$0xff]
    %v8511 = vld [vmem:[%s8 + $0xc8] sm:$0xff]
    %v8512 = vld [vmem:[%s8 + $0xd0] sm:$0xff]
    %v8513 = vld [vmem:[%s8 + $0xd8] sm:$0xff]
    %v8514 = vld [vmem:[%s8 + $0xe0] sm:$0xff]
    %v8515 = vld [vmem:[%s8 + $0xe8] sm:$0xff]
    %v8516 = vld [vmem:[%s8 + $0xf0] sm:$0xff]
    %v8517 = vld [vmem:[%s8 + $0xf8] sm:$0xff]
    %v8518 = vld [vmem:[%s8 + $0x100] sm:$0xff]
    %v8519 = vld [vmem:[%s8 + $0x108] sm:$0xff]
    %v8520 = vld [vmem:[%s8 + $0x110] sm:$0xff]
    %v8521 = vld [vmem:[%s8 + $0x118] sm:$0xff]
    %v8522 = vld [vmem:[%s8 + $0x120] sm:$0xff]
    %v8523 = vld [vmem:[%s8 + $0x128] sm:$0xff]
    %v8524 = vld [vmem:[%s8 + $0x130] sm:$0xff]
    %v8525 = vld [vmem:[%s8 + $0x138] sm:$0xff]
    %v8526 = vld [vmem:[%s8 + $0x140] sm:$0xff]
    %v8527 = vld [vmem:[%s8 + $0x148] sm:$0xff]
    %v8528 = vld [vmem:[%s8 + $0x150] sm:$0xff]
    %v8529 = vld [vmem:[%s8 + $0x158] sm:$0xff]
    %v8530 = vld [vmem:[%s8 + $0x160] sm:$0xff]
    %v8531 = vld [vmem:[%s8 + $0x168] sm:$0xff]
    %v8532 = vld [vmem:[%s8 + $0x170] sm:$0xff]
    %v8533 = vld [vmem:[%s8 + $0x178] sm:$0xff]
    %v8534 = vld [vmem:[%s8 + $0x180] sm:$0xff]
    %v8535 = vld [vmem:[%s8 + $0x188] sm:$0xff]
    %v8536 = vld [vmem:[%s8 + $0x190] sm:$0xff]
    %v8537 = vld [vmem:[%s8 + $0x198] sm:$0xff]
    %v8538 = vld [vmem:[%s8 + $0x1a0] sm:$0xff]
    %v8539 = vld [vmem:[%s8 + $0x1a8] sm:$0xff]
    %v8540 = vld [vmem:[%s8 + $0x1b0] sm:$0xff]
    %v8541 = vld [vmem:[%s8 + $0x1b8] sm:$0xff]
    %v8542 = vld [vmem:[%s8 + $0x1c0] sm:$0xff]
    %v8543 = vld [vmem:[%s8 + $0x1c8] sm:$0xff]
    %v8544 = vld [vmem:[%s8 + $0x1d0] sm:$0xff]
    %v8545 = vld [vmem:[%s8 + $0x1d8] sm:$0xff]
    %v8546 = vld [vmem:[%s8 + $0x1e0] sm:$0xff]
    %v8547 = vld [vmem:[%s8 + $0x1e8] sm:$0xff]
    %v8548 = vld [vmem:[%s8 + $0x1f0] sm:$0xff]
    %v8549 = vld [vmem:[%s8 + $0x1f8] sm:$0xff]
    %v8550 = vld [vmem:[%s9] sm:$0x1]
    %v8552 = vlaneseq
    %v8553 = vshrl.u32 %v8552, 7
    %v8554 = vsub.s32 0, %v8553
    %v8555 = vrot.slane %v8550, %v8554
    %8557 = vmatprep.subr.mxu0 0.0
    %8558 = vmatpush1.msra.mxu0 %v8486
    %8559 = vmatprep.subr.mxu0 0.0
    %8560 = vmatpush1.msra.mxu0 %v8487
    %8561 = vmatprep.subr.mxu0 0.0
    %8562 = vmatpush1.msra.mxu0 %v8488
    %8563 = vmatprep.subr.mxu0 0.0
    %8564 = vmatpush1.msra.mxu0 %v8489
    %8565 = vmatprep.subr.mxu0 0.0
    %8566 = vmatpush1.msra.mxu0 %v8490
    %8567 = vmatprep.subr.mxu0 0.0
    %8568 = vmatpush1.msra.mxu0 %v8491
    %8569 = vmatprep.subr.mxu0 0.0
    %8570 = vmatpush1.msra.mxu0 %v8492
    %8571 = vmatprep.subr.mxu0 0.0
    %8572 = vmatpush1.msra.mxu0 %v8493
    %8573 = vmatprep.subr.mxu0 0.0
    %8574 = vmatpush1.msra.mxu0 %v8494
    %8575 = vmatprep.subr.mxu0 0.0
    %8576 = vmatpush1.msra.mxu0 %v8495
    %8577 = vmatprep.subr.mxu0 0.0
    %8578 = vmatpush1.msra.mxu0 %v8496
    %8579 = vmatprep.subr.mxu0 0.0
    %8580 = vmatpush1.msra.mxu0 %v8497
    %8581 = vmatprep.subr.mxu0 0.0
    %8582 = vmatpush1.msra.mxu0 %v8498
    %8583 = vmatprep.subr.mxu0 0.0
    %8584 = vmatpush1.msra.mxu0 %v8499
    %8585 = vmatprep.subr.mxu0 0.0
    %8586 = vmatpush1.msra.mxu0 %v8500
    %8587 = vmatprep.subr.mxu0 0.0
    %8588 = vmatpush1.msra.mxu0 %v8501
    %8589 = vmatprep.subr.mxu0 0.0
    %8590 = vmatpush1.msra.mxu0 %v8502
    %8591 = vmatprep.subr.mxu0 0.0
    %8592 = vmatpush1.msra.mxu0 %v8503
    %8593 = vmatprep.subr.mxu0 0.0
    %8594 = vmatpush1.msra.mxu0 %v8504
    %8595 = vmatprep.subr.mxu0 0.0
    %8596 = vmatpush1.msra.mxu0 %v8505
    %8597 = vmatprep.subr.mxu0 0.0
    %8598 = vmatpush1.msra.mxu0 %v8506
    %8599 = vmatprep.subr.mxu0 0.0
    %8600 = vmatpush1.msra.mxu0 %v8507
    %8601 = vmatprep.subr.mxu0 0.0
    %8602 = vmatpush1.msra.mxu0 %v8508
    %8603 = vmatprep.subr.mxu0 0.0
    %8604 = vmatpush1.msra.mxu0 %v8509
    %8605 = vmatprep.subr.mxu0 0.0
    %8606 = vmatpush1.msra.mxu0 %v8510
    %8607 = vmatprep.subr.mxu0 0.0
    %8608 = vmatpush1.msra.mxu0 %v8511
    %8609 = vmatprep.subr.mxu0 0.0
    %8610 = vmatpush1.msra.mxu0 %v8512
    %8611 = vmatprep.subr.mxu0 0.0
    %8612 = vmatpush1.msra.mxu0 %v8513
    %8613 = vmatprep.subr.mxu0 0.0
    %8614 = vmatpush1.msra.mxu0 %v8514
    %8615 = vmatprep.subr.mxu0 0.0
    %8616 = vmatpush1.msra.mxu0 %v8515
    %8617 = vmatprep.subr.mxu0 0.0
    %8618 = vmatpush1.msra.mxu0 %v8516
    %8619 = vmatprep.subr.mxu0 0.0
    %8620 = vmatpush1.msra.mxu0 %v8517
    %8621 = vmatprep.mubr.f32.mxu0 %v8483
    %8622 = vmatmul.mubr.f32.gmra.mrb[0].mxu0 %v8482
    %v8623 = vpop.f32.mrb[0].mxu0
    %v8624 = vadd.f32 %v8555, %v8623
    %v8625 = vpop.f32.mrb[0].mxu0
    %8626 = vdwg.mxu0
    %8627 = vmatprep.subr.mxu0 0.0
    %8628 = vmatpush1.msra.mxu0 %v8518
    %8629 = vmatprep.subr.mxu0 0.0
    %8630 = vmatpush1.msra.mxu0 %v8519
    %8631 = vmatprep.subr.mxu0 0.0
    %8632 = vmatpush1.msra.mxu0 %v8520
    %8633 = vmatprep.subr.mxu0 0.0
    %8634 = vmatpush1.msra.mxu0 %v8521
    %8635 = vmatprep.subr.mxu0 0.0
    %8636 = vmatpush1.msra.mxu0 %v8522
    %8637 = vmatprep.subr.mxu0 0.0
    %8638 = vmatpush1.msra.mxu0 %v8523
    %8639 = vmatprep.subr.mxu0 0.0
    %8640 = vmatpush1.msra.mxu0 %v8524
    %8641 = vmatprep.subr.mxu0 0.0
    %8642 = vmatpush1.msra.mxu0 %v8525
    %8643 = vmatprep.subr.mxu0 0.0
    %8644 = vmatpush1.msra.mxu0 %v8526
    %8645 = vmatprep.subr.mxu0 0.0
    %8646 = vmatpush1.msra.mxu0 %v8527
    %8647 = vmatprep.subr.mxu0 0.0
    %8648 = vmatpush1.msra.mxu0 %v8528
    %8649 = vmatprep.subr.mxu0 0.0
    %8650 = vmatpush1.msra.mxu0 %v8529
    %8651 = vmatprep.subr.mxu0 0.0
    %8652 = vmatpush1.msra.mxu0 %v8530
    %8653 = vmatprep.subr.mxu0 0.0
    %8654 = vmatpush1.msra.mxu0 %v8531
    %8655 = vmatprep.subr.mxu0 0.0
    %8656 = vmatpush1.msra.mxu0 %v8532
    %8657 = vmatprep.subr.mxu0 0.0
    %8658 = vmatpush1.msra.mxu0 %v8533
    %8659 = vmatprep.subr.mxu0 0.0
    %8660 = vmatpush1.msra.mxu0 %v8534
    %8661 = vmatprep.subr.mxu0 0.0
    %8662 = vmatpush1.msra.mxu0 %v8535
    %8663 = vmatprep.subr.mxu0 0.0
    %8664 = vmatpush1.msra.mxu0 %v8536
    %8665 = vmatprep.subr.mxu0 0.0
    %8666 = vmatpush1.msra.mxu0 %v8537
    %8667 = vmatprep.subr.mxu0 0.0
    %8668 = vmatpush1.msra.mxu0 %v8538
    %8669 = vmatprep.subr.mxu0 0.0
    %8670 = vmatpush1.msra.mxu0 %v8539
    %8671 = vmatprep.subr.mxu0 0.0
    %8672 = vmatpush1.msra.mxu0 %v8540
    %8673 = vmatprep.subr.mxu0 0.0
    %8674 = vmatpush1.msra.mxu0 %v8541
    %8675 = vmatprep.subr.mxu0 0.0
    %8676 = vmatpush1.msra.mxu0 %v8542
    %8677 = vmatprep.subr.mxu0 0.0
    %8678 = vmatpush1.msra.mxu0 %v8543
    %8679 = vmatprep.subr.mxu0 0.0
    %8680 = vmatpush1.msra.mxu0 %v8544
    %8681 = vmatprep.subr.mxu0 0.0
    %8682 = vmatpush1.msra.mxu0 %v8545
    %8683 = vmatprep.subr.mxu0 0.0
    %8684 = vmatpush1.msra.mxu0 %v8546
    %8685 = vmatprep.subr.mxu0 0.0
    %8686 = vmatpush1.msra.mxu0 %v8547
    %8687 = vmatprep.subr.mxu0 0.0
    %8688 = vmatpush1.msra.mxu0 %v8548
    %8689 = vmatprep.subr.mxu0 0.0
    %8690 = vmatpush1.msra.mxu0 %v8549
    %8691 = vmatprep.mubr.f32.mxu0 %v8485
    %8692 = vmatmul.mubr.f32.gmra.mrb[0].mxu0 %v8484
    %v8693 = vpop.f32.mrb[0].mxu0
    %v8694 = vadd.f32 %v8624, %v8693
    %v8695 = vpop.f32.mrb[0].mxu0
    %8696 = vdwg.mxu0
    %vm8697 = vcmask 154624
    %v8698 = vsel %vm8697, %v8694, -inf
    %8699 = vmax.xlane.f32.xlu0 %v8698
    %v8700 = vpop.xlane.xlu0 %8699
    %v8701 = vsub.f32 %v8694, %v8700
    %v8702 = vmul.f32 %v8701, 1.442695
    %v8703 = vpow.pop %v8702
    %v8704 = vsel %vm8697, %v8703, 0.0
    %8705 = vadd.xlane.f32.xlu0 %v8704
    %v8706 = vpop.xlane.xlu0 %8705
    %v8707 = vlog2.pop %v8706
    %v8708 = vmul.f32 %v8707, 0.6931472
    %v8709 = vadd.f32 %v8700, %v8708
    %v8710 = vsub.f32 %v8694, %v8709
    %vm8711 = vcmask 148480
    %8712 = vst.msk [vmem:[#allocation6] sm:$0x3] %vm8711, %v8710
    // Predicated region
    $region102: #{net_forward.1} parent=1 // pred_check
      _
    $region103: #{net_forward.1} parent=1 // pred_check_branch
      %8714 = sbr.rel (0) target = $region105
    $region104: #{net_forward.1} parent=1 // pred_region
      %s8716 = ssub.s32 32, 32
      %8717 = vsyncadd [#allocation7], %s8716
      %s8719 = sshll.u32 [#allocation6], 4
      %s8720 = int_to_ptr.vmem [resolvable:$true] %s8719
      %8722 = dma.vmem_to_hbm [thread:$0]  %s8720, 32, %s10, [#allocation7]
    $region105: #{net_forward.1} parent=1 // pred_fallthru
      _
    // Predicated region
    $region106: #{net_forward.1} parent=1 // pred_check
      _
    $region107: #{net_forward.1} parent=1 // pred_check_branch
      %8724 = sbr.rel (0) target = $region109
    $region108: #{net_forward.1} parent=1 // pred_region
      %8725 = dma.done [#allocation7], 32
    $region109: #{net_forward.1} parent=1 // pred_fallthru
      _
    %8726 = vsyncpa [#allocation7], 1
  %8727 = vsyncmov [#allocation5]
  %s8728 = vpop.sfrf %8727
  %p8729 = scmp.eq.s32.totalorder %s8728, 0
  %p8730 = pneg %p8729
  %8732 = shalt.err (%p8730)
  %s8733 = scalar_lea.sflag [#allocation5], 1
  %8734 = vsyncmov %s8733
  %s8735 = vpop.sfrf %8734
  %p8736 = scmp.eq.s32.totalorder %s8735, 0
  %p8737 = pneg %p8736
  %8739 = shalt.err (%p8737)

</llo_original>
